<compile_context>
chip_gen: v7x
topology: tpu7x:2x2x1
jax: 0.10.0
libtpu: 0.0.40
codegen_flags: <defaults>
</compile_context>

<pallas_src>
import jax
import jax.numpy as jnp
import numpy as np
from jax.experimental import pallas as pl
from jax.experimental.pallas import tpu as pltpu


def _nrde_kernel(initial_ref, logsig_ref,
                 wi_ref, bi_ref,
                 w1_ref, b1_ref, w2_ref, b2_ref, w3_ref, b3_ref, w4_ref, b4_ref,
                 e_ref,
                 wf_ref, bf_ref,
                 out_ref):
    f32 = jnp.float32

    # initial_linear: h0 = initial @ Wi + bi        -> [BN, H]
    h0 = (jnp.dot(initial_ref[...], wi_ref[...], preferred_element_type=f32)
          + bi_ref[...])

    # Small weights hoisted once; E read per-use inside the vector field to
    # keep live vreg pressure down across the (unrolled) time loop.
    W1, b1 = w1_ref[...], b1_ref[...]
    W2, b2 = w2_ref[...], b2_ref[...]
    W3, b3 = w3_ref[...], b3_ref[...]
    W4, b4 = w4_ref[...], b4_ref[...]

    def vector_field(h, s_tiled):
        # _NRDEFunc MLP -> A (row-major [H, D_pad] groups), then the bmm with
        # s becomes elementwise-mul + grouped reduction via the dense E.
        x = jnp.maximum(jnp.dot(h, W1, preferred_element_type=f32) + b1, 0.0)
        x = jnp.maximum(jnp.dot(x, W2, preferred_element_type=f32) + b2, 0.0)
        x = jnp.tanh(jnp.dot(x, W3, preferred_element_type=f32) + b3)
        A = jnp.dot(x, W4, preferred_element_type=f32) + b4     # [BN, H*D_pad]
        # k[n, h] = sum_d A[n, h*D_pad + d] * s[n, d]
        return jnp.dot(A * s_tiled, e_ref[...], preferred_element_type=f32)

    num_steps = logsig_ref.shape[0]          # == L + 1 (last slice duplicated)

    def body(i, h):
        s_tiled = logsig_ref[i]              # [BN, H*D_pad], leading-axis load
        k1 = vector_field(h, s_tiled)
        k2 = vector_field(h + 0.5 * k1, s_tiled)
        return h + k2

    h_final = jax.lax.fori_loop(0, num_steps, body, h0, unroll=True)

    # final_linear
    out_ref[...] = (jnp.dot(h_final, wf_ref[...], preferred_element_type=f32)
                    + bf_ref[...])


def neural_rde_forward(initial, logsig, params, *, batch_block=128):
    """initial: [N, initial_dim], logsig: [N, L, logsig_dim] -> [N, output_dim]."""
    wi, bi, w1, b1, w2, b2, w3, b3, w4, b4, wf, bf = params
    f32 = jnp.float32

    N, L, D = logsig.shape
    assert L >= 1, "NeuralRDE requires at least one logsignature piece."
    initial_dim = initial.shape[1]
    H = wi.shape[1]
    hh = w4.shape[0]
    out_dim = wf.shape[1]

    # ---- pad the logsig dimension so each H-group is vreg friendly --------
    D_pad = max(8, ((D + 7) // 8) * 8)
    HD_pad = H * D_pad

    # W4 / b4: layout column h*D_pad + d ; padded columns are exact zeros.
    w4_p = jnp.pad(w4.astype(f32).reshape(hh, H, D),
                   ((0, 0), (0, 0), (0, D_pad - D))).reshape(hh, HD_pad)
    b4_p = jnp.pad(b4.astype(f32).reshape(1, H, D),
                   ((0, 0), (0, 0), (0, D_pad - D))).reshape(1, HD_pad)

    # Grouped-reduction matrix: E[h*D_pad + d, h] = 1  (dense [HD_pad, H]).
    E = jnp.repeat(jnp.eye(H, dtype=f32), D_pad, axis=0)

    # ---- batch tiling ------------------------------------------------------
    BN = batch_block if N >= batch_block else ((N + 7) // 8) * 8
    N_pad = ((N + BN - 1) // BN) * BN

    initial_p = jnp.pad(initial.astype(f32), ((0, N_pad - N), (0, 0)))

    # ---- logsig: pad D, duplicate last piece, time-major, pad batch, tile --
    ls = jnp.pad(logsig.astype(f32), ((0, 0), (0, 0), (0, D_pad - D)))   # [N, L, D_pad]
    ls = jnp.concatenate([ls, ls[:, -1:, :]], axis=1)                    # [N, L+1, D_pad]
    ls = jnp.transpose(ls, (1, 0, 2))                                    # [L+1, N, D_pad]
    ls = jnp.pad(ls, ((0, 0), (0, N_pad - N), (0, 0)))                   # [L+1, N_pad, D_pad]
    # s_tiled[t, n, h*D_pad + d] = s[t, n, d]  (one fused materialization)
    logsig_tiled = jnp.tile(ls, (1, 1, H))                               # [L+1, N_pad, HD_pad]

    Lp1 = L + 1
    grid = (N_pad // BN,)

    def rep(shape):
        nd = len(shape)
        return pl.BlockSpec(shape, lambda i, _nd=nd: (0,) * _nd)

    in_specs = [
        pl.BlockSpec((BN, initial_dim), lambda i: (i, 0)),
        pl.BlockSpec((Lp1, BN, HD_pad), lambda i: (0, i, 0)),
        rep(wi.shape), rep(bi.shape),
        rep(w1.shape), rep(b1.shape),
        rep(w2.shape), rep(b2.shape),
        rep(w3.shape), rep(b3.shape),
        rep(w4_p.shape), rep(b4_p.shape),
        rep(E.shape),
        rep(wf.shape), rep(bf.shape),
    ]
    out_spec = pl.BlockSpec((BN, out_dim), lambda i: (i, 0))

    out_p = pl.pallas_call(
        _nrde_kernel,
        out_shape=jax.ShapeDtypeStruct((N_pad, out_dim), f32),
        grid_spec=pltpu.PrefetchScalarGridSpec(
            num_scalar_prefetch=0,
            grid=grid,
            in_specs=in_specs,
            out_specs=out_spec,
        ),
        compiler_params=pltpu.CompilerParams(
            dimension_semantics=("parallel",),
        ),
    )(initial_p, logsig_tiled,
      wi.astype(f32), bi.astype(f32),
      w1.astype(f32), b1.astype(f32),
      w2.astype(f32), b2.astype(f32),
      w3.astype(f32), b3.astype(f32),
      w4_p, b4_p, E,
      wf.astype(f32), bf.astype(f32))

    return out_p[:N]


def _linear_params(key, fan_in, fan_out):
    """PyTorch-style nn.Linear init (uniform +-1/sqrt(fan_in)), pre-transposed to [in, out]."""
    kw, kb = jax.random.split(key)
    bound = 1.0 / np.sqrt(fan_in)
    w = jax.random.uniform(kw, (fan_in, fan_out), jnp.float32, -bound, bound)
    b = jax.random.uniform(kb, (1, fan_out), jnp.float32, -bound, bound)
    return w, b


def reference_forward(initial, logsig, params):
    """Pure-JAX reference mirroring the PyTorch forward semantics."""
    wi, bi, w1, b1, w2, b2, w3, b3, w4, b4, wf, bf = params
    N, L, D = logsig.shape
    H = wi.shape[1]

    h = initial @ wi + bi

    def f(h, s):
        x = jax.nn.relu(h @ w1 + b1)
        x = jax.nn.relu(x @ w2 + b2)
        x = jnp.tanh(x @ w3 + b3)
        A = (x @ w4 + b4).reshape(N, H, D)       # view(-1, H, D)
        return jnp.einsum('nhd,nd->nh', A, s)    # bmm(A, s.unsqueeze(2)).squeeze(2)

    for i in range(L + 1):                        # grid [0..L+1], step 1 -> L+1 steps
        s = logsig[:, min(i, L - 1)]
        k1 = f(h, s)
        k2 = f(h + 0.5 * k1, s)
        h = h + k2
    return h @ wf + bf


if __name__ == "__main__":
    # Small shapes consistent with the module.
    N = 2             # batch
    initial_dim = 5
    logsig_dim = 7
    hidden_dim = 16
    hidden_hidden = 15
    output_dim = 3
    L = 8             # number of logsignature pieces (sequence length)

    root = jax.random.PRNGKey(0)
    keys = jax.random.split(root, 8)

    # Parameters (deterministic, matching nn.Module shapes).
    wi, bi = _linear_params(keys[0], initial_dim, hidden_dim)                 # initial_linear
    w1, b1 = _linear_params(keys[1], hidden_dim, hidden_hidden)               # func.net[0]
    w2, b2 = _linear_params(keys[2], hidden_hidden, hidden_hidden)            # func.net[2]
    w3, b3 = _linear_params(keys[3], hidden_hidden, hidden_hidden)            # func.net[4]
    w4, b4 = _linear_params(keys[4], hidden_hidden, hidden_dim * logsig_dim)  # func.net[6]
    wf, bf = _linear_params(keys[5], hidden_dim, output_dim)                  # final_linear
    params = (wi, bi, w1, b1, w2, b2, w3, b3, w4, b4, wf, bf)

    # Inputs.
    initial = jax.random.normal(keys[6], (N, initial_dim), jnp.float32)
    logsig = 0.1 * jax.random.normal(keys[7], (N, L, logsig_dim), jnp.float32)

    out = neural_rde_forward(initial, logsig, params)
    out = jax.block_until_ready(out)

    ref = reference_forward(initial, logsig, params)
    assert out.shape == (N, output_dim), out.shape
    np.testing.assert_allclose(np.asarray(out), np.asarray(ref), rtol=1e-4, atol=1e-4)

    print("KERNEL_OK")
</pallas_src>

<mosaic_0001>
module attributes {stable_mosaic.version = 11 : i64} {
  func.func @_nrde_kernel(%arg0: i32, %arg1: memref<8x5xf32, #tpu.memory_space<vmem>>, %arg2: memref<9x8x128xf32, #tpu.memory_space<vmem>>, %arg3: memref<5x16xf32, #tpu.memory_space<vmem>>, %arg4: memref<1x16xf32, #tpu.memory_space<vmem>>, %arg5: memref<16x15xf32, #tpu.memory_space<vmem>>, %arg6: memref<1x15xf32, #tpu.memory_space<vmem>>, %arg7: memref<15x15xf32, #tpu.memory_space<vmem>>, %arg8: memref<1x15xf32, #tpu.memory_space<vmem>>, %arg9: memref<15x15xf32, #tpu.memory_space<vmem>>, %arg10: memref<1x15xf32, #tpu.memory_space<vmem>>, %arg11: memref<15x128xf32, #tpu.memory_space<vmem>>, %arg12: memref<1x128xf32, #tpu.memory_space<vmem>>, %arg13: memref<128x16xf32, #tpu.memory_space<vmem>>, %arg14: memref<16x3xf32, #tpu.memory_space<vmem>>, %arg15: memref<1x3xf32, #tpu.memory_space<vmem>>, %arg16: memref<8x3xf32, #tpu.memory_space<vmem>>) attributes {dimension_semantics = [#tpu.dimension_semantics<parallel>], iteration_bounds = array<i64: 1>, scalar_prefetch = 0 : i64, scratch_operands = 0 : i64, tpu.core_type = #tpu.core_type<tc>, window_params = [{transform_indices = @transform_0, window_bounds = array<i64: 8, 5>}, {transform_indices = @transform_1, window_bounds = array<i64: 9, 8, 128>}, {pipeline_mode = #tpu.pipeline_mode<synchronous>, transform_indices = @transform_2, window_bounds = array<i64: 5, 16>}, {pipeline_mode = #tpu.pipeline_mode<synchronous>, transform_indices = @transform_3, window_bounds = array<i64: 1, 16>}, {pipeline_mode = #tpu.pipeline_mode<synchronous>, transform_indices = @transform_4, window_bounds = array<i64: 16, 15>}, {pipeline_mode = #tpu.pipeline_mode<synchronous>, transform_indices = @transform_5, window_bounds = array<i64: 1, 15>}, {pipeline_mode = #tpu.pipeline_mode<synchronous>, transform_indices = @transform_6, window_bounds = array<i64: 15, 15>}, {pipeline_mode = #tpu.pipeline_mode<synchronous>, transform_indices = @transform_7, window_bounds = array<i64: 1, 15>}, {pipeline_mode = #tpu.pipeline_mode<synchronous>, transform_indices = @transform_8, window_bounds = array<i64: 15, 15>}, {pipeline_mode = #tpu.pipeline_mode<synchronous>, transform_indices = @transform_9, window_bounds = array<i64: 1, 15>}, {pipeline_mode = #tpu.pipeline_mode<synchronous>, transform_indices = @transform_10, window_bounds = array<i64: 15, 128>}, {pipeline_mode = #tpu.pipeline_mode<synchronous>, transform_indices = @transform_11, window_bounds = array<i64: 1, 128>}, {pipeline_mode = #tpu.pipeline_mode<synchronous>, transform_indices = @transform_12, window_bounds = array<i64: 128, 16>}, {pipeline_mode = #tpu.pipeline_mode<synchronous>, transform_indices = @transform_13, window_bounds = array<i64: 16, 3>}, {pipeline_mode = #tpu.pipeline_mode<synchronous>, transform_indices = @transform_14, window_bounds = array<i64: 1, 3>}, {transform_indices = @transform_15, window_bounds = array<i64: 8, 3>}]} {
    %c0 = arith.constant 0 : index
    %c0_0 = arith.constant 0 : index
    %0 = vector.load %arg1[%c0, %c0_0] : memref<8x5xf32, #tpu.memory_space<vmem>>, vector<8x5xf32>
    %c0_1 = arith.constant 0 : index
    %c0_2 = arith.constant 0 : index
    %1 = vector.load %arg3[%c0_1, %c0_2] : memref<5x16xf32, #tpu.memory_space<vmem>>, vector<5x16xf32>
    %cst = arith.constant dense<0.000000e+00> : vector<8x16xf32>
    %2 = tpu.matmul %0, %1, %cst {dimension_numbers = #tpu.dot_dimension_numbers<[1], [0], [0], [1], [0, 0, 1, 1], [], []>} : vector<8x5xf32>, vector<5x16xf32>, vector<8x16xf32> -> vector<8x16xf32>
    %c0_3 = arith.constant 0 : index
    %c0_4 = arith.constant 0 : index
    %3 = vector.load %arg4[%c0_3, %c0_4] : memref<1x16xf32, #tpu.memory_space<vmem>>, vector<1x16xf32>
    %4 = vector.broadcast %3 : vector<1x16xf32> to vector<8x16xf32>
    %5 = arith.addf %2, %4 : vector<8x16xf32>
    %c0_5 = arith.constant 0 : index
    %c0_6 = arith.constant 0 : index
    %6 = vector.load %arg5[%c0_5, %c0_6] : memref<16x15xf32, #tpu.memory_space<vmem>>, vector<16x15xf32>
    %c0_7 = arith.constant 0 : index
    %c0_8 = arith.constant 0 : index
    %7 = vector.load %arg6[%c0_7, %c0_8] : memref<1x15xf32, #tpu.memory_space<vmem>>, vector<1x15xf32>
    %c0_9 = arith.constant 0 : index
    %c0_10 = arith.constant 0 : index
    %8 = vector.load %arg7[%c0_9, %c0_10] : memref<15x15xf32, #tpu.memory_space<vmem>>, vector<15x15xf32>
    %c0_11 = arith.constant 0 : index
    %c0_12 = arith.constant 0 : index
    %9 = vector.load %arg8[%c0_11, %c0_12] : memref<1x15xf32, #tpu.memory_space<vmem>>, vector<1x15xf32>
    %c0_13 = arith.constant 0 : index
    %c0_14 = arith.constant 0 : index
    %10 = vector.load %arg9[%c0_13, %c0_14] : memref<15x15xf32, #tpu.memory_space<vmem>>, vector<15x15xf32>
    %c0_15 = arith.constant 0 : index
    %c0_16 = arith.constant 0 : index
    %11 = vector.load %arg10[%c0_15, %c0_16] : memref<1x15xf32, #tpu.memory_space<vmem>>, vector<1x15xf32>
    %c0_17 = arith.constant 0 : index
    %c0_18 = arith.constant 0 : index
    %12 = vector.load %arg11[%c0_17, %c0_18] : memref<15x128xf32, #tpu.memory_space<vmem>>, vector<15x128xf32>
    %c0_19 = arith.constant 0 : index
    %c0_20 = arith.constant 0 : index
    %13 = vector.load %arg12[%c0_19, %c0_20] : memref<1x128xf32, #tpu.memory_space<vmem>>, vector<1x128xf32>
    %c0_i32 = arith.constant 0 : i32
    %14 = arith.index_cast %c0_i32 : i32 to index
    %c0_21 = arith.constant 0 : index
    %c0_22 = arith.constant 0 : index
    %15 = vector.load %arg2[%14, %c0_21, %c0_22] : memref<9x8x128xf32, #tpu.memory_space<vmem>>, vector<1x8x128xf32>
    %16 = vector.shape_cast %15 : vector<1x8x128xf32> to vector<8x128xf32>
    %cst_23 = arith.constant dense<0.000000e+00> : vector<8x15xf32>
    %17 = tpu.matmul %5, %6, %cst_23 {dimension_numbers = #tpu.dot_dimension_numbers<[1], [0], [0], [1], [0, 0, 1, 1], [], []>} : vector<8x16xf32>, vector<16x15xf32>, vector<8x15xf32> -> vector<8x15xf32>
    %18 = vector.broadcast %7 : vector<1x15xf32> to vector<8x15xf32>
    %19 = arith.addf %17, %18 : vector<8x15xf32>
    %cst_24 = arith.constant 0.000000e+00 : f32
    %20 = vector.broadcast %cst_24 : f32 to vector<8x15xf32>
    %21 = arith.maximumf %19, %20 : vector<8x15xf32>
    %cst_25 = arith.constant dense<0.000000e+00> : vector<8x15xf32>
    %22 = tpu.matmul %21, %8, %cst_25 {dimension_numbers = #tpu.dot_dimension_numbers<[1], [0], [0], [1], [0, 0, 1, 1], [], []>} : vector<8x15xf32>, vector<15x15xf32>, vector<8x15xf32> -> vector<8x15xf32>
    %23 = vector.broadcast %9 : vector<1x15xf32> to vector<8x15xf32>
    %24 = arith.addf %22, %23 : vector<8x15xf32>
    %cst_26 = arith.constant 0.000000e+00 : f32
    %25 = vector.broadcast %cst_26 : f32 to vector<8x15xf32>
    %26 = arith.maximumf %24, %25 : vector<8x15xf32>
    %cst_27 = arith.constant dense<0.000000e+00> : vector<8x15xf32>
    %27 = tpu.matmul %26, %10, %cst_27 {dimension_numbers = #tpu.dot_dimension_numbers<[1], [0], [0], [1], [0, 0, 1, 1], [], []>} : vector<8x15xf32>, vector<15x15xf32>, vector<8x15xf32> -> vector<8x15xf32>
    %28 = vector.broadcast %11 : vector<1x15xf32> to vector<8x15xf32>
    %29 = arith.addf %27, %28 : vector<8x15xf32>
    %30 = math.tanh %29 : vector<8x15xf32>
    %cst_28 = arith.constant dense<0.000000e+00> : vector<8x128xf32>
    %31 = tpu.matmul %30, %12, %cst_28 {dimension_numbers = #tpu.dot_dimension_numbers<[1], [0], [0], [1], [0, 0, 1, 1], [], []>} : vector<8x15xf32>, vector<15x128xf32>, vector<8x128xf32> -> vector<8x128xf32>
    %32 = vector.broadcast %13 : vector<1x128xf32> to vector<8x128xf32>
    %33 = arith.addf %31, %32 : vector<8x128xf32>
    %34 = arith.mulf %33, %16 : vector<8x128xf32>
    %c0_29 = arith.constant 0 : index
    %c0_30 = arith.constant 0 : index
    %35 = vector.load %arg13[%c0_29, %c0_30] : memref<128x16xf32, #tpu.memory_space<vmem>>, vector<128x16xf32>
    %cst_31 = arith.constant dense<0.000000e+00> : vector<8x16xf32>
    %36 = tpu.matmul %34, %35, %cst_31 {dimension_numbers = #tpu.dot_dimension_numbers<[1], [0], [0], [1], [0, 0, 1, 1], [], []>} : vector<8x128xf32>, vector<128x16xf32>, vector<8x16xf32> -> vector<8x16xf32>
    %cst_32 = arith.constant 5.000000e-01 : f32
    %37 = vector.broadcast %cst_32 : f32 to vector<8x16xf32>
    %38 = arith.mulf %37, %36 : vector<8x16xf32>
    %39 = arith.addf %5, %38 : vector<8x16xf32>
    %cst_33 = arith.constant dense<0.000000e+00> : vector<8x15xf32>
    %40 = tpu.matmul %39, %6, %cst_33 {dimension_numbers = #tpu.dot_dimension_numbers<[1], [0], [0], [1], [0, 0, 1, 1], [], []>} : vector<8x16xf32>, vector<16x15xf32>, vector<8x15xf32> -> vector<8x15xf32>
    %41 = vector.broadcast %7 : vector<1x15xf32> to vector<8x15xf32>
    %42 = arith.addf %40, %41 : vector<8x15xf32>
    %cst_34 = arith.constant 0.000000e+00 : f32
    %43 = vector.broadcast %cst_34 : f32 to vector<8x15xf32>
    %44 = arith.maximumf %42, %43 : vector<8x15xf32>
    %cst_35 = arith.constant dense<0.000000e+00> : vector<8x15xf32>
    %45 = tpu.matmul %44, %8, %cst_35 {dimension_numbers = #tpu.dot_dimension_numbers<[1], [0], [0], [1], [0, 0, 1, 1], [], []>} : vector<8x15xf32>, vector<15x15xf32>, vector<8x15xf32> -> vector<8x15xf32>
    %46 = vector.broadcast %9 : vector<1x15xf32> to vector<8x15xf32>
    %47 = arith.addf %45, %46 : vector<8x15xf32>
    %cst_36 = arith.constant 0.000000e+00 : f32
    %48 = vector.broadcast %cst_36 : f32 to vector<8x15xf32>
    %49 = arith.maximumf %47, %48 : vector<8x15xf32>
    %cst_37 = arith.constant dense<0.000000e+00> : vector<8x15xf32>
    %50 = tpu.matmul %49, %10, %cst_37 {dimension_numbers = #tpu.dot_dimension_numbers<[1], [0], [0], [1], [0, 0, 1, 1], [], []>} : vector<8x15xf32>, vector<15x15xf32>, vector<8x15xf32> -> vector<8x15xf32>
    %51 = vector.broadcast %11 : vector<1x15xf32> to vector<8x15xf32>
    %52 = arith.addf %50, %51 : vector<8x15xf32>
    %53 = math.tanh %52 : vector<8x15xf32>
    %cst_38 = arith.constant dense<0.000000e+00> : vector<8x128xf32>
    %54 = tpu.matmul %53, %12, %cst_38 {dimension_numbers = #tpu.dot_dimension_numbers<[1], [0], [0], [1], [0, 0, 1, 1], [], []>} : vector<8x15xf32>, vector<15x128xf32>, vector<8x128xf32> -> vector<8x128xf32>
    %55 = vector.broadcast %13 : vector<1x128xf32> to vector<8x128xf32>
    %56 = arith.addf %54, %55 : vector<8x128xf32>
    %57 = arith.mulf %56, %16 : vector<8x128xf32>
    %c0_39 = arith.constant 0 : index
    %c0_40 = arith.constant 0 : index
    %58 = vector.load %arg13[%c0_39, %c0_40] : memref<128x16xf32, #tpu.memory_space<vmem>>, vector<128x16xf32>
    %cst_41 = arith.constant dense<0.000000e+00> : vector<8x16xf32>
    %59 = tpu.matmul %57, %58, %cst_41 {dimension_numbers = #tpu.dot_dimension_numbers<[1], [0], [0], [1], [0, 0, 1, 1], [], []>} : vector<8x128xf32>, vector<128x16xf32>, vector<8x16xf32> -> vector<8x16xf32>
    %60 = arith.addf %5, %59 : vector<8x16xf32>
    %c1_i32 = arith.constant 1 : i32
    %61 = arith.index_cast %c1_i32 : i32 to index
    %c0_42 = arith.constant 0 : index
    %c0_43 = arith.constant 0 : index
    %62 = vector.load %arg2[%61, %c0_42, %c0_43] : memref<9x8x128xf32, #tpu.memory_space<vmem>>, vector<1x8x128xf32>
    %63 = vector.shape_cast %62 : vector<1x8x128xf32> to vector<8x128xf32>
    %cst_44 = arith.constant dense<0.000000e+00> : vector<8x15xf32>
    %64 = tpu.matmul %60, %6, %cst_44 {dimension_numbers = #tpu.dot_dimension_numbers<[1], [0], [0], [1], [0, 0, 1, 1], [], []>} : vector<8x16xf32>, vector<16x15xf32>, vector<8x15xf32> -> vector<8x15xf32>
    %65 = vector.broadcast %7 : vector<1x15xf32> to vector<8x15xf32>
    %66 = arith.addf %64, %65 : vector<8x15xf32>
    %cst_45 = arith.constant 0.000000e+00 : f32
    %67 = vector.broadcast %cst_45 : f32 to vector<8x15xf32>
    %68 = arith.maximumf %66, %67 : vector<8x15xf32>
    %cst_46 = arith.constant dense<0.000000e+00> : vector<8x15xf32>
    %69 = tpu.matmul %68, %8, %cst_46 {dimension_numbers = #tpu.dot_dimension_numbers<[1], [0], [0], [1], [0, 0, 1, 1], [], []>} : vector<8x15xf32>, vector<15x15xf32>, vector<8x15xf32> -> vector<8x15xf32>
    %70 = vector.broadcast %9 : vector<1x15xf32> to vector<8x15xf32>
    %71 = arith.addf %69, %70 : vector<8x15xf32>
    %cst_47 = arith.constant 0.000000e+00 : f32
    %72 = vector.broadcast %cst_47 : f32 to vector<8x15xf32>
    %73 = arith.maximumf %71, %72 : vector<8x15xf32>
    %cst_48 = arith.constant dense<0.000000e+00> : vector<8x15xf32>
    %74 = tpu.matmul %73, %10, %cst_48 {dimension_numbers = #tpu.dot_dimension_numbers<[1], [0], [0], [1], [0, 0, 1, 1], [], []>} : vector<8x15xf32>, vector<15x15xf32>, vector<8x15xf32> -> vector<8x15xf32>
    %75 = vector.broadcast %11 : vector<1x15xf32> to vector<8x15xf32>
    %76 = arith.addf %74, %75 : vector<8x15xf32>
    %77 = math.tanh %76 : vector<8x15xf32>
    %cst_49 = arith.constant dense<0.000000e+00> : vector<8x128xf32>
    %78 = tpu.matmul %77, %12, %cst_49 {dimension_numbers = #tpu.dot_dimension_numbers<[1], [0], [0], [1], [0, 0, 1, 1], [], []>} : vector<8x15xf32>, vector<15x128xf32>, vector<8x128xf32> -> vector<8x128xf32>
    %79 = vector.broadcast %13 : vector<1x128xf32> to vector<8x128xf32>
    %80 = arith.addf %78, %79 : vector<8x128xf32>
    %81 = arith.mulf %80, %63 : vector<8x128xf32>
    %c0_50 = arith.constant 0 : index
    %c0_51 = arith.constant 0 : index
    %82 = vector.load %arg13[%c0_50, %c0_51] : memref<128x16xf32, #tpu.memory_space<vmem>>, vector<128x16xf32>
    %cst_52 = arith.constant dense<0.000000e+00> : vector<8x16xf32>
    %83 = tpu.matmul %81, %82, %cst_52 {dimension_numbers = #tpu.dot_dimension_numbers<[1], [0], [0], [1], [0, 0, 1, 1], [], []>} : vector<8x128xf32>, vector<128x16xf32>, vector<8x16xf32> -> vector<8x16xf32>
    %cst_53 = arith.constant 5.000000e-01 : f32
    %84 = vector.broadcast %cst_53 : f32 to vector<8x16xf32>
    %85 = arith.mulf %84, %83 : vector<8x16xf32>
    %86 = arith.addf %60, %85 : vector<8x16xf32>
    %cst_54 = arith.constant dense<0.000000e+00> : vector<8x15xf32>
    %87 = tpu.matmul %86, %6, %cst_54 {dimension_numbers = #tpu.dot_dimension_numbers<[1], [0], [0], [1], [0, 0, 1, 1], [], []>} : vector<8x16xf32>, vector<16x15xf32>, vector<8x15xf32> -> vector<8x15xf32>
    %88 = vector.broadcast %7 : vector<1x15xf32> to vector<8x15xf32>
    %89 = arith.addf %87, %88 : vector<8x15xf32>
    %cst_55 = arith.constant 0.000000e+00 : f32
    %90 = vector.broadcast %cst_55 : f32 to vector<8x15xf32>
    %91 = arith.maximumf %89, %90 : vector<8x15xf32>
    %cst_56 = arith.constant dense<0.000000e+00> : vector<8x15xf32>
    %92 = tpu.matmul %91, %8, %cst_56 {dimension_numbers = #tpu.dot_dimension_numbers<[1], [0], [0], [1], [0, 0, 1, 1], [], []>} : vector<8x15xf32>, vector<15x15xf32>, vector<8x15xf32> -> vector<8x15xf32>
    %93 = vector.broadcast %9 : vector<1x15xf32> to vector<8x15xf32>
    %94 = arith.addf %92, %93 : vector<8x15xf32>
    %cst_57 = arith.constant 0.000000e+00 : f32
    %95 = vector.broadcast %cst_57 : f32 to vector<8x15xf32>
    %96 = arith.maximumf %94, %95 : vector<8x15xf32>
    %cst_58 = arith.constant dense<0.000000e+00> : vector<8x15xf32>
    %97 = tpu.matmul %96, %10, %cst_58 {dimension_numbers = #tpu.dot_dimension_numbers<[1], [0], [0], [1], [0, 0, 1, 1], [], []>} : vector<8x15xf32>, vector<15x15xf32>, vector<8x15xf32> -> vector<8x15xf32>
    %98 = vector.broadcast %11 : vector<1x15xf32> to vector<8x15xf32>
    %99 = arith.addf %97, %98 : vector<8x15xf32>
    %100 = math.tanh %99 : vector<8x15xf32>
    %cst_59 = arith.constant dense<0.000000e+00> : vector<8x128xf32>
    %101 = tpu.matmul %100, %12, %cst_59 {dimension_numbers = #tpu.dot_dimension_numbers<[1], [0], [0], [1], [0, 0, 1, 1], [], []>} : vector<8x15xf32>, vector<15x128xf32>, vector<8x128xf32> -> vector<8x128xf32>
    %102 = vector.broadcast %13 : vector<1x128xf32> to vector<8x128xf32>
    %103 = arith.addf %101, %102 : vector<8x128xf32>
    %104 = arith.mulf %103, %63 : vector<8x128xf32>
    %c0_60 = arith.constant 0 : index
    %c0_61 = arith.constant 0 : index
    %105 = vector.load %arg13[%c0_60, %c0_61] : memref<128x16xf32, #tpu.memory_space<vmem>>, vector<128x16xf32>
    %cst_62 = arith.constant dense<0.000000e+00> : vector<8x16xf32>
    %106 = tpu.matmul %104, %105, %cst_62 {dimension_numbers = #tpu.dot_dimension_numbers<[1], [0], [0], [1], [0, 0, 1, 1], [], []>} : vector<8x128xf32>, vector<128x16xf32>, vector<8x16xf32> -> vector<8x16xf32>
    %107 = arith.addf %60, %106 : vector<8x16xf32>
    %c2_i32 = arith.constant 2 : i32
    %108 = arith.index_cast %c2_i32 : i32 to index
    %c0_63 = arith.constant 0 : index
    %c0_64 = arith.constant 0 : index
    %109 = vector.load %arg2[%108, %c0_63, %c0_64] : memref<9x8x128xf32, #tpu.memory_space<vmem>>, vector<1x8x128xf32>
    %110 = vector.shape_cast %109 : vector<1x8x128xf32> to vector<8x128xf32>
    %cst_65 = arith.constant dense<0.000000e+00> : vector<8x15xf32>
    %111 = tpu.matmul %107, %6, %cst_65 {dimension_numbers = #tpu.dot_dimension_numbers<[1], [0], [0], [1], [0, 0, 1, 1], [], []>} : vector<8x16xf32>, vector<16x15xf32>, vector<8x15xf32> -> vector<8x15xf32>
    %112 = vector.broadcast %7 : vector<1x15xf32> to vector<8x15xf32>
    %113 = arith.addf %111, %112 : vector<8x15xf32>
    %cst_66 = arith.constant 0.000000e+00 : f32
    %114 = vector.broadcast %cst_66 : f32 to vector<8x15xf32>
    %115 = arith.maximumf %113, %114 : vector<8x15xf32>
    %cst_67 = arith.constant dense<0.000000e+00> : vector<8x15xf32>
    %116 = tpu.matmul %115, %8, %cst_67 {dimension_numbers = #tpu.dot_dimension_numbers<[1], [0], [0], [1], [0, 0, 1, 1], [], []>} : vector<8x15xf32>, vector<15x15xf32>, vector<8x15xf32> -> vector<8x15xf32>
    %117 = vector.broadcast %9 : vector<1x15xf32> to vector<8x15xf32>
    %118 = arith.addf %116, %117 : vector<8x15xf32>
    %cst_68 = arith.constant 0.000000e+00 : f32
    %119 = vector.broadcast %cst_68 : f32 to vector<8x15xf32>
    %120 = arith.maximumf %118, %119 : vector<8x15xf32>
    %cst_69 = arith.constant dense<0.000000e+00> : vector<8x15xf32>
    %121 = tpu.matmul %120, %10, %cst_69 {dimension_numbers = #tpu.dot_dimension_numbers<[1], [0], [0], [1], [0, 0, 1, 1], [], []>} : vector<8x15xf32>, vector<15x15xf32>, vector<8x15xf32> -> vector<8x15xf32>
    %122 = vector.broadcast %11 : vector<1x15xf32> to vector<8x15xf32>
    %123 = arith.addf %121, %122 : vector<8x15xf32>
    %124 = math.tanh %123 : vector<8x15xf32>
    %cst_70 = arith.constant dense<0.000000e+00> : vector<8x128xf32>
    %125 = tpu.matmul %124, %12, %cst_70 {dimension_numbers = #tpu.dot_dimension_numbers<[1], [0], [0], [1], [0, 0, 1, 1], [], []>} : vector<8x15xf32>, vector<15x128xf32>, vector<8x128xf32> -> vector<8x128xf32>
    %126 = vector.broadcast %13 : vector<1x128xf32> to vector<8x128xf32>
    %127 = arith.addf %125, %126 : vector<8x128xf32>
    %128 = arith.mulf %127, %110 : vector<8x128xf32>
    %c0_71 = arith.constant 0 : index
    %c0_72 = arith.constant 0 : index
    %129 = vector.load %arg13[%c0_71, %c0_72] : memref<128x16xf32, #tpu.memory_space<vmem>>, vector<128x16xf32>
    %cst_73 = arith.constant dense<0.000000e+00> : vector<8x16xf32>
    %130 = tpu.matmul %128, %129, %cst_73 {dimension_numbers = #tpu.dot_dimension_numbers<[1], [0], [0], [1], [0, 0, 1, 1], [], []>} : vector<8x128xf32>, vector<128x16xf32>, vector<8x16xf32> -> vector<8x16xf32>
    %cst_74 = arith.constant 5.000000e-01 : f32
    %131 = vector.broadcast %cst_74 : f32 to vector<8x16xf32>
    %132 = arith.mulf %131, %130 : vector<8x16xf32>
    %133 = arith.addf %107, %132 : vector<8x16xf32>
    %cst_75 = arith.constant dense<0.000000e+00> : vector<8x15xf32>
    %134 = tpu.matmul %133, %6, %cst_75 {dimension_numbers = #tpu.dot_dimension_numbers<[1], [0], [0], [1], [0, 0, 1, 1], [], []>} : vector<8x16xf32>, vector<16x15xf32>, vector<8x15xf32> -> vector<8x15xf32>
    %135 = vector.broadcast %7 : vector<1x15xf32> to vector<8x15xf32>
    %136 = arith.addf %134, %135 : vector<8x15xf32>
    %cst_76 = arith.constant 0.000000e+00 : f32
    %137 = vector.broadcast %cst_76 : f32 to vector<8x15xf32>
    %138 = arith.maximumf %136, %137 : vector<8x15xf32>
    %cst_77 = arith.constant dense<0.000000e+00> : vector<8x15xf32>
    %139 = tpu.matmul %138, %8, %cst_77 {dimension_numbers = #tpu.dot_dimension_numbers<[1], [0], [0], [1], [0, 0, 1, 1], [], []>} : vector<8x15xf32>, vector<15x15xf32>, vector<8x15xf32> -> vector<8x15xf32>
    %140 = vector.broadcast %9 : vector<1x15xf32> to vector<8x15xf32>
    %141 = arith.addf %139, %140 : vector<8x15xf32>
    %cst_78 = arith.constant 0.000000e+00 : f32
    %142 = vector.broadcast %cst_78 : f32 to vector<8x15xf32>
    %143 = arith.maximumf %141, %142 : vector<8x15xf32>
    %cst_79 = arith.constant dense<0.000000e+00> : vector<8x15xf32>
    %144 = tpu.matmul %143, %10, %cst_79 {dimension_numbers = #tpu.dot_dimension_numbers<[1], [0], [0], [1], [0, 0, 1, 1], [], []>} : vector<8x15xf32>, vector<15x15xf32>, vector<8x15xf32> -> vector<8x15xf32>
    %145 = vector.broadcast %11 : vector<1x15xf32> to vector<8x15xf32>
    %146 = arith.addf %144, %145 : vector<8x15xf32>
    %147 = math.tanh %146 : vector<8x15xf32>
    %cst_80 = arith.constant dense<0.000000e+00> : vector<8x128xf32>
    %148 = tpu.matmul %147, %12, %cst_80 {dimension_numbers = #tpu.dot_dimension_numbers<[1], [0], [0], [1], [0, 0, 1, 1], [], []>} : vector<8x15xf32>, vector<15x128xf32>, vector<8x128xf32> -> vector<8x128xf32>
    %149 = vector.broadcast %13 : vector<1x128xf32> to vector<8x128xf32>
    %150 = arith.addf %148, %149 : vector<8x128xf32>
    %151 = arith.mulf %150, %110 : vector<8x128xf32>
    %c0_81 = arith.constant 0 : index
    %c0_82 = arith.constant 0 : index
    %152 = vector.load %arg13[%c0_81, %c0_82] : memref<128x16xf32, #tpu.memory_space<vmem>>, vector<128x16xf32>
    %cst_83 = arith.constant dense<0.000000e+00> : vector<8x16xf32>
    %153 = tpu.matmul %151, %152, %cst_83 {dimension_numbers = #tpu.dot_dimension_numbers<[1], [0], [0], [1], [0, 0, 1, 1], [], []>} : vector<8x128xf32>, vector<128x16xf32>, vector<8x16xf32> -> vector<8x16xf32>
    %154 = arith.addf %107, %153 : vector<8x16xf32>
    %c3_i32 = arith.constant 3 : i32
    %155 = arith.index_cast %c3_i32 : i32 to index
    %c0_84 = arith.constant 0 : index
    %c0_85 = arith.constant 0 : index
    %156 = vector.load %arg2[%155, %c0_84, %c0_85] : memref<9x8x128xf32, #tpu.memory_space<vmem>>, vector<1x8x128xf32>
    %157 = vector.shape_cast %156 : vector<1x8x128xf32> to vector<8x128xf32>
    %cst_86 = arith.constant dense<0.000000e+00> : vector<8x15xf32>
    %158 = tpu.matmul %154, %6, %cst_86 {dimension_numbers = #tpu.dot_dimension_numbers<[1], [0], [0], [1], [0, 0, 1, 1], [], []>} : vector<8x16xf32>, vector<16x15xf32>, vector<8x15xf32> -> vector<8x15xf32>
    %159 = vector.broadcast %7 : vector<1x15xf32> to vector<8x15xf32>
    %160 = arith.addf %158, %159 : vector<8x15xf32>
    %cst_87 = arith.constant 0.000000e+00 : f32
    %161 = vector.broadcast %cst_87 : f32 to vector<8x15xf32>
    %162 = arith.maximumf %160, %161 : vector<8x15xf32>
    %cst_88 = arith.constant dense<0.000000e+00> : vector<8x15xf32>
    %163 = tpu.matmul %162, %8, %cst_88 {dimension_numbers = #tpu.dot_dimension_numbers<[1], [0], [0], [1], [0, 0, 1, 1], [], []>} : vector<8x15xf32>, vector<15x15xf32>, vector<8x15xf32> -> vector<8x15xf32>
    %164 = vector.broadcast %9 : vector<1x15xf32> to vector<8x15xf32>
    %165 = arith.addf %163, %164 : vector<8x15xf32>
    %cst_89 = arith.constant 0.000000e+00 : f32
    %166 = vector.broadcast %cst_89 : f32 to vector<8x15xf32>
    %167 = arith.maximumf %165, %166 : vector<8x15xf32>
    %cst_90 = arith.constant dense<0.000000e+00> : vector<8x15xf32>
    %168 = tpu.matmul %167, %10, %cst_90 {dimension_numbers = #tpu.dot_dimension_numbers<[1], [0], [0], [1], [0, 0, 1, 1], [], []>} : vector<8x15xf32>, vector<15x15xf32>, vector<8x15xf32> -> vector<8x15xf32>
    %169 = vector.broadcast %11 : vector<1x15xf32> to vector<8x15xf32>
    %170 = arith.addf %168, %169 : vector<8x15xf32>
    %171 = math.tanh %170 : vector<8x15xf32>
    %cst_91 = arith.constant dense<0.000000e+00> : vector<8x128xf32>
    %172 = tpu.matmul %171, %12, %cst_91 {dimension_numbers = #tpu.dot_dimension_numbers<[1], [0], [0], [1], [0, 0, 1, 1], [], []>} : vector<8x15xf32>, vector<15x128xf32>, vector<8x128xf32> -> vector<8x128xf32>
    %173 = vector.broadcast %13 : vector<1x128xf32> to vector<8x128xf32>
    %174 = arith.addf %172, %173 : vector<8x128xf32>
    %175 = arith.mulf %174, %157 : vector<8x128xf32>
    %c0_92 = arith.constant 0 : index
    %c0_93 = arith.constant 0 : index
    %176 = vector.load %arg13[%c0_92, %c0_93] : memref<128x16xf32, #tpu.memory_space<vmem>>, vector<128x16xf32>
    %cst_94 = arith.constant dense<0.000000e+00> : vector<8x16xf32>
    %177 = tpu.matmul %175, %176, %cst_94 {dimension_numbers = #tpu.dot_dimension_numbers<[1], [0], [0], [1], [0, 0, 1, 1], [], []>} : vector<8x128xf32>, vector<128x16xf32>, vector<8x16xf32> -> vector<8x16xf32>
    %cst_95 = arith.constant 5.000000e-01 : f32
    %178 = vector.broadcast %cst_95 : f32 to vector<8x16xf32>
    %179 = arith.mulf %178, %177 : vector<8x16xf32>
    %180 = arith.addf %154, %179 : vector<8x16xf32>
    %cst_96 = arith.constant dense<0.000000e+00> : vector<8x15xf32>
    %181 = tpu.matmul %180, %6, %cst_96 {dimension_numbers = #tpu.dot_dimension_numbers<[1], [0], [0], [1], [0, 0, 1, 1], [], []>} : vector<8x16xf32>, vector<16x15xf32>, vector<8x15xf32> -> vector<8x15xf32>
    %182 = vector.broadcast %7 : vector<1x15xf32> to vector<8x15xf32>
    %183 = arith.addf %181, %182 : vector<8x15xf32>
    %cst_97 = arith.constant 0.000000e+00 : f32
    %184 = vector.broadcast %cst_97 : f32 to vector<8x15xf32>
    %185 = arith.maximumf %183, %184 : vector<8x15xf32>
    %cst_98 = arith.constant dense<0.000000e+00> : vector<8x15xf32>
    %186 = tpu.matmul %185, %8, %cst_98 {dimension_numbers = #tpu.dot_dimension_numbers<[1], [0], [0], [1], [0, 0, 1, 1], [], []>} : vector<8x15xf32>, vector<15x15xf32>, vector<8x15xf32> -> vector<8x15xf32>
    %187 = vector.broadcast %9 : vector<1x15xf32> to vector<8x15xf32>
    %188 = arith.addf %186, %187 : vector<8x15xf32>
    %cst_99 = arith.constant 0.000000e+00 : f32
    %189 = vector.broadcast %cst_99 : f32 to vector<8x15xf32>
    %190 = arith.maximumf %188, %189 : vector<8x15xf32>
    %cst_100 = arith.constant dense<0.000000e+00> : vector<8x15xf32>
    %191 = tpu.matmul %190, %10, %cst_100 {dimension_numbers = #tpu.dot_dimension_numbers<[1], [0], [0], [1], [0, 0, 1, 1], [], []>} : vector<8x15xf32>, vector<15x15xf32>, vector<8x15xf32> -> vector<8x15xf32>
    %192 = vector.broadcast %11 : vector<1x15xf32> to vector<8x15xf32>
    %193 = arith.addf %191, %192 : vector<8x15xf32>
    %194 = math.tanh %193 : vector<8x15xf32>
    %cst_101 = arith.constant dense<0.000000e+00> : vector<8x128xf32>
    %195 = tpu.matmul %194, %12, %cst_101 {dimension_numbers = #tpu.dot_dimension_numbers<[1], [0], [0], [1], [0, 0, 1, 1], [], []>} : vector<8x15xf32>, vector<15x128xf32>, vector<8x128xf32> -> vector<8x128xf32>
    %196 = vector.broadcast %13 : vector<1x128xf32> to vector<8x128xf32>
    %197 = arith.addf %195, %196 : vector<8x128xf32>
    %198 = arith.mulf %197, %157 : vector<8x128xf32>
    %c0_102 = arith.constant 0 : index
    %c0_103 = arith.constant 0 : index
    %199 = vector.load %arg13[%c0_102, %c0_103] : memref<128x16xf32, #tpu.memory_space<vmem>>, vector<128x16xf32>
    %cst_104 = arith.constant dense<0.000000e+00> : vector<8x16xf32>
    %200 = tpu.matmul %198, %199, %cst_104 {dimension_numbers = #tpu.dot_dimension_numbers<[1], [0], [0], [1], [0, 0, 1, 1], [], []>} : vector<8x128xf32>, vector<128x16xf32>, vector<8x16xf32> -> vector<8x16xf32>
    %201 = arith.addf %154, %200 : vector<8x16xf32>
    %c4_i32 = arith.constant 4 : i32
    %202 = arith.index_cast %c4_i32 : i32 to index
    %c0_105 = arith.constant 0 : index
    %c0_106 = arith.constant 0 : index
    %203 = vector.load %arg2[%202, %c0_105, %c0_106] : memref<9x8x128xf32, #tpu.memory_space<vmem>>, vector<1x8x128xf32>
    %204 = vector.shape_cast %203 : vector<1x8x128xf32> to vector<8x128xf32>
    %cst_107 = arith.constant dense<0.000000e+00> : vector<8x15xf32>
    %205 = tpu.matmul %201, %6, %cst_107 {dimension_numbers = #tpu.dot_dimension_numbers<[1], [0], [0], [1], [0, 0, 1, 1], [], []>} : vector<8x16xf32>, vector<16x15xf32>, vector<8x15xf32> -> vector<8x15xf32>
    %206 = vector.broadcast %7 : vector<1x15xf32> to vector<8x15xf32>
    %207 = arith.addf %205, %206 : vector<8x15xf32>
    %cst_108 = arith.constant 0.000000e+00 : f32
    %208 = vector.broadcast %cst_108 : f32 to vector<8x15xf32>
    %209 = arith.maximumf %207, %208 : vector<8x15xf32>
    %cst_109 = arith.constant dense<0.000000e+00> : vector<8x15xf32>
    %210 = tpu.matmul %209, %8, %cst_109 {dimension_numbers = #tpu.dot_dimension_numbers<[1], [0], [0], [1], [0, 0, 1, 1], [], []>} : vector<8x15xf32>, vector<15x15xf32>, vector<8x15xf32> -> vector<8x15xf32>
    %211 = vector.broadcast %9 : vector<1x15xf32> to vector<8x15xf32>
    %212 = arith.addf %210, %211 : vector<8x15xf32>
    %cst_110 = arith.constant 0.000000e+00 : f32
    %213 = vector.broadcast %cst_110 : f32 to vector<8x15xf32>
    %214 = arith.maximumf %212, %213 : vector<8x15xf32>
    %cst_111 = arith.constant dense<0.000000e+00> : vector<8x15xf32>
    %215 = tpu.matmul %214, %10, %cst_111 {dimension_numbers = #tpu.dot_dimension_numbers<[1], [0], [0], [1], [0, 0, 1, 1], [], []>} : vector<8x15xf32>, vector<15x15xf32>, vector<8x15xf32> -> vector<8x15xf32>
    %216 = vector.broadcast %11 : vector<1x15xf32> to vector<8x15xf32>
    %217 = arith.addf %215, %216 : vector<8x15xf32>
    %218 = math.tanh %217 : vector<8x15xf32>
    %cst_112 = arith.constant dense<0.000000e+00> : vector<8x128xf32>
    %219 = tpu.matmul %218, %12, %cst_112 {dimension_numbers = #tpu.dot_dimension_numbers<[1], [0], [0], [1], [0, 0, 1, 1], [], []>} : vector<8x15xf32>, vector<15x128xf32>, vector<8x128xf32> -> vector<8x128xf32>
    %220 = vector.broadcast %13 : vector<1x128xf32> to vector<8x128xf32>
    %221 = arith.addf %219, %220 : vector<8x128xf32>
    %222 = arith.mulf %221, %204 : vector<8x128xf32>
    %c0_113 = arith.constant 0 : index
    %c0_114 = arith.constant 0 : index
    %223 = vector.load %arg13[%c0_113, %c0_114] : memref<128x16xf32, #tpu.memory_space<vmem>>, vector<128x16xf32>
    %cst_115 = arith.constant dense<0.000000e+00> : vector<8x16xf32>
    %224 = tpu.matmul %222, %223, %cst_115 {dimension_numbers = #tpu.dot_dimension_numbers<[1], [0], [0], [1], [0, 0, 1, 1], [], []>} : vector<8x128xf32>, vector<128x16xf32>, vector<8x16xf32> -> vector<8x16xf32>
    %cst_116 = arith.constant 5.000000e-01 : f32
    %225 = vector.broadcast %cst_116 : f32 to vector<8x16xf32>
    %226 = arith.mulf %225, %224 : vector<8x16xf32>
    %227 = arith.addf %201, %226 : vector<8x16xf32>
    %cst_117 = arith.constant dense<0.000000e+00> : vector<8x15xf32>
    %228 = tpu.matmul %227, %6, %cst_117 {dimension_numbers = #tpu.dot_dimension_numbers<[1], [0], [0], [1], [0, 0, 1, 1], [], []>} : vector<8x16xf32>, vector<16x15xf32>, vector<8x15xf32> -> vector<8x15xf32>
    %229 = vector.broadcast %7 : vector<1x15xf32> to vector<8x15xf32>
    %230 = arith.addf %228, %229 : vector<8x15xf32>
    %cst_118 = arith.constant 0.000000e+00 : f32
    %231 = vector.broadcast %cst_118 : f32 to vector<8x15xf32>
    %232 = arith.maximumf %230, %231 : vector<8x15xf32>
    %cst_119 = arith.constant dense<0.000000e+00> : vector<8x15xf32>
    %233 = tpu.matmul %232, %8, %cst_119 {dimension_numbers = #tpu.dot_dimension_numbers<[1], [0], [0], [1], [0, 0, 1, 1], [], []>} : vector<8x15xf32>, vector<15x15xf32>, vector<8x15xf32> -> vector<8x15xf32>
    %234 = vector.broadcast %9 : vector<1x15xf32> to vector<8x15xf32>
    %235 = arith.addf %233, %234 : vector<8x15xf32>
    %cst_120 = arith.constant 0.000000e+00 : f32
    %236 = vector.broadcast %cst_120 : f32 to vector<8x15xf32>
    %237 = arith.maximumf %235, %236 : vector<8x15xf32>
    %cst_121 = arith.constant dense<0.000000e+00> : vector<8x15xf32>
    %238 = tpu.matmul %237, %10, %cst_121 {dimension_numbers = #tpu.dot_dimension_numbers<[1], [0], [0], [1], [0, 0, 1, 1], [], []>} : vector<8x15xf32>, vector<15x15xf32>, vector<8x15xf32> -> vector<8x15xf32>
    %239 = vector.broadcast %11 : vector<1x15xf32> to vector<8x15xf32>
    %240 = arith.addf %238, %239 : vector<8x15xf32>
    %241 = math.tanh %240 : vector<8x15xf32>
    %cst_122 = arith.constant dense<0.000000e+00> : vector<8x128xf32>
    %242 = tpu.matmul %241, %12, %cst_122 {dimension_numbers = #tpu.dot_dimension_numbers<[1], [0], [0], [1], [0, 0, 1, 1], [], []>} : vector<8x15xf32>, vector<15x128xf32>, vector<8x128xf32> -> vector<8x128xf32>
    %243 = vector.broadcast %13 : vector<1x128xf32> to vector<8x128xf32>
    %244 = arith.addf %242, %243 : vector<8x128xf32>
    %245 = arith.mulf %244, %204 : vector<8x128xf32>
    %c0_123 = arith.constant 0 : index
    %c0_124 = arith.constant 0 : index
    %246 = vector.load %arg13[%c0_123, %c0_124] : memref<128x16xf32, #tpu.memory_space<vmem>>, vector<128x16xf32>
    %cst_125 = arith.constant dense<0.000000e+00> : vector<8x16xf32>
    %247 = tpu.matmul %245, %246, %cst_125 {dimension_numbers = #tpu.dot_dimension_numbers<[1], [0], [0], [1], [0, 0, 1, 1], [], []>} : vector<8x128xf32>, vector<128x16xf32>, vector<8x16xf32> -> vector<8x16xf32>
    %248 = arith.addf %201, %247 : vector<8x16xf32>
    %c5_i32 = arith.constant 5 : i32
    %249 = arith.index_cast %c5_i32 : i32 to index
    %c0_126 = arith.constant 0 : index
    %c0_127 = arith.constant 0 : index
    %250 = vector.load %arg2[%249, %c0_126, %c0_127] : memref<9x8x128xf32, #tpu.memory_space<vmem>>, vector<1x8x128xf32>
    %251 = vector.shape_cast %250 : vector<1x8x128xf32> to vector<8x128xf32>
    %cst_128 = arith.constant dense<0.000000e+00> : vector<8x15xf32>
    %252 = tpu.matmul %248, %6, %cst_128 {dimension_numbers = #tpu.dot_dimension_numbers<[1], [0], [0], [1], [0, 0, 1, 1], [], []>} : vector<8x16xf32>, vector<16x15xf32>, vector<8x15xf32> -> vector<8x15xf32>
    %253 = vector.broadcast %7 : vector<1x15xf32> to vector<8x15xf32>
    %254 = arith.addf %252, %253 : vector<8x15xf32>
    %cst_129 = arith.constant 0.000000e+00 : f32
    %255 = vector.broadcast %cst_129 : f32 to vector<8x15xf32>
    %256 = arith.maximumf %254, %255 : vector<8x15xf32>
    %cst_130 = arith.constant dense<0.000000e+00> : vector<8x15xf32>
    %257 = tpu.matmul %256, %8, %cst_130 {dimension_numbers = #tpu.dot_dimension_numbers<[1], [0], [0], [1], [0, 0, 1, 1], [], []>} : vector<8x15xf32>, vector<15x15xf32>, vector<8x15xf32> -> vector<8x15xf32>
    %258 = vector.broadcast %9 : vector<1x15xf32> to vector<8x15xf32>
    %259 = arith.addf %257, %258 : vector<8x15xf32>
    %cst_131 = arith.constant 0.000000e+00 : f32
    %260 = vector.broadcast %cst_131 : f32 to vector<8x15xf32>
    %261 = arith.maximumf %259, %260 : vector<8x15xf32>
    %cst_132 = arith.constant dense<0.000000e+00> : vector<8x15xf32>
    %262 = tpu.matmul %261, %10, %cst_132 {dimension_numbers = #tpu.dot_dimension_numbers<[1], [0], [0], [1], [0, 0, 1, 1], [], []>} : vector<8x15xf32>, vector<15x15xf32>, vector<8x15xf32> -> vector<8x15xf32>
    %263 = vector.broadcast %11 : vector<1x15xf32> to vector<8x15xf32>
    %264 = arith.addf %262, %263 : vector<8x15xf32>
    %265 = math.tanh %264 : vector<8x15xf32>
    %cst_133 = arith.constant dense<0.000000e+00> : vector<8x128xf32>
    %266 = tpu.matmul %265, %12, %cst_133 {dimension_numbers = #tpu.dot_dimension_numbers<[1], [0], [0], [1], [0, 0, 1, 1], [], []>} : vector<8x15xf32>, vector<15x128xf32>, vector<8x128xf32> -> vector<8x128xf32>
    %267 = vector.broadcast %13 : vector<1x128xf32> to vector<8x128xf32>
    %268 = arith.addf %266, %267 : vector<8x128xf32>
    %269 = arith.mulf %268, %251 : vector<8x128xf32>
    %c0_134 = arith.constant 0 : index
    %c0_135 = arith.constant 0 : index
    %270 = vector.load %arg13[%c0_134, %c0_135] : memref<128x16xf32, #tpu.memory_space<vmem>>, vector<128x16xf32>
    %cst_136 = arith.constant dense<0.000000e+00> : vector<8x16xf32>
    %271 = tpu.matmul %269, %270, %cst_136 {dimension_numbers = #tpu.dot_dimension_numbers<[1], [0], [0], [1], [0, 0, 1, 1], [], []>} : vector<8x128xf32>, vector<128x16xf32>, vector<8x16xf32> -> vector<8x16xf32>
    %cst_137 = arith.constant 5.000000e-01 : f32
    %272 = vector.broadcast %cst_137 : f32 to vector<8x16xf32>
    %273 = arith.mulf %272, %271 : vector<8x16xf32>
    %274 = arith.addf %248, %273 : vector<8x16xf32>
    %cst_138 = arith.constant dense<0.000000e+00> : vector<8x15xf32>
    %275 = tpu.matmul %274, %6, %cst_138 {dimension_numbers = #tpu.dot_dimension_numbers<[1], [0], [0], [1], [0, 0, 1, 1], [], []>} : vector<8x16xf32>, vector<16x15xf32>, vector<8x15xf32> -> vector<8x15xf32>
    %276 = vector.broadcast %7 : vector<1x15xf32> to vector<8x15xf32>
    %277 = arith.addf %275, %276 : vector<8x15xf32>
    %cst_139 = arith.constant 0.000000e+00 : f32
    %278 = vector.broadcast %cst_139 : f32 to vector<8x15xf32>
    %279 = arith.maximumf %277, %278 : vector<8x15xf32>
    %cst_140 = arith.constant dense<0.000000e+00> : vector<8x15xf32>
    %280 = tpu.matmul %279, %8, %cst_140 {dimension_numbers = #tpu.dot_dimension_numbers<[1], [0], [0], [1], [0, 0, 1, 1], [], []>} : vector<8x15xf32>, vector<15x15xf32>, vector<8x15xf32> -> vector<8x15xf32>
    %281 = vector.broadcast %9 : vector<1x15xf32> to vector<8x15xf32>
    %282 = arith.addf %280, %281 : vector<8x15xf32>
    %cst_141 = arith.constant 0.000000e+00 : f32
    %283 = vector.broadcast %cst_141 : f32 to vector<8x15xf32>
    %284 = arith.maximumf %282, %283 : vector<8x15xf32>
    %cst_142 = arith.constant dense<0.000000e+00> : vector<8x15xf32>
    %285 = tpu.matmul %284, %10, %cst_142 {dimension_numbers = #tpu.dot_dimension_numbers<[1], [0], [0], [1], [0, 0, 1, 1], [], []>} : vector<8x15xf32>, vector<15x15xf32>, vector<8x15xf32> -> vector<8x15xf32>
    %286 = vector.broadcast %11 : vector<1x15xf32> to vector<8x15xf32>
    %287 = arith.addf %285, %286 : vector<8x15xf32>
    %288 = math.tanh %287 : vector<8x15xf32>
    %cst_143 = arith.constant dense<0.000000e+00> : vector<8x128xf32>
    %289 = tpu.matmul %288, %12, %cst_143 {dimension_numbers = #tpu.dot_dimension_numbers<[1], [0], [0], [1], [0, 0, 1, 1], [], []>} : vector<8x15xf32>, vector<15x128xf32>, vector<8x128xf32> -> vector<8x128xf32>
    %290 = vector.broadcast %13 : vector<1x128xf32> to vector<8x128xf32>
    %291 = arith.addf %289, %290 : vector<8x128xf32>
    %292 = arith.mulf %291, %251 : vector<8x128xf32>
    %c0_144 = arith.constant 0 : index
    %c0_145 = arith.constant 0 : index
    %293 = vector.load %arg13[%c0_144, %c0_145] : memref<128x16xf32, #tpu.memory_space<vmem>>, vector<128x16xf32>
    %cst_146 = arith.constant dense<0.000000e+00> : vector<8x16xf32>
    %294 = tpu.matmul %292, %293, %cst_146 {dimension_numbers = #tpu.dot_dimension_numbers<[1], [0], [0], [1], [0, 0, 1, 1], [], []>} : vector<8x128xf32>, vector<128x16xf32>, vector<8x16xf32> -> vector<8x16xf32>
    %295 = arith.addf %248, %294 : vector<8x16xf32>
    %c6_i32 = arith.constant 6 : i32
    %296 = arith.index_cast %c6_i32 : i32 to index
    %c0_147 = arith.constant 0 : index
    %c0_148 = arith.constant 0 : index
    %297 = vector.load %arg2[%296, %c0_147, %c0_148] : memref<9x8x128xf32, #tpu.memory_space<vmem>>, vector<1x8x128xf32>
    %298 = vector.shape_cast %297 : vector<1x8x128xf32> to vector<8x128xf32>
    %cst_149 = arith.constant dense<0.000000e+00> : vector<8x15xf32>
    %299 = tpu.matmul %295, %6, %cst_149 {dimension_numbers = #tpu.dot_dimension_numbers<[1], [0], [0], [1], [0, 0, 1, 1], [], []>} : vector<8x16xf32>, vector<16x15xf32>, vector<8x15xf32> -> vector<8x15xf32>
    %300 = vector.broadcast %7 : vector<1x15xf32> to vector<8x15xf32>
    %301 = arith.addf %299, %300 : vector<8x15xf32>
    %cst_150 = arith.constant 0.000000e+00 : f32
    %302 = vector.broadcast %cst_150 : f32 to vector<8x15xf32>
    %303 = arith.maximumf %301, %302 : vector<8x15xf32>
    %cst_151 = arith.constant dense<0.000000e+00> : vector<8x15xf32>
    %304 = tpu.matmul %303, %8, %cst_151 {dimension_numbers = #tpu.dot_dimension_numbers<[1], [0], [0], [1], [0, 0, 1, 1], [], []>} : vector<8x15xf32>, vector<15x15xf32>, vector<8x15xf32> -> vector<8x15xf32>
    %305 = vector.broadcast %9 : vector<1x15xf32> to vector<8x15xf32>
    %306 = arith.addf %304, %305 : vector<8x15xf32>
    %cst_152 = arith.constant 0.000000e+00 : f32
    %307 = vector.broadcast %cst_152 : f32 to vector<8x15xf32>
    %308 = arith.maximumf %306, %307 : vector<8x15xf32>
    %cst_153 = arith.constant dense<0.000000e+00> : vector<8x15xf32>
    %309 = tpu.matmul %308, %10, %cst_153 {dimension_numbers = #tpu.dot_dimension_numbers<[1], [0], [0], [1], [0, 0, 1, 1], [], []>} : vector<8x15xf32>, vector<15x15xf32>, vector<8x15xf32> -> vector<8x15xf32>
    %310 = vector.broadcast %11 : vector<1x15xf32> to vector<8x15xf32>
    %311 = arith.addf %309, %310 : vector<8x15xf32>
    %312 = math.tanh %311 : vector<8x15xf32>
    %cst_154 = arith.constant dense<0.000000e+00> : vector<8x128xf32>
    %313 = tpu.matmul %312, %12, %cst_154 {dimension_numbers = #tpu.dot_dimension_numbers<[1], [0], [0], [1], [0, 0, 1, 1], [], []>} : vector<8x15xf32>, vector<15x128xf32>, vector<8x128xf32> -> vector<8x128xf32>
    %314 = vector.broadcast %13 : vector<1x128xf32> to vector<8x128xf32>
    %315 = arith.addf %313, %314 : vector<8x128xf32>
    %316 = arith.mulf %315, %298 : vector<8x128xf32>
    %c0_155 = arith.constant 0 : index
    %c0_156 = arith.constant 0 : index
    %317 = vector.load %arg13[%c0_155, %c0_156] : memref<128x16xf32, #tpu.memory_space<vmem>>, vector<128x16xf32>
    %cst_157 = arith.constant dense<0.000000e+00> : vector<8x16xf32>
    %318 = tpu.matmul %316, %317, %cst_157 {dimension_numbers = #tpu.dot_dimension_numbers<[1], [0], [0], [1], [0, 0, 1, 1], [], []>} : vector<8x128xf32>, vector<128x16xf32>, vector<8x16xf32> -> vector<8x16xf32>
    %cst_158 = arith.constant 5.000000e-01 : f32
    %319 = vector.broadcast %cst_158 : f32 to vector<8x16xf32>
    %320 = arith.mulf %319, %318 : vector<8x16xf32>
    %321 = arith.addf %295, %320 : vector<8x16xf32>
    %cst_159 = arith.constant dense<0.000000e+00> : vector<8x15xf32>
    %322 = tpu.matmul %321, %6, %cst_159 {dimension_numbers = #tpu.dot_dimension_numbers<[1], [0], [0], [1], [0, 0, 1, 1], [], []>} : vector<8x16xf32>, vector<16x15xf32>, vector<8x15xf32> -> vector<8x15xf32>
    %323 = vector.broadcast %7 : vector<1x15xf32> to vector<8x15xf32>
    %324 = arith.addf %322, %323 : vector<8x15xf32>
    %cst_160 = arith.constant 0.000000e+00 : f32
    %325 = vector.broadcast %cst_160 : f32 to vector<8x15xf32>
    %326 = arith.maximumf %324, %325 : vector<8x15xf32>
    %cst_161 = arith.constant dense<0.000000e+00> : vector<8x15xf32>
    %327 = tpu.matmul %326, %8, %cst_161 {dimension_numbers = #tpu.dot_dimension_numbers<[1], [0], [0], [1], [0, 0, 1, 1], [], []>} : vector<8x15xf32>, vector<15x15xf32>, vector<8x15xf32> -> vector<8x15xf32>
    %328 = vector.broadcast %9 : vector<1x15xf32> to vector<8x15xf32>
    %329 = arith.addf %327, %328 : vector<8x15xf32>
    %cst_162 = arith.constant 0.000000e+00 : f32
    %330 = vector.broadcast %cst_162 : f32 to vector<8x15xf32>
    %331 = arith.maximumf %329, %330 : vector<8x15xf32>
    %cst_163 = arith.constant dense<0.000000e+00> : vector<8x15xf32>
    %332 = tpu.matmul %331, %10, %cst_163 {dimension_numbers = #tpu.dot_dimension_numbers<[1], [0], [0], [1], [0, 0, 1, 1], [], []>} : vector<8x15xf32>, vector<15x15xf32>, vector<8x15xf32> -> vector<8x15xf32>
    %333 = vector.broadcast %11 : vector<1x15xf32> to vector<8x15xf32>
    %334 = arith.addf %332, %333 : vector<8x15xf32>
    %335 = math.tanh %334 : vector<8x15xf32>
    %cst_164 = arith.constant dense<0.000000e+00> : vector<8x128xf32>
    %336 = tpu.matmul %335, %12, %cst_164 {dimension_numbers = #tpu.dot_dimension_numbers<[1], [0], [0], [1], [0, 0, 1, 1], [], []>} : vector<8x15xf32>, vector<15x128xf32>, vector<8x128xf32> -> vector<8x128xf32>
    %337 = vector.broadcast %13 : vector<1x128xf32> to vector<8x128xf32>
    %338 = arith.addf %336, %337 : vector<8x128xf32>
    %339 = arith.mulf %338, %298 : vector<8x128xf32>
    %c0_165 = arith.constant 0 : index
    %c0_166 = arith.constant 0 : index
    %340 = vector.load %arg13[%c0_165, %c0_166] : memref<128x16xf32, #tpu.memory_space<vmem>>, vector<128x16xf32>
    %cst_167 = arith.constant dense<0.000000e+00> : vector<8x16xf32>
    %341 = tpu.matmul %339, %340, %cst_167 {dimension_numbers = #tpu.dot_dimension_numbers<[1], [0], [0], [1], [0, 0, 1, 1], [], []>} : vector<8x128xf32>, vector<128x16xf32>, vector<8x16xf32> -> vector<8x16xf32>
    %342 = arith.addf %295, %341 : vector<8x16xf32>
    %c7_i32 = arith.constant 7 : i32
    %343 = arith.index_cast %c7_i32 : i32 to index
    %c0_168 = arith.constant 0 : index
    %c0_169 = arith.constant 0 : index
    %344 = vector.load %arg2[%343, %c0_168, %c0_169] : memref<9x8x128xf32, #tpu.memory_space<vmem>>, vector<1x8x128xf32>
    %345 = vector.shape_cast %344 : vector<1x8x128xf32> to vector<8x128xf32>
    %cst_170 = arith.constant dense<0.000000e+00> : vector<8x15xf32>
    %346 = tpu.matmul %342, %6, %cst_170 {dimension_numbers = #tpu.dot_dimension_numbers<[1], [0], [0], [1], [0, 0, 1, 1], [], []>} : vector<8x16xf32>, vector<16x15xf32>, vector<8x15xf32> -> vector<8x15xf32>
    %347 = vector.broadcast %7 : vector<1x15xf32> to vector<8x15xf32>
    %348 = arith.addf %346, %347 : vector<8x15xf32>
    %cst_171 = arith.constant 0.000000e+00 : f32
    %349 = vector.broadcast %cst_171 : f32 to vector<8x15xf32>
    %350 = arith.maximumf %348, %349 : vector<8x15xf32>
    %cst_172 = arith.constant dense<0.000000e+00> : vector<8x15xf32>
    %351 = tpu.matmul %350, %8, %cst_172 {dimension_numbers = #tpu.dot_dimension_numbers<[1], [0], [0], [1], [0, 0, 1, 1], [], []>} : vector<8x15xf32>, vector<15x15xf32>, vector<8x15xf32> -> vector<8x15xf32>
    %352 = vector.broadcast %9 : vector<1x15xf32> to vector<8x15xf32>
    %353 = arith.addf %351, %352 : vector<8x15xf32>
    %cst_173 = arith.constant 0.000000e+00 : f32
    %354 = vector.broadcast %cst_173 : f32 to vector<8x15xf32>
    %355 = arith.maximumf %353, %354 : vector<8x15xf32>
    %cst_174 = arith.constant dense<0.000000e+00> : vector<8x15xf32>
    %356 = tpu.matmul %355, %10, %cst_174 {dimension_numbers = #tpu.dot_dimension_numbers<[1], [0], [0], [1], [0, 0, 1, 1], [], []>} : vector<8x15xf32>, vector<15x15xf32>, vector<8x15xf32> -> vector<8x15xf32>
    %357 = vector.broadcast %11 : vector<1x15xf32> to vector<8x15xf32>
    %358 = arith.addf %356, %357 : vector<8x15xf32>
    %359 = math.tanh %358 : vector<8x15xf32>
    %cst_175 = arith.constant dense<0.000000e+00> : vector<8x128xf32>
    %360 = tpu.matmul %359, %12, %cst_175 {dimension_numbers = #tpu.dot_dimension_numbers<[1], [0], [0], [1], [0, 0, 1, 1], [], []>} : vector<8x15xf32>, vector<15x128xf32>, vector<8x128xf32> -> vector<8x128xf32>
    %361 = vector.broadcast %13 : vector<1x128xf32> to vector<8x128xf32>
    %362 = arith.addf %360, %361 : vector<8x128xf32>
    %363 = arith.mulf %362, %345 : vector<8x128xf32>
    %c0_176 = arith.constant 0 : index
    %c0_177 = arith.constant 0 : index
    %364 = vector.load %arg13[%c0_176, %c0_177] : memref<128x16xf32, #tpu.memory_space<vmem>>, vector<128x16xf32>
    %cst_178 = arith.constant dense<0.000000e+00> : vector<8x16xf32>
    %365 = tpu.matmul %363, %364, %cst_178 {dimension_numbers = #tpu.dot_dimension_numbers<[1], [0], [0], [1], [0, 0, 1, 1], [], []>} : vector<8x128xf32>, vector<128x16xf32>, vector<8x16xf32> -> vector<8x16xf32>
    %cst_179 = arith.constant 5.000000e-01 : f32
    %366 = vector.broadcast %cst_179 : f32 to vector<8x16xf32>
    %367 = arith.mulf %366, %365 : vector<8x16xf32>
    %368 = arith.addf %342, %367 : vector<8x16xf32>
    %cst_180 = arith.constant dense<0.000000e+00> : vector<8x15xf32>
    %369 = tpu.matmul %368, %6, %cst_180 {dimension_numbers = #tpu.dot_dimension_numbers<[1], [0], [0], [1], [0, 0, 1, 1], [], []>} : vector<8x16xf32>, vector<16x15xf32>, vector<8x15xf32> -> vector<8x15xf32>
    %370 = vector.broadcast %7 : vector<1x15xf32> to vector<8x15xf32>
    %371 = arith.addf %369, %370 : vector<8x15xf32>
    %cst_181 = arith.constant 0.000000e+00 : f32
    %372 = vector.broadcast %cst_181 : f32 to vector<8x15xf32>
    %373 = arith.maximumf %371, %372 : vector<8x15xf32>
    %cst_182 = arith.constant dense<0.000000e+00> : vector<8x15xf32>
    %374 = tpu.matmul %373, %8, %cst_182 {dimension_numbers = #tpu.dot_dimension_numbers<[1], [0], [0], [1], [0, 0, 1, 1], [], []>} : vector<8x15xf32>, vector<15x15xf32>, vector<8x15xf32> -> vector<8x15xf32>
    %375 = vector.broadcast %9 : vector<1x15xf32> to vector<8x15xf32>
    %376 = arith.addf %374, %375 : vector<8x15xf32>
    %cst_183 = arith.constant 0.000000e+00 : f32
    %377 = vector.broadcast %cst_183 : f32 to vector<8x15xf32>
    %378 = arith.maximumf %376, %377 : vector<8x15xf32>
    %cst_184 = arith.constant dense<0.000000e+00> : vector<8x15xf32>
    %379 = tpu.matmul %378, %10, %cst_184 {dimension_numbers = #tpu.dot_dimension_numbers<[1], [0], [0], [1], [0, 0, 1, 1], [], []>} : vector<8x15xf32>, vector<15x15xf32>, vector<8x15xf32> -> vector<8x15xf32>
    %380 = vector.broadcast %11 : vector<1x15xf32> to vector<8x15xf32>
    %381 = arith.addf %379, %380 : vector<8x15xf32>
    %382 = math.tanh %381 : vector<8x15xf32>
    %cst_185 = arith.constant dense<0.000000e+00> : vector<8x128xf32>
    %383 = tpu.matmul %382, %12, %cst_185 {dimension_numbers = #tpu.dot_dimension_numbers<[1], [0], [0], [1], [0, 0, 1, 1], [], []>} : vector<8x15xf32>, vector<15x128xf32>, vector<8x128xf32> -> vector<8x128xf32>
    %384 = vector.broadcast %13 : vector<1x128xf32> to vector<8x128xf32>
    %385 = arith.addf %383, %384 : vector<8x128xf32>
    %386 = arith.mulf %385, %345 : vector<8x128xf32>
    %c0_186 = arith.constant 0 : index
    %c0_187 = arith.constant 0 : index
    %387 = vector.load %arg13[%c0_186, %c0_187] : memref<128x16xf32, #tpu.memory_space<vmem>>, vector<128x16xf32>
    %cst_188 = arith.constant dense<0.000000e+00> : vector<8x16xf32>
    %388 = tpu.matmul %386, %387, %cst_188 {dimension_numbers = #tpu.dot_dimension_numbers<[1], [0], [0], [1], [0, 0, 1, 1], [], []>} : vector<8x128xf32>, vector<128x16xf32>, vector<8x16xf32> -> vector<8x16xf32>
    %389 = arith.addf %342, %388 : vector<8x16xf32>
    %c8_i32 = arith.constant 8 : i32
    %390 = arith.index_cast %c8_i32 : i32 to index
    %c0_189 = arith.constant 0 : index
    %c0_190 = arith.constant 0 : index
    %391 = vector.load %arg2[%390, %c0_189, %c0_190] : memref<9x8x128xf32, #tpu.memory_space<vmem>>, vector<1x8x128xf32>
    %392 = vector.shape_cast %391 : vector<1x8x128xf32> to vector<8x128xf32>
    %cst_191 = arith.constant dense<0.000000e+00> : vector<8x15xf32>
    %393 = tpu.matmul %389, %6, %cst_191 {dimension_numbers = #tpu.dot_dimension_numbers<[1], [0], [0], [1], [0, 0, 1, 1], [], []>} : vector<8x16xf32>, vector<16x15xf32>, vector<8x15xf32> -> vector<8x15xf32>
    %394 = vector.broadcast %7 : vector<1x15xf32> to vector<8x15xf32>
    %395 = arith.addf %393, %394 : vector<8x15xf32>
    %cst_192 = arith.constant 0.000000e+00 : f32
    %396 = vector.broadcast %cst_192 : f32 to vector<8x15xf32>
    %397 = arith.maximumf %395, %396 : vector<8x15xf32>
    %cst_193 = arith.constant dense<0.000000e+00> : vector<8x15xf32>
    %398 = tpu.matmul %397, %8, %cst_193 {dimension_numbers = #tpu.dot_dimension_numbers<[1], [0], [0], [1], [0, 0, 1, 1], [], []>} : vector<8x15xf32>, vector<15x15xf32>, vector<8x15xf32> -> vector<8x15xf32>
    %399 = vector.broadcast %9 : vector<1x15xf32> to vector<8x15xf32>
    %400 = arith.addf %398, %399 : vector<8x15xf32>
    %cst_194 = arith.constant 0.000000e+00 : f32
    %401 = vector.broadcast %cst_194 : f32 to vector<8x15xf32>
    %402 = arith.maximumf %400, %401 : vector<8x15xf32>
    %cst_195 = arith.constant dense<0.000000e+00> : vector<8x15xf32>
    %403 = tpu.matmul %402, %10, %cst_195 {dimension_numbers = #tpu.dot_dimension_numbers<[1], [0], [0], [1], [0, 0, 1, 1], [], []>} : vector<8x15xf32>, vector<15x15xf32>, vector<8x15xf32> -> vector<8x15xf32>
    %404 = vector.broadcast %11 : vector<1x15xf32> to vector<8x15xf32>
    %405 = arith.addf %403, %404 : vector<8x15xf32>
    %406 = math.tanh %405 : vector<8x15xf32>
    %cst_196 = arith.constant dense<0.000000e+00> : vector<8x128xf32>
    %407 = tpu.matmul %406, %12, %cst_196 {dimension_numbers = #tpu.dot_dimension_numbers<[1], [0], [0], [1], [0, 0, 1, 1], [], []>} : vector<8x15xf32>, vector<15x128xf32>, vector<8x128xf32> -> vector<8x128xf32>
    %408 = vector.broadcast %13 : vector<1x128xf32> to vector<8x128xf32>
    %409 = arith.addf %407, %408 : vector<8x128xf32>
    %410 = arith.mulf %409, %392 : vector<8x128xf32>
    %c0_197 = arith.constant 0 : index
    %c0_198 = arith.constant 0 : index
    %411 = vector.load %arg13[%c0_197, %c0_198] : memref<128x16xf32, #tpu.memory_space<vmem>>, vector<128x16xf32>
    %cst_199 = arith.constant dense<0.000000e+00> : vector<8x16xf32>
    %412 = tpu.matmul %410, %411, %cst_199 {dimension_numbers = #tpu.dot_dimension_numbers<[1], [0], [0], [1], [0, 0, 1, 1], [], []>} : vector<8x128xf32>, vector<128x16xf32>, vector<8x16xf32> -> vector<8x16xf32>
    %cst_200 = arith.constant 5.000000e-01 : f32
    %413 = vector.broadcast %cst_200 : f32 to vector<8x16xf32>
    %414 = arith.mulf %413, %412 : vector<8x16xf32>
    %415 = arith.addf %389, %414 : vector<8x16xf32>
    %cst_201 = arith.constant dense<0.000000e+00> : vector<8x15xf32>
    %416 = tpu.matmul %415, %6, %cst_201 {dimension_numbers = #tpu.dot_dimension_numbers<[1], [0], [0], [1], [0, 0, 1, 1], [], []>} : vector<8x16xf32>, vector<16x15xf32>, vector<8x15xf32> -> vector<8x15xf32>
    %417 = vector.broadcast %7 : vector<1x15xf32> to vector<8x15xf32>
    %418 = arith.addf %416, %417 : vector<8x15xf32>
    %cst_202 = arith.constant 0.000000e+00 : f32
    %419 = vector.broadcast %cst_202 : f32 to vector<8x15xf32>
    %420 = arith.maximumf %418, %419 : vector<8x15xf32>
    %cst_203 = arith.constant dense<0.000000e+00> : vector<8x15xf32>
    %421 = tpu.matmul %420, %8, %cst_203 {dimension_numbers = #tpu.dot_dimension_numbers<[1], [0], [0], [1], [0, 0, 1, 1], [], []>} : vector<8x15xf32>, vector<15x15xf32>, vector<8x15xf32> -> vector<8x15xf32>
    %422 = vector.broadcast %9 : vector<1x15xf32> to vector<8x15xf32>
    %423 = arith.addf %421, %422 : vector<8x15xf32>
    %cst_204 = arith.constant 0.000000e+00 : f32
    %424 = vector.broadcast %cst_204 : f32 to vector<8x15xf32>
    %425 = arith.maximumf %423, %424 : vector<8x15xf32>
    %cst_205 = arith.constant dense<0.000000e+00> : vector<8x15xf32>
    %426 = tpu.matmul %425, %10, %cst_205 {dimension_numbers = #tpu.dot_dimension_numbers<[1], [0], [0], [1], [0, 0, 1, 1], [], []>} : vector<8x15xf32>, vector<15x15xf32>, vector<8x15xf32> -> vector<8x15xf32>
    %427 = vector.broadcast %11 : vector<1x15xf32> to vector<8x15xf32>
    %428 = arith.addf %426, %427 : vector<8x15xf32>
    %429 = math.tanh %428 : vector<8x15xf32>
    %cst_206 = arith.constant dense<0.000000e+00> : vector<8x128xf32>
    %430 = tpu.matmul %429, %12, %cst_206 {dimension_numbers = #tpu.dot_dimension_numbers<[1], [0], [0], [1], [0, 0, 1, 1], [], []>} : vector<8x15xf32>, vector<15x128xf32>, vector<8x128xf32> -> vector<8x128xf32>
    %431 = vector.broadcast %13 : vector<1x128xf32> to vector<8x128xf32>
    %432 = arith.addf %430, %431 : vector<8x128xf32>
    %433 = arith.mulf %432, %392 : vector<8x128xf32>
    %c0_207 = arith.constant 0 : index
    %c0_208 = arith.constant 0 : index
    %434 = vector.load %arg13[%c0_207, %c0_208] : memref<128x16xf32, #tpu.memory_space<vmem>>, vector<128x16xf32>
    %cst_209 = arith.constant dense<0.000000e+00> : vector<8x16xf32>
    %435 = tpu.matmul %433, %434, %cst_209 {dimension_numbers = #tpu.dot_dimension_numbers<[1], [0], [0], [1], [0, 0, 1, 1], [], []>} : vector<8x128xf32>, vector<128x16xf32>, vector<8x16xf32> -> vector<8x16xf32>
    %436 = arith.addf %389, %435 : vector<8x16xf32>
    %c9_i32 = arith.constant 9 : i32
    %c0_210 = arith.constant 0 : index
    %c0_211 = arith.constant 0 : index
    %437 = vector.load %arg14[%c0_210, %c0_211] : memref<16x3xf32, #tpu.memory_space<vmem>>, vector<16x3xf32>
    %cst_212 = arith.constant dense<0.000000e+00> : vector<8x3xf32>
    %438 = tpu.matmul %436, %437, %cst_212 {dimension_numbers = #tpu.dot_dimension_numbers<[1], [0], [0], [1], [0, 0, 1, 1], [], []>} : vector<8x16xf32>, vector<16x3xf32>, vector<8x3xf32> -> vector<8x3xf32>
    %c0_213 = arith.constant 0 : index
    %c0_214 = arith.constant 0 : index
    %439 = vector.load %arg15[%c0_213, %c0_214] : memref<1x3xf32, #tpu.memory_space<vmem>>, vector<1x3xf32>
    %440 = vector.broadcast %439 : vector<1x3xf32> to vector<8x3xf32>
    %441 = arith.addf %438, %440 : vector<8x3xf32>
    %c0_215 = arith.constant 0 : index
    %c0_216 = arith.constant 0 : index
    %442 = vector.load %arg16[%c0_215, %c0_216] : memref<8x3xf32, #tpu.memory_space<vmem>>, vector<8x3xf32>
    tpu.vector_store %arg16[%c0_215, %c0_216], %441 {strides = array<i32>} : memref<8x3xf32, #tpu.memory_space<vmem>>, vector<8x3xf32>,
    return
  }
  func.func @transform_0(%arg0: i32) -> (i32, i32) {
    %c0_i32 = arith.constant 0 : i32
    %c0_i32_0 = arith.constant 0 : i32
    return %arg0, %c0_i32 : i32, i32
  }
  func.func @transform_1(%arg0: i32) -> (i32, i32, i32) {
    %c0_i32 = arith.constant 0 : i32
    %c0_i32_0 = arith.constant 0 : i32
    %c0_i32_1 = arith.constant 0 : i32
    return %c0_i32, %arg0, %c0_i32_0 : i32, i32, i32
  }
  func.func @transform_2(%arg0: i32) -> (i32, i32) {
    %c0_i32 = arith.constant 0 : i32
    %c0_i32_0 = arith.constant 0 : i32
    %c0_i32_1 = arith.constant 0 : i32
    return %c0_i32, %c0_i32_0 : i32, i32
  }
  func.func @transform_3(%arg0: i32) -> (i32, i32) {
    %c0_i32 = arith.constant 0 : i32
    %c0_i32_0 = arith.constant 0 : i32
    %c0_i32_1 = arith.constant 0 : i32
    return %c0_i32, %c0_i32_0 : i32, i32
  }
  func.func @transform_4(%arg0: i32) -> (i32, i32) {
    %c0_i32 = arith.constant 0 : i32
    %c0_i32_0 = arith.constant 0 : i32
    %c0_i32_1 = arith.constant 0 : i32
    return %c0_i32, %c0_i32_0 : i32, i32
  }
  func.func @transform_5(%arg0: i32) -> (i32, i32) {
    %c0_i32 = arith.constant 0 : i32
    %c0_i32_0 = arith.constant 0 : i32
    %c0_i32_1 = arith.constant 0 : i32
    return %c0_i32, %c0_i32_0 : i32, i32
  }
  func.func @transform_6(%arg0: i32) -> (i32, i32) {
    %c0_i32 = arith.constant 0 : i32
    %c0_i32_0 = arith.constant 0 : i32
    %c0_i32_1 = arith.constant 0 : i32
    return %c0_i32, %c0_i32_0 : i32, i32
  }
  func.func @transform_7(%arg0: i32) -> (i32, i32) {
    %c0_i32 = arith.constant 0 : i32
    %c0_i32_0 = arith.constant 0 : i32
    %c0_i32_1 = arith.constant 0 : i32
    return %c0_i32, %c0_i32_0 : i32, i32
  }
  func.func @transform_8(%arg0: i32) -> (i32, i32) {
    %c0_i32 = arith.constant 0 : i32
    %c0_i32_0 = arith.constant 0 : i32
    %c0_i32_1 = arith.constant 0 : i32
    return %c0_i32, %c0_i32_0 : i32, i32
  }
  func.func @transform_9(%arg0: i32) -> (i32, i32) {
    %c0_i32 = arith.constant 0 : i32
    %c0_i32_0 = arith.constant 0 : i32
    %c0_i32_1 = arith.constant 0 : i32
    return %c0_i32, %c0_i32_0 : i32, i32
  }
  func.func @transform_10(%arg0: i32) -> (i32, i32) {
    %c0_i32 = arith.constant 0 : i32
    %c0_i32_0 = arith.constant 0 : i32
    %c0_i32_1 = arith.constant 0 : i32
    return %c0_i32, %c0_i32_0 : i32, i32
  }
  func.func @transform_11(%arg0: i32) -> (i32, i32) {
    %c0_i32 = arith.constant 0 : i32
    %c0_i32_0 = arith.constant 0 : i32
    %c0_i32_1 = arith.constant 0 : i32
    return %c0_i32, %c0_i32_0 : i32, i32
  }
  func.func @transform_12(%arg0: i32) -> (i32, i32) {
    %c0_i32 = arith.constant 0 : i32
    %c0_i32_0 = arith.constant 0 : i32
    %c0_i32_1 = arith.constant 0 : i32
    return %c0_i32, %c0_i32_0 : i32, i32
  }
  func.func @transform_13(%arg0: i32) -> (i32, i32) {
    %c0_i32 = arith.constant 0 : i32
    %c0_i32_0 = arith.constant 0 : i32
    %c0_i32_1 = arith.constant 0 : i32
    return %c0_i32, %c0_i32_0 : i32, i32
  }
  func.func @transform_14(%arg0: i32) -> (i32, i32) {
    %c0_i32 = arith.constant 0 : i32
    %c0_i32_0 = arith.constant 0 : i32
    %c0_i32_1 = arith.constant 0 : i32
    return %c0_i32, %c0_i32_0 : i32, i32
  }
  func.func @transform_15(%arg0: i32) -> (i32, i32) {
    %c0_i32 = arith.constant 0 : i32
    %c0_i32_0 = arith.constant 0 : i32
    return %arg0, %c0_i32 : i32, i32
  }
}

</mosaic_0001>

<llo_original>
// kernel: tpu_custom_call.1
$region0: #{tpu_custom_call.1}
  #allocation0 [shape = 'u32[]', space=smem, size = 0x4, offset = 0x4, fixed_abs, tag = 'smem constant byte address 0x4 - core index']
  #allocation1 [shape = 'u32[144,128]{1,0:T(1,128)}', space=vmem, size = 0x12000, scoped, tag = 'internal scratch']
  %s0 = inlined_call_operand.vmem [shape: f32[8,5], index: 0, kind: input, shape index: {}]
  %s1 = inlined_call_operand.vmem [shape: f32[9,8,128], index: 1, kind: input, shape index: {}]
  %s2 = inlined_call_operand.vmem [shape: f32[5,16], index: 2, kind: input, shape index: {}]
  %s3 = inlined_call_operand.vmem [shape: f32[1,16], index: 3, kind: input, shape index: {}]
  %s4 = inlined_call_operand.vmem [shape: f32[16,15], index: 4, kind: input, shape index: {}]
  %s5 = inlined_call_operand.vmem [shape: f32[1,15], index: 5, kind: input, shape index: {}]
  %s6 = inlined_call_operand.vmem [shape: f32[15,15], index: 6, kind: input, shape index: {}]
  %s7 = inlined_call_operand.vmem [shape: f32[1,15], index: 7, kind: input, shape index: {}]
  %s8 = inlined_call_operand.vmem [shape: f32[15,15], index: 8, kind: input, shape index: {}]
  %s9 = inlined_call_operand.vmem [shape: f32[1,15], index: 9, kind: input, shape index: {}]
  %s10 = inlined_call_operand.vmem [shape: f32[15,128], index: 10, kind: input, shape index: {}]
  %s11 = inlined_call_operand.vmem [shape: f32[1,128], index: 11, kind: input, shape index: {}]
  %s12 = inlined_call_operand.vmem [shape: f32[128,16], index: 12, kind: input, shape index: {}]
  %s13 = inlined_call_operand.vmem [shape: f32[16,3], index: 13, kind: input, shape index: {}]
  %s14 = inlined_call_operand.vmem [shape: f32[1,3], index: 14, kind: input, shape index: {}]
  %s15 = inlined_call_operand.vmem [shape: f32[8,3], index: 15, kind: output, shape index: {}]
  %s16 = sld [smem:[#allocation0]]
  $region70: #{tpu_custom_call.1} parent=0
    _
  %s18 = ssub.s32 1, %s16
  %s19 = scalar_select 0, %s18, %s16
  // Predicated region
  $region2: #{tpu_custom_call.1} parent=0 // pred_check
    _
  $region3: #{tpu_custom_call.1} parent=0 // pred_check_branch
    %21 = sbr.rel (0) target = $region5
  $region4: #{tpu_custom_call.1} parent=0 // pred_region
    _
  $region5: #{tpu_custom_call.1} parent=0 // pred_fallthru
    _
  // Predicated region
  $region6: #{tpu_custom_call.1} parent=0 // pred_check
    _
  $region7: #{tpu_custom_call.1} parent=0 // pred_check_branch
    %23 = sbr.rel (0) target = $region9
  $region8: #{tpu_custom_call.1} parent=0 // pred_region
    _
  $region9: #{tpu_custom_call.1} parent=0 // pred_fallthru
    _
  // Predicated region
  $region10: #{tpu_custom_call.1} parent=0 // pred_check
    _
  $region11: #{tpu_custom_call.1} parent=0 // pred_check_branch
    %25 = sbr.rel (0) target = $region13
  $region12: #{tpu_custom_call.1} parent=0 // pred_region
    _
  $region13: #{tpu_custom_call.1} parent=0 // pred_fallthru
    _
  // Predicated region
  $region14: #{tpu_custom_call.1} parent=0 // pred_check
    _
  $region15: #{tpu_custom_call.1} parent=0 // pred_check_branch
    %27 = sbr.rel (0) target = $region17
  $region16: #{tpu_custom_call.1} parent=0 // pred_region
    _
  $region17: #{tpu_custom_call.1} parent=0 // pred_fallthru
    _
  // Predicated region
  $region18: #{tpu_custom_call.1} parent=0 // pred_check
    _
  $region19: #{tpu_custom_call.1} parent=0 // pred_check_branch
    %29 = sbr.rel (0) target = $region21
  $region20: #{tpu_custom_call.1} parent=0 // pred_region
    _
  $region21: #{tpu_custom_call.1} parent=0 // pred_fallthru
    _
  // Predicated region
  $region22: #{tpu_custom_call.1} parent=0 // pred_check
    _
  $region23: #{tpu_custom_call.1} parent=0 // pred_check_branch
    %31 = sbr.rel (0) target = $region25
  $region24: #{tpu_custom_call.1} parent=0 // pred_region
    _
  $region25: #{tpu_custom_call.1} parent=0 // pred_fallthru
    _
  // Predicated region
  $region26: #{tpu_custom_call.1} parent=0 // pred_check
    _
  $region27: #{tpu_custom_call.1} parent=0 // pred_check_branch
    %33 = sbr.rel (0) target = $region29
  $region28: #{tpu_custom_call.1} parent=0 // pred_region
    _
  $region29: #{tpu_custom_call.1} parent=0 // pred_fallthru
    _
  // Predicated region
  $region30: #{tpu_custom_call.1} parent=0 // pred_check
    _
  $region31: #{tpu_custom_call.1} parent=0 // pred_check_branch
    %35 = sbr.rel (0) target = $region33
  $region32: #{tpu_custom_call.1} parent=0 // pred_region
    _
  $region33: #{tpu_custom_call.1} parent=0 // pred_fallthru
    _
  // Predicated region
  $region34: #{tpu_custom_call.1} parent=0 // pred_check
    _
  $region35: #{tpu_custom_call.1} parent=0 // pred_check_branch
    %37 = sbr.rel (0) target = $region37
  $region36: #{tpu_custom_call.1} parent=0 // pred_region
    _
  $region37: #{tpu_custom_call.1} parent=0 // pred_fallthru
    _
  // Predicated region
  $region38: #{tpu_custom_call.1} parent=0 // pred_check
    _
  $region39: #{tpu_custom_call.1} parent=0 // pred_check_branch
    %39 = sbr.rel (0) target = $region41
  $region40: #{tpu_custom_call.1} parent=0 // pred_region
    _
  $region41: #{tpu_custom_call.1} parent=0 // pred_fallthru
    _
  // Predicated region
  $region42: #{tpu_custom_call.1} parent=0 // pred_check
    _
  $region43: #{tpu_custom_call.1} parent=0 // pred_check_branch
    %41 = sbr.rel (0) target = $region45
  $region44: #{tpu_custom_call.1} parent=0 // pred_region
    _
  $region45: #{tpu_custom_call.1} parent=0 // pred_fallthru
    _
  // Predicated region
  $region46: #{tpu_custom_call.1} parent=0 // pred_check
    _
  $region47: #{tpu_custom_call.1} parent=0 // pred_check_branch
    %43 = sbr.rel (0) target = $region49
  $region48: #{tpu_custom_call.1} parent=0 // pred_region
    _
  $region49: #{tpu_custom_call.1} parent=0 // pred_fallthru
    _
  // Predicated region
  $region50: #{tpu_custom_call.1} parent=0 // pred_check
    _
  $region51: #{tpu_custom_call.1} parent=0 // pred_check_branch
    %45 = sbr.rel (0) target = $region53
  $region52: #{tpu_custom_call.1} parent=0 // pred_region
    _
  $region53: #{tpu_custom_call.1} parent=0 // pred_fallthru
    _
  // Predicated region
  $region54: #{tpu_custom_call.1} parent=0 // pred_check
    _
  $region55: #{tpu_custom_call.1} parent=0 // pred_check_branch
    %47 = sbr.rel (0) target = $region57
  $region56: #{tpu_custom_call.1} parent=0 // pred_region
    _
  $region57: #{tpu_custom_call.1} parent=0 // pred_fallthru
    _
  // Predicated region
  $region58: #{tpu_custom_call.1} parent=0 // pred_check
    _
  $region59: #{tpu_custom_call.1} parent=0 // pred_check_branch
    %49 = sbr.rel (0) target = $region61
  $region60: #{tpu_custom_call.1} parent=0 // pred_region
    _
  $region61: #{tpu_custom_call.1} parent=0 // pred_fallthru
    _
  %v50 = vld [vmem:[%s0] sm:$0xff]
  %v51 = vld [vmem:[%s2] sm:$0x1f]
  %v52 = vld [vmem:[%s3] sm:$0x1]
  %v54 = vlaneseq
  %v55 = vshrl.u32 %v54, 7
  %v56 = vsub.s32 0, %v55
  %v57 = vrot.slane %v52, %v56
  %vm59 = vcmask 39936
  %v61 = vsel %vm59, %v50, 0
  %vm63 = vcmask 1044480
  %v65 = vsel %vm63, %v51, 0
  %67 = vmatprep.subr.mxu0 0.0
  %68 = vmatpush1.msra.mxu0 %v65
  %69 = vmatprep.subr.mxu0 0.0
  %70 = vmatpush1.msra.mxu0 0.0
  %71 = vmatprep.subr.mxu0 0.0
  %72 = vmatpush1.msra.mxu0 0.0
  %73 = vmatprep.subr.mxu0 0.0
  %74 = vmatpush1.msra.mxu0 0.0
  %75 = vmatprep.subr.mxu0 0.0
  %76 = vmatpush1.msra.mxu0 0.0
  %77 = vmatprep.subr.mxu0 0.0
  %78 = vmatpush1.msra.mxu0 0.0
  %79 = vmatprep.subr.mxu0 0.0
  %80 = vmatpush1.msra.mxu0 0.0
  %81 = vmatprep.subr.mxu0 0.0
  %82 = vmatpush1.msra.mxu0 0.0
  %83 = vmatprep.subr.mxu0 0.0
  %84 = vmatpush1.msra.mxu0 0.0
  %85 = vmatprep.subr.mxu0 0.0
  %86 = vmatpush1.msra.mxu0 0.0
  %87 = vmatprep.subr.mxu0 0.0
  %88 = vmatpush1.msra.mxu0 0.0
  %89 = vmatprep.subr.mxu0 0.0
  %90 = vmatpush1.msra.mxu0 0.0
  %91 = vmatprep.subr.mxu0 0.0
  %92 = vmatpush1.msra.mxu0 0.0
  %93 = vmatprep.subr.mxu0 0.0
  %94 = vmatpush1.msra.mxu0 0.0
  %95 = vmatprep.subr.mxu0 0.0
  %96 = vmatpush1.msra.mxu0 0.0
  %97 = vmatprep.subr.mxu0 0.0
  %98 = vmatpush1.msra.mxu0 0.0
  %99 = vmatprep.subr.mxu0 0.0
  %100 = vmatpush1.msra.mxu0 0.0
  %101 = vmatprep.subr.mxu0 0.0
  %102 = vmatpush1.msra.mxu0 0.0
  %103 = vmatprep.subr.mxu0 0.0
  %104 = vmatpush1.msra.mxu0 0.0
  %105 = vmatprep.subr.mxu0 0.0
  %106 = vmatpush1.msra.mxu0 0.0
  %107 = vmatprep.subr.mxu0 0.0
  %108 = vmatpush1.msra.mxu0 0.0
  %109 = vmatprep.subr.mxu0 0.0
  %110 = vmatpush1.msra.mxu0 0.0
  %111 = vmatprep.subr.mxu0 0.0
  %112 = vmatpush1.msra.mxu0 0.0
  %113 = vmatprep.subr.mxu0 0.0
  %114 = vmatpush1.msra.mxu0 0.0
  %115 = vmatprep.subr.mxu0 0.0
  %116 = vmatpush1.msra.mxu0 0.0
  %117 = vmatprep.subr.mxu0 0.0
  %118 = vmatpush1.msra.mxu0 0.0
  %119 = vmatprep.subr.mxu0 0.0
  %120 = vmatpush1.msra.mxu0 0.0
  %121 = vmatprep.subr.mxu0 0.0
  %122 = vmatpush1.msra.mxu0 0.0
  %123 = vmatprep.subr.mxu0 0.0
  %124 = vmatpush1.msra.mxu0 0.0
  %125 = vmatprep.subr.mxu0 0.0
  %126 = vmatpush1.msra.mxu0 0.0
  %127 = vmatprep.subr.mxu0 0.0
  %128 = vmatpush1.msra.mxu0 0.0
  %129 = vmatprep.subr.mxu0 0.0
  %130 = vmatpush1.msra.mxu0 0.0
  %131 = vmatprep.mubr.f32.mxu0 0.0
  %132 = vmatmul.mubr.f32.gmra.mrb[0].mxu0 %v61
  %v133 = vpop.f32.mrb[0].mxu0
  %v134 = vadd.f32 %v57, %v133
  %v135 = vpop.f32.mrb[0].mxu0
  %136 = vdwg.mxu0
  %v137 = vld [vmem:[%s4] sm:$0xff]
  %v138 = vld [vmem:[%s4 + $0x8] sm:$0xff]
  %v139 = vld [vmem:[%s5] sm:$0x1]
  %v140 = vld [vmem:[%s6] sm:$0xff]
  %v141 = vld [vmem:[%s6 + $0x8] sm:$0x7f]
  %v142 = vld [vmem:[%s7] sm:$0x1]
  %v143 = vld [vmem:[%s8] sm:$0xff]
  %v144 = vld [vmem:[%s8 + $0x8] sm:$0x7f]
  %v145 = vld [vmem:[%s9] sm:$0x1]
  %v146 = vld [vmem:[%s10] sm:$0xff]
  %v147 = vld [vmem:[%s10 + $0x8] sm:$0x7f]
  %v148 = vld [vmem:[%s11] sm:$0x1]
  %v149 = vld [vmem:[%s1] sm:$0xff]
  %v151 = vlaneseq
  %v152 = vshrl.u32 %v151, 7
  %v153 = vsub.s32 0, %v152
  %v154 = vrot.slane %v139, %v153
  %vm156 = vcmask 130048
  %v158 = vsel %vm156, %v134, 0
  %160 = vmatprep.subr.mxu0 0.0
  %161 = vmatpush1.msra.mxu0 %v137
  %162 = vmatprep.subr.mxu0 0.0
  %163 = vmatpush1.msra.mxu0 %v138
  %164 = vmatprep.subr.mxu0 0.0
  %165 = vmatpush1.msra.mxu0 0.0
  %166 = vmatprep.subr.mxu0 0.0
  %167 = vmatpush1.msra.mxu0 0.0
  %168 = vmatprep.subr.mxu0 0.0
  %169 = vmatpush1.msra.mxu0 0.0
  %170 = vmatprep.subr.mxu0 0.0
  %171 = vmatpush1.msra.mxu0 0.0
  %172 = vmatprep.subr.mxu0 0.0
  %173 = vmatpush1.msra.mxu0 0.0
  %174 = vmatprep.subr.mxu0 0.0
  %175 = vmatpush1.msra.mxu0 0.0
  %176 = vmatprep.subr.mxu0 0.0
  %177 = vmatpush1.msra.mxu0 0.0
  %178 = vmatprep.subr.mxu0 0.0
  %179 = vmatpush1.msra.mxu0 0.0
  %180 = vmatprep.subr.mxu0 0.0
  %181 = vmatpush1.msra.mxu0 0.0
  %182 = vmatprep.subr.mxu0 0.0
  %183 = vmatpush1.msra.mxu0 0.0
  %184 = vmatprep.subr.mxu0 0.0
  %185 = vmatpush1.msra.mxu0 0.0
  %186 = vmatprep.subr.mxu0 0.0
  %187 = vmatpush1.msra.mxu0 0.0
  %188 = vmatprep.subr.mxu0 0.0
  %189 = vmatpush1.msra.mxu0 0.0
  %190 = vmatprep.subr.mxu0 0.0
  %191 = vmatpush1.msra.mxu0 0.0
  %192 = vmatprep.subr.mxu0 0.0
  %193 = vmatpush1.msra.mxu0 0.0
  %194 = vmatprep.subr.mxu0 0.0
  %195 = vmatpush1.msra.mxu0 0.0
  %196 = vmatprep.subr.mxu0 0.0
  %197 = vmatpush1.msra.mxu0 0.0
  %198 = vmatprep.subr.mxu0 0.0
  %199 = vmatpush1.msra.mxu0 0.0
  %200 = vmatprep.subr.mxu0 0.0
  %201 = vmatpush1.msra.mxu0 0.0
  %202 = vmatprep.subr.mxu0 0.0
  %203 = vmatpush1.msra.mxu0 0.0
  %204 = vmatprep.subr.mxu0 0.0
  %205 = vmatpush1.msra.mxu0 0.0
  %206 = vmatprep.subr.mxu0 0.0
  %207 = vmatpush1.msra.mxu0 0.0
  %208 = vmatprep.subr.mxu0 0.0
  %209 = vmatpush1.msra.mxu0 0.0
  %210 = vmatprep.subr.mxu0 0.0
  %211 = vmatpush1.msra.mxu0 0.0
  %212 = vmatprep.subr.mxu0 0.0
  %213 = vmatpush1.msra.mxu0 0.0
  %214 = vmatprep.subr.mxu0 0.0
  %215 = vmatpush1.msra.mxu0 0.0
  %216 = vmatprep.subr.mxu0 0.0
  %217 = vmatpush1.msra.mxu0 0.0
  %218 = vmatprep.subr.mxu0 0.0
  %219 = vmatpush1.msra.mxu0 0.0
  %220 = vmatprep.subr.mxu0 0.0
  %221 = vmatpush1.msra.mxu0 0.0
  %222 = vmatprep.subr.mxu0 0.0
  %223 = vmatpush1.msra.mxu0 0.0
  %224 = vmatprep.mubr.f32.mxu0 0.0
  %225 = vmatmul.mubr.f32.gmra.mrb[0].mxu0 %v158
  %v226 = vpop.f32.mrb[0].mxu0
  %v227 = vadd.f32 %v154, %v226
  %v228 = vpop.f32.mrb[0].mxu0
  %229 = vdwg.mxu0
  %v230 = vmax.f32 %v227, 0.0
  %v232 = vlaneseq
  %v233 = vshrl.u32 %v232, 7
  %v234 = vsub.s32 0, %v233
  %v235 = vrot.slane %v142, %v234
  %vm237 = vcmask 121856
  %v239 = vsel %vm237, %v230, 0
  %vm241 = vcmask 1046528
  %v243 = vsel %vm241, %v141, 0
  %245 = vmatprep.subr.mxu0 0.0
  %246 = vmatpush1.msra.mxu0 %v140
  %247 = vmatprep.subr.mxu0 0.0
  %248 = vmatpush1.msra.mxu0 %v243
  %249 = vmatprep.subr.mxu0 0.0
  %250 = vmatpush1.msra.mxu0 0.0
  %251 = vmatprep.subr.mxu0 0.0
  %252 = vmatpush1.msra.mxu0 0.0
  %253 = vmatprep.subr.mxu0 0.0
  %254 = vmatpush1.msra.mxu0 0.0
  %255 = vmatprep.subr.mxu0 0.0
  %256 = vmatpush1.msra.mxu0 0.0
  %257 = vmatprep.subr.mxu0 0.0
  %258 = vmatpush1.msra.mxu0 0.0
  %259 = vmatprep.subr.mxu0 0.0
  %260 = vmatpush1.msra.mxu0 0.0
  %261 = vmatprep.subr.mxu0 0.0
  %262 = vmatpush1.msra.mxu0 0.0
  %263 = vmatprep.subr.mxu0 0.0
  %264 = vmatpush1.msra.mxu0 0.0
  %265 = vmatprep.subr.mxu0 0.0
  %266 = vmatpush1.msra.mxu0 0.0
  %267 = vmatprep.subr.mxu0 0.0
  %268 = vmatpush1.msra.mxu0 0.0
  %269 = vmatprep.subr.mxu0 0.0
  %270 = vmatpush1.msra.mxu0 0.0
  %271 = vmatprep.subr.mxu0 0.0
  %272 = vmatpush1.msra.mxu0 0.0
  %273 = vmatprep.subr.mxu0 0.0
  %274 = vmatpush1.msra.mxu0 0.0
  %275 = vmatprep.subr.mxu0 0.0
  %276 = vmatpush1.msra.mxu0 0.0
  %277 = vmatprep.subr.mxu0 0.0
  %278 = vmatpush1.msra.mxu0 0.0
  %279 = vmatprep.subr.mxu0 0.0
  %280 = vmatpush1.msra.mxu0 0.0
  %281 = vmatprep.subr.mxu0 0.0
  %282 = vmatpush1.msra.mxu0 0.0
  %283 = vmatprep.subr.mxu0 0.0
  %284 = vmatpush1.msra.mxu0 0.0
  %285 = vmatprep.subr.mxu0 0.0
  %286 = vmatpush1.msra.mxu0 0.0
  %287 = vmatprep.subr.mxu0 0.0
  %288 = vmatpush1.msra.mxu0 0.0
  %289 = vmatprep.subr.mxu0 0.0
  %290 = vmatpush1.msra.mxu0 0.0
  %291 = vmatprep.subr.mxu0 0.0
  %292 = vmatpush1.msra.mxu0 0.0
  %293 = vmatprep.subr.mxu0 0.0
  %294 = vmatpush1.msra.mxu0 0.0
  %295 = vmatprep.subr.mxu0 0.0
  %296 = vmatpush1.msra.mxu0 0.0
  %297 = vmatprep.subr.mxu0 0.0
  %298 = vmatpush1.msra.mxu0 0.0
  %299 = vmatprep.subr.mxu0 0.0
  %300 = vmatpush1.msra.mxu0 0.0
  %301 = vmatprep.subr.mxu0 0.0
  %302 = vmatpush1.msra.mxu0 0.0
  %303 = vmatprep.subr.mxu0 0.0
  %304 = vmatpush1.msra.mxu0 0.0
  %305 = vmatprep.subr.mxu0 0.0
  %306 = vmatpush1.msra.mxu0 0.0
  %307 = vmatprep.subr.mxu0 0.0
  %308 = vmatpush1.msra.mxu0 0.0
  %309 = vmatprep.mubr.f32.mxu0 0.0
  %310 = vmatmul.mubr.f32.gmra.mrb[0].mxu0 %v239
  %v311 = vpop.f32.mrb[0].mxu0
  %v312 = vadd.f32 %v235, %v311
  %v313 = vpop.f32.mrb[0].mxu0
  %314 = vdwg.mxu0
  %v315 = vmax.f32 %v312, 0.0
  %v317 = vlaneseq
  %v318 = vshrl.u32 %v317, 7
  %v319 = vsub.s32 0, %v318
  %v320 = vrot.slane %v145, %v319
  %v323 = vsel %vm237, %v315, 0
  %v326 = vsel %vm241, %v144, 0
  %328 = vmatprep.subr.mxu0 0.0
  %329 = vmatpush1.msra.mxu0 %v143
  %330 = vmatprep.subr.mxu0 0.0
  %331 = vmatpush1.msra.mxu0 %v326
  %332 = vmatprep.subr.mxu0 0.0
  %333 = vmatpush1.msra.mxu0 0.0
  %334 = vmatprep.subr.mxu0 0.0
  %335 = vmatpush1.msra.mxu0 0.0
  %336 = vmatprep.subr.mxu0 0.0
  %337 = vmatpush1.msra.mxu0 0.0
  %338 = vmatprep.subr.mxu0 0.0
  %339 = vmatpush1.msra.mxu0 0.0
  %340 = vmatprep.subr.mxu0 0.0
  %341 = vmatpush1.msra.mxu0 0.0
  %342 = vmatprep.subr.mxu0 0.0
  %343 = vmatpush1.msra.mxu0 0.0
  %344 = vmatprep.subr.mxu0 0.0
  %345 = vmatpush1.msra.mxu0 0.0
  %346 = vmatprep.subr.mxu0 0.0
  %347 = vmatpush1.msra.mxu0 0.0
  %348 = vmatprep.subr.mxu0 0.0
  %349 = vmatpush1.msra.mxu0 0.0
  %350 = vmatprep.subr.mxu0 0.0
  %351 = vmatpush1.msra.mxu0 0.0
  %352 = vmatprep.subr.mxu0 0.0
  %353 = vmatpush1.msra.mxu0 0.0
  %354 = vmatprep.subr.mxu0 0.0
  %355 = vmatpush1.msra.mxu0 0.0
  %356 = vmatprep.subr.mxu0 0.0
  %357 = vmatpush1.msra.mxu0 0.0
  %358 = vmatprep.subr.mxu0 0.0
  %359 = vmatpush1.msra.mxu0 0.0
  %360 = vmatprep.subr.mxu0 0.0
  %361 = vmatpush1.msra.mxu0 0.0
  %362 = vmatprep.subr.mxu0 0.0
  %363 = vmatpush1.msra.mxu0 0.0
  %364 = vmatprep.subr.mxu0 0.0
  %365 = vmatpush1.msra.mxu0 0.0
  %366 = vmatprep.subr.mxu0 0.0
  %367 = vmatpush1.msra.mxu0 0.0
  %368 = vmatprep.subr.mxu0 0.0
  %369 = vmatpush1.msra.mxu0 0.0
  %370 = vmatprep.subr.mxu0 0.0
  %371 = vmatpush1.msra.mxu0 0.0
  %372 = vmatprep.subr.mxu0 0.0
  %373 = vmatpush1.msra.mxu0 0.0
  %374 = vmatprep.subr.mxu0 0.0
  %375 = vmatpush1.msra.mxu0 0.0
  %376 = vmatprep.subr.mxu0 0.0
  %377 = vmatpush1.msra.mxu0 0.0
  %378 = vmatprep.subr.mxu0 0.0
  %379 = vmatpush1.msra.mxu0 0.0
  %380 = vmatprep.subr.mxu0 0.0
  %381 = vmatpush1.msra.mxu0 0.0
  %382 = vmatprep.subr.mxu0 0.0
  %383 = vmatpush1.msra.mxu0 0.0
  %384 = vmatprep.subr.mxu0 0.0
  %385 = vmatpush1.msra.mxu0 0.0
  %386 = vmatprep.subr.mxu0 0.0
  %387 = vmatpush1.msra.mxu0 0.0
  %388 = vmatprep.subr.mxu0 0.0
  %389 = vmatpush1.msra.mxu0 0.0
  %390 = vmatprep.subr.mxu0 0.0
  %391 = vmatpush1.msra.mxu0 0.0
  %392 = vmatprep.mubr.f32.mxu0 0.0
  %393 = vmatmul.mubr.f32.gmra.mrb[0].mxu0 %v323
  %v394 = vpop.f32.mrb[0].mxu0
  %v395 = vadd.f32 %v320, %v394
  %v396 = vpop.f32.mrb[0].mxu0
  %397 = vdwg.mxu0
  %v398 = vtanh.pop %v395
  %v400 = vlaneseq
  %v401 = vshrl.u32 %v400, 7
  %v402 = vsub.s32 0, %v401
  %v403 = vrot.slane %v148, %v402
  %v406 = vsel %vm237, %v398, 0
  %v409 = vsel %vm241, %v147, 0
  %411 = vmatprep.subr.mxu0 0.0
  %412 = vmatpush1.msra.mxu0 %v146
  %413 = vmatprep.subr.mxu0 0.0
  %414 = vmatpush1.msra.mxu0 %v409
  %415 = vmatprep.subr.mxu0 0.0
  %416 = vmatpush1.msra.mxu0 0.0
  %417 = vmatprep.subr.mxu0 0.0
  %418 = vmatpush1.msra.mxu0 0.0
  %419 = vmatprep.subr.mxu0 0.0
  %420 = vmatpush1.msra.mxu0 0.0
  %421 = vmatprep.subr.mxu0 0.0
  %422 = vmatpush1.msra.mxu0 0.0
  %423 = vmatprep.subr.mxu0 0.0
  %424 = vmatpush1.msra.mxu0 0.0
  %425 = vmatprep.subr.mxu0 0.0
  %426 = vmatpush1.msra.mxu0 0.0
  %427 = vmatprep.subr.mxu0 0.0
  %428 = vmatpush1.msra.mxu0 0.0
  %429 = vmatprep.subr.mxu0 0.0
  %430 = vmatpush1.msra.mxu0 0.0
  %431 = vmatprep.subr.mxu0 0.0
  %432 = vmatpush1.msra.mxu0 0.0
  %433 = vmatprep.subr.mxu0 0.0
  %434 = vmatpush1.msra.mxu0 0.0
  %435 = vmatprep.subr.mxu0 0.0
  %436 = vmatpush1.msra.mxu0 0.0
  %437 = vmatprep.subr.mxu0 0.0
  %438 = vmatpush1.msra.mxu0 0.0
  %439 = vmatprep.subr.mxu0 0.0
  %440 = vmatpush1.msra.mxu0 0.0
  %441 = vmatprep.subr.mxu0 0.0
  %442 = vmatpush1.msra.mxu0 0.0
  %443 = vmatprep.subr.mxu0 0.0
  %444 = vmatpush1.msra.mxu0 0.0
  %445 = vmatprep.subr.mxu0 0.0
  %446 = vmatpush1.msra.mxu0 0.0
  %447 = vmatprep.subr.mxu0 0.0
  %448 = vmatpush1.msra.mxu0 0.0
  %449 = vmatprep.subr.mxu0 0.0
  %450 = vmatpush1.msra.mxu0 0.0
  %451 = vmatprep.subr.mxu0 0.0
  %452 = vmatpush1.msra.mxu0 0.0
  %453 = vmatprep.subr.mxu0 0.0
  %454 = vmatpush1.msra.mxu0 0.0
  %455 = vmatprep.subr.mxu0 0.0
  %456 = vmatpush1.msra.mxu0 0.0
  %457 = vmatprep.subr.mxu0 0.0
  %458 = vmatpush1.msra.mxu0 0.0
  %459 = vmatprep.subr.mxu0 0.0
  %460 = vmatpush1.msra.mxu0 0.0
  %461 = vmatprep.subr.mxu0 0.0
  %462 = vmatpush1.msra.mxu0 0.0
  %463 = vmatprep.subr.mxu0 0.0
  %464 = vmatpush1.msra.mxu0 0.0
  %465 = vmatprep.subr.mxu0 0.0
  %466 = vmatpush1.msra.mxu0 0.0
  %467 = vmatprep.subr.mxu0 0.0
  %468 = vmatpush1.msra.mxu0 0.0
  %469 = vmatprep.subr.mxu0 0.0
  %470 = vmatpush1.msra.mxu0 0.0
  %471 = vmatprep.subr.mxu0 0.0
  %472 = vmatpush1.msra.mxu0 0.0
  %473 = vmatprep.subr.mxu0 0.0
  %474 = vmatpush1.msra.mxu0 0.0
  %475 = vmatprep.mubr.f32.mxu0 0.0
  %476 = vmatmul.mubr.f32.gmra.mrb[0].mxu0 %v406
  %v477 = vpop.f32.mrb[0].mxu0
  %v478 = vadd.f32 %v403, %v477
  %v479 = vpop.f32.mrb[0].mxu0
  %480 = vdwg.mxu0
  %v481 = vmul.f32 %v478, %v149
  %v482 = vld [vmem:[%s12] sm:$0xff]
  %v483 = vld [vmem:[%s12 + $0x8] sm:$0xff]
  %v484 = vld [vmem:[%s12 + $0x10] sm:$0xff]
  %v485 = vld [vmem:[%s12 + $0x18] sm:$0xff]
  %v486 = vld [vmem:[%s12 + $0x20] sm:$0xff]
  %v487 = vld [vmem:[%s12 + $0x28] sm:$0xff]
  %v488 = vld [vmem:[%s12 + $0x30] sm:$0xff]
  %v489 = vld [vmem:[%s12 + $0x38] sm:$0xff]
  %v490 = vld [vmem:[%s12 + $0x40] sm:$0xff]
  %v491 = vld [vmem:[%s12 + $0x48] sm:$0xff]
  %v492 = vld [vmem:[%s12 + $0x50] sm:$0xff]
  %v493 = vld [vmem:[%s12 + $0x58] sm:$0xff]
  %v494 = vld [vmem:[%s12 + $0x60] sm:$0xff]
  %v495 = vld [vmem:[%s12 + $0x68] sm:$0xff]
  %v496 = vld [vmem:[%s12 + $0x70] sm:$0xff]
  %v497 = vld [vmem:[%s12 + $0x78] sm:$0xff]
  %498 = vmatprep.subr.mxu0 0.0
  %499 = vmatpush1.msra.mxu0 %v482
  %500 = vmatprep.subr.mxu0 0.0
  %501 = vmatpush1.msra.mxu0 %v483
  %502 = vmatprep.subr.mxu0 0.0
  %503 = vmatpush1.msra.mxu0 %v484
  %504 = vmatprep.subr.mxu0 0.0
  %505 = vmatpush1.msra.mxu0 %v485
  %506 = vmatprep.subr.mxu0 0.0
  %507 = vmatpush1.msra.mxu0 %v486
  %508 = vmatprep.subr.mxu0 0.0
  %509 = vmatpush1.msra.mxu0 %v487
  %510 = vmatprep.subr.mxu0 0.0
  %511 = vmatpush1.msra.mxu0 %v488
  %512 = vmatprep.subr.mxu0 0.0
  %513 = vmatpush1.msra.mxu0 %v489
  %514 = vmatprep.subr.mxu0 0.0
  %515 = vmatpush1.msra.mxu0 %v490
  %516 = vmatprep.subr.mxu0 0.0
  %517 = vmatpush1.msra.mxu0 %v491
  %518 = vmatprep.subr.mxu0 0.0
  %519 = vmatpush1.msra.mxu0 %v492
  %520 = vmatprep.subr.mxu0 0.0
  %521 = vmatpush1.msra.mxu0 %v493
  %522 = vmatprep.subr.mxu0 0.0
  %523 = vmatpush1.msra.mxu0 %v494
  %524 = vmatprep.subr.mxu0 0.0
  %525 = vmatpush1.msra.mxu0 %v495
  %526 = vmatprep.subr.mxu0 0.0
  %527 = vmatpush1.msra.mxu0 %v496
  %528 = vmatprep.subr.mxu0 0.0
  %529 = vmatpush1.msra.mxu0 %v497
  %530 = vmatprep.subr.mxu0 0.0
  %531 = vmatpush1.msra.mxu0 0.0
  %532 = vmatprep.subr.mxu0 0.0
  %533 = vmatpush1.msra.mxu0 0.0
  %534 = vmatprep.subr.mxu0 0.0
  %535 = vmatpush1.msra.mxu0 0.0
  %536 = vmatprep.subr.mxu0 0.0
  %537 = vmatpush1.msra.mxu0 0.0
  %538 = vmatprep.subr.mxu0 0.0
  %539 = vmatpush1.msra.mxu0 0.0
  %540 = vmatprep.subr.mxu0 0.0
  %541 = vmatpush1.msra.mxu0 0.0
  %542 = vmatprep.subr.mxu0 0.0
  %543 = vmatpush1.msra.mxu0 0.0
  %544 = vmatprep.subr.mxu0 0.0
  %545 = vmatpush1.msra.mxu0 0.0
  %546 = vmatprep.subr.mxu0 0.0
  %547 = vmatpush1.msra.mxu0 0.0
  %548 = vmatprep.subr.mxu0 0.0
  %549 = vmatpush1.msra.mxu0 0.0
  %550 = vmatprep.subr.mxu0 0.0
  %551 = vmatpush1.msra.mxu0 0.0
  %552 = vmatprep.subr.mxu0 0.0
  %553 = vmatpush1.msra.mxu0 0.0
  %554 = vmatprep.subr.mxu0 0.0
  %555 = vmatpush1.msra.mxu0 0.0
  %556 = vmatprep.subr.mxu0 0.0
  %557 = vmatpush1.msra.mxu0 0.0
  %558 = vmatprep.subr.mxu0 0.0
  %559 = vmatpush1.msra.mxu0 0.0
  %560 = vmatprep.subr.mxu0 0.0
  %561 = vmatpush1.msra.mxu0 0.0
  %562 = vmatprep.mubr.f32.mxu0 0.0
  %563 = vmatmul.mubr.f32.gmra.mrb[0].mxu0 %v481
  %v564 = vpop.f32.mrb[0].mxu0
  %v565 = vadd.f32 0.0, %v564
  %v566 = vpop.f32.mrb[0].mxu0
  %567 = vdwg.mxu0
  %v568 = vmul.f32 %v565, 0.5
  %v569 = vadd.f32 %v134, %v568
  %v571 = vsel %vm156, %v569, 0
  %573 = vmatprep.subr.mxu0 0.0
  %574 = vmatpush1.msra.mxu0 %v137
  %575 = vmatprep.subr.mxu0 0.0
  %576 = vmatpush1.msra.mxu0 %v138
  %577 = vmatprep.subr.mxu0 0.0
  %578 = vmatpush1.msra.mxu0 0.0
  %579 = vmatprep.subr.mxu0 0.0
  %580 = vmatpush1.msra.mxu0 0.0
  %581 = vmatprep.subr.mxu0 0.0
  %582 = vmatpush1.msra.mxu0 0.0
  %583 = vmatprep.subr.mxu0 0.0
  %584 = vmatpush1.msra.mxu0 0.0
  %585 = vmatprep.subr.mxu0 0.0
  %586 = vmatpush1.msra.mxu0 0.0
  %587 = vmatprep.subr.mxu0 0.0
  %588 = vmatpush1.msra.mxu0 0.0
  %589 = vmatprep.subr.mxu0 0.0
  %590 = vmatpush1.msra.mxu0 0.0
  %591 = vmatprep.subr.mxu0 0.0
  %592 = vmatpush1.msra.mxu0 0.0
  %593 = vmatprep.subr.mxu0 0.0
  %594 = vmatpush1.msra.mxu0 0.0
  %595 = vmatprep.subr.mxu0 0.0
  %596 = vmatpush1.msra.mxu0 0.0
  %597 = vmatprep.subr.mxu0 0.0
  %598 = vmatpush1.msra.mxu0 0.0
  %599 = vmatprep.subr.mxu0 0.0
  %600 = vmatpush1.msra.mxu0 0.0
  %601 = vmatprep.subr.mxu0 0.0
  %602 = vmatpush1.msra.mxu0 0.0
  %603 = vmatprep.subr.mxu0 0.0
  %604 = vmatpush1.msra.mxu0 0.0
  %605 = vmatprep.subr.mxu0 0.0
  %606 = vmatpush1.msra.mxu0 0.0
  %607 = vmatprep.subr.mxu0 0.0
  %608 = vmatpush1.msra.mxu0 0.0
  %609 = vmatprep.subr.mxu0 0.0
  %610 = vmatpush1.msra.mxu0 0.0
  %611 = vmatprep.subr.mxu0 0.0
  %612 = vmatpush1.msra.mxu0 0.0
  %613 = vmatprep.subr.mxu0 0.0
  %614 = vmatpush1.msra.mxu0 0.0
  %615 = vmatprep.subr.mxu0 0.0
  %616 = vmatpush1.msra.mxu0 0.0
  %617 = vmatprep.subr.mxu0 0.0
  %618 = vmatpush1.msra.mxu0 0.0
  %619 = vmatprep.subr.mxu0 0.0
  %620 = vmatpush1.msra.mxu0 0.0
  %621 = vmatprep.subr.mxu0 0.0
  %622 = vmatpush1.msra.mxu0 0.0
  %623 = vmatprep.subr.mxu0 0.0
  %624 = vmatpush1.msra.mxu0 0.0
  %625 = vmatprep.subr.mxu0 0.0
  %626 = vmatpush1.msra.mxu0 0.0
  %627 = vmatprep.subr.mxu0 0.0
  %628 = vmatpush1.msra.mxu0 0.0
  %629 = vmatprep.subr.mxu0 0.0
  %630 = vmatpush1.msra.mxu0 0.0
  %631 = vmatprep.subr.mxu0 0.0
  %632 = vmatpush1.msra.mxu0 0.0
  %633 = vmatprep.subr.mxu0 0.0
  %634 = vmatpush1.msra.mxu0 0.0
  %635 = vmatprep.subr.mxu0 0.0
  %636 = vmatpush1.msra.mxu0 0.0
  %637 = vmatprep.mubr.f32.mxu0 0.0
  %638 = vmatmul.mubr.f32.gmra.mrb[0].mxu0 %v571
  %v639 = vpop.f32.mrb[0].mxu0
  %v640 = vadd.f32 %v154, %v639
  %v641 = vpop.f32.mrb[0].mxu0
  %642 = vdwg.mxu0
  %v643 = vmax.f32 %v640, 0.0
  %v645 = vsel %vm237, %v643, 0
  %647 = vmatprep.subr.mxu0 0.0
  %648 = vmatpush1.msra.mxu0 %v140
  %649 = vmatprep.subr.mxu0 0.0
  %650 = vmatpush1.msra.mxu0 %v243
  %651 = vmatprep.subr.mxu0 0.0
  %652 = vmatpush1.msra.mxu0 0.0
  %653 = vmatprep.subr.mxu0 0.0
  %654 = vmatpush1.msra.mxu0 0.0
  %655 = vmatprep.subr.mxu0 0.0
  %656 = vmatpush1.msra.mxu0 0.0
  %657 = vmatprep.subr.mxu0 0.0
  %658 = vmatpush1.msra.mxu0 0.0
  %659 = vmatprep.subr.mxu0 0.0
  %660 = vmatpush1.msra.mxu0 0.0
  %661 = vmatprep.subr.mxu0 0.0
  %662 = vmatpush1.msra.mxu0 0.0
  %663 = vmatprep.subr.mxu0 0.0
  %664 = vmatpush1.msra.mxu0 0.0
  %665 = vmatprep.subr.mxu0 0.0
  %666 = vmatpush1.msra.mxu0 0.0
  %667 = vmatprep.subr.mxu0 0.0
  %668 = vmatpush1.msra.mxu0 0.0
  %669 = vmatprep.subr.mxu0 0.0
  %670 = vmatpush1.msra.mxu0 0.0
  %671 = vmatprep.subr.mxu0 0.0
  %672 = vmatpush1.msra.mxu0 0.0
  %673 = vmatprep.subr.mxu0 0.0
  %674 = vmatpush1.msra.mxu0 0.0
  %675 = vmatprep.subr.mxu0 0.0
  %676 = vmatpush1.msra.mxu0 0.0
  %677 = vmatprep.subr.mxu0 0.0
  %678 = vmatpush1.msra.mxu0 0.0
  %679 = vmatprep.subr.mxu0 0.0
  %680 = vmatpush1.msra.mxu0 0.0
  %681 = vmatprep.subr.mxu0 0.0
  %682 = vmatpush1.msra.mxu0 0.0
  %683 = vmatprep.subr.mxu0 0.0
  %684 = vmatpush1.msra.mxu0 0.0
  %685 = vmatprep.subr.mxu0 0.0
  %686 = vmatpush1.msra.mxu0 0.0
  %687 = vmatprep.subr.mxu0 0.0
  %688 = vmatpush1.msra.mxu0 0.0
  %689 = vmatprep.subr.mxu0 0.0
  %690 = vmatpush1.msra.mxu0 0.0
  %691 = vmatprep.subr.mxu0 0.0
  %692 = vmatpush1.msra.mxu0 0.0
  %693 = vmatprep.subr.mxu0 0.0
  %694 = vmatpush1.msra.mxu0 0.0
  %695 = vmatprep.subr.mxu0 0.0
  %696 = vmatpush1.msra.mxu0 0.0
  %697 = vmatprep.subr.mxu0 0.0
  %698 = vmatpush1.msra.mxu0 0.0
  %699 = vmatprep.subr.mxu0 0.0
  %700 = vmatpush1.msra.mxu0 0.0
  %701 = vmatprep.subr.mxu0 0.0
  %702 = vmatpush1.msra.mxu0 0.0
  %703 = vmatprep.subr.mxu0 0.0
  %704 = vmatpush1.msra.mxu0 0.0
  %705 = vmatprep.subr.mxu0 0.0
  %706 = vmatpush1.msra.mxu0 0.0
  %707 = vmatprep.subr.mxu0 0.0
  %708 = vmatpush1.msra.mxu0 0.0
  %709 = vmatprep.subr.mxu0 0.0
  %710 = vmatpush1.msra.mxu0 0.0
  %711 = vmatprep.mubr.f32.mxu0 0.0
  %712 = vmatmul.mubr.f32.gmra.mrb[0].mxu0 %v645
  %v713 = vpop.f32.mrb[0].mxu0
  %v714 = vadd.f32 %v235, %v713
  %v715 = vpop.f32.mrb[0].mxu0
  %716 = vdwg.mxu0
  %v717 = vmax.f32 %v714, 0.0
  %v719 = vsel %vm237, %v717, 0
  %721 = vmatprep.subr.mxu0 0.0
  %722 = vmatpush1.msra.mxu0 %v143
  %723 = vmatprep.subr.mxu0 0.0
  %724 = vmatpush1.msra.mxu0 %v326
  %725 = vmatprep.subr.mxu0 0.0
  %726 = vmatpush1.msra.mxu0 0.0
  %727 = vmatprep.subr.mxu0 0.0
  %728 = vmatpush1.msra.mxu0 0.0
  %729 = vmatprep.subr.mxu0 0.0
  %730 = vmatpush1.msra.mxu0 0.0
  %731 = vmatprep.subr.mxu0 0.0
  %732 = vmatpush1.msra.mxu0 0.0
  %733 = vmatprep.subr.mxu0 0.0
  %734 = vmatpush1.msra.mxu0 0.0
  %735 = vmatprep.subr.mxu0 0.0
  %736 = vmatpush1.msra.mxu0 0.0
  %737 = vmatprep.subr.mxu0 0.0
  %738 = vmatpush1.msra.mxu0 0.0
  %739 = vmatprep.subr.mxu0 0.0
  %740 = vmatpush1.msra.mxu0 0.0
  %741 = vmatprep.subr.mxu0 0.0
  %742 = vmatpush1.msra.mxu0 0.0
  %743 = vmatprep.subr.mxu0 0.0
  %744 = vmatpush1.msra.mxu0 0.0
  %745 = vmatprep.subr.mxu0 0.0
  %746 = vmatpush1.msra.mxu0 0.0
  %747 = vmatprep.subr.mxu0 0.0
  %748 = vmatpush1.msra.mxu0 0.0
  %749 = vmatprep.subr.mxu0 0.0
  %750 = vmatpush1.msra.mxu0 0.0
  %751 = vmatprep.subr.mxu0 0.0
  %752 = vmatpush1.msra.mxu0 0.0
  %753 = vmatprep.subr.mxu0 0.0
  %754 = vmatpush1.msra.mxu0 0.0
  %755 = vmatprep.subr.mxu0 0.0
  %756 = vmatpush1.msra.mxu0 0.0
  %757 = vmatprep.subr.mxu0 0.0
  %758 = vmatpush1.msra.mxu0 0.0
  %759 = vmatprep.subr.mxu0 0.0
  %760 = vmatpush1.msra.mxu0 0.0
  %761 = vmatprep.subr.mxu0 0.0
  %762 = vmatpush1.msra.mxu0 0.0
  %763 = vmatprep.subr.mxu0 0.0
  %764 = vmatpush1.msra.mxu0 0.0
  %765 = vmatprep.subr.mxu0 0.0
  %766 = vmatpush1.msra.mxu0 0.0
  %767 = vmatprep.subr.mxu0 0.0
  %768 = vmatpush1.msra.mxu0 0.0
  %769 = vmatprep.subr.mxu0 0.0
  %770 = vmatpush1.msra.mxu0 0.0
  %771 = vmatprep.subr.mxu0 0.0
  %772 = vmatpush1.msra.mxu0 0.0
  %773 = vmatprep.subr.mxu0 0.0
  %774 = vmatpush1.msra.mxu0 0.0
  %775 = vmatprep.subr.mxu0 0.0
  %776 = vmatpush1.msra.mxu0 0.0
  %777 = vmatprep.subr.mxu0 0.0
  %778 = vmatpush1.msra.mxu0 0.0
  %779 = vmatprep.subr.mxu0 0.0
  %780 = vmatpush1.msra.mxu0 0.0
  %781 = vmatprep.subr.mxu0 0.0
  %782 = vmatpush1.msra.mxu0 0.0
  %783 = vmatprep.subr.mxu0 0.0
  %784 = vmatpush1.msra.mxu0 0.0
  %785 = vmatprep.mubr.f32.mxu0 0.0
  %786 = vmatmul.mubr.f32.gmra.mrb[0].mxu0 %v719
  %v787 = vpop.f32.mrb[0].mxu0
  %v788 = vadd.f32 %v320, %v787
  %v789 = vpop.f32.mrb[0].mxu0
  %790 = vdwg.mxu0
  %v791 = vtanh.pop %v788
  %v793 = vsel %vm237, %v791, 0
  %795 = vmatprep.subr.mxu0 0.0
  %796 = vmatpush1.msra.mxu0 %v146
  %797 = vmatprep.subr.mxu0 0.0
  %798 = vmatpush1.msra.mxu0 %v409
  %799 = vmatprep.subr.mxu0 0.0
  %800 = vmatpush1.msra.mxu0 0.0
  %801 = vmatprep.subr.mxu0 0.0
  %802 = vmatpush1.msra.mxu0 0.0
  %803 = vmatprep.subr.mxu0 0.0
  %804 = vmatpush1.msra.mxu0 0.0
  %805 = vmatprep.subr.mxu0 0.0
  %806 = vmatpush1.msra.mxu0 0.0
  %807 = vmatprep.subr.mxu0 0.0
  %808 = vmatpush1.msra.mxu0 0.0
  %809 = vmatprep.subr.mxu0 0.0
  %810 = vmatpush1.msra.mxu0 0.0
  %811 = vmatprep.subr.mxu0 0.0
  %812 = vmatpush1.msra.mxu0 0.0
  %813 = vmatprep.subr.mxu0 0.0
  %814 = vmatpush1.msra.mxu0 0.0
  %815 = vmatprep.subr.mxu0 0.0
  %816 = vmatpush1.msra.mxu0 0.0
  %817 = vmatprep.subr.mxu0 0.0
  %818 = vmatpush1.msra.mxu0 0.0
  %819 = vmatprep.subr.mxu0 0.0
  %820 = vmatpush1.msra.mxu0 0.0
  %821 = vmatprep.subr.mxu0 0.0
  %822 = vmatpush1.msra.mxu0 0.0
  %823 = vmatprep.subr.mxu0 0.0
  %824 = vmatpush1.msra.mxu0 0.0
  %825 = vmatprep.subr.mxu0 0.0
  %826 = vmatpush1.msra.mxu0 0.0
  %827 = vmatprep.subr.mxu0 0.0
  %828 = vmatpush1.msra.mxu0 0.0
  %829 = vmatprep.subr.mxu0 0.0
  %830 = vmatpush1.msra.mxu0 0.0
  %831 = vmatprep.subr.mxu0 0.0
  %832 = vmatpush1.msra.mxu0 0.0
  %833 = vmatprep.subr.mxu0 0.0
  %834 = vmatpush1.msra.mxu0 0.0
  %835 = vmatprep.subr.mxu0 0.0
  %836 = vmatpush1.msra.mxu0 0.0
  %837 = vmatprep.subr.mxu0 0.0
  %838 = vmatpush1.msra.mxu0 0.0
  %839 = vmatprep.subr.mxu0 0.0
  %840 = vmatpush1.msra.mxu0 0.0
  %841 = vmatprep.subr.mxu0 0.0
  %842 = vmatpush1.msra.mxu0 0.0
  %843 = vmatprep.subr.mxu0 0.0
  %844 = vmatpush1.msra.mxu0 0.0
  %845 = vmatprep.subr.mxu0 0.0
  %846 = vmatpush1.msra.mxu0 0.0
  %847 = vmatprep.subr.mxu0 0.0
  %848 = vmatpush1.msra.mxu0 0.0
  %849 = vmatprep.subr.mxu0 0.0
  %850 = vmatpush1.msra.mxu0 0.0
  %851 = vmatprep.subr.mxu0 0.0
  %852 = vmatpush1.msra.mxu0 0.0
  %853 = vmatprep.subr.mxu0 0.0
  %854 = vmatpush1.msra.mxu0 0.0
  %855 = vmatprep.subr.mxu0 0.0
  %856 = vmatpush1.msra.mxu0 0.0
  %857 = vmatprep.subr.mxu0 0.0
  %858 = vmatpush1.msra.mxu0 0.0
  %859 = vmatprep.mubr.f32.mxu0 0.0
  %860 = vmatmul.mubr.f32.gmra.mrb[0].mxu0 %v793
  %v861 = vpop.f32.mrb[0].mxu0
  %v862 = vadd.f32 %v403, %v861
  %v863 = vpop.f32.mrb[0].mxu0
  %864 = vdwg.mxu0
  %v865 = vmul.f32 %v862, %v149
  %866 = vmatprep.subr.mxu0 0.0
  %867 = vmatpush1.msra.mxu0 %v482
  %868 = vmatprep.subr.mxu0 0.0
  %869 = vmatpush1.msra.mxu0 %v483
  %870 = vmatprep.subr.mxu0 0.0
  %871 = vmatpush1.msra.mxu0 %v484
  %872 = vmatprep.subr.mxu0 0.0
  %873 = vmatpush1.msra.mxu0 %v485
  %874 = vmatprep.subr.mxu0 0.0
  %875 = vmatpush1.msra.mxu0 %v486
  %876 = vmatprep.subr.mxu0 0.0
  %877 = vmatpush1.msra.mxu0 %v487
  %878 = vmatprep.subr.mxu0 0.0
  %879 = vmatpush1.msra.mxu0 %v488
  %880 = vmatprep.subr.mxu0 0.0
  %881 = vmatpush1.msra.mxu0 %v489
  %882 = vmatprep.subr.mxu0 0.0
  %883 = vmatpush1.msra.mxu0 %v490
  %884 = vmatprep.subr.mxu0 0.0
  %885 = vmatpush1.msra.mxu0 %v491
  %886 = vmatprep.subr.mxu0 0.0
  %887 = vmatpush1.msra.mxu0 %v492
  %888 = vmatprep.subr.mxu0 0.0
  %889 = vmatpush1.msra.mxu0 %v493
  %890 = vmatprep.subr.mxu0 0.0
  %891 = vmatpush1.msra.mxu0 %v494
  %892 = vmatprep.subr.mxu0 0.0
  %893 = vmatpush1.msra.mxu0 %v495
  %894 = vmatprep.subr.mxu0 0.0
  %895 = vmatpush1.msra.mxu0 %v496
  %896 = vmatprep.subr.mxu0 0.0
  %897 = vmatpush1.msra.mxu0 %v497
  %898 = vmatprep.subr.mxu0 0.0
  %899 = vmatpush1.msra.mxu0 0.0
  %900 = vmatprep.subr.mxu0 0.0
  %901 = vmatpush1.msra.mxu0 0.0
  %902 = vmatprep.subr.mxu0 0.0
  %903 = vmatpush1.msra.mxu0 0.0
  %904 = vmatprep.subr.mxu0 0.0
  %905 = vmatpush1.msra.mxu0 0.0
  %906 = vmatprep.subr.mxu0 0.0
  %907 = vmatpush1.msra.mxu0 0.0
  %908 = vmatprep.subr.mxu0 0.0
  %909 = vmatpush1.msra.mxu0 0.0
  %910 = vmatprep.subr.mxu0 0.0
  %911 = vmatpush1.msra.mxu0 0.0
  %912 = vmatprep.subr.mxu0 0.0
  %913 = vmatpush1.msra.mxu0 0.0
  %914 = vmatprep.subr.mxu0 0.0
  %915 = vmatpush1.msra.mxu0 0.0
  %916 = vmatprep.subr.mxu0 0.0
  %917 = vmatpush1.msra.mxu0 0.0
  %918 = vmatprep.subr.mxu0 0.0
  %919 = vmatpush1.msra.mxu0 0.0
  %920 = vmatprep.subr.mxu0 0.0
  %921 = vmatpush1.msra.mxu0 0.0
  %922 = vmatprep.subr.mxu0 0.0
  %923 = vmatpush1.msra.mxu0 0.0
  %924 = vmatprep.subr.mxu0 0.0
  %925 = vmatpush1.msra.mxu0 0.0
  %926 = vmatprep.subr.mxu0 0.0
  %927 = vmatpush1.msra.mxu0 0.0
  %928 = vmatprep.subr.mxu0 0.0
  %929 = vmatpush1.msra.mxu0 0.0
  %930 = vmatprep.mubr.f32.mxu0 0.0
  %931 = vmatmul.mubr.f32.gmra.mrb[0].mxu0 %v865
  %v932 = vpop.f32.mrb[0].mxu0
  %v933 = vadd.f32 0.0, %v932
  %v934 = vpop.f32.mrb[0].mxu0
  %935 = vdwg.mxu0
  %v936 = vadd.f32 %v134, %v933
  %s937 = scalar_lea.vmem %s1, 8
  %v938 = vld [vmem:[%s937] sm:$0xff]
  %v940 = vsel %vm156, %v936, 0
  %942 = vmatprep.subr.mxu0 0.0
  %943 = vmatpush1.msra.mxu0 %v137
  %944 = vmatprep.subr.mxu0 0.0
  %945 = vmatpush1.msra.mxu0 %v138
  %946 = vmatprep.subr.mxu0 0.0
  %947 = vmatpush1.msra.mxu0 0.0
  %948 = vmatprep.subr.mxu0 0.0
  %949 = vmatpush1.msra.mxu0 0.0
  %950 = vmatprep.subr.mxu0 0.0
  %951 = vmatpush1.msra.mxu0 0.0
  %952 = vmatprep.subr.mxu0 0.0
  %953 = vmatpush1.msra.mxu0 0.0
  %954 = vmatprep.subr.mxu0 0.0
  %955 = vmatpush1.msra.mxu0 0.0
  %956 = vmatprep.subr.mxu0 0.0
  %957 = vmatpush1.msra.mxu0 0.0
  %958 = vmatprep.subr.mxu0 0.0
  %959 = vmatpush1.msra.mxu0 0.0
  %960 = vmatprep.subr.mxu0 0.0
  %961 = vmatpush1.msra.mxu0 0.0
  %962 = vmatprep.subr.mxu0 0.0
  %963 = vmatpush1.msra.mxu0 0.0
  %964 = vmatprep.subr.mxu0 0.0
  %965 = vmatpush1.msra.mxu0 0.0
  %966 = vmatprep.subr.mxu0 0.0
  %967 = vmatpush1.msra.mxu0 0.0
  %968 = vmatprep.subr.mxu0 0.0
  %969 = vmatpush1.msra.mxu0 0.0
  %970 = vmatprep.subr.mxu0 0.0
  %971 = vmatpush1.msra.mxu0 0.0
  %972 = vmatprep.subr.mxu0 0.0
  %973 = vmatpush1.msra.mxu0 0.0
  %974 = vmatprep.subr.mxu0 0.0
  %975 = vmatpush1.msra.mxu0 0.0
  %976 = vmatprep.subr.mxu0 0.0
  %977 = vmatpush1.msra.mxu0 0.0
  %978 = vmatprep.subr.mxu0 0.0
  %979 = vmatpush1.msra.mxu0 0.0
  %980 = vmatprep.subr.mxu0 0.0
  %981 = vmatpush1.msra.mxu0 0.0
  %982 = vmatprep.subr.mxu0 0.0
  %983 = vmatpush1.msra.mxu0 0.0
  %984 = vmatprep.subr.mxu0 0.0
  %985 = vmatpush1.msra.mxu0 0.0
  %986 = vmatprep.subr.mxu0 0.0
  %987 = vmatpush1.msra.mxu0 0.0
  %988 = vmatprep.subr.mxu0 0.0
  %989 = vmatpush1.msra.mxu0 0.0
  %990 = vmatprep.subr.mxu0 0.0
  %991 = vmatpush1.msra.mxu0 0.0
  %992 = vmatprep.subr.mxu0 0.0
  %993 = vmatpush1.msra.mxu0 0.0
  %994 = vmatprep.subr.mxu0 0.0
  %995 = vmatpush1.msra.mxu0 0.0
  %996 = vmatprep.subr.mxu0 0.0
  %997 = vmatpush1.msra.mxu0 0.0
  %998 = vmatprep.subr.mxu0 0.0
  %999 = vmatpush1.msra.mxu0 0.0
  %1000 = vmatprep.subr.mxu0 0.0
  %1001 = vmatpush1.msra.mxu0 0.0
  %1002 = vmatprep.subr.mxu0 0.0
  %1003 = vmatpush1.msra.mxu0 0.0
  %1004 = vmatprep.subr.mxu0 0.0
  %1005 = vmatpush1.msra.mxu0 0.0
  %1006 = vmatprep.mubr.f32.mxu0 0.0
  %1007 = vmatmul.mubr.f32.gmra.mrb[0].mxu0 %v940
  %v1008 = vpop.f32.mrb[0].mxu0
  %v1009 = vadd.f32 %v154, %v1008
  %v1010 = vpop.f32.mrb[0].mxu0
  %1011 = vdwg.mxu0
  %v1012 = vmax.f32 %v1009, 0.0
  %v1014 = vsel %vm237, %v1012, 0
  %1016 = vmatprep.subr.mxu0 0.0
  %1017 = vmatpush1.msra.mxu0 %v140
  %1018 = vmatprep.subr.mxu0 0.0
  %1019 = vmatpush1.msra.mxu0 %v243
  %1020 = vmatprep.subr.mxu0 0.0
  %1021 = vmatpush1.msra.mxu0 0.0
  %1022 = vmatprep.subr.mxu0 0.0
  %1023 = vmatpush1.msra.mxu0 0.0
  %1024 = vmatprep.subr.mxu0 0.0
  %1025 = vmatpush1.msra.mxu0 0.0
  %1026 = vmatprep.subr.mxu0 0.0
  %1027 = vmatpush1.msra.mxu0 0.0
  %1028 = vmatprep.subr.mxu0 0.0
  %1029 = vmatpush1.msra.mxu0 0.0
  %1030 = vmatprep.subr.mxu0 0.0
  %1031 = vmatpush1.msra.mxu0 0.0
  %1032 = vmatprep.subr.mxu0 0.0
  %1033 = vmatpush1.msra.mxu0 0.0
  %1034 = vmatprep.subr.mxu0 0.0
  %1035 = vmatpush1.msra.mxu0 0.0
  %1036 = vmatprep.subr.mxu0 0.0
  %1037 = vmatpush1.msra.mxu0 0.0
  %1038 = vmatprep.subr.mxu0 0.0
  %1039 = vmatpush1.msra.mxu0 0.0
  %1040 = vmatprep.subr.mxu0 0.0
  %1041 = vmatpush1.msra.mxu0 0.0
  %1042 = vmatprep.subr.mxu0 0.0
  %1043 = vmatpush1.msra.mxu0 0.0
  %1044 = vmatprep.subr.mxu0 0.0
  %1045 = vmatpush1.msra.mxu0 0.0
  %1046 = vmatprep.subr.mxu0 0.0
  %1047 = vmatpush1.msra.mxu0 0.0
  %1048 = vmatprep.subr.mxu0 0.0
  %1049 = vmatpush1.msra.mxu0 0.0
  %1050 = vmatprep.subr.mxu0 0.0
  %1051 = vmatpush1.msra.mxu0 0.0
  %1052 = vmatprep.subr.mxu0 0.0
  %1053 = vmatpush1.msra.mxu0 0.0
  %1054 = vmatprep.subr.mxu0 0.0
  %1055 = vmatpush1.msra.mxu0 0.0
  %1056 = vmatprep.subr.mxu0 0.0
  %1057 = vmatpush1.msra.mxu0 0.0
  %1058 = vmatprep.subr.mxu0 0.0
  %1059 = vmatpush1.msra.mxu0 0.0
  %1060 = vmatprep.subr.mxu0 0.0
  %1061 = vmatpush1.msra.mxu0 0.0
  %1062 = vmatprep.subr.mxu0 0.0
  %1063 = vmatpush1.msra.mxu0 0.0
  %1064 = vmatprep.subr.mxu0 0.0
  %1065 = vmatpush1.msra.mxu0 0.0
  %1066 = vmatprep.subr.mxu0 0.0
  %1067 = vmatpush1.msra.mxu0 0.0
  %1068 = vmatprep.subr.mxu0 0.0
  %1069 = vmatpush1.msra.mxu0 0.0
  %1070 = vmatprep.subr.mxu0 0.0
  %1071 = vmatpush1.msra.mxu0 0.0
  %1072 = vmatprep.subr.mxu0 0.0
  %1073 = vmatpush1.msra.mxu0 0.0
  %1074 = vmatprep.subr.mxu0 0.0
  %1075 = vmatpush1.msra.mxu0 0.0
  %1076 = vmatprep.subr.mxu0 0.0
  %1077 = vmatpush1.msra.mxu0 0.0
  %1078 = vmatprep.subr.mxu0 0.0
  %1079 = vmatpush1.msra.mxu0 0.0
  %1080 = vmatprep.mubr.f32.mxu0 0.0
  %1081 = vmatmul.mubr.f32.gmra.mrb[0].mxu0 %v1014
  %v1082 = vpop.f32.mrb[0].mxu0
  %v1083 = vadd.f32 %v235, %v1082
  %v1084 = vpop.f32.mrb[0].mxu0
  %1085 = vdwg.mxu0
  %v1086 = vmax.f32 %v1083, 0.0
  %v1088 = vsel %vm237, %v1086, 0
  %1090 = vmatprep.subr.mxu0 0.0
  %1091 = vmatpush1.msra.mxu0 %v143
  %1092 = vmatprep.subr.mxu0 0.0
  %1093 = vmatpush1.msra.mxu0 %v326
  %1094 = vmatprep.subr.mxu0 0.0
  %1095 = vmatpush1.msra.mxu0 0.0
  %1096 = vmatprep.subr.mxu0 0.0
  %1097 = vmatpush1.msra.mxu0 0.0
  %1098 = vmatprep.subr.mxu0 0.0
  %1099 = vmatpush1.msra.mxu0 0.0
  %1100 = vmatprep.subr.mxu0 0.0
  %1101 = vmatpush1.msra.mxu0 0.0
  %1102 = vmatprep.subr.mxu0 0.0
  %1103 = vmatpush1.msra.mxu0 0.0
  %1104 = vmatprep.subr.mxu0 0.0
  %1105 = vmatpush1.msra.mxu0 0.0
  %1106 = vmatprep.subr.mxu0 0.0
  %1107 = vmatpush1.msra.mxu0 0.0
  %1108 = vmatprep.subr.mxu0 0.0
  %1109 = vmatpush1.msra.mxu0 0.0
  %1110 = vmatprep.subr.mxu0 0.0
  %1111 = vmatpush1.msra.mxu0 0.0
  %1112 = vmatprep.subr.mxu0 0.0
  %1113 = vmatpush1.msra.mxu0 0.0
  %1114 = vmatprep.subr.mxu0 0.0
  %1115 = vmatpush1.msra.mxu0 0.0
  %1116 = vmatprep.subr.mxu0 0.0
  %1117 = vmatpush1.msra.mxu0 0.0
  %1118 = vmatprep.subr.mxu0 0.0
  %1119 = vmatpush1.msra.mxu0 0.0
  %1120 = vmatprep.subr.mxu0 0.0
  %1121 = vmatpush1.msra.mxu0 0.0
  %1122 = vmatprep.subr.mxu0 0.0
  %1123 = vmatpush1.msra.mxu0 0.0
  %1124 = vmatprep.subr.mxu0 0.0
  %1125 = vmatpush1.msra.mxu0 0.0
  %1126 = vmatprep.subr.mxu0 0.0
  %1127 = vmatpush1.msra.mxu0 0.0
  %1128 = vmatprep.subr.mxu0 0.0
  %1129 = vmatpush1.msra.mxu0 0.0
  %1130 = vmatprep.subr.mxu0 0.0
  %1131 = vmatpush1.msra.mxu0 0.0
  %1132 = vmatprep.subr.mxu0 0.0
  %1133 = vmatpush1.msra.mxu0 0.0
  %1134 = vmatprep.subr.mxu0 0.0
  %1135 = vmatpush1.msra.mxu0 0.0
  %1136 = vmatprep.subr.mxu0 0.0
  %1137 = vmatpush1.msra.mxu0 0.0
  %1138 = vmatprep.subr.mxu0 0.0
  %1139 = vmatpush1.msra.mxu0 0.0
  %1140 = vmatprep.subr.mxu0 0.0
  %1141 = vmatpush1.msra.mxu0 0.0
  %1142 = vmatprep.subr.mxu0 0.0
  %1143 = vmatpush1.msra.mxu0 0.0
  %1144 = vmatprep.subr.mxu0 0.0
  %1145 = vmatpush1.msra.mxu0 0.0
  %1146 = vmatprep.subr.mxu0 0.0
  %1147 = vmatpush1.msra.mxu0 0.0
  %1148 = vmatprep.subr.mxu0 0.0
  %1149 = vmatpush1.msra.mxu0 0.0
  %1150 = vmatprep.subr.mxu0 0.0
  %1151 = vmatpush1.msra.mxu0 0.0
  %1152 = vmatprep.subr.mxu0 0.0
  %1153 = vmatpush1.msra.mxu0 0.0
  %1154 = vmatprep.mubr.f32.mxu0 0.0
  %1155 = vmatmul.mubr.f32.gmra.mrb[0].mxu0 %v1088
  %v1156 = vpop.f32.mrb[0].mxu0
  %v1157 = vadd.f32 %v320, %v1156
  %v1158 = vpop.f32.mrb[0].mxu0
  %1159 = vdwg.mxu0
  %v1160 = vtanh.pop %v1157
  %v1162 = vsel %vm237, %v1160, 0
  %1164 = vmatprep.subr.mxu0 0.0
  %1165 = vmatpush1.msra.mxu0 %v146
  %1166 = vmatprep.subr.mxu0 0.0
  %1167 = vmatpush1.msra.mxu0 %v409
  %1168 = vmatprep.subr.mxu0 0.0
  %1169 = vmatpush1.msra.mxu0 0.0
  %1170 = vmatprep.subr.mxu0 0.0
  %1171 = vmatpush1.msra.mxu0 0.0
  %1172 = vmatprep.subr.mxu0 0.0
  %1173 = vmatpush1.msra.mxu0 0.0
  %1174 = vmatprep.subr.mxu0 0.0
  %1175 = vmatpush1.msra.mxu0 0.0
  %1176 = vmatprep.subr.mxu0 0.0
  %1177 = vmatpush1.msra.mxu0 0.0
  %1178 = vmatprep.subr.mxu0 0.0
  %1179 = vmatpush1.msra.mxu0 0.0
  %1180 = vmatprep.subr.mxu0 0.0
  %1181 = vmatpush1.msra.mxu0 0.0
  %1182 = vmatprep.subr.mxu0 0.0
  %1183 = vmatpush1.msra.mxu0 0.0
  %1184 = vmatprep.subr.mxu0 0.0
  %1185 = vmatpush1.msra.mxu0 0.0
  %1186 = vmatprep.subr.mxu0 0.0
  %1187 = vmatpush1.msra.mxu0 0.0
  %1188 = vmatprep.subr.mxu0 0.0
  %1189 = vmatpush1.msra.mxu0 0.0
  %1190 = vmatprep.subr.mxu0 0.0
  %1191 = vmatpush1.msra.mxu0 0.0
  %1192 = vmatprep.subr.mxu0 0.0
  %1193 = vmatpush1.msra.mxu0 0.0
  %1194 = vmatprep.subr.mxu0 0.0
  %1195 = vmatpush1.msra.mxu0 0.0
  %1196 = vmatprep.subr.mxu0 0.0
  %1197 = vmatpush1.msra.mxu0 0.0
  %1198 = vmatprep.subr.mxu0 0.0
  %1199 = vmatpush1.msra.mxu0 0.0
  %1200 = vmatprep.subr.mxu0 0.0
  %1201 = vmatpush1.msra.mxu0 0.0
  %1202 = vmatprep.subr.mxu0 0.0
  %1203 = vmatpush1.msra.mxu0 0.0
  %1204 = vmatprep.subr.mxu0 0.0
  %1205 = vmatpush1.msra.mxu0 0.0
  %1206 = vmatprep.subr.mxu0 0.0
  %1207 = vmatpush1.msra.mxu0 0.0
  %1208 = vmatprep.subr.mxu0 0.0
  %1209 = vmatpush1.msra.mxu0 0.0
  %1210 = vmatprep.subr.mxu0 0.0
  %1211 = vmatpush1.msra.mxu0 0.0
  %1212 = vmatprep.subr.mxu0 0.0
  %1213 = vmatpush1.msra.mxu0 0.0
  %1214 = vmatprep.subr.mxu0 0.0
  %1215 = vmatpush1.msra.mxu0 0.0
  %1216 = vmatprep.subr.mxu0 0.0
  %1217 = vmatpush1.msra.mxu0 0.0
  %1218 = vmatprep.subr.mxu0 0.0
  %1219 = vmatpush1.msra.mxu0 0.0
  %1220 = vmatprep.subr.mxu0 0.0
  %1221 = vmatpush1.msra.mxu0 0.0
  %1222 = vmatprep.subr.mxu0 0.0
  %1223 = vmatpush1.msra.mxu0 0.0
  %1224 = vmatprep.subr.mxu0 0.0
  %1225 = vmatpush1.msra.mxu0 0.0
  %1226 = vmatprep.subr.mxu0 0.0
  %1227 = vmatpush1.msra.mxu0 0.0
  %1228 = vmatprep.mubr.f32.mxu0 0.0
  %1229 = vmatmul.mubr.f32.gmra.mrb[0].mxu0 %v1162
  %v1230 = vpop.f32.mrb[0].mxu0
  %v1231 = vadd.f32 %v403, %v1230
  %v1232 = vpop.f32.mrb[0].mxu0
  %1233 = vdwg.mxu0
  %v1234 = vmul.f32 %v1231, %v938
  %1235 = vmatprep.subr.mxu0 0.0
  %1236 = vmatpush1.msra.mxu0 %v482
  %1237 = vmatprep.subr.mxu0 0.0
  %1238 = vmatpush1.msra.mxu0 %v483
  %1239 = vmatprep.subr.mxu0 0.0
  %1240 = vmatpush1.msra.mxu0 %v484
  %1241 = vmatprep.subr.mxu0 0.0
  %1242 = vmatpush1.msra.mxu0 %v485
  %1243 = vmatprep.subr.mxu0 0.0
  %1244 = vmatpush1.msra.mxu0 %v486
  %1245 = vmatprep.subr.mxu0 0.0
  %1246 = vmatpush1.msra.mxu0 %v487
  %1247 = vmatprep.subr.mxu0 0.0
  %1248 = vmatpush1.msra.mxu0 %v488
  %1249 = vmatprep.subr.mxu0 0.0
  %1250 = vmatpush1.msra.mxu0 %v489
  %1251 = vmatprep.subr.mxu0 0.0
  %1252 = vmatpush1.msra.mxu0 %v490
  %1253 = vmatprep.subr.mxu0 0.0
  %1254 = vmatpush1.msra.mxu0 %v491
  %1255 = vmatprep.subr.mxu0 0.0
  %1256 = vmatpush1.msra.mxu0 %v492
  %1257 = vmatprep.subr.mxu0 0.0
  %1258 = vmatpush1.msra.mxu0 %v493
  %1259 = vmatprep.subr.mxu0 0.0
  %1260 = vmatpush1.msra.mxu0 %v494
  %1261 = vmatprep.subr.mxu0 0.0
  %1262 = vmatpush1.msra.mxu0 %v495
  %1263 = vmatprep.subr.mxu0 0.0
  %1264 = vmatpush1.msra.mxu0 %v496
  %1265 = vmatprep.subr.mxu0 0.0
  %1266 = vmatpush1.msra.mxu0 %v497
  %1267 = vmatprep.subr.mxu0 0.0
  %1268 = vmatpush1.msra.mxu0 0.0
  %1269 = vmatprep.subr.mxu0 0.0
  %1270 = vmatpush1.msra.mxu0 0.0
  %1271 = vmatprep.subr.mxu0 0.0
  %1272 = vmatpush1.msra.mxu0 0.0
  %1273 = vmatprep.subr.mxu0 0.0
  %1274 = vmatpush1.msra.mxu0 0.0
  %1275 = vmatprep.subr.mxu0 0.0
  %1276 = vmatpush1.msra.mxu0 0.0
  %1277 = vmatprep.subr.mxu0 0.0
  %1278 = vmatpush1.msra.mxu0 0.0
  %1279 = vmatprep.subr.mxu0 0.0
  %1280 = vmatpush1.msra.mxu0 0.0
  %1281 = vmatprep.subr.mxu0 0.0
  %1282 = vmatpush1.msra.mxu0 0.0
  %1283 = vmatprep.subr.mxu0 0.0
  %1284 = vmatpush1.msra.mxu0 0.0
  %1285 = vmatprep.subr.mxu0 0.0
  %1286 = vmatpush1.msra.mxu0 0.0
  %1287 = vmatprep.subr.mxu0 0.0
  %1288 = vmatpush1.msra.mxu0 0.0
  %1289 = vmatprep.subr.mxu0 0.0
  %1290 = vmatpush1.msra.mxu0 0.0
  %1291 = vmatprep.subr.mxu0 0.0
  %1292 = vmatpush1.msra.mxu0 0.0
  %1293 = vmatprep.subr.mxu0 0.0
  %1294 = vmatpush1.msra.mxu0 0.0
  %1295 = vmatprep.subr.mxu0 0.0
  %1296 = vmatpush1.msra.mxu0 0.0
  %1297 = vmatprep.subr.mxu0 0.0
  %1298 = vmatpush1.msra.mxu0 0.0
  %1299 = vmatprep.mubr.f32.mxu0 0.0
  %1300 = vmatmul.mubr.f32.gmra.mrb[0].mxu0 %v1234
  %v1301 = vpop.f32.mrb[0].mxu0
  %v1302 = vadd.f32 0.0, %v1301
  %v1303 = vpop.f32.mrb[0].mxu0
  %1304 = vdwg.mxu0
  %v1305 = vmul.f32 %v1302, 0.5
  %v1306 = vadd.f32 %v936, %v1305
  %v1308 = vsel %vm156, %v1306, 0
  %1310 = vmatprep.subr.mxu0 0.0
  %1311 = vmatpush1.msra.mxu0 %v137
  %1312 = vmatprep.subr.mxu0 0.0
  %1313 = vmatpush1.msra.mxu0 %v138
  %1314 = vmatprep.subr.mxu0 0.0
  %1315 = vmatpush1.msra.mxu0 0.0
  %1316 = vmatprep.subr.mxu0 0.0
  %1317 = vmatpush1.msra.mxu0 0.0
  %1318 = vmatprep.subr.mxu0 0.0
  %1319 = vmatpush1.msra.mxu0 0.0
  %1320 = vmatprep.subr.mxu0 0.0
  %1321 = vmatpush1.msra.mxu0 0.0
  %1322 = vmatprep.subr.mxu0 0.0
  %1323 = vmatpush1.msra.mxu0 0.0
  %1324 = vmatprep.subr.mxu0 0.0
  %1325 = vmatpush1.msra.mxu0 0.0
  %1326 = vmatprep.subr.mxu0 0.0
  %1327 = vmatpush1.msra.mxu0 0.0
  %1328 = vmatprep.subr.mxu0 0.0
  %1329 = vmatpush1.msra.mxu0 0.0
  %1330 = vmatprep.subr.mxu0 0.0
  %1331 = vmatpush1.msra.mxu0 0.0
  %1332 = vmatprep.subr.mxu0 0.0
  %1333 = vmatpush1.msra.mxu0 0.0
  %1334 = vmatprep.subr.mxu0 0.0
  %1335 = vmatpush1.msra.mxu0 0.0
  %1336 = vmatprep.subr.mxu0 0.0
  %1337 = vmatpush1.msra.mxu0 0.0
  %1338 = vmatprep.subr.mxu0 0.0
  %1339 = vmatpush1.msra.mxu0 0.0
  %1340 = vmatprep.subr.mxu0 0.0
  %1341 = vmatpush1.msra.mxu0 0.0
  %1342 = vmatprep.subr.mxu0 0.0
  %1343 = vmatpush1.msra.mxu0 0.0
  %1344 = vmatprep.subr.mxu0 0.0
  %1345 = vmatpush1.msra.mxu0 0.0
  %1346 = vmatprep.subr.mxu0 0.0
  %1347 = vmatpush1.msra.mxu0 0.0
  %1348 = vmatprep.subr.mxu0 0.0
  %1349 = vmatpush1.msra.mxu0 0.0
  %1350 = vmatprep.subr.mxu0 0.0
  %1351 = vmatpush1.msra.mxu0 0.0
  %1352 = vmatprep.subr.mxu0 0.0
  %1353 = vmatpush1.msra.mxu0 0.0
  %1354 = vmatprep.subr.mxu0 0.0
  %1355 = vmatpush1.msra.mxu0 0.0
  %1356 = vmatprep.subr.mxu0 0.0
  %1357 = vmatpush1.msra.mxu0 0.0
  %1358 = vmatprep.subr.mxu0 0.0
  %1359 = vmatpush1.msra.mxu0 0.0
  %1360 = vmatprep.subr.mxu0 0.0
  %1361 = vmatpush1.msra.mxu0 0.0
  %1362 = vmatprep.subr.mxu0 0.0
  %1363 = vmatpush1.msra.mxu0 0.0
  %1364 = vmatprep.subr.mxu0 0.0
  %1365 = vmatpush1.msra.mxu0 0.0
  %1366 = vmatprep.subr.mxu0 0.0
  %1367 = vmatpush1.msra.mxu0 0.0
  %1368 = vmatprep.subr.mxu0 0.0
  %1369 = vmatpush1.msra.mxu0 0.0
  %1370 = vmatprep.subr.mxu0 0.0
  %1371 = vmatpush1.msra.mxu0 0.0
  %1372 = vmatprep.subr.mxu0 0.0
  %1373 = vmatpush1.msra.mxu0 0.0
  %1374 = vmatprep.mubr.f32.mxu0 0.0
  %1375 = vmatmul.mubr.f32.gmra.mrb[0].mxu0 %v1308
  %v1376 = vpop.f32.mrb[0].mxu0
  %v1377 = vadd.f32 %v154, %v1376
  %v1378 = vpop.f32.mrb[0].mxu0
  %1379 = vdwg.mxu0
  %v1380 = vmax.f32 %v1377, 0.0
  %v1382 = vsel %vm237, %v1380, 0
  %1384 = vmatprep.subr.mxu0 0.0
  %1385 = vmatpush1.msra.mxu0 %v140
  %1386 = vmatprep.subr.mxu0 0.0
  %1387 = vmatpush1.msra.mxu0 %v243
  %1388 = vmatprep.subr.mxu0 0.0
  %1389 = vmatpush1.msra.mxu0 0.0
  %1390 = vmatprep.subr.mxu0 0.0
  %1391 = vmatpush1.msra.mxu0 0.0
  %1392 = vmatprep.subr.mxu0 0.0
  %1393 = vmatpush1.msra.mxu0 0.0
  %1394 = vmatprep.subr.mxu0 0.0
  %1395 = vmatpush1.msra.mxu0 0.0
  %1396 = vmatprep.subr.mxu0 0.0
  %1397 = vmatpush1.msra.mxu0 0.0
  %1398 = vmatprep.subr.mxu0 0.0
  %1399 = vmatpush1.msra.mxu0 0.0
  %1400 = vmatprep.subr.mxu0 0.0
  %1401 = vmatpush1.msra.mxu0 0.0
  %1402 = vmatprep.subr.mxu0 0.0
  %1403 = vmatpush1.msra.mxu0 0.0
  %1404 = vmatprep.subr.mxu0 0.0
  %1405 = vmatpush1.msra.mxu0 0.0
  %1406 = vmatprep.subr.mxu0 0.0
  %1407 = vmatpush1.msra.mxu0 0.0
  %1408 = vmatprep.subr.mxu0 0.0
  %1409 = vmatpush1.msra.mxu0 0.0
  %1410 = vmatprep.subr.mxu0 0.0
  %1411 = vmatpush1.msra.mxu0 0.0
  %1412 = vmatprep.subr.mxu0 0.0
  %1413 = vmatpush1.msra.mxu0 0.0
  %1414 = vmatprep.subr.mxu0 0.0
  %1415 = vmatpush1.msra.mxu0 0.0
  %1416 = vmatprep.subr.mxu0 0.0
  %1417 = vmatpush1.msra.mxu0 0.0
  %1418 = vmatprep.subr.mxu0 0.0
  %1419 = vmatpush1.msra.mxu0 0.0
  %1420 = vmatprep.subr.mxu0 0.0
  %1421 = vmatpush1.msra.mxu0 0.0
  %1422 = vmatprep.subr.mxu0 0.0
  %1423 = vmatpush1.msra.mxu0 0.0
  %1424 = vmatprep.subr.mxu0 0.0
  %1425 = vmatpush1.msra.mxu0 0.0
  %1426 = vmatprep.subr.mxu0 0.0
  %1427 = vmatpush1.msra.mxu0 0.0
  %1428 = vmatprep.subr.mxu0 0.0
  %1429 = vmatpush1.msra.mxu0 0.0
  %1430 = vmatprep.subr.mxu0 0.0
  %1431 = vmatpush1.msra.mxu0 0.0
  %1432 = vmatprep.subr.mxu0 0.0
  %1433 = vmatpush1.msra.mxu0 0.0
  %1434 = vmatprep.subr.mxu0 0.0
  %1435 = vmatpush1.msra.mxu0 0.0
  %1436 = vmatprep.subr.mxu0 0.0
  %1437 = vmatpush1.msra.mxu0 0.0
  %1438 = vmatprep.subr.mxu0 0.0
  %1439 = vmatpush1.msra.mxu0 0.0
  %1440 = vmatprep.subr.mxu0 0.0
  %1441 = vmatpush1.msra.mxu0 0.0
  %1442 = vmatprep.subr.mxu0 0.0
  %1443 = vmatpush1.msra.mxu0 0.0
  %1444 = vmatprep.subr.mxu0 0.0
  %1445 = vmatpush1.msra.mxu0 0.0
  %1446 = vmatprep.subr.mxu0 0.0
  %1447 = vmatpush1.msra.mxu0 0.0
  %1448 = vmatprep.mubr.f32.mxu0 0.0
  %1449 = vmatmul.mubr.f32.gmra.mrb[0].mxu0 %v1382
  %v1450 = vpop.f32.mrb[0].mxu0
  %v1451 = vadd.f32 %v235, %v1450
  %v1452 = vpop.f32.mrb[0].mxu0
  %1453 = vdwg.mxu0
  %v1454 = vmax.f32 %v1451, 0.0
  %v1456 = vsel %vm237, %v1454, 0
  %1458 = vmatprep.subr.mxu0 0.0
  %1459 = vmatpush1.msra.mxu0 %v143
  %1460 = vmatprep.subr.mxu0 0.0
  %1461 = vmatpush1.msra.mxu0 %v326
  %1462 = vmatprep.subr.mxu0 0.0
  %1463 = vmatpush1.msra.mxu0 0.0
  %1464 = vmatprep.subr.mxu0 0.0
  %1465 = vmatpush1.msra.mxu0 0.0
  %1466 = vmatprep.subr.mxu0 0.0
  %1467 = vmatpush1.msra.mxu0 0.0
  %1468 = vmatprep.subr.mxu0 0.0
  %1469 = vmatpush1.msra.mxu0 0.0
  %1470 = vmatprep.subr.mxu0 0.0
  %1471 = vmatpush1.msra.mxu0 0.0
  %1472 = vmatprep.subr.mxu0 0.0
  %1473 = vmatpush1.msra.mxu0 0.0
  %1474 = vmatprep.subr.mxu0 0.0
  %1475 = vmatpush1.msra.mxu0 0.0
  %1476 = vmatprep.subr.mxu0 0.0
  %1477 = vmatpush1.msra.mxu0 0.0
  %1478 = vmatprep.subr.mxu0 0.0
  %1479 = vmatpush1.msra.mxu0 0.0
  %1480 = vmatprep.subr.mxu0 0.0
  %1481 = vmatpush1.msra.mxu0 0.0
  %1482 = vmatprep.subr.mxu0 0.0
  %1483 = vmatpush1.msra.mxu0 0.0
  %1484 = vmatprep.subr.mxu0 0.0
  %1485 = vmatpush1.msra.mxu0 0.0
  %1486 = vmatprep.subr.mxu0 0.0
  %1487 = vmatpush1.msra.mxu0 0.0
  %1488 = vmatprep.subr.mxu0 0.0
  %1489 = vmatpush1.msra.mxu0 0.0
  %1490 = vmatprep.subr.mxu0 0.0
  %1491 = vmatpush1.msra.mxu0 0.0
  %1492 = vmatprep.subr.mxu0 0.0
  %1493 = vmatpush1.msra.mxu0 0.0
  %1494 = vmatprep.subr.mxu0 0.0
  %1495 = vmatpush1.msra.mxu0 0.0
  %1496 = vmatprep.subr.mxu0 0.0
  %1497 = vmatpush1.msra.mxu0 0.0
  %1498 = vmatprep.subr.mxu0 0.0
  %1499 = vmatpush1.msra.mxu0 0.0
  %1500 = vmatprep.subr.mxu0 0.0
  %1501 = vmatpush1.msra.mxu0 0.0
  %1502 = vmatprep.subr.mxu0 0.0
  %1503 = vmatpush1.msra.mxu0 0.0
  %1504 = vmatprep.subr.mxu0 0.0
  %1505 = vmatpush1.msra.mxu0 0.0
  %1506 = vmatprep.subr.mxu0 0.0
  %1507 = vmatpush1.msra.mxu0 0.0
  %1508 = vmatprep.subr.mxu0 0.0
  %1509 = vmatpush1.msra.mxu0 0.0
  %1510 = vmatprep.subr.mxu0 0.0
  %1511 = vmatpush1.msra.mxu0 0.0
  %1512 = vmatprep.subr.mxu0 0.0
  %1513 = vmatpush1.msra.mxu0 0.0
  %1514 = vmatprep.subr.mxu0 0.0
  %1515 = vmatpush1.msra.mxu0 0.0
  %1516 = vmatprep.subr.mxu0 0.0
  %1517 = vmatpush1.msra.mxu0 0.0
  %1518 = vmatprep.subr.mxu0 0.0
  %1519 = vmatpush1.msra.mxu0 0.0
  %1520 = vmatprep.subr.mxu0 0.0
  %1521 = vmatpush1.msra.mxu0 0.0
  %1522 = vmatprep.mubr.f32.mxu0 0.0
  %1523 = vmatmul.mubr.f32.gmra.mrb[0].mxu0 %v1456
  %v1524 = vpop.f32.mrb[0].mxu0
  %v1525 = vadd.f32 %v320, %v1524
  %v1526 = vpop.f32.mrb[0].mxu0
  %1527 = vdwg.mxu0
  %v1528 = vtanh.pop %v1525
  %v1530 = vsel %vm237, %v1528, 0
  %1532 = vmatprep.subr.mxu0 0.0
  %1533 = vmatpush1.msra.mxu0 %v146
  %1534 = vmatprep.subr.mxu0 0.0
  %1535 = vmatpush1.msra.mxu0 %v409
  %1536 = vmatprep.subr.mxu0 0.0
  %1537 = vmatpush1.msra.mxu0 0.0
  %1538 = vmatprep.subr.mxu0 0.0
  %1539 = vmatpush1.msra.mxu0 0.0
  %1540 = vmatprep.subr.mxu0 0.0
  %1541 = vmatpush1.msra.mxu0 0.0
  %1542 = vmatprep.subr.mxu0 0.0
  %1543 = vmatpush1.msra.mxu0 0.0
  %1544 = vmatprep.subr.mxu0 0.0
  %1545 = vmatpush1.msra.mxu0 0.0
  %1546 = vmatprep.subr.mxu0 0.0
  %1547 = vmatpush1.msra.mxu0 0.0
  %1548 = vmatprep.subr.mxu0 0.0
  %1549 = vmatpush1.msra.mxu0 0.0
  %1550 = vmatprep.subr.mxu0 0.0
  %1551 = vmatpush1.msra.mxu0 0.0
  %1552 = vmatprep.subr.mxu0 0.0
  %1553 = vmatpush1.msra.mxu0 0.0
  %1554 = vmatprep.subr.mxu0 0.0
  %1555 = vmatpush1.msra.mxu0 0.0
  %1556 = vmatprep.subr.mxu0 0.0
  %1557 = vmatpush1.msra.mxu0 0.0
  %1558 = vmatprep.subr.mxu0 0.0
  %1559 = vmatpush1.msra.mxu0 0.0
  %1560 = vmatprep.subr.mxu0 0.0
  %1561 = vmatpush1.msra.mxu0 0.0
  %1562 = vmatprep.subr.mxu0 0.0
  %1563 = vmatpush1.msra.mxu0 0.0
  %1564 = vmatprep.subr.mxu0 0.0
  %1565 = vmatpush1.msra.mxu0 0.0
  %1566 = vmatprep.subr.mxu0 0.0
  %1567 = vmatpush1.msra.mxu0 0.0
  %1568 = vmatprep.subr.mxu0 0.0
  %1569 = vmatpush1.msra.mxu0 0.0
  %1570 = vmatprep.subr.mxu0 0.0
  %1571 = vmatpush1.msra.mxu0 0.0
  %1572 = vmatprep.subr.mxu0 0.0
  %1573 = vmatpush1.msra.mxu0 0.0
  %1574 = vmatprep.subr.mxu0 0.0
  %1575 = vmatpush1.msra.mxu0 0.0
  %1576 = vmatprep.subr.mxu0 0.0
  %1577 = vmatpush1.msra.mxu0 0.0
  %1578 = vmatprep.subr.mxu0 0.0
  %1579 = vmatpush1.msra.mxu0 0.0
  %1580 = vmatprep.subr.mxu0 0.0
  %1581 = vmatpush1.msra.mxu0 0.0
  %1582 = vmatprep.subr.mxu0 0.0
  %1583 = vmatpush1.msra.mxu0 0.0
  %1584 = vmatprep.subr.mxu0 0.0
  %1585 = vmatpush1.msra.mxu0 0.0
  %1586 = vmatprep.subr.mxu0 0.0
  %1587 = vmatpush1.msra.mxu0 0.0
  %1588 = vmatprep.subr.mxu0 0.0
  %1589 = vmatpush1.msra.mxu0 0.0
  %1590 = vmatprep.subr.mxu0 0.0
  %1591 = vmatpush1.msra.mxu0 0.0
  %1592 = vmatprep.subr.mxu0 0.0
  %1593 = vmatpush1.msra.mxu0 0.0
  %1594 = vmatprep.subr.mxu0 0.0
  %1595 = vmatpush1.msra.mxu0 0.0
  %1596 = vmatprep.mubr.f32.mxu0 0.0
  %1597 = vmatmul.mubr.f32.gmra.mrb[0].mxu0 %v1530
  %v1598 = vpop.f32.mrb[0].mxu0
  %v1599 = vadd.f32 %v403, %v1598
  %v1600 = vpop.f32.mrb[0].mxu0
  %1601 = vdwg.mxu0
  %v1602 = vmul.f32 %v1599, %v938
  %1603 = vmatprep.subr.mxu0 0.0
  %1604 = vmatpush1.msra.mxu0 %v482
  %1605 = vmatprep.subr.mxu0 0.0
  %1606 = vmatpush1.msra.mxu0 %v483
  %1607 = vmatprep.subr.mxu0 0.0
  %1608 = vmatpush1.msra.mxu0 %v484
  %1609 = vmatprep.subr.mxu0 0.0
  %1610 = vmatpush1.msra.mxu0 %v485
  %1611 = vmatprep.subr.mxu0 0.0
  %1612 = vmatpush1.msra.mxu0 %v486
  %1613 = vmatprep.subr.mxu0 0.0
  %1614 = vmatpush1.msra.mxu0 %v487
  %1615 = vmatprep.subr.mxu0 0.0
  %1616 = vmatpush1.msra.mxu0 %v488
  %1617 = vmatprep.subr.mxu0 0.0
  %1618 = vmatpush1.msra.mxu0 %v489
  %1619 = vmatprep.subr.mxu0 0.0
  %1620 = vmatpush1.msra.mxu0 %v490
  %1621 = vmatprep.subr.mxu0 0.0
  %1622 = vmatpush1.msra.mxu0 %v491
  %1623 = vmatprep.subr.mxu0 0.0
  %1624 = vmatpush1.msra.mxu0 %v492
  %1625 = vmatprep.subr.mxu0 0.0
  %1626 = vmatpush1.msra.mxu0 %v493
  %1627 = vmatprep.subr.mxu0 0.0
  %1628 = vmatpush1.msra.mxu0 %v494
  %1629 = vmatprep.subr.mxu0 0.0
  %1630 = vmatpush1.msra.mxu0 %v495
  %1631 = vmatprep.subr.mxu0 0.0
  %1632 = vmatpush1.msra.mxu0 %v496
  %1633 = vmatprep.subr.mxu0 0.0
  %1634 = vmatpush1.msra.mxu0 %v497
  %1635 = vmatprep.subr.mxu0 0.0
  %1636 = vmatpush1.msra.mxu0 0.0
  %1637 = vmatprep.subr.mxu0 0.0
  %1638 = vmatpush1.msra.mxu0 0.0
  %1639 = vmatprep.subr.mxu0 0.0
  %1640 = vmatpush1.msra.mxu0 0.0
  %1641 = vmatprep.subr.mxu0 0.0
  %1642 = vmatpush1.msra.mxu0 0.0
  %1643 = vmatprep.subr.mxu0 0.0
  %1644 = vmatpush1.msra.mxu0 0.0
  %1645 = vmatprep.subr.mxu0 0.0
  %1646 = vmatpush1.msra.mxu0 0.0
  %1647 = vmatprep.subr.mxu0 0.0
  %1648 = vmatpush1.msra.mxu0 0.0
  %1649 = vmatprep.subr.mxu0 0.0
  %1650 = vmatpush1.msra.mxu0 0.0
  %1651 = vmatprep.subr.mxu0 0.0
  %1652 = vmatpush1.msra.mxu0 0.0
  %1653 = vmatprep.subr.mxu0 0.0
  %1654 = vmatpush1.msra.mxu0 0.0
  %1655 = vmatprep.subr.mxu0 0.0
  %1656 = vmatpush1.msra.mxu0 0.0
  %1657 = vmatprep.subr.mxu0 0.0
  %1658 = vmatpush1.msra.mxu0 0.0
  %1659 = vmatprep.subr.mxu0 0.0
  %1660 = vmatpush1.msra.mxu0 0.0
  %1661 = vmatprep.subr.mxu0 0.0
  %1662 = vmatpush1.msra.mxu0 0.0
  %1663 = vmatprep.subr.mxu0 0.0
  %1664 = vmatpush1.msra.mxu0 0.0
  %1665 = vmatprep.subr.mxu0 0.0
  %1666 = vmatpush1.msra.mxu0 0.0
  %1667 = vmatprep.mubr.f32.mxu0 0.0
  %1668 = vmatmul.mubr.f32.gmra.mrb[0].mxu0 %v1602
  %v1669 = vpop.f32.mrb[0].mxu0
  %v1670 = vadd.f32 0.0, %v1669
  %v1671 = vpop.f32.mrb[0].mxu0
  %1672 = vdwg.mxu0
  %v1673 = vadd.f32 %v936, %v1670
  %s1674 = scalar_lea.vmem %s1, 16
  %v1675 = vld [vmem:[%s1674] sm:$0xff]
  %v1677 = vsel %vm156, %v1673, 0
  %1679 = vmatprep.subr.mxu0 0.0
  %1680 = vmatpush1.msra.mxu0 %v137
  %1681 = vmatprep.subr.mxu0 0.0
  %1682 = vmatpush1.msra.mxu0 %v138
  %1683 = vmatprep.subr.mxu0 0.0
  %1684 = vmatpush1.msra.mxu0 0.0
  %1685 = vmatprep.subr.mxu0 0.0
  %1686 = vmatpush1.msra.mxu0 0.0
  %1687 = vmatprep.subr.mxu0 0.0
  %1688 = vmatpush1.msra.mxu0 0.0
  %1689 = vmatprep.subr.mxu0 0.0
  %1690 = vmatpush1.msra.mxu0 0.0
  %1691 = vmatprep.subr.mxu0 0.0
  %1692 = vmatpush1.msra.mxu0 0.0
  %1693 = vmatprep.subr.mxu0 0.0
  %1694 = vmatpush1.msra.mxu0 0.0
  %1695 = vmatprep.subr.mxu0 0.0
  %1696 = vmatpush1.msra.mxu0 0.0
  %1697 = vmatprep.subr.mxu0 0.0
  %1698 = vmatpush1.msra.mxu0 0.0
  %1699 = vmatprep.subr.mxu0 0.0
  %1700 = vmatpush1.msra.mxu0 0.0
  %1701 = vmatprep.subr.mxu0 0.0
  %1702 = vmatpush1.msra.mxu0 0.0
  %1703 = vmatprep.subr.mxu0 0.0
  %1704 = vmatpush1.msra.mxu0 0.0
  %1705 = vmatprep.subr.mxu0 0.0
  %1706 = vmatpush1.msra.mxu0 0.0
  %1707 = vmatprep.subr.mxu0 0.0
  %1708 = vmatpush1.msra.mxu0 0.0
  %1709 = vmatprep.subr.mxu0 0.0
  %1710 = vmatpush1.msra.mxu0 0.0
  %1711 = vmatprep.subr.mxu0 0.0
  %1712 = vmatpush1.msra.mxu0 0.0
  %1713 = vmatprep.subr.mxu0 0.0
  %1714 = vmatpush1.msra.mxu0 0.0
  %1715 = vmatprep.subr.mxu0 0.0
  %1716 = vmatpush1.msra.mxu0 0.0
  %1717 = vmatprep.subr.mxu0 0.0
  %1718 = vmatpush1.msra.mxu0 0.0
  %1719 = vmatprep.subr.mxu0 0.0
  %1720 = vmatpush1.msra.mxu0 0.0
  %1721 = vmatprep.subr.mxu0 0.0
  %1722 = vmatpush1.msra.mxu0 0.0
  %1723 = vmatprep.subr.mxu0 0.0
  %1724 = vmatpush1.msra.mxu0 0.0
  %1725 = vmatprep.subr.mxu0 0.0
  %1726 = vmatpush1.msra.mxu0 0.0
  %1727 = vmatprep.subr.mxu0 0.0
  %1728 = vmatpush1.msra.mxu0 0.0
  %1729 = vmatprep.subr.mxu0 0.0
  %1730 = vmatpush1.msra.mxu0 0.0
  %1731 = vmatprep.subr.mxu0 0.0
  %1732 = vmatpush1.msra.mxu0 0.0
  %1733 = vmatprep.subr.mxu0 0.0
  %1734 = vmatpush1.msra.mxu0 0.0
  %1735 = vmatprep.subr.mxu0 0.0
  %1736 = vmatpush1.msra.mxu0 0.0
  %1737 = vmatprep.subr.mxu0 0.0
  %1738 = vmatpush1.msra.mxu0 0.0
  %1739 = vmatprep.subr.mxu0 0.0
  %1740 = vmatpush1.msra.mxu0 0.0
  %1741 = vmatprep.subr.mxu0 0.0
  %1742 = vmatpush1.msra.mxu0 0.0
  %1743 = vmatprep.mubr.f32.mxu0 0.0
  %1744 = vmatmul.mubr.f32.gmra.mrb[0].mxu0 %v1677
  %v1745 = vpop.f32.mrb[0].mxu0
  %v1746 = vadd.f32 %v154, %v1745
  %v1747 = vpop.f32.mrb[0].mxu0
  %1748 = vdwg.mxu0
  %v1749 = vmax.f32 %v1746, 0.0
  %v1751 = vsel %vm237, %v1749, 0
  %1753 = vmatprep.subr.mxu0 0.0
  %1754 = vmatpush1.msra.mxu0 %v140
  %1755 = vmatprep.subr.mxu0 0.0
  %1756 = vmatpush1.msra.mxu0 %v243
  %1757 = vmatprep.subr.mxu0 0.0
  %1758 = vmatpush1.msra.mxu0 0.0
  %1759 = vmatprep.subr.mxu0 0.0
  %1760 = vmatpush1.msra.mxu0 0.0
  %1761 = vmatprep.subr.mxu0 0.0
  %1762 = vmatpush1.msra.mxu0 0.0
  %1763 = vmatprep.subr.mxu0 0.0
  %1764 = vmatpush1.msra.mxu0 0.0
  %1765 = vmatprep.subr.mxu0 0.0
  %1766 = vmatpush1.msra.mxu0 0.0
  %1767 = vmatprep.subr.mxu0 0.0
  %1768 = vmatpush1.msra.mxu0 0.0
  %1769 = vmatprep.subr.mxu0 0.0
  %1770 = vmatpush1.msra.mxu0 0.0
  %1771 = vmatprep.subr.mxu0 0.0
  %1772 = vmatpush1.msra.mxu0 0.0
  %1773 = vmatprep.subr.mxu0 0.0
  %1774 = vmatpush1.msra.mxu0 0.0
  %1775 = vmatprep.subr.mxu0 0.0
  %1776 = vmatpush1.msra.mxu0 0.0
  %1777 = vmatprep.subr.mxu0 0.0
  %1778 = vmatpush1.msra.mxu0 0.0
  %1779 = vmatprep.subr.mxu0 0.0
  %1780 = vmatpush1.msra.mxu0 0.0
  %1781 = vmatprep.subr.mxu0 0.0
  %1782 = vmatpush1.msra.mxu0 0.0
  %1783 = vmatprep.subr.mxu0 0.0
  %1784 = vmatpush1.msra.mxu0 0.0
  %1785 = vmatprep.subr.mxu0 0.0
  %1786 = vmatpush1.msra.mxu0 0.0
  %1787 = vmatprep.subr.mxu0 0.0
  %1788 = vmatpush1.msra.mxu0 0.0
  %1789 = vmatprep.subr.mxu0 0.0
  %1790 = vmatpush1.msra.mxu0 0.0
  %1791 = vmatprep.subr.mxu0 0.0
  %1792 = vmatpush1.msra.mxu0 0.0
  %1793 = vmatprep.subr.mxu0 0.0
  %1794 = vmatpush1.msra.mxu0 0.0
  %1795 = vmatprep.subr.mxu0 0.0
  %1796 = vmatpush1.msra.mxu0 0.0
  %1797 = vmatprep.subr.mxu0 0.0
  %1798 = vmatpush1.msra.mxu0 0.0
  %1799 = vmatprep.subr.mxu0 0.0
  %1800 = vmatpush1.msra.mxu0 0.0
  %1801 = vmatprep.subr.mxu0 0.0
  %1802 = vmatpush1.msra.mxu0 0.0
  %1803 = vmatprep.subr.mxu0 0.0
  %1804 = vmatpush1.msra.mxu0 0.0
  %1805 = vmatprep.subr.mxu0 0.0
  %1806 = vmatpush1.msra.mxu0 0.0
  %1807 = vmatprep.subr.mxu0 0.0
  %1808 = vmatpush1.msra.mxu0 0.0
  %1809 = vmatprep.subr.mxu0 0.0
  %1810 = vmatpush1.msra.mxu0 0.0
  %1811 = vmatprep.subr.mxu0 0.0
  %1812 = vmatpush1.msra.mxu0 0.0
  %1813 = vmatprep.subr.mxu0 0.0
  %1814 = vmatpush1.msra.mxu0 0.0
  %1815 = vmatprep.subr.mxu0 0.0
  %1816 = vmatpush1.msra.mxu0 0.0
  %1817 = vmatprep.mubr.f32.mxu0 0.0
  %1818 = vmatmul.mubr.f32.gmra.mrb[0].mxu0 %v1751
  %v1819 = vpop.f32.mrb[0].mxu0
  %v1820 = vadd.f32 %v235, %v1819
  %v1821 = vpop.f32.mrb[0].mxu0
  %1822 = vdwg.mxu0
  %v1823 = vmax.f32 %v1820, 0.0
  %v1825 = vsel %vm237, %v1823, 0
  %1827 = vmatprep.subr.mxu0 0.0
  %1828 = vmatpush1.msra.mxu0 %v143
  %1829 = vmatprep.subr.mxu0 0.0
  %1830 = vmatpush1.msra.mxu0 %v326
  %1831 = vmatprep.subr.mxu0 0.0
  %1832 = vmatpush1.msra.mxu0 0.0
  %1833 = vmatprep.subr.mxu0 0.0
  %1834 = vmatpush1.msra.mxu0 0.0
  %1835 = vmatprep.subr.mxu0 0.0
  %1836 = vmatpush1.msra.mxu0 0.0
  %1837 = vmatprep.subr.mxu0 0.0
  %1838 = vmatpush1.msra.mxu0 0.0
  %1839 = vmatprep.subr.mxu0 0.0
  %1840 = vmatpush1.msra.mxu0 0.0
  %1841 = vmatprep.subr.mxu0 0.0
  %1842 = vmatpush1.msra.mxu0 0.0
  %1843 = vmatprep.subr.mxu0 0.0
  %1844 = vmatpush1.msra.mxu0 0.0
  %1845 = vmatprep.subr.mxu0 0.0
  %1846 = vmatpush1.msra.mxu0 0.0
  %1847 = vmatprep.subr.mxu0 0.0
  %1848 = vmatpush1.msra.mxu0 0.0
  %1849 = vmatprep.subr.mxu0 0.0
  %1850 = vmatpush1.msra.mxu0 0.0
  %1851 = vmatprep.subr.mxu0 0.0
  %1852 = vmatpush1.msra.mxu0 0.0
  %1853 = vmatprep.subr.mxu0 0.0
  %1854 = vmatpush1.msra.mxu0 0.0
  %1855 = vmatprep.subr.mxu0 0.0
  %1856 = vmatpush1.msra.mxu0 0.0
  %1857 = vmatprep.subr.mxu0 0.0
  %1858 = vmatpush1.msra.mxu0 0.0
  %1859 = vmatprep.subr.mxu0 0.0
  %1860 = vmatpush1.msra.mxu0 0.0
  %1861 = vmatprep.subr.mxu0 0.0
  %1862 = vmatpush1.msra.mxu0 0.0
  %1863 = vmatprep.subr.mxu0 0.0
  %1864 = vmatpush1.msra.mxu0 0.0
  %1865 = vmatprep.subr.mxu0 0.0
  %1866 = vmatpush1.msra.mxu0 0.0
  %1867 = vmatprep.subr.mxu0 0.0
  %1868 = vmatpush1.msra.mxu0 0.0
  %1869 = vmatprep.subr.mxu0 0.0
  %1870 = vmatpush1.msra.mxu0 0.0
  %1871 = vmatprep.subr.mxu0 0.0
  %1872 = vmatpush1.msra.mxu0 0.0
  %1873 = vmatprep.subr.mxu0 0.0
  %1874 = vmatpush1.msra.mxu0 0.0
  %1875 = vmatprep.subr.mxu0 0.0
  %1876 = vmatpush1.msra.mxu0 0.0
  %1877 = vmatprep.subr.mxu0 0.0
  %1878 = vmatpush1.msra.mxu0 0.0
  %1879 = vmatprep.subr.mxu0 0.0
  %1880 = vmatpush1.msra.mxu0 0.0
  %1881 = vmatprep.subr.mxu0 0.0
  %1882 = vmatpush1.msra.mxu0 0.0
  %1883 = vmatprep.subr.mxu0 0.0
  %1884 = vmatpush1.msra.mxu0 0.0
  %1885 = vmatprep.subr.mxu0 0.0
  %1886 = vmatpush1.msra.mxu0 0.0
  %1887 = vmatprep.subr.mxu0 0.0
  %1888 = vmatpush1.msra.mxu0 0.0
  %1889 = vmatprep.subr.mxu0 0.0
  %1890 = vmatpush1.msra.mxu0 0.0
  %1891 = vmatprep.mubr.f32.mxu0 0.0
  %1892 = vmatmul.mubr.f32.gmra.mrb[0].mxu0 %v1825
  %v1893 = vpop.f32.mrb[0].mxu0
  %v1894 = vadd.f32 %v320, %v1893
  %v1895 = vpop.f32.mrb[0].mxu0
  %1896 = vdwg.mxu0
  %v1897 = vtanh.pop %v1894
  %v1899 = vsel %vm237, %v1897, 0
  %1901 = vmatprep.subr.mxu0 0.0
  %1902 = vmatpush1.msra.mxu0 %v146
  %1903 = vmatprep.subr.mxu0 0.0
  %1904 = vmatpush1.msra.mxu0 %v409
  %1905 = vmatprep.subr.mxu0 0.0
  %1906 = vmatpush1.msra.mxu0 0.0
  %1907 = vmatprep.subr.mxu0 0.0
  %1908 = vmatpush1.msra.mxu0 0.0
  %1909 = vmatprep.subr.mxu0 0.0
  %1910 = vmatpush1.msra.mxu0 0.0
  %1911 = vmatprep.subr.mxu0 0.0
  %1912 = vmatpush1.msra.mxu0 0.0
  %1913 = vmatprep.subr.mxu0 0.0
  %1914 = vmatpush1.msra.mxu0 0.0
  %1915 = vmatprep.subr.mxu0 0.0
  %1916 = vmatpush1.msra.mxu0 0.0
  %1917 = vmatprep.subr.mxu0 0.0
  %1918 = vmatpush1.msra.mxu0 0.0
  %1919 = vmatprep.subr.mxu0 0.0
  %1920 = vmatpush1.msra.mxu0 0.0
  %1921 = vmatprep.subr.mxu0 0.0
  %1922 = vmatpush1.msra.mxu0 0.0
  %1923 = vmatprep.subr.mxu0 0.0
  %1924 = vmatpush1.msra.mxu0 0.0
  %1925 = vmatprep.subr.mxu0 0.0
  %1926 = vmatpush1.msra.mxu0 0.0
  %1927 = vmatprep.subr.mxu0 0.0
  %1928 = vmatpush1.msra.mxu0 0.0
  %1929 = vmatprep.subr.mxu0 0.0
  %1930 = vmatpush1.msra.mxu0 0.0
  %1931 = vmatprep.subr.mxu0 0.0
  %1932 = vmatpush1.msra.mxu0 0.0
  %1933 = vmatprep.subr.mxu0 0.0
  %1934 = vmatpush1.msra.mxu0 0.0
  %1935 = vmatprep.subr.mxu0 0.0
  %1936 = vmatpush1.msra.mxu0 0.0
  %1937 = vmatprep.subr.mxu0 0.0
  %1938 = vmatpush1.msra.mxu0 0.0
  %1939 = vmatprep.subr.mxu0 0.0
  %1940 = vmatpush1.msra.mxu0 0.0
  %1941 = vmatprep.subr.mxu0 0.0
  %1942 = vmatpush1.msra.mxu0 0.0
  %1943 = vmatprep.subr.mxu0 0.0
  %1944 = vmatpush1.msra.mxu0 0.0
  %1945 = vmatprep.subr.mxu0 0.0
  %1946 = vmatpush1.msra.mxu0 0.0
  %1947 = vmatprep.subr.mxu0 0.0
  %1948 = vmatpush1.msra.mxu0 0.0
  %1949 = vmatprep.subr.mxu0 0.0
  %1950 = vmatpush1.msra.mxu0 0.0
  %1951 = vmatprep.subr.mxu0 0.0
  %1952 = vmatpush1.msra.mxu0 0.0
  %1953 = vmatprep.subr.mxu0 0.0
  %1954 = vmatpush1.msra.mxu0 0.0
  %1955 = vmatprep.subr.mxu0 0.0
  %1956 = vmatpush1.msra.mxu0 0.0
  %1957 = vmatprep.subr.mxu0 0.0
  %1958 = vmatpush1.msra.mxu0 0.0
  %1959 = vmatprep.subr.mxu0 0.0
  %1960 = vmatpush1.msra.mxu0 0.0
  %1961 = vmatprep.subr.mxu0 0.0
  %1962 = vmatpush1.msra.mxu0 0.0
  %1963 = vmatprep.subr.mxu0 0.0
  %1964 = vmatpush1.msra.mxu0 0.0
  %1965 = vmatprep.mubr.f32.mxu0 0.0
  %1966 = vmatmul.mubr.f32.gmra.mrb[0].mxu0 %v1899
  %v1967 = vpop.f32.mrb[0].mxu0
  %v1968 = vadd.f32 %v403, %v1967
  %v1969 = vpop.f32.mrb[0].mxu0
  %1970 = vdwg.mxu0
  %v1971 = vmul.f32 %v1968, %v1675
  %1972 = vmatprep.subr.mxu0 0.0
  %1973 = vmatpush1.msra.mxu0 %v482
  %1974 = vmatprep.subr.mxu0 0.0
  %1975 = vmatpush1.msra.mxu0 %v483
  %1976 = vmatprep.subr.mxu0 0.0
  %1977 = vmatpush1.msra.mxu0 %v484
  %1978 = vmatprep.subr.mxu0 0.0
  %1979 = vmatpush1.msra.mxu0 %v485
  %1980 = vmatprep.subr.mxu0 0.0
  %1981 = vmatpush1.msra.mxu0 %v486
  %1982 = vmatprep.subr.mxu0 0.0
  %1983 = vmatpush1.msra.mxu0 %v487
  %1984 = vmatprep.subr.mxu0 0.0
  %1985 = vmatpush1.msra.mxu0 %v488
  %1986 = vmatprep.subr.mxu0 0.0
  %1987 = vmatpush1.msra.mxu0 %v489
  %1988 = vmatprep.subr.mxu0 0.0
  %1989 = vmatpush1.msra.mxu0 %v490
  %1990 = vmatprep.subr.mxu0 0.0
  %1991 = vmatpush1.msra.mxu0 %v491
  %1992 = vmatprep.subr.mxu0 0.0
  %1993 = vmatpush1.msra.mxu0 %v492
  %1994 = vmatprep.subr.mxu0 0.0
  %1995 = vmatpush1.msra.mxu0 %v493
  %1996 = vmatprep.subr.mxu0 0.0
  %1997 = vmatpush1.msra.mxu0 %v494
  %1998 = vmatprep.subr.mxu0 0.0
  %1999 = vmatpush1.msra.mxu0 %v495
  %2000 = vmatprep.subr.mxu0 0.0
  %2001 = vmatpush1.msra.mxu0 %v496
  %2002 = vmatprep.subr.mxu0 0.0
  %2003 = vmatpush1.msra.mxu0 %v497
  %2004 = vmatprep.subr.mxu0 0.0
  %2005 = vmatpush1.msra.mxu0 0.0
  %2006 = vmatprep.subr.mxu0 0.0
  %2007 = vmatpush1.msra.mxu0 0.0
  %2008 = vmatprep.subr.mxu0 0.0
  %2009 = vmatpush1.msra.mxu0 0.0
  %2010 = vmatprep.subr.mxu0 0.0
  %2011 = vmatpush1.msra.mxu0 0.0
  %2012 = vmatprep.subr.mxu0 0.0
  %2013 = vmatpush1.msra.mxu0 0.0
  %2014 = vmatprep.subr.mxu0 0.0
  %2015 = vmatpush1.msra.mxu0 0.0
  %2016 = vmatprep.subr.mxu0 0.0
  %2017 = vmatpush1.msra.mxu0 0.0
  %2018 = vmatprep.subr.mxu0 0.0
  %2019 = vmatpush1.msra.mxu0 0.0
  %2020 = vmatprep.subr.mxu0 0.0
  %2021 = vmatpush1.msra.mxu0 0.0
  %2022 = vmatprep.subr.mxu0 0.0
  %2023 = vmatpush1.msra.mxu0 0.0
  %2024 = vmatprep.subr.mxu0 0.0
  %2025 = vmatpush1.msra.mxu0 0.0
  %2026 = vmatprep.subr.mxu0 0.0
  %2027 = vmatpush1.msra.mxu0 0.0
  %2028 = vmatprep.subr.mxu0 0.0
  %2029 = vmatpush1.msra.mxu0 0.0
  %2030 = vmatprep.subr.mxu0 0.0
  %2031 = vmatpush1.msra.mxu0 0.0
  %2032 = vmatprep.subr.mxu0 0.0
  %2033 = vmatpush1.msra.mxu0 0.0
  %2034 = vmatprep.subr.mxu0 0.0
  %2035 = vmatpush1.msra.mxu0 0.0
  %2036 = vmatprep.mubr.f32.mxu0 0.0
  %2037 = vmatmul.mubr.f32.gmra.mrb[0].mxu0 %v1971
  %v2038 = vpop.f32.mrb[0].mxu0
  %v2039 = vadd.f32 0.0, %v2038
  %v2040 = vpop.f32.mrb[0].mxu0
  %2041 = vdwg.mxu0
  %v2042 = vmul.f32 %v2039, 0.5
  %v2043 = vadd.f32 %v1673, %v2042
  %v2045 = vsel %vm156, %v2043, 0
  %2047 = vmatprep.subr.mxu0 0.0
  %2048 = vmatpush1.msra.mxu0 %v137
  %2049 = vmatprep.subr.mxu0 0.0
  %2050 = vmatpush1.msra.mxu0 %v138
  %2051 = vmatprep.subr.mxu0 0.0
  %2052 = vmatpush1.msra.mxu0 0.0
  %2053 = vmatprep.subr.mxu0 0.0
  %2054 = vmatpush1.msra.mxu0 0.0
  %2055 = vmatprep.subr.mxu0 0.0
  %2056 = vmatpush1.msra.mxu0 0.0
  %2057 = vmatprep.subr.mxu0 0.0
  %2058 = vmatpush1.msra.mxu0 0.0
  %2059 = vmatprep.subr.mxu0 0.0
  %2060 = vmatpush1.msra.mxu0 0.0
  %2061 = vmatprep.subr.mxu0 0.0
  %2062 = vmatpush1.msra.mxu0 0.0
  %2063 = vmatprep.subr.mxu0 0.0
  %2064 = vmatpush1.msra.mxu0 0.0
  %2065 = vmatprep.subr.mxu0 0.0
  %2066 = vmatpush1.msra.mxu0 0.0
  %2067 = vmatprep.subr.mxu0 0.0
  %2068 = vmatpush1.msra.mxu0 0.0
  %2069 = vmatprep.subr.mxu0 0.0
  %2070 = vmatpush1.msra.mxu0 0.0
  %2071 = vmatprep.subr.mxu0 0.0
  %2072 = vmatpush1.msra.mxu0 0.0
  %2073 = vmatprep.subr.mxu0 0.0
  %2074 = vmatpush1.msra.mxu0 0.0
  %2075 = vmatprep.subr.mxu0 0.0
  %2076 = vmatpush1.msra.mxu0 0.0
  %2077 = vmatprep.subr.mxu0 0.0
  %2078 = vmatpush1.msra.mxu0 0.0
  %2079 = vmatprep.subr.mxu0 0.0
  %2080 = vmatpush1.msra.mxu0 0.0
  %2081 = vmatprep.subr.mxu0 0.0
  %2082 = vmatpush1.msra.mxu0 0.0
  %2083 = vmatprep.subr.mxu0 0.0
  %2084 = vmatpush1.msra.mxu0 0.0
  %2085 = vmatprep.subr.mxu0 0.0
  %2086 = vmatpush1.msra.mxu0 0.0
  %2087 = vmatprep.subr.mxu0 0.0
  %2088 = vmatpush1.msra.mxu0 0.0
  %2089 = vmatprep.subr.mxu0 0.0
  %2090 = vmatpush1.msra.mxu0 0.0
  %2091 = vmatprep.subr.mxu0 0.0
  %2092 = vmatpush1.msra.mxu0 0.0
  %2093 = vmatprep.subr.mxu0 0.0
  %2094 = vmatpush1.msra.mxu0 0.0
  %2095 = vmatprep.subr.mxu0 0.0
  %2096 = vmatpush1.msra.mxu0 0.0
  %2097 = vmatprep.subr.mxu0 0.0
  %2098 = vmatpush1.msra.mxu0 0.0
  %2099 = vmatprep.subr.mxu0 0.0
  %2100 = vmatpush1.msra.mxu0 0.0
  %2101 = vmatprep.subr.mxu0 0.0
  %2102 = vmatpush1.msra.mxu0 0.0
  %2103 = vmatprep.subr.mxu0 0.0
  %2104 = vmatpush1.msra.mxu0 0.0
  %2105 = vmatprep.subr.mxu0 0.0
  %2106 = vmatpush1.msra.mxu0 0.0
  %2107 = vmatprep.subr.mxu0 0.0
  %2108 = vmatpush1.msra.mxu0 0.0
  %2109 = vmatprep.subr.mxu0 0.0
  %2110 = vmatpush1.msra.mxu0 0.0
  %2111 = vmatprep.mubr.f32.mxu0 0.0
  %2112 = vmatmul.mubr.f32.gmra.mrb[0].mxu0 %v2045
  %v2113 = vpop.f32.mrb[0].mxu0
  %v2114 = vadd.f32 %v154, %v2113
  %v2115 = vpop.f32.mrb[0].mxu0
  %2116 = vdwg.mxu0
  %v2117 = vmax.f32 %v2114, 0.0
  %v2119 = vsel %vm237, %v2117, 0
  %2121 = vmatprep.subr.mxu0 0.0
  %2122 = vmatpush1.msra.mxu0 %v140
  %2123 = vmatprep.subr.mxu0 0.0
  %2124 = vmatpush1.msra.mxu0 %v243
  %2125 = vmatprep.subr.mxu0 0.0
  %2126 = vmatpush1.msra.mxu0 0.0
  %2127 = vmatprep.subr.mxu0 0.0
  %2128 = vmatpush1.msra.mxu0 0.0
  %2129 = vmatprep.subr.mxu0 0.0
  %2130 = vmatpush1.msra.mxu0 0.0
  %2131 = vmatprep.subr.mxu0 0.0
  %2132 = vmatpush1.msra.mxu0 0.0
  %2133 = vmatprep.subr.mxu0 0.0
  %2134 = vmatpush1.msra.mxu0 0.0
  %2135 = vmatprep.subr.mxu0 0.0
  %2136 = vmatpush1.msra.mxu0 0.0
  %2137 = vmatprep.subr.mxu0 0.0
  %2138 = vmatpush1.msra.mxu0 0.0
  %2139 = vmatprep.subr.mxu0 0.0
  %2140 = vmatpush1.msra.mxu0 0.0
  %2141 = vmatprep.subr.mxu0 0.0
  %2142 = vmatpush1.msra.mxu0 0.0
  %2143 = vmatprep.subr.mxu0 0.0
  %2144 = vmatpush1.msra.mxu0 0.0
  %2145 = vmatprep.subr.mxu0 0.0
  %2146 = vmatpush1.msra.mxu0 0.0
  %2147 = vmatprep.subr.mxu0 0.0
  %2148 = vmatpush1.msra.mxu0 0.0
  %2149 = vmatprep.subr.mxu0 0.0
  %2150 = vmatpush1.msra.mxu0 0.0
  %2151 = vmatprep.subr.mxu0 0.0
  %2152 = vmatpush1.msra.mxu0 0.0
  %2153 = vmatprep.subr.mxu0 0.0
  %2154 = vmatpush1.msra.mxu0 0.0
  %2155 = vmatprep.subr.mxu0 0.0
  %2156 = vmatpush1.msra.mxu0 0.0
  %2157 = vmatprep.subr.mxu0 0.0
  %2158 = vmatpush1.msra.mxu0 0.0
  %2159 = vmatprep.subr.mxu0 0.0
  %2160 = vmatpush1.msra.mxu0 0.0
  %2161 = vmatprep.subr.mxu0 0.0
  %2162 = vmatpush1.msra.mxu0 0.0
  %2163 = vmatprep.subr.mxu0 0.0
  %2164 = vmatpush1.msra.mxu0 0.0
  %2165 = vmatprep.subr.mxu0 0.0
  %2166 = vmatpush1.msra.mxu0 0.0
  %2167 = vmatprep.subr.mxu0 0.0
  %2168 = vmatpush1.msra.mxu0 0.0
  %2169 = vmatprep.subr.mxu0 0.0
  %2170 = vmatpush1.msra.mxu0 0.0
  %2171 = vmatprep.subr.mxu0 0.0
  %2172 = vmatpush1.msra.mxu0 0.0
  %2173 = vmatprep.subr.mxu0 0.0
  %2174 = vmatpush1.msra.mxu0 0.0
  %2175 = vmatprep.subr.mxu0 0.0
  %2176 = vmatpush1.msra.mxu0 0.0
  %2177 = vmatprep.subr.mxu0 0.0
  %2178 = vmatpush1.msra.mxu0 0.0
  %2179 = vmatprep.subr.mxu0 0.0
  %2180 = vmatpush1.msra.mxu0 0.0
  %2181 = vmatprep.subr.mxu0 0.0
  %2182 = vmatpush1.msra.mxu0 0.0
  %2183 = vmatprep.subr.mxu0 0.0
  %2184 = vmatpush1.msra.mxu0 0.0
  %2185 = vmatprep.mubr.f32.mxu0 0.0
  %2186 = vmatmul.mubr.f32.gmra.mrb[0].mxu0 %v2119
  %v2187 = vpop.f32.mrb[0].mxu0
  %v2188 = vadd.f32 %v235, %v2187
  %v2189 = vpop.f32.mrb[0].mxu0
  %2190 = vdwg.mxu0
  %v2191 = vmax.f32 %v2188, 0.0
  %v2193 = vsel %vm237, %v2191, 0
  %2195 = vmatprep.subr.mxu0 0.0
  %2196 = vmatpush1.msra.mxu0 %v143
  %2197 = vmatprep.subr.mxu0 0.0
  %2198 = vmatpush1.msra.mxu0 %v326
  %2199 = vmatprep.subr.mxu0 0.0
  %2200 = vmatpush1.msra.mxu0 0.0
  %2201 = vmatprep.subr.mxu0 0.0
  %2202 = vmatpush1.msra.mxu0 0.0
  %2203 = vmatprep.subr.mxu0 0.0
  %2204 = vmatpush1.msra.mxu0 0.0
  %2205 = vmatprep.subr.mxu0 0.0
  %2206 = vmatpush1.msra.mxu0 0.0
  %2207 = vmatprep.subr.mxu0 0.0
  %2208 = vmatpush1.msra.mxu0 0.0
  %2209 = vmatprep.subr.mxu0 0.0
  %2210 = vmatpush1.msra.mxu0 0.0
  %2211 = vmatprep.subr.mxu0 0.0
  %2212 = vmatpush1.msra.mxu0 0.0
  %2213 = vmatprep.subr.mxu0 0.0
  %2214 = vmatpush1.msra.mxu0 0.0
  %2215 = vmatprep.subr.mxu0 0.0
  %2216 = vmatpush1.msra.mxu0 0.0
  %2217 = vmatprep.subr.mxu0 0.0
  %2218 = vmatpush1.msra.mxu0 0.0
  %2219 = vmatprep.subr.mxu0 0.0
  %2220 = vmatpush1.msra.mxu0 0.0
  %2221 = vmatprep.subr.mxu0 0.0
  %2222 = vmatpush1.msra.mxu0 0.0
  %2223 = vmatprep.subr.mxu0 0.0
  %2224 = vmatpush1.msra.mxu0 0.0
  %2225 = vmatprep.subr.mxu0 0.0
  %2226 = vmatpush1.msra.mxu0 0.0
  %2227 = vmatprep.subr.mxu0 0.0
  %2228 = vmatpush1.msra.mxu0 0.0
  %2229 = vmatprep.subr.mxu0 0.0
  %2230 = vmatpush1.msra.mxu0 0.0
  %2231 = vmatprep.subr.mxu0 0.0
  %2232 = vmatpush1.msra.mxu0 0.0
  %2233 = vmatprep.subr.mxu0 0.0
  %2234 = vmatpush1.msra.mxu0 0.0
  %2235 = vmatprep.subr.mxu0 0.0
  %2236 = vmatpush1.msra.mxu0 0.0
  %2237 = vmatprep.subr.mxu0 0.0
  %2238 = vmatpush1.msra.mxu0 0.0
  %2239 = vmatprep.subr.mxu0 0.0
  %2240 = vmatpush1.msra.mxu0 0.0
  %2241 = vmatprep.subr.mxu0 0.0
  %2242 = vmatpush1.msra.mxu0 0.0
  %2243 = vmatprep.subr.mxu0 0.0
  %2244 = vmatpush1.msra.mxu0 0.0
  %2245 = vmatprep.subr.mxu0 0.0
  %2246 = vmatpush1.msra.mxu0 0.0
  %2247 = vmatprep.subr.mxu0 0.0
  %2248 = vmatpush1.msra.mxu0 0.0
  %2249 = vmatprep.subr.mxu0 0.0
  %2250 = vmatpush1.msra.mxu0 0.0
  %2251 = vmatprep.subr.mxu0 0.0
  %2252 = vmatpush1.msra.mxu0 0.0
  %2253 = vmatprep.subr.mxu0 0.0
  %2254 = vmatpush1.msra.mxu0 0.0
  %2255 = vmatprep.subr.mxu0 0.0
  %2256 = vmatpush1.msra.mxu0 0.0
  %2257 = vmatprep.subr.mxu0 0.0
  %2258 = vmatpush1.msra.mxu0 0.0
  %2259 = vmatprep.mubr.f32.mxu0 0.0
  %2260 = vmatmul.mubr.f32.gmra.mrb[0].mxu0 %v2193
  %v2261 = vpop.f32.mrb[0].mxu0
  %v2262 = vadd.f32 %v320, %v2261
  %v2263 = vpop.f32.mrb[0].mxu0
  %2264 = vdwg.mxu0
  %v2265 = vtanh.pop %v2262
  %v2267 = vsel %vm237, %v2265, 0
  %2269 = vmatprep.subr.mxu0 0.0
  %2270 = vmatpush1.msra.mxu0 %v146
  %2271 = vmatprep.subr.mxu0 0.0
  %2272 = vmatpush1.msra.mxu0 %v409
  %2273 = vmatprep.subr.mxu0 0.0
  %2274 = vmatpush1.msra.mxu0 0.0
  %2275 = vmatprep.subr.mxu0 0.0
  %2276 = vmatpush1.msra.mxu0 0.0
  %2277 = vmatprep.subr.mxu0 0.0
  %2278 = vmatpush1.msra.mxu0 0.0
  %2279 = vmatprep.subr.mxu0 0.0
  %2280 = vmatpush1.msra.mxu0 0.0
  %2281 = vmatprep.subr.mxu0 0.0
  %2282 = vmatpush1.msra.mxu0 0.0
  %2283 = vmatprep.subr.mxu0 0.0
  %2284 = vmatpush1.msra.mxu0 0.0
  %2285 = vmatprep.subr.mxu0 0.0
  %2286 = vmatpush1.msra.mxu0 0.0
  %2287 = vmatprep.subr.mxu0 0.0
  %2288 = vmatpush1.msra.mxu0 0.0
  %2289 = vmatprep.subr.mxu0 0.0
  %2290 = vmatpush1.msra.mxu0 0.0
  %2291 = vmatprep.subr.mxu0 0.0
  %2292 = vmatpush1.msra.mxu0 0.0
  %2293 = vmatprep.subr.mxu0 0.0
  %2294 = vmatpush1.msra.mxu0 0.0
  %2295 = vmatprep.subr.mxu0 0.0
  %2296 = vmatpush1.msra.mxu0 0.0
  %2297 = vmatprep.subr.mxu0 0.0
  %2298 = vmatpush1.msra.mxu0 0.0
  %2299 = vmatprep.subr.mxu0 0.0
  %2300 = vmatpush1.msra.mxu0 0.0
  %2301 = vmatprep.subr.mxu0 0.0
  %2302 = vmatpush1.msra.mxu0 0.0
  %2303 = vmatprep.subr.mxu0 0.0
  %2304 = vmatpush1.msra.mxu0 0.0
  %2305 = vmatprep.subr.mxu0 0.0
  %2306 = vmatpush1.msra.mxu0 0.0
  %2307 = vmatprep.subr.mxu0 0.0
  %2308 = vmatpush1.msra.mxu0 0.0
  %2309 = vmatprep.subr.mxu0 0.0
  %2310 = vmatpush1.msra.mxu0 0.0
  %2311 = vmatprep.subr.mxu0 0.0
  %2312 = vmatpush1.msra.mxu0 0.0
  %2313 = vmatprep.subr.mxu0 0.0
  %2314 = vmatpush1.msra.mxu0 0.0
  %2315 = vmatprep.subr.mxu0 0.0
  %2316 = vmatpush1.msra.mxu0 0.0
  %2317 = vmatprep.subr.mxu0 0.0
  %2318 = vmatpush1.msra.mxu0 0.0
  %2319 = vmatprep.subr.mxu0 0.0
  %2320 = vmatpush1.msra.mxu0 0.0
  %2321 = vmatprep.subr.mxu0 0.0
  %2322 = vmatpush1.msra.mxu0 0.0
  %2323 = vmatprep.subr.mxu0 0.0
  %2324 = vmatpush1.msra.mxu0 0.0
  %2325 = vmatprep.subr.mxu0 0.0
  %2326 = vmatpush1.msra.mxu0 0.0
  %2327 = vmatprep.subr.mxu0 0.0
  %2328 = vmatpush1.msra.mxu0 0.0
  %2329 = vmatprep.subr.mxu0 0.0
  %2330 = vmatpush1.msra.mxu0 0.0
  %2331 = vmatprep.subr.mxu0 0.0
  %2332 = vmatpush1.msra.mxu0 0.0
  %2333 = vmatprep.mubr.f32.mxu0 0.0
  %2334 = vmatmul.mubr.f32.gmra.mrb[0].mxu0 %v2267
  %v2335 = vpop.f32.mrb[0].mxu0
  %v2336 = vadd.f32 %v403, %v2335
  %v2337 = vpop.f32.mrb[0].mxu0
  %2338 = vdwg.mxu0
  %v2339 = vmul.f32 %v2336, %v1675
  %2340 = vmatprep.subr.mxu0 0.0
  %2341 = vmatpush1.msra.mxu0 %v482
  %2342 = vmatprep.subr.mxu0 0.0
  %2343 = vmatpush1.msra.mxu0 %v483
  %2344 = vmatprep.subr.mxu0 0.0
  %2345 = vmatpush1.msra.mxu0 %v484
  %2346 = vmatprep.subr.mxu0 0.0
  %2347 = vmatpush1.msra.mxu0 %v485
  %2348 = vmatprep.subr.mxu0 0.0
  %2349 = vmatpush1.msra.mxu0 %v486
  %2350 = vmatprep.subr.mxu0 0.0
  %2351 = vmatpush1.msra.mxu0 %v487
  %2352 = vmatprep.subr.mxu0 0.0
  %2353 = vmatpush1.msra.mxu0 %v488
  %2354 = vmatprep.subr.mxu0 0.0
  %2355 = vmatpush1.msra.mxu0 %v489
  %2356 = vmatprep.subr.mxu0 0.0
  %2357 = vmatpush1.msra.mxu0 %v490
  %2358 = vmatprep.subr.mxu0 0.0
  %2359 = vmatpush1.msra.mxu0 %v491
  %2360 = vmatprep.subr.mxu0 0.0
  %2361 = vmatpush1.msra.mxu0 %v492
  %2362 = vmatprep.subr.mxu0 0.0
  %2363 = vmatpush1.msra.mxu0 %v493
  %2364 = vmatprep.subr.mxu0 0.0
  %2365 = vmatpush1.msra.mxu0 %v494
  %2366 = vmatprep.subr.mxu0 0.0
  %2367 = vmatpush1.msra.mxu0 %v495
  %2368 = vmatprep.subr.mxu0 0.0
  %2369 = vmatpush1.msra.mxu0 %v496
  %2370 = vmatprep.subr.mxu0 0.0
  %2371 = vmatpush1.msra.mxu0 %v497
  %2372 = vmatprep.subr.mxu0 0.0
  %2373 = vmatpush1.msra.mxu0 0.0
  %2374 = vmatprep.subr.mxu0 0.0
  %2375 = vmatpush1.msra.mxu0 0.0
  %2376 = vmatprep.subr.mxu0 0.0
  %2377 = vmatpush1.msra.mxu0 0.0
  %2378 = vmatprep.subr.mxu0 0.0
  %2379 = vmatpush1.msra.mxu0 0.0
  %2380 = vmatprep.subr.mxu0 0.0
  %2381 = vmatpush1.msra.mxu0 0.0
  %2382 = vmatprep.subr.mxu0 0.0
  %2383 = vmatpush1.msra.mxu0 0.0
  %2384 = vmatprep.subr.mxu0 0.0
  %2385 = vmatpush1.msra.mxu0 0.0
  %2386 = vmatprep.subr.mxu0 0.0
  %2387 = vmatpush1.msra.mxu0 0.0
  %2388 = vmatprep.subr.mxu0 0.0
  %2389 = vmatpush1.msra.mxu0 0.0
  %2390 = vmatprep.subr.mxu0 0.0
  %2391 = vmatpush1.msra.mxu0 0.0
  %2392 = vmatprep.subr.mxu0 0.0
  %2393 = vmatpush1.msra.mxu0 0.0
  %2394 = vmatprep.subr.mxu0 0.0
  %2395 = vmatpush1.msra.mxu0 0.0
  %2396 = vmatprep.subr.mxu0 0.0
  %2397 = vmatpush1.msra.mxu0 0.0
  %2398 = vmatprep.subr.mxu0 0.0
  %2399 = vmatpush1.msra.mxu0 0.0
  %2400 = vmatprep.subr.mxu0 0.0
  %2401 = vmatpush1.msra.mxu0 0.0
  %2402 = vmatprep.subr.mxu0 0.0
  %2403 = vmatpush1.msra.mxu0 0.0
  %2404 = vmatprep.mubr.f32.mxu0 0.0
  %2405 = vmatmul.mubr.f32.gmra.mrb[0].mxu0 %v2339
  %v2406 = vpop.f32.mrb[0].mxu0
  %v2407 = vadd.f32 0.0, %v2406
  %v2408 = vpop.f32.mrb[0].mxu0
  %2409 = vdwg.mxu0
  %v2410 = vadd.f32 %v1673, %v2407
  %s2411 = scalar_lea.vmem %s1, 24
  %v2412 = vld [vmem:[%s2411] sm:$0xff]
  %v2414 = vsel %vm156, %v2410, 0
  %2416 = vmatprep.subr.mxu0 0.0
  %2417 = vmatpush1.msra.mxu0 %v137
  %2418 = vmatprep.subr.mxu0 0.0
  %2419 = vmatpush1.msra.mxu0 %v138
  %2420 = vmatprep.subr.mxu0 0.0
  %2421 = vmatpush1.msra.mxu0 0.0
  %2422 = vmatprep.subr.mxu0 0.0
  %2423 = vmatpush1.msra.mxu0 0.0
  %2424 = vmatprep.subr.mxu0 0.0
  %2425 = vmatpush1.msra.mxu0 0.0
  %2426 = vmatprep.subr.mxu0 0.0
  %2427 = vmatpush1.msra.mxu0 0.0
  %2428 = vmatprep.subr.mxu0 0.0
  %2429 = vmatpush1.msra.mxu0 0.0
  %2430 = vmatprep.subr.mxu0 0.0
  %2431 = vmatpush1.msra.mxu0 0.0
  %2432 = vmatprep.subr.mxu0 0.0
  %2433 = vmatpush1.msra.mxu0 0.0
  %2434 = vmatprep.subr.mxu0 0.0
  %2435 = vmatpush1.msra.mxu0 0.0
  %2436 = vmatprep.subr.mxu0 0.0
  %2437 = vmatpush1.msra.mxu0 0.0
  %2438 = vmatprep.subr.mxu0 0.0
  %2439 = vmatpush1.msra.mxu0 0.0
  %2440 = vmatprep.subr.mxu0 0.0
  %2441 = vmatpush1.msra.mxu0 0.0
  %2442 = vmatprep.subr.mxu0 0.0
  %2443 = vmatpush1.msra.mxu0 0.0
  %2444 = vmatprep.subr.mxu0 0.0
  %2445 = vmatpush1.msra.mxu0 0.0
  %2446 = vmatprep.subr.mxu0 0.0
  %2447 = vmatpush1.msra.mxu0 0.0
  %2448 = vmatprep.subr.mxu0 0.0
  %2449 = vmatpush1.msra.mxu0 0.0
  %2450 = vmatprep.subr.mxu0 0.0
  %2451 = vmatpush1.msra.mxu0 0.0
  %2452 = vmatprep.subr.mxu0 0.0
  %2453 = vmatpush1.msra.mxu0 0.0
  %2454 = vmatprep.subr.mxu0 0.0
  %2455 = vmatpush1.msra.mxu0 0.0
  %2456 = vmatprep.subr.mxu0 0.0
  %2457 = vmatpush1.msra.mxu0 0.0
  %2458 = vmatprep.subr.mxu0 0.0
  %2459 = vmatpush1.msra.mxu0 0.0
  %2460 = vmatprep.subr.mxu0 0.0
  %2461 = vmatpush1.msra.mxu0 0.0
  %2462 = vmatprep.subr.mxu0 0.0
  %2463 = vmatpush1.msra.mxu0 0.0
  %2464 = vmatprep.subr.mxu0 0.0
  %2465 = vmatpush1.msra.mxu0 0.0
  %2466 = vmatprep.subr.mxu0 0.0
  %2467 = vmatpush1.msra.mxu0 0.0
  %2468 = vmatprep.subr.mxu0 0.0
  %2469 = vmatpush1.msra.mxu0 0.0
  %2470 = vmatprep.subr.mxu0 0.0
  %2471 = vmatpush1.msra.mxu0 0.0
  %2472 = vmatprep.subr.mxu0 0.0
  %2473 = vmatpush1.msra.mxu0 0.0
  %2474 = vmatprep.subr.mxu0 0.0
  %2475 = vmatpush1.msra.mxu0 0.0
  %2476 = vmatprep.subr.mxu0 0.0
  %2477 = vmatpush1.msra.mxu0 0.0
  %2478 = vmatprep.subr.mxu0 0.0
  %2479 = vmatpush1.msra.mxu0 0.0
  %2480 = vmatprep.mubr.f32.mxu0 0.0
  %2481 = vmatmul.mubr.f32.gmra.mrb[0].mxu0 %v2414
  %v2482 = vpop.f32.mrb[0].mxu0
  %v2483 = vadd.f32 %v154, %v2482
  %v2484 = vpop.f32.mrb[0].mxu0
  %2485 = vdwg.mxu0
  %v2486 = vmax.f32 %v2483, 0.0
  %v2488 = vsel %vm237, %v2486, 0
  %2490 = vmatprep.subr.mxu0 0.0
  %2491 = vmatpush1.msra.mxu0 %v140
  %2492 = vmatprep.subr.mxu0 0.0
  %2493 = vmatpush1.msra.mxu0 %v243
  %2494 = vmatprep.subr.mxu0 0.0
  %2495 = vmatpush1.msra.mxu0 0.0
  %2496 = vmatprep.subr.mxu0 0.0
  %2497 = vmatpush1.msra.mxu0 0.0
  %2498 = vmatprep.subr.mxu0 0.0
  %2499 = vmatpush1.msra.mxu0 0.0
  %2500 = vmatprep.subr.mxu0 0.0
  %2501 = vmatpush1.msra.mxu0 0.0
  %2502 = vmatprep.subr.mxu0 0.0
  %2503 = vmatpush1.msra.mxu0 0.0
  %2504 = vmatprep.subr.mxu0 0.0
  %2505 = vmatpush1.msra.mxu0 0.0
  %2506 = vmatprep.subr.mxu0 0.0
  %2507 = vmatpush1.msra.mxu0 0.0
  %2508 = vmatprep.subr.mxu0 0.0
  %2509 = vmatpush1.msra.mxu0 0.0
  %2510 = vmatprep.subr.mxu0 0.0
  %2511 = vmatpush1.msra.mxu0 0.0
  %2512 = vmatprep.subr.mxu0 0.0
  %2513 = vmatpush1.msra.mxu0 0.0
  %2514 = vmatprep.subr.mxu0 0.0
  %2515 = vmatpush1.msra.mxu0 0.0
  %2516 = vmatprep.subr.mxu0 0.0
  %2517 = vmatpush1.msra.mxu0 0.0
  %2518 = vmatprep.subr.mxu0 0.0
  %2519 = vmatpush1.msra.mxu0 0.0
  %2520 = vmatprep.subr.mxu0 0.0
  %2521 = vmatpush1.msra.mxu0 0.0
  %2522 = vmatprep.subr.mxu0 0.0
  %2523 = vmatpush1.msra.mxu0 0.0
  %2524 = vmatprep.subr.mxu0 0.0
  %2525 = vmatpush1.msra.mxu0 0.0
  %2526 = vmatprep.subr.mxu0 0.0
  %2527 = vmatpush1.msra.mxu0 0.0
  %2528 = vmatprep.subr.mxu0 0.0
  %2529 = vmatpush1.msra.mxu0 0.0
  %2530 = vmatprep.subr.mxu0 0.0
  %2531 = vmatpush1.msra.mxu0 0.0
  %2532 = vmatprep.subr.mxu0 0.0
  %2533 = vmatpush1.msra.mxu0 0.0
  %2534 = vmatprep.subr.mxu0 0.0
  %2535 = vmatpush1.msra.mxu0 0.0
  %2536 = vmatprep.subr.mxu0 0.0
  %2537 = vmatpush1.msra.mxu0 0.0
  %2538 = vmatprep.subr.mxu0 0.0
  %2539 = vmatpush1.msra.mxu0 0.0
  %2540 = vmatprep.subr.mxu0 0.0
  %2541 = vmatpush1.msra.mxu0 0.0
  %2542 = vmatprep.subr.mxu0 0.0
  %2543 = vmatpush1.msra.mxu0 0.0
  %2544 = vmatprep.subr.mxu0 0.0
  %2545 = vmatpush1.msra.mxu0 0.0
  %2546 = vmatprep.subr.mxu0 0.0
  %2547 = vmatpush1.msra.mxu0 0.0
  %2548 = vmatprep.subr.mxu0 0.0
  %2549 = vmatpush1.msra.mxu0 0.0
  %2550 = vmatprep.subr.mxu0 0.0
  %2551 = vmatpush1.msra.mxu0 0.0
  %2552 = vmatprep.subr.mxu0 0.0
  %2553 = vmatpush1.msra.mxu0 0.0
  %2554 = vmatprep.mubr.f32.mxu0 0.0
  %2555 = vmatmul.mubr.f32.gmra.mrb[0].mxu0 %v2488
  %v2556 = vpop.f32.mrb[0].mxu0
  %v2557 = vadd.f32 %v235, %v2556
  %v2558 = vpop.f32.mrb[0].mxu0
  %2559 = vdwg.mxu0
  %v2560 = vmax.f32 %v2557, 0.0
  %v2562 = vsel %vm237, %v2560, 0
  %2564 = vmatprep.subr.mxu0 0.0
  %2565 = vmatpush1.msra.mxu0 %v143
  %2566 = vmatprep.subr.mxu0 0.0
  %2567 = vmatpush1.msra.mxu0 %v326
  %2568 = vmatprep.subr.mxu0 0.0
  %2569 = vmatpush1.msra.mxu0 0.0
  %2570 = vmatprep.subr.mxu0 0.0
  %2571 = vmatpush1.msra.mxu0 0.0
  %2572 = vmatprep.subr.mxu0 0.0
  %2573 = vmatpush1.msra.mxu0 0.0
  %2574 = vmatprep.subr.mxu0 0.0
  %2575 = vmatpush1.msra.mxu0 0.0
  %2576 = vmatprep.subr.mxu0 0.0
  %2577 = vmatpush1.msra.mxu0 0.0
  %2578 = vmatprep.subr.mxu0 0.0
  %2579 = vmatpush1.msra.mxu0 0.0
  %2580 = vmatprep.subr.mxu0 0.0
  %2581 = vmatpush1.msra.mxu0 0.0
  %2582 = vmatprep.subr.mxu0 0.0
  %2583 = vmatpush1.msra.mxu0 0.0
  %2584 = vmatprep.subr.mxu0 0.0
  %2585 = vmatpush1.msra.mxu0 0.0
  %2586 = vmatprep.subr.mxu0 0.0
  %2587 = vmatpush1.msra.mxu0 0.0
  %2588 = vmatprep.subr.mxu0 0.0
  %2589 = vmatpush1.msra.mxu0 0.0
  %2590 = vmatprep.subr.mxu0 0.0
  %2591 = vmatpush1.msra.mxu0 0.0
  %2592 = vmatprep.subr.mxu0 0.0
  %2593 = vmatpush1.msra.mxu0 0.0
  %2594 = vmatprep.subr.mxu0 0.0
  %2595 = vmatpush1.msra.mxu0 0.0
  %2596 = vmatprep.subr.mxu0 0.0
  %2597 = vmatpush1.msra.mxu0 0.0
  %2598 = vmatprep.subr.mxu0 0.0
  %2599 = vmatpush1.msra.mxu0 0.0
  %2600 = vmatprep.subr.mxu0 0.0
  %2601 = vmatpush1.msra.mxu0 0.0
  %2602 = vmatprep.subr.mxu0 0.0
  %2603 = vmatpush1.msra.mxu0 0.0
  %2604 = vmatprep.subr.mxu0 0.0
  %2605 = vmatpush1.msra.mxu0 0.0
  %2606 = vmatprep.subr.mxu0 0.0
  %2607 = vmatpush1.msra.mxu0 0.0
  %2608 = vmatprep.subr.mxu0 0.0
  %2609 = vmatpush1.msra.mxu0 0.0
  %2610 = vmatprep.subr.mxu0 0.0
  %2611 = vmatpush1.msra.mxu0 0.0
  %2612 = vmatprep.subr.mxu0 0.0
  %2613 = vmatpush1.msra.mxu0 0.0
  %2614 = vmatprep.subr.mxu0 0.0
  %2615 = vmatpush1.msra.mxu0 0.0
  %2616 = vmatprep.subr.mxu0 0.0
  %2617 = vmatpush1.msra.mxu0 0.0
  %2618 = vmatprep.subr.mxu0 0.0
  %2619 = vmatpush1.msra.mxu0 0.0
  %2620 = vmatprep.subr.mxu0 0.0
  %2621 = vmatpush1.msra.mxu0 0.0
  %2622 = vmatprep.subr.mxu0 0.0
  %2623 = vmatpush1.msra.mxu0 0.0
  %2624 = vmatprep.subr.mxu0 0.0
  %2625 = vmatpush1.msra.mxu0 0.0
  %2626 = vmatprep.subr.mxu0 0.0
  %2627 = vmatpush1.msra.mxu0 0.0
  %2628 = vmatprep.mubr.f32.mxu0 0.0
  %2629 = vmatmul.mubr.f32.gmra.mrb[0].mxu0 %v2562
  %v2630 = vpop.f32.mrb[0].mxu0
  %v2631 = vadd.f32 %v320, %v2630
  %v2632 = vpop.f32.mrb[0].mxu0
  %2633 = vdwg.mxu0
  %v2634 = vtanh.pop %v2631
  %v2636 = vsel %vm237, %v2634, 0
  %2638 = vmatprep.subr.mxu0 0.0
  %2639 = vmatpush1.msra.mxu0 %v146
  %2640 = vmatprep.subr.mxu0 0.0
  %2641 = vmatpush1.msra.mxu0 %v409
  %2642 = vmatprep.subr.mxu0 0.0
  %2643 = vmatpush1.msra.mxu0 0.0
  %2644 = vmatprep.subr.mxu0 0.0
  %2645 = vmatpush1.msra.mxu0 0.0
  %2646 = vmatprep.subr.mxu0 0.0
  %2647 = vmatpush1.msra.mxu0 0.0
  %2648 = vmatprep.subr.mxu0 0.0
  %2649 = vmatpush1.msra.mxu0 0.0
  %2650 = vmatprep.subr.mxu0 0.0
  %2651 = vmatpush1.msra.mxu0 0.0
  %2652 = vmatprep.subr.mxu0 0.0
  %2653 = vmatpush1.msra.mxu0 0.0
  %2654 = vmatprep.subr.mxu0 0.0
  %2655 = vmatpush1.msra.mxu0 0.0
  %2656 = vmatprep.subr.mxu0 0.0
  %2657 = vmatpush1.msra.mxu0 0.0
  %2658 = vmatprep.subr.mxu0 0.0
  %2659 = vmatpush1.msra.mxu0 0.0
  %2660 = vmatprep.subr.mxu0 0.0
  %2661 = vmatpush1.msra.mxu0 0.0
  %2662 = vmatprep.subr.mxu0 0.0
  %2663 = vmatpush1.msra.mxu0 0.0
  %2664 = vmatprep.subr.mxu0 0.0
  %2665 = vmatpush1.msra.mxu0 0.0
  %2666 = vmatprep.subr.mxu0 0.0
  %2667 = vmatpush1.msra.mxu0 0.0
  %2668 = vmatprep.subr.mxu0 0.0
  %2669 = vmatpush1.msra.mxu0 0.0
  %2670 = vmatprep.subr.mxu0 0.0
  %2671 = vmatpush1.msra.mxu0 0.0
  %2672 = vmatprep.subr.mxu0 0.0
  %2673 = vmatpush1.msra.mxu0 0.0
  %2674 = vmatprep.subr.mxu0 0.0
  %2675 = vmatpush1.msra.mxu0 0.0
  %2676 = vmatprep.subr.mxu0 0.0
  %2677 = vmatpush1.msra.mxu0 0.0
  %2678 = vmatprep.subr.mxu0 0.0
  %2679 = vmatpush1.msra.mxu0 0.0
  %2680 = vmatprep.subr.mxu0 0.0
  %2681 = vmatpush1.msra.mxu0 0.0
  %2682 = vmatprep.subr.mxu0 0.0
  %2683 = vmatpush1.msra.mxu0 0.0
  %2684 = vmatprep.subr.mxu0 0.0
  %2685 = vmatpush1.msra.mxu0 0.0
  %2686 = vmatprep.subr.mxu0 0.0
  %2687 = vmatpush1.msra.mxu0 0.0
  %2688 = vmatprep.subr.mxu0 0.0
  %2689 = vmatpush1.msra.mxu0 0.0
  %2690 = vmatprep.subr.mxu0 0.0
  %2691 = vmatpush1.msra.mxu0 0.0
  %2692 = vmatprep.subr.mxu0 0.0
  %2693 = vmatpush1.msra.mxu0 0.0
  %2694 = vmatprep.subr.mxu0 0.0
  %2695 = vmatpush1.msra.mxu0 0.0
  %2696 = vmatprep.subr.mxu0 0.0
  %2697 = vmatpush1.msra.mxu0 0.0
  %2698 = vmatprep.subr.mxu0 0.0
  %2699 = vmatpush1.msra.mxu0 0.0
  %2700 = vmatprep.subr.mxu0 0.0
  %2701 = vmatpush1.msra.mxu0 0.0
  %2702 = vmatprep.mubr.f32.mxu0 0.0
  %2703 = vmatmul.mubr.f32.gmra.mrb[0].mxu0 %v2636
  %v2704 = vpop.f32.mrb[0].mxu0
  %v2705 = vadd.f32 %v403, %v2704
  %v2706 = vpop.f32.mrb[0].mxu0
  %2707 = vdwg.mxu0
  %v2708 = vmul.f32 %v2705, %v2412
  %2709 = vmatprep.subr.mxu0 0.0
  %2710 = vmatpush1.msra.mxu0 %v482
  %2711 = vmatprep.subr.mxu0 0.0
  %2712 = vmatpush1.msra.mxu0 %v483
  %2713 = vmatprep.subr.mxu0 0.0
  %2714 = vmatpush1.msra.mxu0 %v484
  %2715 = vmatprep.subr.mxu0 0.0
  %2716 = vmatpush1.msra.mxu0 %v485
  %2717 = vmatprep.subr.mxu0 0.0
  %2718 = vmatpush1.msra.mxu0 %v486
  %2719 = vmatprep.subr.mxu0 0.0
  %2720 = vmatpush1.msra.mxu0 %v487
  %2721 = vmatprep.subr.mxu0 0.0
  %2722 = vmatpush1.msra.mxu0 %v488
  %2723 = vmatprep.subr.mxu0 0.0
  %2724 = vmatpush1.msra.mxu0 %v489
  %2725 = vmatprep.subr.mxu0 0.0
  %2726 = vmatpush1.msra.mxu0 %v490
  %2727 = vmatprep.subr.mxu0 0.0
  %2728 = vmatpush1.msra.mxu0 %v491
  %2729 = vmatprep.subr.mxu0 0.0
  %2730 = vmatpush1.msra.mxu0 %v492
  %2731 = vmatprep.subr.mxu0 0.0
  %2732 = vmatpush1.msra.mxu0 %v493
  %2733 = vmatprep.subr.mxu0 0.0
  %2734 = vmatpush1.msra.mxu0 %v494
  %2735 = vmatprep.subr.mxu0 0.0
  %2736 = vmatpush1.msra.mxu0 %v495
  %2737 = vmatprep.subr.mxu0 0.0
  %2738 = vmatpush1.msra.mxu0 %v496
  %2739 = vmatprep.subr.mxu0 0.0
  %2740 = vmatpush1.msra.mxu0 %v497
  %2741 = vmatprep.subr.mxu0 0.0
  %2742 = vmatpush1.msra.mxu0 0.0
  %2743 = vmatprep.subr.mxu0 0.0
  %2744 = vmatpush1.msra.mxu0 0.0
  %2745 = vmatprep.subr.mxu0 0.0
  %2746 = vmatpush1.msra.mxu0 0.0
  %2747 = vmatprep.subr.mxu0 0.0
  %2748 = vmatpush1.msra.mxu0 0.0
  %2749 = vmatprep.subr.mxu0 0.0
  %2750 = vmatpush1.msra.mxu0 0.0
  %2751 = vmatprep.subr.mxu0 0.0
  %2752 = vmatpush1.msra.mxu0 0.0
  %2753 = vmatprep.subr.mxu0 0.0
  %2754 = vmatpush1.msra.mxu0 0.0
  %2755 = vmatprep.subr.mxu0 0.0
  %2756 = vmatpush1.msra.mxu0 0.0
  %2757 = vmatprep.subr.mxu0 0.0
  %2758 = vmatpush1.msra.mxu0 0.0
  %2759 = vmatprep.subr.mxu0 0.0
  %2760 = vmatpush1.msra.mxu0 0.0
  %2761 = vmatprep.subr.mxu0 0.0
  %2762 = vmatpush1.msra.mxu0 0.0
  %2763 = vmatprep.subr.mxu0 0.0
  %2764 = vmatpush1.msra.mxu0 0.0
  %2765 = vmatprep.subr.mxu0 0.0
  %2766 = vmatpush1.msra.mxu0 0.0
  %2767 = vmatprep.subr.mxu0 0.0
  %2768 = vmatpush1.msra.mxu0 0.0
  %2769 = vmatprep.subr.mxu0 0.0
  %2770 = vmatpush1.msra.mxu0 0.0
  %2771 = vmatprep.subr.mxu0 0.0
  %2772 = vmatpush1.msra.mxu0 0.0
  %2773 = vmatprep.mubr.f32.mxu0 0.0
  %2774 = vmatmul.mubr.f32.gmra.mrb[0].mxu0 %v2708
  %v2775 = vpop.f32.mrb[0].mxu0
  %v2776 = vadd.f32 0.0, %v2775
  %v2777 = vpop.f32.mrb[0].mxu0
  %2778 = vdwg.mxu0
  %v2779 = vmul.f32 %v2776, 0.5
  %v2780 = vadd.f32 %v2410, %v2779
  %v2782 = vsel %vm156, %v2780, 0
  %2784 = vmatprep.subr.mxu0 0.0
  %2785 = vmatpush1.msra.mxu0 %v137
  %2786 = vmatprep.subr.mxu0 0.0
  %2787 = vmatpush1.msra.mxu0 %v138
  %2788 = vmatprep.subr.mxu0 0.0
  %2789 = vmatpush1.msra.mxu0 0.0
  %2790 = vmatprep.subr.mxu0 0.0
  %2791 = vmatpush1.msra.mxu0 0.0
  %2792 = vmatprep.subr.mxu0 0.0
  %2793 = vmatpush1.msra.mxu0 0.0
  %2794 = vmatprep.subr.mxu0 0.0
  %2795 = vmatpush1.msra.mxu0 0.0
  %2796 = vmatprep.subr.mxu0 0.0
  %2797 = vmatpush1.msra.mxu0 0.0
  %2798 = vmatprep.subr.mxu0 0.0
  %2799 = vmatpush1.msra.mxu0 0.0
  %2800 = vmatprep.subr.mxu0 0.0
  %2801 = vmatpush1.msra.mxu0 0.0
  %2802 = vmatprep.subr.mxu0 0.0
  %2803 = vmatpush1.msra.mxu0 0.0
  %2804 = vmatprep.subr.mxu0 0.0
  %2805 = vmatpush1.msra.mxu0 0.0
  %2806 = vmatprep.subr.mxu0 0.0
  %2807 = vmatpush1.msra.mxu0 0.0
  %2808 = vmatprep.subr.mxu0 0.0
  %2809 = vmatpush1.msra.mxu0 0.0
  %2810 = vmatprep.subr.mxu0 0.0
  %2811 = vmatpush1.msra.mxu0 0.0
  %2812 = vmatprep.subr.mxu0 0.0
  %2813 = vmatpush1.msra.mxu0 0.0
  %2814 = vmatprep.subr.mxu0 0.0
  %2815 = vmatpush1.msra.mxu0 0.0
  %2816 = vmatprep.subr.mxu0 0.0
  %2817 = vmatpush1.msra.mxu0 0.0
  %2818 = vmatprep.subr.mxu0 0.0
  %2819 = vmatpush1.msra.mxu0 0.0
  %2820 = vmatprep.subr.mxu0 0.0
  %2821 = vmatpush1.msra.mxu0 0.0
  %2822 = vmatprep.subr.mxu0 0.0
  %2823 = vmatpush1.msra.mxu0 0.0
  %2824 = vmatprep.subr.mxu0 0.0
  %2825 = vmatpush1.msra.mxu0 0.0
  %2826 = vmatprep.subr.mxu0 0.0
  %2827 = vmatpush1.msra.mxu0 0.0
  %2828 = vmatprep.subr.mxu0 0.0
  %2829 = vmatpush1.msra.mxu0 0.0
  %2830 = vmatprep.subr.mxu0 0.0
  %2831 = vmatpush1.msra.mxu0 0.0
  %2832 = vmatprep.subr.mxu0 0.0
  %2833 = vmatpush1.msra.mxu0 0.0
  %2834 = vmatprep.subr.mxu0 0.0
  %2835 = vmatpush1.msra.mxu0 0.0
  %2836 = vmatprep.subr.mxu0 0.0
  %2837 = vmatpush1.msra.mxu0 0.0
  %2838 = vmatprep.subr.mxu0 0.0
  %2839 = vmatpush1.msra.mxu0 0.0
  %2840 = vmatprep.subr.mxu0 0.0
  %2841 = vmatpush1.msra.mxu0 0.0
  %2842 = vmatprep.subr.mxu0 0.0
  %2843 = vmatpush1.msra.mxu0 0.0
  %2844 = vmatprep.subr.mxu0 0.0
  %2845 = vmatpush1.msra.mxu0 0.0
  %2846 = vmatprep.subr.mxu0 0.0
  %2847 = vmatpush1.msra.mxu0 0.0
  %2848 = vmatprep.mubr.f32.mxu0 0.0
  %2849 = vmatmul.mubr.f32.gmra.mrb[0].mxu0 %v2782
  %v2850 = vpop.f32.mrb[0].mxu0
  %v2851 = vadd.f32 %v154, %v2850
  %v2852 = vpop.f32.mrb[0].mxu0
  %2853 = vdwg.mxu0
  %v2854 = vmax.f32 %v2851, 0.0
  %v2856 = vsel %vm237, %v2854, 0
  %2858 = vmatprep.subr.mxu0 0.0
  %2859 = vmatpush1.msra.mxu0 %v140
  %2860 = vmatprep.subr.mxu0 0.0
  %2861 = vmatpush1.msra.mxu0 %v243
  %2862 = vmatprep.subr.mxu0 0.0
  %2863 = vmatpush1.msra.mxu0 0.0
  %2864 = vmatprep.subr.mxu0 0.0
  %2865 = vmatpush1.msra.mxu0 0.0
  %2866 = vmatprep.subr.mxu0 0.0
  %2867 = vmatpush1.msra.mxu0 0.0
  %2868 = vmatprep.subr.mxu0 0.0
  %2869 = vmatpush1.msra.mxu0 0.0
  %2870 = vmatprep.subr.mxu0 0.0
  %2871 = vmatpush1.msra.mxu0 0.0
  %2872 = vmatprep.subr.mxu0 0.0
  %2873 = vmatpush1.msra.mxu0 0.0
  %2874 = vmatprep.subr.mxu0 0.0
  %2875 = vmatpush1.msra.mxu0 0.0
  %2876 = vmatprep.subr.mxu0 0.0
  %2877 = vmatpush1.msra.mxu0 0.0
  %2878 = vmatprep.subr.mxu0 0.0
  %2879 = vmatpush1.msra.mxu0 0.0
  %2880 = vmatprep.subr.mxu0 0.0
  %2881 = vmatpush1.msra.mxu0 0.0
  %2882 = vmatprep.subr.mxu0 0.0
  %2883 = vmatpush1.msra.mxu0 0.0
  %2884 = vmatprep.subr.mxu0 0.0
  %2885 = vmatpush1.msra.mxu0 0.0
  %2886 = vmatprep.subr.mxu0 0.0
  %2887 = vmatpush1.msra.mxu0 0.0
  %2888 = vmatprep.subr.mxu0 0.0
  %2889 = vmatpush1.msra.mxu0 0.0
  %2890 = vmatprep.subr.mxu0 0.0
  %2891 = vmatpush1.msra.mxu0 0.0
  %2892 = vmatprep.subr.mxu0 0.0
  %2893 = vmatpush1.msra.mxu0 0.0
  %2894 = vmatprep.subr.mxu0 0.0
  %2895 = vmatpush1.msra.mxu0 0.0
  %2896 = vmatprep.subr.mxu0 0.0
  %2897 = vmatpush1.msra.mxu0 0.0
  %2898 = vmatprep.subr.mxu0 0.0
  %2899 = vmatpush1.msra.mxu0 0.0
  %2900 = vmatprep.subr.mxu0 0.0
  %2901 = vmatpush1.msra.mxu0 0.0
  %2902 = vmatprep.subr.mxu0 0.0
  %2903 = vmatpush1.msra.mxu0 0.0
  %2904 = vmatprep.subr.mxu0 0.0
  %2905 = vmatpush1.msra.mxu0 0.0
  %2906 = vmatprep.subr.mxu0 0.0
  %2907 = vmatpush1.msra.mxu0 0.0
  %2908 = vmatprep.subr.mxu0 0.0
  %2909 = vmatpush1.msra.mxu0 0.0
  %2910 = vmatprep.subr.mxu0 0.0
  %2911 = vmatpush1.msra.mxu0 0.0
  %2912 = vmatprep.subr.mxu0 0.0
  %2913 = vmatpush1.msra.mxu0 0.0
  %2914 = vmatprep.subr.mxu0 0.0
  %2915 = vmatpush1.msra.mxu0 0.0
  %2916 = vmatprep.subr.mxu0 0.0
  %2917 = vmatpush1.msra.mxu0 0.0
  %2918 = vmatprep.subr.mxu0 0.0
  %2919 = vmatpush1.msra.mxu0 0.0
  %2920 = vmatprep.subr.mxu0 0.0
  %2921 = vmatpush1.msra.mxu0 0.0
  %2922 = vmatprep.mubr.f32.mxu0 0.0
  %2923 = vmatmul.mubr.f32.gmra.mrb[0].mxu0 %v2856
  %v2924 = vpop.f32.mrb[0].mxu0
  %v2925 = vadd.f32 %v235, %v2924
  %v2926 = vpop.f32.mrb[0].mxu0
  %2927 = vdwg.mxu0
  %v2928 = vmax.f32 %v2925, 0.0
  %v2930 = vsel %vm237, %v2928, 0
  %2932 = vmatprep.subr.mxu0 0.0
  %2933 = vmatpush1.msra.mxu0 %v143
  %2934 = vmatprep.subr.mxu0 0.0
  %2935 = vmatpush1.msra.mxu0 %v326
  %2936 = vmatprep.subr.mxu0 0.0
  %2937 = vmatpush1.msra.mxu0 0.0
  %2938 = vmatprep.subr.mxu0 0.0
  %2939 = vmatpush1.msra.mxu0 0.0
  %2940 = vmatprep.subr.mxu0 0.0
  %2941 = vmatpush1.msra.mxu0 0.0
  %2942 = vmatprep.subr.mxu0 0.0
  %2943 = vmatpush1.msra.mxu0 0.0
  %2944 = vmatprep.subr.mxu0 0.0
  %2945 = vmatpush1.msra.mxu0 0.0
  %2946 = vmatprep.subr.mxu0 0.0
  %2947 = vmatpush1.msra.mxu0 0.0
  %2948 = vmatprep.subr.mxu0 0.0
  %2949 = vmatpush1.msra.mxu0 0.0
  %2950 = vmatprep.subr.mxu0 0.0
  %2951 = vmatpush1.msra.mxu0 0.0
  %2952 = vmatprep.subr.mxu0 0.0
  %2953 = vmatpush1.msra.mxu0 0.0
  %2954 = vmatprep.subr.mxu0 0.0
  %2955 = vmatpush1.msra.mxu0 0.0
  %2956 = vmatprep.subr.mxu0 0.0
  %2957 = vmatpush1.msra.mxu0 0.0
  %2958 = vmatprep.subr.mxu0 0.0
  %2959 = vmatpush1.msra.mxu0 0.0
  %2960 = vmatprep.subr.mxu0 0.0
  %2961 = vmatpush1.msra.mxu0 0.0
  %2962 = vmatprep.subr.mxu0 0.0
  %2963 = vmatpush1.msra.mxu0 0.0
  %2964 = vmatprep.subr.mxu0 0.0
  %2965 = vmatpush1.msra.mxu0 0.0
  %2966 = vmatprep.subr.mxu0 0.0
  %2967 = vmatpush1.msra.mxu0 0.0
  %2968 = vmatprep.subr.mxu0 0.0
  %2969 = vmatpush1.msra.mxu0 0.0
  %2970 = vmatprep.subr.mxu0 0.0
  %2971 = vmatpush1.msra.mxu0 0.0
  %2972 = vmatprep.subr.mxu0 0.0
  %2973 = vmatpush1.msra.mxu0 0.0
  %2974 = vmatprep.subr.mxu0 0.0
  %2975 = vmatpush1.msra.mxu0 0.0
  %2976 = vmatprep.subr.mxu0 0.0
  %2977 = vmatpush1.msra.mxu0 0.0
  %2978 = vmatprep.subr.mxu0 0.0
  %2979 = vmatpush1.msra.mxu0 0.0
  %2980 = vmatprep.subr.mxu0 0.0
  %2981 = vmatpush1.msra.mxu0 0.0
  %2982 = vmatprep.subr.mxu0 0.0
  %2983 = vmatpush1.msra.mxu0 0.0
  %2984 = vmatprep.subr.mxu0 0.0
  %2985 = vmatpush1.msra.mxu0 0.0
  %2986 = vmatprep.subr.mxu0 0.0
  %2987 = vmatpush1.msra.mxu0 0.0
  %2988 = vmatprep.subr.mxu0 0.0
  %2989 = vmatpush1.msra.mxu0 0.0
  %2990 = vmatprep.subr.mxu0 0.0
  %2991 = vmatpush1.msra.mxu0 0.0
  %2992 = vmatprep.subr.mxu0 0.0
  %2993 = vmatpush1.msra.mxu0 0.0
  %2994 = vmatprep.subr.mxu0 0.0
  %2995 = vmatpush1.msra.mxu0 0.0
  %2996 = vmatprep.mubr.f32.mxu0 0.0
  %2997 = vmatmul.mubr.f32.gmra.mrb[0].mxu0 %v2930
  %v2998 = vpop.f32.mrb[0].mxu0
  %v2999 = vadd.f32 %v320, %v2998
  %v3000 = vpop.f32.mrb[0].mxu0
  %3001 = vdwg.mxu0
  %v3002 = vtanh.pop %v2999
  %v3004 = vsel %vm237, %v3002, 0
  %3006 = vmatprep.subr.mxu0 0.0
  %3007 = vmatpush1.msra.mxu0 %v146
  %3008 = vmatprep.subr.mxu0 0.0
  %3009 = vmatpush1.msra.mxu0 %v409
  %3010 = vmatprep.subr.mxu0 0.0
  %3011 = vmatpush1.msra.mxu0 0.0
  %3012 = vmatprep.subr.mxu0 0.0
  %3013 = vmatpush1.msra.mxu0 0.0
  %3014 = vmatprep.subr.mxu0 0.0
  %3015 = vmatpush1.msra.mxu0 0.0
  %3016 = vmatprep.subr.mxu0 0.0
  %3017 = vmatpush1.msra.mxu0 0.0
  %3018 = vmatprep.subr.mxu0 0.0
  %3019 = vmatpush1.msra.mxu0 0.0
  %3020 = vmatprep.subr.mxu0 0.0
  %3021 = vmatpush1.msra.mxu0 0.0
  %3022 = vmatprep.subr.mxu0 0.0
  %3023 = vmatpush1.msra.mxu0 0.0
  %3024 = vmatprep.subr.mxu0 0.0
  %3025 = vmatpush1.msra.mxu0 0.0
  %3026 = vmatprep.subr.mxu0 0.0
  %3027 = vmatpush1.msra.mxu0 0.0
  %3028 = vmatprep.subr.mxu0 0.0
  %3029 = vmatpush1.msra.mxu0 0.0
  %3030 = vmatprep.subr.mxu0 0.0
  %3031 = vmatpush1.msra.mxu0 0.0
  %3032 = vmatprep.subr.mxu0 0.0
  %3033 = vmatpush1.msra.mxu0 0.0
  %3034 = vmatprep.subr.mxu0 0.0
  %3035 = vmatpush1.msra.mxu0 0.0
  %3036 = vmatprep.subr.mxu0 0.0
  %3037 = vmatpush1.msra.mxu0 0.0
  %3038 = vmatprep.subr.mxu0 0.0
  %3039 = vmatpush1.msra.mxu0 0.0
  %3040 = vmatprep.subr.mxu0 0.0
  %3041 = vmatpush1.msra.mxu0 0.0
  %3042 = vmatprep.subr.mxu0 0.0
  %3043 = vmatpush1.msra.mxu0 0.0
  %3044 = vmatprep.subr.mxu0 0.0
  %3045 = vmatpush1.msra.mxu0 0.0
  %3046 = vmatprep.subr.mxu0 0.0
  %3047 = vmatpush1.msra.mxu0 0.0
  %3048 = vmatprep.subr.mxu0 0.0
  %3049 = vmatpush1.msra.mxu0 0.0
  %3050 = vmatprep.subr.mxu0 0.0
  %3051 = vmatpush1.msra.mxu0 0.0
  %3052 = vmatprep.subr.mxu0 0.0
  %3053 = vmatpush1.msra.mxu0 0.0
  %3054 = vmatprep.subr.mxu0 0.0
  %3055 = vmatpush1.msra.mxu0 0.0
  %3056 = vmatprep.subr.mxu0 0.0
  %3057 = vmatpush1.msra.mxu0 0.0
  %3058 = vmatprep.subr.mxu0 0.0
  %3059 = vmatpush1.msra.mxu0 0.0
  %3060 = vmatprep.subr.mxu0 0.0
  %3061 = vmatpush1.msra.mxu0 0.0
  %3062 = vmatprep.subr.mxu0 0.0
  %3063 = vmatpush1.msra.mxu0 0.0
  %3064 = vmatprep.subr.mxu0 0.0
  %3065 = vmatpush1.msra.mxu0 0.0
  %3066 = vmatprep.subr.mxu0 0.0
  %3067 = vmatpush1.msra.mxu0 0.0
  %3068 = vmatprep.subr.mxu0 0.0
  %3069 = vmatpush1.msra.mxu0 0.0
  %3070 = vmatprep.mubr.f32.mxu0 0.0
  %3071 = vmatmul.mubr.f32.gmra.mrb[0].mxu0 %v3004
  %v3072 = vpop.f32.mrb[0].mxu0
  %v3073 = vadd.f32 %v403, %v3072
  %v3074 = vpop.f32.mrb[0].mxu0
  %3075 = vdwg.mxu0
  %v3076 = vmul.f32 %v3073, %v2412
  %3077 = vmatprep.subr.mxu0 0.0
  %3078 = vmatpush1.msra.mxu0 %v482
  %3079 = vmatprep.subr.mxu0 0.0
  %3080 = vmatpush1.msra.mxu0 %v483
  %3081 = vmatprep.subr.mxu0 0.0
  %3082 = vmatpush1.msra.mxu0 %v484
  %3083 = vmatprep.subr.mxu0 0.0
  %3084 = vmatpush1.msra.mxu0 %v485
  %3085 = vmatprep.subr.mxu0 0.0
  %3086 = vmatpush1.msra.mxu0 %v486
  %3087 = vmatprep.subr.mxu0 0.0
  %3088 = vmatpush1.msra.mxu0 %v487
  %3089 = vmatprep.subr.mxu0 0.0
  %3090 = vmatpush1.msra.mxu0 %v488
  %3091 = vmatprep.subr.mxu0 0.0
  %3092 = vmatpush1.msra.mxu0 %v489
  %3093 = vmatprep.subr.mxu0 0.0
  %3094 = vmatpush1.msra.mxu0 %v490
  %3095 = vmatprep.subr.mxu0 0.0
  %3096 = vmatpush1.msra.mxu0 %v491
  %3097 = vmatprep.subr.mxu0 0.0
  %3098 = vmatpush1.msra.mxu0 %v492
  %3099 = vmatprep.subr.mxu0 0.0
  %3100 = vmatpush1.msra.mxu0 %v493
  %3101 = vmatprep.subr.mxu0 0.0
  %3102 = vmatpush1.msra.mxu0 %v494
  %3103 = vmatprep.subr.mxu0 0.0
  %3104 = vmatpush1.msra.mxu0 %v495
  %3105 = vmatprep.subr.mxu0 0.0
  %3106 = vmatpush1.msra.mxu0 %v496
  %3107 = vmatprep.subr.mxu0 0.0
  %3108 = vmatpush1.msra.mxu0 %v497
  %3109 = vmatprep.subr.mxu0 0.0
  %3110 = vmatpush1.msra.mxu0 0.0
  %3111 = vmatprep.subr.mxu0 0.0
  %3112 = vmatpush1.msra.mxu0 0.0
  %3113 = vmatprep.subr.mxu0 0.0
  %3114 = vmatpush1.msra.mxu0 0.0
  %3115 = vmatprep.subr.mxu0 0.0
  %3116 = vmatpush1.msra.mxu0 0.0
  %3117 = vmatprep.subr.mxu0 0.0
  %3118 = vmatpush1.msra.mxu0 0.0
  %3119 = vmatprep.subr.mxu0 0.0
  %3120 = vmatpush1.msra.mxu0 0.0
  %3121 = vmatprep.subr.mxu0 0.0
  %3122 = vmatpush1.msra.mxu0 0.0
  %3123 = vmatprep.subr.mxu0 0.0
  %3124 = vmatpush1.msra.mxu0 0.0
  %3125 = vmatprep.subr.mxu0 0.0
  %3126 = vmatpush1.msra.mxu0 0.0
  %3127 = vmatprep.subr.mxu0 0.0
  %3128 = vmatpush1.msra.mxu0 0.0
  %3129 = vmatprep.subr.mxu0 0.0
  %3130 = vmatpush1.msra.mxu0 0.0
  %3131 = vmatprep.subr.mxu0 0.0
  %3132 = vmatpush1.msra.mxu0 0.0
  %3133 = vmatprep.subr.mxu0 0.0
  %3134 = vmatpush1.msra.mxu0 0.0
  %3135 = vmatprep.subr.mxu0 0.0
  %3136 = vmatpush1.msra.mxu0 0.0
  %3137 = vmatprep.subr.mxu0 0.0
  %3138 = vmatpush1.msra.mxu0 0.0
  %3139 = vmatprep.subr.mxu0 0.0
  %3140 = vmatpush1.msra.mxu0 0.0
  %3141 = vmatprep.mubr.f32.mxu0 0.0
  %3142 = vmatmul.mubr.f32.gmra.mrb[0].mxu0 %v3076
  %v3143 = vpop.f32.mrb[0].mxu0
  %v3144 = vadd.f32 0.0, %v3143
  %v3145 = vpop.f32.mrb[0].mxu0
  %3146 = vdwg.mxu0
  %v3147 = vadd.f32 %v2410, %v3144
  %s3148 = scalar_lea.vmem %s1, 32
  %v3149 = vld [vmem:[%s3148] sm:$0xff]
  %v3151 = vsel %vm156, %v3147, 0
  %3153 = vmatprep.subr.mxu0 0.0
  %3154 = vmatpush1.msra.mxu0 %v137
  %3155 = vmatprep.subr.mxu0 0.0
  %3156 = vmatpush1.msra.mxu0 %v138
  %3157 = vmatprep.subr.mxu0 0.0
  %3158 = vmatpush1.msra.mxu0 0.0
  %3159 = vmatprep.subr.mxu0 0.0
  %3160 = vmatpush1.msra.mxu0 0.0
  %3161 = vmatprep.subr.mxu0 0.0
  %3162 = vmatpush1.msra.mxu0 0.0
  %3163 = vmatprep.subr.mxu0 0.0
  %3164 = vmatpush1.msra.mxu0 0.0
  %3165 = vmatprep.subr.mxu0 0.0
  %3166 = vmatpush1.msra.mxu0 0.0
  %3167 = vmatprep.subr.mxu0 0.0
  %3168 = vmatpush1.msra.mxu0 0.0
  %3169 = vmatprep.subr.mxu0 0.0
  %3170 = vmatpush1.msra.mxu0 0.0
  %3171 = vmatprep.subr.mxu0 0.0
  %3172 = vmatpush1.msra.mxu0 0.0
  %3173 = vmatprep.subr.mxu0 0.0
  %3174 = vmatpush1.msra.mxu0 0.0
  %3175 = vmatprep.subr.mxu0 0.0
  %3176 = vmatpush1.msra.mxu0 0.0
  %3177 = vmatprep.subr.mxu0 0.0
  %3178 = vmatpush1.msra.mxu0 0.0
  %3179 = vmatprep.subr.mxu0 0.0
  %3180 = vmatpush1.msra.mxu0 0.0
  %3181 = vmatprep.subr.mxu0 0.0
  %3182 = vmatpush1.msra.mxu0 0.0
  %3183 = vmatprep.subr.mxu0 0.0
  %3184 = vmatpush1.msra.mxu0 0.0
  %3185 = vmatprep.subr.mxu0 0.0
  %3186 = vmatpush1.msra.mxu0 0.0
  %3187 = vmatprep.subr.mxu0 0.0
  %3188 = vmatpush1.msra.mxu0 0.0
  %3189 = vmatprep.subr.mxu0 0.0
  %3190 = vmatpush1.msra.mxu0 0.0
  %3191 = vmatprep.subr.mxu0 0.0
  %3192 = vmatpush1.msra.mxu0 0.0
  %3193 = vmatprep.subr.mxu0 0.0
  %3194 = vmatpush1.msra.mxu0 0.0
  %3195 = vmatprep.subr.mxu0 0.0
  %3196 = vmatpush1.msra.mxu0 0.0
  %3197 = vmatprep.subr.mxu0 0.0
  %3198 = vmatpush1.msra.mxu0 0.0
  %3199 = vmatprep.subr.mxu0 0.0
  %3200 = vmatpush1.msra.mxu0 0.0
  %3201 = vmatprep.subr.mxu0 0.0
  %3202 = vmatpush1.msra.mxu0 0.0
  %3203 = vmatprep.subr.mxu0 0.0
  %3204 = vmatpush1.msra.mxu0 0.0
  %3205 = vmatprep.subr.mxu0 0.0
  %3206 = vmatpush1.msra.mxu0 0.0
  %3207 = vmatprep.subr.mxu0 0.0
  %3208 = vmatpush1.msra.mxu0 0.0
  %3209 = vmatprep.subr.mxu0 0.0
  %3210 = vmatpush1.msra.mxu0 0.0
  %3211 = vmatprep.subr.mxu0 0.0
  %3212 = vmatpush1.msra.mxu0 0.0
  %3213 = vmatprep.subr.mxu0 0.0
  %3214 = vmatpush1.msra.mxu0 0.0
  %3215 = vmatprep.subr.mxu0 0.0
  %3216 = vmatpush1.msra.mxu0 0.0
  %3217 = vmatprep.mubr.f32.mxu0 0.0
  %3218 = vmatmul.mubr.f32.gmra.mrb[0].mxu0 %v3151
  %v3219 = vpop.f32.mrb[0].mxu0
  %v3220 = vadd.f32 %v154, %v3219
  %v3221 = vpop.f32.mrb[0].mxu0
  %3222 = vdwg.mxu0
  %v3223 = vmax.f32 %v3220, 0.0
  %v3225 = vsel %vm237, %v3223, 0
  %3227 = vmatprep.subr.mxu0 0.0
  %3228 = vmatpush1.msra.mxu0 %v140
  %3229 = vmatprep.subr.mxu0 0.0
  %3230 = vmatpush1.msra.mxu0 %v243
  %3231 = vmatprep.subr.mxu0 0.0
  %3232 = vmatpush1.msra.mxu0 0.0
  %3233 = vmatprep.subr.mxu0 0.0
  %3234 = vmatpush1.msra.mxu0 0.0
  %3235 = vmatprep.subr.mxu0 0.0
  %3236 = vmatpush1.msra.mxu0 0.0
  %3237 = vmatprep.subr.mxu0 0.0
  %3238 = vmatpush1.msra.mxu0 0.0
  %3239 = vmatprep.subr.mxu0 0.0
  %3240 = vmatpush1.msra.mxu0 0.0
  %3241 = vmatprep.subr.mxu0 0.0
  %3242 = vmatpush1.msra.mxu0 0.0
  %3243 = vmatprep.subr.mxu0 0.0
  %3244 = vmatpush1.msra.mxu0 0.0
  %3245 = vmatprep.subr.mxu0 0.0
  %3246 = vmatpush1.msra.mxu0 0.0
  %3247 = vmatprep.subr.mxu0 0.0
  %3248 = vmatpush1.msra.mxu0 0.0
  %3249 = vmatprep.subr.mxu0 0.0
  %3250 = vmatpush1.msra.mxu0 0.0
  %3251 = vmatprep.subr.mxu0 0.0
  %3252 = vmatpush1.msra.mxu0 0.0
  %3253 = vmatprep.subr.mxu0 0.0
  %3254 = vmatpush1.msra.mxu0 0.0
  %3255 = vmatprep.subr.mxu0 0.0
  %3256 = vmatpush1.msra.mxu0 0.0
  %3257 = vmatprep.subr.mxu0 0.0
  %3258 = vmatpush1.msra.mxu0 0.0
  %3259 = vmatprep.subr.mxu0 0.0
  %3260 = vmatpush1.msra.mxu0 0.0
  %3261 = vmatprep.subr.mxu0 0.0
  %3262 = vmatpush1.msra.mxu0 0.0
  %3263 = vmatprep.subr.mxu0 0.0
  %3264 = vmatpush1.msra.mxu0 0.0
  %3265 = vmatprep.subr.mxu0 0.0
  %3266 = vmatpush1.msra.mxu0 0.0
  %3267 = vmatprep.subr.mxu0 0.0
  %3268 = vmatpush1.msra.mxu0 0.0
  %3269 = vmatprep.subr.mxu0 0.0
  %3270 = vmatpush1.msra.mxu0 0.0
  %3271 = vmatprep.subr.mxu0 0.0
  %3272 = vmatpush1.msra.mxu0 0.0
  %3273 = vmatprep.subr.mxu0 0.0
  %3274 = vmatpush1.msra.mxu0 0.0
  %3275 = vmatprep.subr.mxu0 0.0
  %3276 = vmatpush1.msra.mxu0 0.0
  %3277 = vmatprep.subr.mxu0 0.0
  %3278 = vmatpush1.msra.mxu0 0.0
  %3279 = vmatprep.subr.mxu0 0.0
  %3280 = vmatpush1.msra.mxu0 0.0
  %3281 = vmatprep.subr.mxu0 0.0
  %3282 = vmatpush1.msra.mxu0 0.0
  %3283 = vmatprep.subr.mxu0 0.0
  %3284 = vmatpush1.msra.mxu0 0.0
  %3285 = vmatprep.subr.mxu0 0.0
  %3286 = vmatpush1.msra.mxu0 0.0
  %3287 = vmatprep.subr.mxu0 0.0
  %3288 = vmatpush1.msra.mxu0 0.0
  %3289 = vmatprep.subr.mxu0 0.0
  %3290 = vmatpush1.msra.mxu0 0.0
  %3291 = vmatprep.mubr.f32.mxu0 0.0
  %3292 = vmatmul.mubr.f32.gmra.mrb[0].mxu0 %v3225
  %v3293 = vpop.f32.mrb[0].mxu0
  %v3294 = vadd.f32 %v235, %v3293
  %v3295 = vpop.f32.mrb[0].mxu0
  %3296 = vdwg.mxu0
  %v3297 = vmax.f32 %v3294, 0.0
  %v3299 = vsel %vm237, %v3297, 0
  %3301 = vmatprep.subr.mxu0 0.0
  %3302 = vmatpush1.msra.mxu0 %v143
  %3303 = vmatprep.subr.mxu0 0.0
  %3304 = vmatpush1.msra.mxu0 %v326
  %3305 = vmatprep.subr.mxu0 0.0
  %3306 = vmatpush1.msra.mxu0 0.0
  %3307 = vmatprep.subr.mxu0 0.0
  %3308 = vmatpush1.msra.mxu0 0.0
  %3309 = vmatprep.subr.mxu0 0.0
  %3310 = vmatpush1.msra.mxu0 0.0
  %3311 = vmatprep.subr.mxu0 0.0
  %3312 = vmatpush1.msra.mxu0 0.0
  %3313 = vmatprep.subr.mxu0 0.0
  %3314 = vmatpush1.msra.mxu0 0.0
  %3315 = vmatprep.subr.mxu0 0.0
  %3316 = vmatpush1.msra.mxu0 0.0
  %3317 = vmatprep.subr.mxu0 0.0
  %3318 = vmatpush1.msra.mxu0 0.0
  %3319 = vmatprep.subr.mxu0 0.0
  %3320 = vmatpush1.msra.mxu0 0.0
  %3321 = vmatprep.subr.mxu0 0.0
  %3322 = vmatpush1.msra.mxu0 0.0
  %3323 = vmatprep.subr.mxu0 0.0
  %3324 = vmatpush1.msra.mxu0 0.0
  %3325 = vmatprep.subr.mxu0 0.0
  %3326 = vmatpush1.msra.mxu0 0.0
  %3327 = vmatprep.subr.mxu0 0.0
  %3328 = vmatpush1.msra.mxu0 0.0
  %3329 = vmatprep.subr.mxu0 0.0
  %3330 = vmatpush1.msra.mxu0 0.0
  %3331 = vmatprep.subr.mxu0 0.0
  %3332 = vmatpush1.msra.mxu0 0.0
  %3333 = vmatprep.subr.mxu0 0.0
  %3334 = vmatpush1.msra.mxu0 0.0
  %3335 = vmatprep.subr.mxu0 0.0
  %3336 = vmatpush1.msra.mxu0 0.0
  %3337 = vmatprep.subr.mxu0 0.0
  %3338 = vmatpush1.msra.mxu0 0.0
  %3339 = vmatprep.subr.mxu0 0.0
  %3340 = vmatpush1.msra.mxu0 0.0
  %3341 = vmatprep.subr.mxu0 0.0
  %3342 = vmatpush1.msra.mxu0 0.0
  %3343 = vmatprep.subr.mxu0 0.0
  %3344 = vmatpush1.msra.mxu0 0.0
  %3345 = vmatprep.subr.mxu0 0.0
  %3346 = vmatpush1.msra.mxu0 0.0
  %3347 = vmatprep.subr.mxu0 0.0
  %3348 = vmatpush1.msra.mxu0 0.0
  %3349 = vmatprep.subr.mxu0 0.0
  %3350 = vmatpush1.msra.mxu0 0.0
  %3351 = vmatprep.subr.mxu0 0.0
  %3352 = vmatpush1.msra.mxu0 0.0
  %3353 = vmatprep.subr.mxu0 0.0
  %3354 = vmatpush1.msra.mxu0 0.0
  %3355 = vmatprep.subr.mxu0 0.0
  %3356 = vmatpush1.msra.mxu0 0.0
  %3357 = vmatprep.subr.mxu0 0.0
  %3358 = vmatpush1.msra.mxu0 0.0
  %3359 = vmatprep.subr.mxu0 0.0
  %3360 = vmatpush1.msra.mxu0 0.0
  %3361 = vmatprep.subr.mxu0 0.0
  %3362 = vmatpush1.msra.mxu0 0.0
  %3363 = vmatprep.subr.mxu0 0.0
  %3364 = vmatpush1.msra.mxu0 0.0
  %3365 = vmatprep.mubr.f32.mxu0 0.0
  %3366 = vmatmul.mubr.f32.gmra.mrb[0].mxu0 %v3299
  %v3367 = vpop.f32.mrb[0].mxu0
  %v3368 = vadd.f32 %v320, %v3367
  %v3369 = vpop.f32.mrb[0].mxu0
  %3370 = vdwg.mxu0
  %v3371 = vtanh.pop %v3368
  %v3373 = vsel %vm237, %v3371, 0
  %3375 = vmatprep.subr.mxu0 0.0
  %3376 = vmatpush1.msra.mxu0 %v146
  %3377 = vmatprep.subr.mxu0 0.0
  %3378 = vmatpush1.msra.mxu0 %v409
  %3379 = vmatprep.subr.mxu0 0.0
  %3380 = vmatpush1.msra.mxu0 0.0
  %3381 = vmatprep.subr.mxu0 0.0
  %3382 = vmatpush1.msra.mxu0 0.0
  %3383 = vmatprep.subr.mxu0 0.0
  %3384 = vmatpush1.msra.mxu0 0.0
  %3385 = vmatprep.subr.mxu0 0.0
  %3386 = vmatpush1.msra.mxu0 0.0
  %3387 = vmatprep.subr.mxu0 0.0
  %3388 = vmatpush1.msra.mxu0 0.0
  %3389 = vmatprep.subr.mxu0 0.0
  %3390 = vmatpush1.msra.mxu0 0.0
  %3391 = vmatprep.subr.mxu0 0.0
  %3392 = vmatpush1.msra.mxu0 0.0
  %3393 = vmatprep.subr.mxu0 0.0
  %3394 = vmatpush1.msra.mxu0 0.0
  %3395 = vmatprep.subr.mxu0 0.0
  %3396 = vmatpush1.msra.mxu0 0.0
  %3397 = vmatprep.subr.mxu0 0.0
  %3398 = vmatpush1.msra.mxu0 0.0
  %3399 = vmatprep.subr.mxu0 0.0
  %3400 = vmatpush1.msra.mxu0 0.0
  %3401 = vmatprep.subr.mxu0 0.0
  %3402 = vmatpush1.msra.mxu0 0.0
  %3403 = vmatprep.subr.mxu0 0.0
  %3404 = vmatpush1.msra.mxu0 0.0
  %3405 = vmatprep.subr.mxu0 0.0
  %3406 = vmatpush1.msra.mxu0 0.0
  %3407 = vmatprep.subr.mxu0 0.0
  %3408 = vmatpush1.msra.mxu0 0.0
  %3409 = vmatprep.subr.mxu0 0.0
  %3410 = vmatpush1.msra.mxu0 0.0
  %3411 = vmatprep.subr.mxu0 0.0
  %3412 = vmatpush1.msra.mxu0 0.0
  %3413 = vmatprep.subr.mxu0 0.0
  %3414 = vmatpush1.msra.mxu0 0.0
  %3415 = vmatprep.subr.mxu0 0.0
  %3416 = vmatpush1.msra.mxu0 0.0
  %3417 = vmatprep.subr.mxu0 0.0
  %3418 = vmatpush1.msra.mxu0 0.0
  %3419 = vmatprep.subr.mxu0 0.0
  %3420 = vmatpush1.msra.mxu0 0.0
  %3421 = vmatprep.subr.mxu0 0.0
  %3422 = vmatpush1.msra.mxu0 0.0
  %3423 = vmatprep.subr.mxu0 0.0
  %3424 = vmatpush1.msra.mxu0 0.0
  %3425 = vmatprep.subr.mxu0 0.0
  %3426 = vmatpush1.msra.mxu0 0.0
  %3427 = vmatprep.subr.mxu0 0.0
  %3428 = vmatpush1.msra.mxu0 0.0
  %3429 = vmatprep.subr.mxu0 0.0
  %3430 = vmatpush1.msra.mxu0 0.0
  %3431 = vmatprep.subr.mxu0 0.0
  %3432 = vmatpush1.msra.mxu0 0.0
  %3433 = vmatprep.subr.mxu0 0.0
  %3434 = vmatpush1.msra.mxu0 0.0
  %3435 = vmatprep.subr.mxu0 0.0
  %3436 = vmatpush1.msra.mxu0 0.0
  %3437 = vmatprep.subr.mxu0 0.0
  %3438 = vmatpush1.msra.mxu0 0.0
  %3439 = vmatprep.mubr.f32.mxu0 0.0
  %3440 = vmatmul.mubr.f32.gmra.mrb[0].mxu0 %v3373
  %v3441 = vpop.f32.mrb[0].mxu0
  %v3442 = vadd.f32 %v403, %v3441
  %v3443 = vpop.f32.mrb[0].mxu0
  %3444 = vdwg.mxu0
  %v3445 = vmul.f32 %v3442, %v3149
  %3446 = vmatprep.subr.mxu0 0.0
  %3447 = vmatpush1.msra.mxu0 %v482
  %3448 = vmatprep.subr.mxu0 0.0
  %3449 = vmatpush1.msra.mxu0 %v483
  %3450 = vmatprep.subr.mxu0 0.0
  %3451 = vmatpush1.msra.mxu0 %v484
  %3452 = vmatprep.subr.mxu0 0.0
  %3453 = vmatpush1.msra.mxu0 %v485
  %3454 = vmatprep.subr.mxu0 0.0
  %3455 = vmatpush1.msra.mxu0 %v486
  %3456 = vmatprep.subr.mxu0 0.0
  %3457 = vmatpush1.msra.mxu0 %v487
  %3458 = vmatprep.subr.mxu0 0.0
  %3459 = vmatpush1.msra.mxu0 %v488
  %3460 = vmatprep.subr.mxu0 0.0
  %3461 = vmatpush1.msra.mxu0 %v489
  %3462 = vmatprep.subr.mxu0 0.0
  %3463 = vmatpush1.msra.mxu0 %v490
  %3464 = vmatprep.subr.mxu0 0.0
  %3465 = vmatpush1.msra.mxu0 %v491
  %3466 = vmatprep.subr.mxu0 0.0
  %3467 = vmatpush1.msra.mxu0 %v492
  %3468 = vmatprep.subr.mxu0 0.0
  %3469 = vmatpush1.msra.mxu0 %v493
  %3470 = vmatprep.subr.mxu0 0.0
  %3471 = vmatpush1.msra.mxu0 %v494
  %3472 = vmatprep.subr.mxu0 0.0
  %3473 = vmatpush1.msra.mxu0 %v495
  %3474 = vmatprep.subr.mxu0 0.0
  %3475 = vmatpush1.msra.mxu0 %v496
  %3476 = vmatprep.subr.mxu0 0.0
  %3477 = vmatpush1.msra.mxu0 %v497
  %3478 = vmatprep.subr.mxu0 0.0
  %3479 = vmatpush1.msra.mxu0 0.0
  %3480 = vmatprep.subr.mxu0 0.0
  %3481 = vmatpush1.msra.mxu0 0.0
  %3482 = vmatprep.subr.mxu0 0.0
  %3483 = vmatpush1.msra.mxu0 0.0
  %3484 = vmatprep.subr.mxu0 0.0
  %3485 = vmatpush1.msra.mxu0 0.0
  %3486 = vmatprep.subr.mxu0 0.0
  %3487 = vmatpush1.msra.mxu0 0.0
  %3488 = vmatprep.subr.mxu0 0.0
  %3489 = vmatpush1.msra.mxu0 0.0
  %3490 = vmatprep.subr.mxu0 0.0
  %3491 = vmatpush1.msra.mxu0 0.0
  %3492 = vmatprep.subr.mxu0 0.0
  %3493 = vmatpush1.msra.mxu0 0.0
  %3494 = vmatprep.subr.mxu0 0.0
  %3495 = vmatpush1.msra.mxu0 0.0
  %3496 = vmatprep.subr.mxu0 0.0
  %3497 = vmatpush1.msra.mxu0 0.0
  %3498 = vmatprep.subr.mxu0 0.0
  %3499 = vmatpush1.msra.mxu0 0.0
  %3500 = vmatprep.subr.mxu0 0.0
  %3501 = vmatpush1.msra.mxu0 0.0
  %3502 = vmatprep.subr.mxu0 0.0
  %3503 = vmatpush1.msra.mxu0 0.0
  %3504 = vmatprep.subr.mxu0 0.0
  %3505 = vmatpush1.msra.mxu0 0.0
  %3506 = vmatprep.subr.mxu0 0.0
  %3507 = vmatpush1.msra.mxu0 0.0
  %3508 = vmatprep.subr.mxu0 0.0
  %3509 = vmatpush1.msra.mxu0 0.0
  %3510 = vmatprep.mubr.f32.mxu0 0.0
  %3511 = vmatmul.mubr.f32.gmra.mrb[0].mxu0 %v3445
  %v3512 = vpop.f32.mrb[0].mxu0
  %v3513 = vadd.f32 0.0, %v3512
  %v3514 = vpop.f32.mrb[0].mxu0
  %3515 = vdwg.mxu0
  %v3516 = vmul.f32 %v3513, 0.5
  %v3517 = vadd.f32 %v3147, %v3516
  %v3519 = vsel %vm156, %v3517, 0
  %3521 = vmatprep.subr.mxu0 0.0
  %3522 = vmatpush1.msra.mxu0 %v137
  %3523 = vmatprep.subr.mxu0 0.0
  %3524 = vmatpush1.msra.mxu0 %v138
  %3525 = vmatprep.subr.mxu0 0.0
  %3526 = vmatpush1.msra.mxu0 0.0
  %3527 = vmatprep.subr.mxu0 0.0
  %3528 = vmatpush1.msra.mxu0 0.0
  %3529 = vmatprep.subr.mxu0 0.0
  %3530 = vmatpush1.msra.mxu0 0.0
  %3531 = vmatprep.subr.mxu0 0.0
  %3532 = vmatpush1.msra.mxu0 0.0
  %3533 = vmatprep.subr.mxu0 0.0
  %3534 = vmatpush1.msra.mxu0 0.0
  %3535 = vmatprep.subr.mxu0 0.0
  %3536 = vmatpush1.msra.mxu0 0.0
  %3537 = vmatprep.subr.mxu0 0.0
  %3538 = vmatpush1.msra.mxu0 0.0
  %3539 = vmatprep.subr.mxu0 0.0
  %3540 = vmatpush1.msra.mxu0 0.0
  %3541 = vmatprep.subr.mxu0 0.0
  %3542 = vmatpush1.msra.mxu0 0.0
  %3543 = vmatprep.subr.mxu0 0.0
  %3544 = vmatpush1.msra.mxu0 0.0
  %3545 = vmatprep.subr.mxu0 0.0
  %3546 = vmatpush1.msra.mxu0 0.0
  %3547 = vmatprep.subr.mxu0 0.0
  %3548 = vmatpush1.msra.mxu0 0.0
  %3549 = vmatprep.subr.mxu0 0.0
  %3550 = vmatpush1.msra.mxu0 0.0
  %3551 = vmatprep.subr.mxu0 0.0
  %3552 = vmatpush1.msra.mxu0 0.0
  %3553 = vmatprep.subr.mxu0 0.0
  %3554 = vmatpush1.msra.mxu0 0.0
  %3555 = vmatprep.subr.mxu0 0.0
  %3556 = vmatpush1.msra.mxu0 0.0
  %3557 = vmatprep.subr.mxu0 0.0
  %3558 = vmatpush1.msra.mxu0 0.0
  %3559 = vmatprep.subr.mxu0 0.0
  %3560 = vmatpush1.msra.mxu0 0.0
  %3561 = vmatprep.subr.mxu0 0.0
  %3562 = vmatpush1.msra.mxu0 0.0
  %3563 = vmatprep.subr.mxu0 0.0
  %3564 = vmatpush1.msra.mxu0 0.0
  %3565 = vmatprep.subr.mxu0 0.0
  %3566 = vmatpush1.msra.mxu0 0.0
  %3567 = vmatprep.subr.mxu0 0.0
  %3568 = vmatpush1.msra.mxu0 0.0
  %3569 = vmatprep.subr.mxu0 0.0
  %3570 = vmatpush1.msra.mxu0 0.0
  %3571 = vmatprep.subr.mxu0 0.0
  %3572 = vmatpush1.msra.mxu0 0.0
  %3573 = vmatprep.subr.mxu0 0.0
  %3574 = vmatpush1.msra.mxu0 0.0
  %3575 = vmatprep.subr.mxu0 0.0
  %3576 = vmatpush1.msra.mxu0 0.0
  %3577 = vmatprep.subr.mxu0 0.0
  %3578 = vmatpush1.msra.mxu0 0.0
  %3579 = vmatprep.subr.mxu0 0.0
  %3580 = vmatpush1.msra.mxu0 0.0
  %3581 = vmatprep.subr.mxu0 0.0
  %3582 = vmatpush1.msra.mxu0 0.0
  %3583 = vmatprep.subr.mxu0 0.0
  %3584 = vmatpush1.msra.mxu0 0.0
  %3585 = vmatprep.mubr.f32.mxu0 0.0
  %3586 = vmatmul.mubr.f32.gmra.mrb[0].mxu0 %v3519
  %v3587 = vpop.f32.mrb[0].mxu0
  %v3588 = vadd.f32 %v154, %v3587
  %v3589 = vpop.f32.mrb[0].mxu0
  %3590 = vdwg.mxu0
  %v3591 = vmax.f32 %v3588, 0.0
  %v3593 = vsel %vm237, %v3591, 0
  %3595 = vmatprep.subr.mxu0 0.0
  %3596 = vmatpush1.msra.mxu0 %v140
  %3597 = vmatprep.subr.mxu0 0.0
  %3598 = vmatpush1.msra.mxu0 %v243
  %3599 = vmatprep.subr.mxu0 0.0
  %3600 = vmatpush1.msra.mxu0 0.0
  %3601 = vmatprep.subr.mxu0 0.0
  %3602 = vmatpush1.msra.mxu0 0.0
  %3603 = vmatprep.subr.mxu0 0.0
  %3604 = vmatpush1.msra.mxu0 0.0
  %3605 = vmatprep.subr.mxu0 0.0
  %3606 = vmatpush1.msra.mxu0 0.0
  %3607 = vmatprep.subr.mxu0 0.0
  %3608 = vmatpush1.msra.mxu0 0.0
  %3609 = vmatprep.subr.mxu0 0.0
  %3610 = vmatpush1.msra.mxu0 0.0
  %3611 = vmatprep.subr.mxu0 0.0
  %3612 = vmatpush1.msra.mxu0 0.0
  %3613 = vmatprep.subr.mxu0 0.0
  %3614 = vmatpush1.msra.mxu0 0.0
  %3615 = vmatprep.subr.mxu0 0.0
  %3616 = vmatpush1.msra.mxu0 0.0
  %3617 = vmatprep.subr.mxu0 0.0
  %3618 = vmatpush1.msra.mxu0 0.0
  %3619 = vmatprep.subr.mxu0 0.0
  %3620 = vmatpush1.msra.mxu0 0.0
  %3621 = vmatprep.subr.mxu0 0.0
  %3622 = vmatpush1.msra.mxu0 0.0
  %3623 = vmatprep.subr.mxu0 0.0
  %3624 = vmatpush1.msra.mxu0 0.0
  %3625 = vmatprep.subr.mxu0 0.0
  %3626 = vmatpush1.msra.mxu0 0.0
  %3627 = vmatprep.subr.mxu0 0.0
  %3628 = vmatpush1.msra.mxu0 0.0
  %3629 = vmatprep.subr.mxu0 0.0
  %3630 = vmatpush1.msra.mxu0 0.0
  %3631 = vmatprep.subr.mxu0 0.0
  %3632 = vmatpush1.msra.mxu0 0.0
  %3633 = vmatprep.subr.mxu0 0.0
  %3634 = vmatpush1.msra.mxu0 0.0
  %3635 = vmatprep.subr.mxu0 0.0
  %3636 = vmatpush1.msra.mxu0 0.0
  %3637 = vmatprep.subr.mxu0 0.0
  %3638 = vmatpush1.msra.mxu0 0.0
  %3639 = vmatprep.subr.mxu0 0.0
  %3640 = vmatpush1.msra.mxu0 0.0
  %3641 = vmatprep.subr.mxu0 0.0
  %3642 = vmatpush1.msra.mxu0 0.0
  %3643 = vmatprep.subr.mxu0 0.0
  %3644 = vmatpush1.msra.mxu0 0.0
  %3645 = vmatprep.subr.mxu0 0.0
  %3646 = vmatpush1.msra.mxu0 0.0
  %3647 = vmatprep.subr.mxu0 0.0
  %3648 = vmatpush1.msra.mxu0 0.0
  %3649 = vmatprep.subr.mxu0 0.0
  %3650 = vmatpush1.msra.mxu0 0.0
  %3651 = vmatprep.subr.mxu0 0.0
  %3652 = vmatpush1.msra.mxu0 0.0
  %3653 = vmatprep.subr.mxu0 0.0
  %3654 = vmatpush1.msra.mxu0 0.0
  %3655 = vmatprep.subr.mxu0 0.0
  %3656 = vmatpush1.msra.mxu0 0.0
  %3657 = vmatprep.subr.mxu0 0.0
  %3658 = vmatpush1.msra.mxu0 0.0
  %3659 = vmatprep.mubr.f32.mxu0 0.0
  %3660 = vmatmul.mubr.f32.gmra.mrb[0].mxu0 %v3593
  %v3661 = vpop.f32.mrb[0].mxu0
  %v3662 = vadd.f32 %v235, %v3661
  %v3663 = vpop.f32.mrb[0].mxu0
  %3664 = vdwg.mxu0
  %v3665 = vmax.f32 %v3662, 0.0
  %v3667 = vsel %vm237, %v3665, 0
  %3669 = vmatprep.subr.mxu0 0.0
  %3670 = vmatpush1.msra.mxu0 %v143
  %3671 = vmatprep.subr.mxu0 0.0
  %3672 = vmatpush1.msra.mxu0 %v326
  %3673 = vmatprep.subr.mxu0 0.0
  %3674 = vmatpush1.msra.mxu0 0.0
  %3675 = vmatprep.subr.mxu0 0.0
  %3676 = vmatpush1.msra.mxu0 0.0
  %3677 = vmatprep.subr.mxu0 0.0
  %3678 = vmatpush1.msra.mxu0 0.0
  %3679 = vmatprep.subr.mxu0 0.0
  %3680 = vmatpush1.msra.mxu0 0.0
  %3681 = vmatprep.subr.mxu0 0.0
  %3682 = vmatpush1.msra.mxu0 0.0
  %3683 = vmatprep.subr.mxu0 0.0
  %3684 = vmatpush1.msra.mxu0 0.0
  %3685 = vmatprep.subr.mxu0 0.0
  %3686 = vmatpush1.msra.mxu0 0.0
  %3687 = vmatprep.subr.mxu0 0.0
  %3688 = vmatpush1.msra.mxu0 0.0
  %3689 = vmatprep.subr.mxu0 0.0
  %3690 = vmatpush1.msra.mxu0 0.0
  %3691 = vmatprep.subr.mxu0 0.0
  %3692 = vmatpush1.msra.mxu0 0.0
  %3693 = vmatprep.subr.mxu0 0.0
  %3694 = vmatpush1.msra.mxu0 0.0
  %3695 = vmatprep.subr.mxu0 0.0
  %3696 = vmatpush1.msra.mxu0 0.0
  %3697 = vmatprep.subr.mxu0 0.0
  %3698 = vmatpush1.msra.mxu0 0.0
  %3699 = vmatprep.subr.mxu0 0.0
  %3700 = vmatpush1.msra.mxu0 0.0
  %3701 = vmatprep.subr.mxu0 0.0
  %3702 = vmatpush1.msra.mxu0 0.0
  %3703 = vmatprep.subr.mxu0 0.0
  %3704 = vmatpush1.msra.mxu0 0.0
  %3705 = vmatprep.subr.mxu0 0.0
  %3706 = vmatpush1.msra.mxu0 0.0
  %3707 = vmatprep.subr.mxu0 0.0
  %3708 = vmatpush1.msra.mxu0 0.0
  %3709 = vmatprep.subr.mxu0 0.0
  %3710 = vmatpush1.msra.mxu0 0.0
  %3711 = vmatprep.subr.mxu0 0.0
  %3712 = vmatpush1.msra.mxu0 0.0
  %3713 = vmatprep.subr.mxu0 0.0
  %3714 = vmatpush1.msra.mxu0 0.0
  %3715 = vmatprep.subr.mxu0 0.0
  %3716 = vmatpush1.msra.mxu0 0.0
  %3717 = vmatprep.subr.mxu0 0.0
  %3718 = vmatpush1.msra.mxu0 0.0
  %3719 = vmatprep.subr.mxu0 0.0
  %3720 = vmatpush1.msra.mxu0 0.0
  %3721 = vmatprep.subr.mxu0 0.0
  %3722 = vmatpush1.msra.mxu0 0.0
  %3723 = vmatprep.subr.mxu0 0.0
  %3724 = vmatpush1.msra.mxu0 0.0
  %3725 = vmatprep.subr.mxu0 0.0
  %3726 = vmatpush1.msra.mxu0 0.0
  %3727 = vmatprep.subr.mxu0 0.0
  %3728 = vmatpush1.msra.mxu0 0.0
  %3729 = vmatprep.subr.mxu0 0.0
  %3730 = vmatpush1.msra.mxu0 0.0
  %3731 = vmatprep.subr.mxu0 0.0
  %3732 = vmatpush1.msra.mxu0 0.0
  %3733 = vmatprep.mubr.f32.mxu0 0.0
  %3734 = vmatmul.mubr.f32.gmra.mrb[0].mxu0 %v3667
  %v3735 = vpop.f32.mrb[0].mxu0
  %v3736 = vadd.f32 %v320, %v3735
  %v3737 = vpop.f32.mrb[0].mxu0
  %3738 = vdwg.mxu0
  %v3739 = vtanh.pop %v3736
  %v3741 = vsel %vm237, %v3739, 0
  %3743 = vmatprep.subr.mxu0 0.0
  %3744 = vmatpush1.msra.mxu0 %v146
  %3745 = vmatprep.subr.mxu0 0.0
  %3746 = vmatpush1.msra.mxu0 %v409
  %3747 = vmatprep.subr.mxu0 0.0
  %3748 = vmatpush1.msra.mxu0 0.0
  %3749 = vmatprep.subr.mxu0 0.0
  %3750 = vmatpush1.msra.mxu0 0.0
  %3751 = vmatprep.subr.mxu0 0.0
  %3752 = vmatpush1.msra.mxu0 0.0
  %3753 = vmatprep.subr.mxu0 0.0
  %3754 = vmatpush1.msra.mxu0 0.0
  %3755 = vmatprep.subr.mxu0 0.0
  %3756 = vmatpush1.msra.mxu0 0.0
  %3757 = vmatprep.subr.mxu0 0.0
  %3758 = vmatpush1.msra.mxu0 0.0
  %3759 = vmatprep.subr.mxu0 0.0
  %3760 = vmatpush1.msra.mxu0 0.0
  %3761 = vmatprep.subr.mxu0 0.0
  %3762 = vmatpush1.msra.mxu0 0.0
  %3763 = vmatprep.subr.mxu0 0.0
  %3764 = vmatpush1.msra.mxu0 0.0
  %3765 = vmatprep.subr.mxu0 0.0
  %3766 = vmatpush1.msra.mxu0 0.0
  %3767 = vmatprep.subr.mxu0 0.0
  %3768 = vmatpush1.msra.mxu0 0.0
  %3769 = vmatprep.subr.mxu0 0.0
  %3770 = vmatpush1.msra.mxu0 0.0
  %3771 = vmatprep.subr.mxu0 0.0
  %3772 = vmatpush1.msra.mxu0 0.0
  %3773 = vmatprep.subr.mxu0 0.0
  %3774 = vmatpush1.msra.mxu0 0.0
  %3775 = vmatprep.subr.mxu0 0.0
  %3776 = vmatpush1.msra.mxu0 0.0
  %3777 = vmatprep.subr.mxu0 0.0
  %3778 = vmatpush1.msra.mxu0 0.0
  %3779 = vmatprep.subr.mxu0 0.0
  %3780 = vmatpush1.msra.mxu0 0.0
  %3781 = vmatprep.subr.mxu0 0.0
  %3782 = vmatpush1.msra.mxu0 0.0
  %3783 = vmatprep.subr.mxu0 0.0
  %3784 = vmatpush1.msra.mxu0 0.0
  %3785 = vmatprep.subr.mxu0 0.0
  %3786 = vmatpush1.msra.mxu0 0.0
  %3787 = vmatprep.subr.mxu0 0.0
  %3788 = vmatpush1.msra.mxu0 0.0
  %3789 = vmatprep.subr.mxu0 0.0
  %3790 = vmatpush1.msra.mxu0 0.0
  %3791 = vmatprep.subr.mxu0 0.0
  %3792 = vmatpush1.msra.mxu0 0.0
  %3793 = vmatprep.subr.mxu0 0.0
  %3794 = vmatpush1.msra.mxu0 0.0
  %3795 = vmatprep.subr.mxu0 0.0
  %3796 = vmatpush1.msra.mxu0 0.0
  %3797 = vmatprep.subr.mxu0 0.0
  %3798 = vmatpush1.msra.mxu0 0.0
  %3799 = vmatprep.subr.mxu0 0.0
  %3800 = vmatpush1.msra.mxu0 0.0
  %3801 = vmatprep.subr.mxu0 0.0
  %3802 = vmatpush1.msra.mxu0 0.0
  %3803 = vmatprep.subr.mxu0 0.0
  %3804 = vmatpush1.msra.mxu0 0.0
  %3805 = vmatprep.subr.mxu0 0.0
  %3806 = vmatpush1.msra.mxu0 0.0
  %3807 = vmatprep.mubr.f32.mxu0 0.0
  %3808 = vmatmul.mubr.f32.gmra.mrb[0].mxu0 %v3741
  %v3809 = vpop.f32.mrb[0].mxu0
  %v3810 = vadd.f32 %v403, %v3809
  %v3811 = vpop.f32.mrb[0].mxu0
  %3812 = vdwg.mxu0
  %v3813 = vmul.f32 %v3810, %v3149
  %3814 = vmatprep.subr.mxu0 0.0
  %3815 = vmatpush1.msra.mxu0 %v482
  %3816 = vmatprep.subr.mxu0 0.0
  %3817 = vmatpush1.msra.mxu0 %v483
  %3818 = vmatprep.subr.mxu0 0.0
  %3819 = vmatpush1.msra.mxu0 %v484
  %3820 = vmatprep.subr.mxu0 0.0
  %3821 = vmatpush1.msra.mxu0 %v485
  %3822 = vmatprep.subr.mxu0 0.0
  %3823 = vmatpush1.msra.mxu0 %v486
  %3824 = vmatprep.subr.mxu0 0.0
  %3825 = vmatpush1.msra.mxu0 %v487
  %3826 = vmatprep.subr.mxu0 0.0
  %3827 = vmatpush1.msra.mxu0 %v488
  %3828 = vmatprep.subr.mxu0 0.0
  %3829 = vmatpush1.msra.mxu0 %v489
  %3830 = vmatprep.subr.mxu0 0.0
  %3831 = vmatpush1.msra.mxu0 %v490
  %3832 = vmatprep.subr.mxu0 0.0
  %3833 = vmatpush1.msra.mxu0 %v491
  %3834 = vmatprep.subr.mxu0 0.0
  %3835 = vmatpush1.msra.mxu0 %v492
  %3836 = vmatprep.subr.mxu0 0.0
  %3837 = vmatpush1.msra.mxu0 %v493
  %3838 = vmatprep.subr.mxu0 0.0
  %3839 = vmatpush1.msra.mxu0 %v494
  %3840 = vmatprep.subr.mxu0 0.0
  %3841 = vmatpush1.msra.mxu0 %v495
  %3842 = vmatprep.subr.mxu0 0.0
  %3843 = vmatpush1.msra.mxu0 %v496
  %3844 = vmatprep.subr.mxu0 0.0
  %3845 = vmatpush1.msra.mxu0 %v497
  %3846 = vmatprep.subr.mxu0 0.0
  %3847 = vmatpush1.msra.mxu0 0.0
  %3848 = vmatprep.subr.mxu0 0.0
  %3849 = vmatpush1.msra.mxu0 0.0
  %3850 = vmatprep.subr.mxu0 0.0
  %3851 = vmatpush1.msra.mxu0 0.0
  %3852 = vmatprep.subr.mxu0 0.0
  %3853 = vmatpush1.msra.mxu0 0.0
  %3854 = vmatprep.subr.mxu0 0.0
  %3855 = vmatpush1.msra.mxu0 0.0
  %3856 = vmatprep.subr.mxu0 0.0
  %3857 = vmatpush1.msra.mxu0 0.0
  %3858 = vmatprep.subr.mxu0 0.0
  %3859 = vmatpush1.msra.mxu0 0.0
  %3860 = vmatprep.subr.mxu0 0.0
  %3861 = vmatpush1.msra.mxu0 0.0
  %3862 = vmatprep.subr.mxu0 0.0
  %3863 = vmatpush1.msra.mxu0 0.0
  %3864 = vmatprep.subr.mxu0 0.0
  %3865 = vmatpush1.msra.mxu0 0.0
  %3866 = vmatprep.subr.mxu0 0.0
  %3867 = vmatpush1.msra.mxu0 0.0
  %3868 = vmatprep.subr.mxu0 0.0
  %3869 = vmatpush1.msra.mxu0 0.0
  %3870 = vmatprep.subr.mxu0 0.0
  %3871 = vmatpush1.msra.mxu0 0.0
  %3872 = vmatprep.subr.mxu0 0.0
  %3873 = vmatpush1.msra.mxu0 0.0
  %3874 = vmatprep.subr.mxu0 0.0
  %3875 = vmatpush1.msra.mxu0 0.0
  %3876 = vmatprep.subr.mxu0 0.0
  %3877 = vmatpush1.msra.mxu0 0.0
  %3878 = vmatprep.mubr.f32.mxu0 0.0
  %3879 = vmatmul.mubr.f32.gmra.mrb[0].mxu0 %v3813
  %v3880 = vpop.f32.mrb[0].mxu0
  %v3881 = vadd.f32 0.0, %v3880
  %v3882 = vpop.f32.mrb[0].mxu0
  %3883 = vdwg.mxu0
  %v3884 = vadd.f32 %v3147, %v3881
  %s3885 = scalar_lea.vmem %s1, 40
  %v3886 = vld [vmem:[%s3885] sm:$0xff]
  %v3888 = vsel %vm156, %v3884, 0
  %3890 = vmatprep.subr.mxu0 0.0
  %3891 = vmatpush1.msra.mxu0 %v137
  %3892 = vmatprep.subr.mxu0 0.0
  %3893 = vmatpush1.msra.mxu0 %v138
  %3894 = vmatprep.subr.mxu0 0.0
  %3895 = vmatpush1.msra.mxu0 0.0
  %3896 = vmatprep.subr.mxu0 0.0
  %3897 = vmatpush1.msra.mxu0 0.0
  %3898 = vmatprep.subr.mxu0 0.0
  %3899 = vmatpush1.msra.mxu0 0.0
  %3900 = vmatprep.subr.mxu0 0.0
  %3901 = vmatpush1.msra.mxu0 0.0
  %3902 = vmatprep.subr.mxu0 0.0
  %3903 = vmatpush1.msra.mxu0 0.0
  %3904 = vmatprep.subr.mxu0 0.0
  %3905 = vmatpush1.msra.mxu0 0.0
  %3906 = vmatprep.subr.mxu0 0.0
  %3907 = vmatpush1.msra.mxu0 0.0
  %3908 = vmatprep.subr.mxu0 0.0
  %3909 = vmatpush1.msra.mxu0 0.0
  %3910 = vmatprep.subr.mxu0 0.0
  %3911 = vmatpush1.msra.mxu0 0.0
  %3912 = vmatprep.subr.mxu0 0.0
  %3913 = vmatpush1.msra.mxu0 0.0
  %3914 = vmatprep.subr.mxu0 0.0
  %3915 = vmatpush1.msra.mxu0 0.0
  %3916 = vmatprep.subr.mxu0 0.0
  %3917 = vmatpush1.msra.mxu0 0.0
  %3918 = vmatprep.subr.mxu0 0.0
  %3919 = vmatpush1.msra.mxu0 0.0
  %3920 = vmatprep.subr.mxu0 0.0
  %3921 = vmatpush1.msra.mxu0 0.0
  %3922 = vmatprep.subr.mxu0 0.0
  %3923 = vmatpush1.msra.mxu0 0.0
  %3924 = vmatprep.subr.mxu0 0.0
  %3925 = vmatpush1.msra.mxu0 0.0
  %3926 = vmatprep.subr.mxu0 0.0
  %3927 = vmatpush1.msra.mxu0 0.0
  %3928 = vmatprep.subr.mxu0 0.0
  %3929 = vmatpush1.msra.mxu0 0.0
  %3930 = vmatprep.subr.mxu0 0.0
  %3931 = vmatpush1.msra.mxu0 0.0
  %3932 = vmatprep.subr.mxu0 0.0
  %3933 = vmatpush1.msra.mxu0 0.0
  %3934 = vmatprep.subr.mxu0 0.0
  %3935 = vmatpush1.msra.mxu0 0.0
  %3936 = vmatprep.subr.mxu0 0.0
  %3937 = vmatpush1.msra.mxu0 0.0
  %3938 = vmatprep.subr.mxu0 0.0
  %3939 = vmatpush1.msra.mxu0 0.0
  %3940 = vmatprep.subr.mxu0 0.0
  %3941 = vmatpush1.msra.mxu0 0.0
  %3942 = vmatprep.subr.mxu0 0.0
  %3943 = vmatpush1.msra.mxu0 0.0
  %3944 = vmatprep.subr.mxu0 0.0
  %3945 = vmatpush1.msra.mxu0 0.0
  %3946 = vmatprep.subr.mxu0 0.0
  %3947 = vmatpush1.msra.mxu0 0.0
  %3948 = vmatprep.subr.mxu0 0.0
  %3949 = vmatpush1.msra.mxu0 0.0
  %3950 = vmatprep.subr.mxu0 0.0
  %3951 = vmatpush1.msra.mxu0 0.0
  %3952 = vmatprep.subr.mxu0 0.0
  %3953 = vmatpush1.msra.mxu0 0.0
  %3954 = vmatprep.mubr.f32.mxu0 0.0
  %3955 = vmatmul.mubr.f32.gmra.mrb[0].mxu0 %v3888
  %v3956 = vpop.f32.mrb[0].mxu0
  %v3957 = vadd.f32 %v154, %v3956
  %v3958 = vpop.f32.mrb[0].mxu0
  %3959 = vdwg.mxu0
  %v3960 = vmax.f32 %v3957, 0.0
  %v3962 = vsel %vm237, %v3960, 0
  %3964 = vmatprep.subr.mxu0 0.0
  %3965 = vmatpush1.msra.mxu0 %v140
  %3966 = vmatprep.subr.mxu0 0.0
  %3967 = vmatpush1.msra.mxu0 %v243
  %3968 = vmatprep.subr.mxu0 0.0
  %3969 = vmatpush1.msra.mxu0 0.0
  %3970 = vmatprep.subr.mxu0 0.0
  %3971 = vmatpush1.msra.mxu0 0.0
  %3972 = vmatprep.subr.mxu0 0.0
  %3973 = vmatpush1.msra.mxu0 0.0
  %3974 = vmatprep.subr.mxu0 0.0
  %3975 = vmatpush1.msra.mxu0 0.0
  %3976 = vmatprep.subr.mxu0 0.0
  %3977 = vmatpush1.msra.mxu0 0.0
  %3978 = vmatprep.subr.mxu0 0.0
  %3979 = vmatpush1.msra.mxu0 0.0
  %3980 = vmatprep.subr.mxu0 0.0
  %3981 = vmatpush1.msra.mxu0 0.0
  %3982 = vmatprep.subr.mxu0 0.0
  %3983 = vmatpush1.msra.mxu0 0.0
  %3984 = vmatprep.subr.mxu0 0.0
  %3985 = vmatpush1.msra.mxu0 0.0
  %3986 = vmatprep.subr.mxu0 0.0
  %3987 = vmatpush1.msra.mxu0 0.0
  %3988 = vmatprep.subr.mxu0 0.0
  %3989 = vmatpush1.msra.mxu0 0.0
  %3990 = vmatprep.subr.mxu0 0.0
  %3991 = vmatpush1.msra.mxu0 0.0
  %3992 = vmatprep.subr.mxu0 0.0
  %3993 = vmatpush1.msra.mxu0 0.0
  %3994 = vmatprep.subr.mxu0 0.0
  %3995 = vmatpush1.msra.mxu0 0.0
  %3996 = vmatprep.subr.mxu0 0.0
  %3997 = vmatpush1.msra.mxu0 0.0
  %3998 = vmatprep.subr.mxu0 0.0
  %3999 = vmatpush1.msra.mxu0 0.0
  %4000 = vmatprep.subr.mxu0 0.0
  %4001 = vmatpush1.msra.mxu0 0.0
  %4002 = vmatprep.subr.mxu0 0.0
  %4003 = vmatpush1.msra.mxu0 0.0
  %4004 = vmatprep.subr.mxu0 0.0
  %4005 = vmatpush1.msra.mxu0 0.0
  %4006 = vmatprep.subr.mxu0 0.0
  %4007 = vmatpush1.msra.mxu0 0.0
  %4008 = vmatprep.subr.mxu0 0.0
  %4009 = vmatpush1.msra.mxu0 0.0
  %4010 = vmatprep.subr.mxu0 0.0
  %4011 = vmatpush1.msra.mxu0 0.0
  %4012 = vmatprep.subr.mxu0 0.0
  %4013 = vmatpush1.msra.mxu0 0.0
  %4014 = vmatprep.subr.mxu0 0.0
  %4015 = vmatpush1.msra.mxu0 0.0
  %4016 = vmatprep.subr.mxu0 0.0
  %4017 = vmatpush1.msra.mxu0 0.0
  %4018 = vmatprep.subr.mxu0 0.0
  %4019 = vmatpush1.msra.mxu0 0.0
  %4020 = vmatprep.subr.mxu0 0.0
  %4021 = vmatpush1.msra.mxu0 0.0
  %4022 = vmatprep.subr.mxu0 0.0
  %4023 = vmatpush1.msra.mxu0 0.0
  %4024 = vmatprep.subr.mxu0 0.0
  %4025 = vmatpush1.msra.mxu0 0.0
  %4026 = vmatprep.subr.mxu0 0.0
  %4027 = vmatpush1.msra.mxu0 0.0
  %4028 = vmatprep.mubr.f32.mxu0 0.0
  %4029 = vmatmul.mubr.f32.gmra.mrb[0].mxu0 %v3962
  %v4030 = vpop.f32.mrb[0].mxu0
  %v4031 = vadd.f32 %v235, %v4030
  %v4032 = vpop.f32.mrb[0].mxu0
  %4033 = vdwg.mxu0
  %v4034 = vmax.f32 %v4031, 0.0
  %v4036 = vsel %vm237, %v4034, 0
  %4038 = vmatprep.subr.mxu0 0.0
  %4039 = vmatpush1.msra.mxu0 %v143
  %4040 = vmatprep.subr.mxu0 0.0
  %4041 = vmatpush1.msra.mxu0 %v326
  %4042 = vmatprep.subr.mxu0 0.0
  %4043 = vmatpush1.msra.mxu0 0.0
  %4044 = vmatprep.subr.mxu0 0.0
  %4045 = vmatpush1.msra.mxu0 0.0
  %4046 = vmatprep.subr.mxu0 0.0
  %4047 = vmatpush1.msra.mxu0 0.0
  %4048 = vmatprep.subr.mxu0 0.0
  %4049 = vmatpush1.msra.mxu0 0.0
  %4050 = vmatprep.subr.mxu0 0.0
  %4051 = vmatpush1.msra.mxu0 0.0
  %4052 = vmatprep.subr.mxu0 0.0
  %4053 = vmatpush1.msra.mxu0 0.0
  %4054 = vmatprep.subr.mxu0 0.0
  %4055 = vmatpush1.msra.mxu0 0.0
  %4056 = vmatprep.subr.mxu0 0.0
  %4057 = vmatpush1.msra.mxu0 0.0
  %4058 = vmatprep.subr.mxu0 0.0
  %4059 = vmatpush1.msra.mxu0 0.0
  %4060 = vmatprep.subr.mxu0 0.0
  %4061 = vmatpush1.msra.mxu0 0.0
  %4062 = vmatprep.subr.mxu0 0.0
  %4063 = vmatpush1.msra.mxu0 0.0
  %4064 = vmatprep.subr.mxu0 0.0
  %4065 = vmatpush1.msra.mxu0 0.0
  %4066 = vmatprep.subr.mxu0 0.0
  %4067 = vmatpush1.msra.mxu0 0.0
  %4068 = vmatprep.subr.mxu0 0.0
  %4069 = vmatpush1.msra.mxu0 0.0
  %4070 = vmatprep.subr.mxu0 0.0
  %4071 = vmatpush1.msra.mxu0 0.0
  %4072 = vmatprep.subr.mxu0 0.0
  %4073 = vmatpush1.msra.mxu0 0.0
  %4074 = vmatprep.subr.mxu0 0.0
  %4075 = vmatpush1.msra.mxu0 0.0
  %4076 = vmatprep.subr.mxu0 0.0
  %4077 = vmatpush1.msra.mxu0 0.0
  %4078 = vmatprep.subr.mxu0 0.0
  %4079 = vmatpush1.msra.mxu0 0.0
  %4080 = vmatprep.subr.mxu0 0.0
  %4081 = vmatpush1.msra.mxu0 0.0
  %4082 = vmatprep.subr.mxu0 0.0
  %4083 = vmatpush1.msra.mxu0 0.0
  %4084 = vmatprep.subr.mxu0 0.0
  %4085 = vmatpush1.msra.mxu0 0.0
  %4086 = vmatprep.subr.mxu0 0.0
  %4087 = vmatpush1.msra.mxu0 0.0
  %4088 = vmatprep.subr.mxu0 0.0
  %4089 = vmatpush1.msra.mxu0 0.0
  %4090 = vmatprep.subr.mxu0 0.0
  %4091 = vmatpush1.msra.mxu0 0.0
  %4092 = vmatprep.subr.mxu0 0.0
  %4093 = vmatpush1.msra.mxu0 0.0
  %4094 = vmatprep.subr.mxu0 0.0
  %4095 = vmatpush1.msra.mxu0 0.0
  %4096 = vmatprep.subr.mxu0 0.0
  %4097 = vmatpush1.msra.mxu0 0.0
  %4098 = vmatprep.subr.mxu0 0.0
  %4099 = vmatpush1.msra.mxu0 0.0
  %4100 = vmatprep.subr.mxu0 0.0
  %4101 = vmatpush1.msra.mxu0 0.0
  %4102 = vmatprep.mubr.f32.mxu0 0.0
  %4103 = vmatmul.mubr.f32.gmra.mrb[0].mxu0 %v4036
  %v4104 = vpop.f32.mrb[0].mxu0
  %v4105 = vadd.f32 %v320, %v4104
  %v4106 = vpop.f32.mrb[0].mxu0
  %4107 = vdwg.mxu0
  %v4108 = vtanh.pop %v4105
  %v4110 = vsel %vm237, %v4108, 0
  %4112 = vmatprep.subr.mxu0 0.0
  %4113 = vmatpush1.msra.mxu0 %v146
  %4114 = vmatprep.subr.mxu0 0.0
  %4115 = vmatpush1.msra.mxu0 %v409
  %4116 = vmatprep.subr.mxu0 0.0
  %4117 = vmatpush1.msra.mxu0 0.0
  %4118 = vmatprep.subr.mxu0 0.0
  %4119 = vmatpush1.msra.mxu0 0.0
  %4120 = vmatprep.subr.mxu0 0.0
  %4121 = vmatpush1.msra.mxu0 0.0
  %4122 = vmatprep.subr.mxu0 0.0
  %4123 = vmatpush1.msra.mxu0 0.0
  %4124 = vmatprep.subr.mxu0 0.0
  %4125 = vmatpush1.msra.mxu0 0.0
  %4126 = vmatprep.subr.mxu0 0.0
  %4127 = vmatpush1.msra.mxu0 0.0
  %4128 = vmatprep.subr.mxu0 0.0
  %4129 = vmatpush1.msra.mxu0 0.0
  %4130 = vmatprep.subr.mxu0 0.0
  %4131 = vmatpush1.msra.mxu0 0.0
  %4132 = vmatprep.subr.mxu0 0.0
  %4133 = vmatpush1.msra.mxu0 0.0
  %4134 = vmatprep.subr.mxu0 0.0
  %4135 = vmatpush1.msra.mxu0 0.0
  %4136 = vmatprep.subr.mxu0 0.0
  %4137 = vmatpush1.msra.mxu0 0.0
  %4138 = vmatprep.subr.mxu0 0.0
  %4139 = vmatpush1.msra.mxu0 0.0
  %4140 = vmatprep.subr.mxu0 0.0
  %4141 = vmatpush1.msra.mxu0 0.0
  %4142 = vmatprep.subr.mxu0 0.0
  %4143 = vmatpush1.msra.mxu0 0.0
  %4144 = vmatprep.subr.mxu0 0.0
  %4145 = vmatpush1.msra.mxu0 0.0
  %4146 = vmatprep.subr.mxu0 0.0
  %4147 = vmatpush1.msra.mxu0 0.0
  %4148 = vmatprep.subr.mxu0 0.0
  %4149 = vmatpush1.msra.mxu0 0.0
  %4150 = vmatprep.subr.mxu0 0.0
  %4151 = vmatpush1.msra.mxu0 0.0
  %4152 = vmatprep.subr.mxu0 0.0
  %4153 = vmatpush1.msra.mxu0 0.0
  %4154 = vmatprep.subr.mxu0 0.0
  %4155 = vmatpush1.msra.mxu0 0.0
  %4156 = vmatprep.subr.mxu0 0.0
  %4157 = vmatpush1.msra.mxu0 0.0
  %4158 = vmatprep.subr.mxu0 0.0
  %4159 = vmatpush1.msra.mxu0 0.0
  %4160 = vmatprep.subr.mxu0 0.0
  %4161 = vmatpush1.msra.mxu0 0.0
  %4162 = vmatprep.subr.mxu0 0.0
  %4163 = vmatpush1.msra.mxu0 0.0
  %4164 = vmatprep.subr.mxu0 0.0
  %4165 = vmatpush1.msra.mxu0 0.0
  %4166 = vmatprep.subr.mxu0 0.0
  %4167 = vmatpush1.msra.mxu0 0.0
  %4168 = vmatprep.subr.mxu0 0.0
  %4169 = vmatpush1.msra.mxu0 0.0
  %4170 = vmatprep.subr.mxu0 0.0
  %4171 = vmatpush1.msra.mxu0 0.0
  %4172 = vmatprep.subr.mxu0 0.0
  %4173 = vmatpush1.msra.mxu0 0.0
  %4174 = vmatprep.subr.mxu0 0.0
  %4175 = vmatpush1.msra.mxu0 0.0
  %4176 = vmatprep.mubr.f32.mxu0 0.0
  %4177 = vmatmul.mubr.f32.gmra.mrb[0].mxu0 %v4110
  %v4178 = vpop.f32.mrb[0].mxu0
  %v4179 = vadd.f32 %v403, %v4178
  %v4180 = vpop.f32.mrb[0].mxu0
  %4181 = vdwg.mxu0
  %v4182 = vmul.f32 %v4179, %v3886
  %4183 = vmatprep.subr.mxu0 0.0
  %4184 = vmatpush1.msra.mxu0 %v482
  %4185 = vmatprep.subr.mxu0 0.0
  %4186 = vmatpush1.msra.mxu0 %v483
  %4187 = vmatprep.subr.mxu0 0.0
  %4188 = vmatpush1.msra.mxu0 %v484
  %4189 = vmatprep.subr.mxu0 0.0
  %4190 = vmatpush1.msra.mxu0 %v485
  %4191 = vmatprep.subr.mxu0 0.0
  %4192 = vmatpush1.msra.mxu0 %v486
  %4193 = vmatprep.subr.mxu0 0.0
  %4194 = vmatpush1.msra.mxu0 %v487
  %4195 = vmatprep.subr.mxu0 0.0
  %4196 = vmatpush1.msra.mxu0 %v488
  %4197 = vmatprep.subr.mxu0 0.0
  %4198 = vmatpush1.msra.mxu0 %v489
  %4199 = vmatprep.subr.mxu0 0.0
  %4200 = vmatpush1.msra.mxu0 %v490
  %4201 = vmatprep.subr.mxu0 0.0
  %4202 = vmatpush1.msra.mxu0 %v491
  %4203 = vmatprep.subr.mxu0 0.0
  %4204 = vmatpush1.msra.mxu0 %v492
  %4205 = vmatprep.subr.mxu0 0.0
  %4206 = vmatpush1.msra.mxu0 %v493
  %4207 = vmatprep.subr.mxu0 0.0
  %4208 = vmatpush1.msra.mxu0 %v494
  %4209 = vmatprep.subr.mxu0 0.0
  %4210 = vmatpush1.msra.mxu0 %v495
  %4211 = vmatprep.subr.mxu0 0.0
  %4212 = vmatpush1.msra.mxu0 %v496
  %4213 = vmatprep.subr.mxu0 0.0
  %4214 = vmatpush1.msra.mxu0 %v497
  %4215 = vmatprep.subr.mxu0 0.0
  %4216 = vmatpush1.msra.mxu0 0.0
  %4217 = vmatprep.subr.mxu0 0.0
  %4218 = vmatpush1.msra.mxu0 0.0
  %4219 = vmatprep.subr.mxu0 0.0
  %4220 = vmatpush1.msra.mxu0 0.0
  %4221 = vmatprep.subr.mxu0 0.0
  %4222 = vmatpush1.msra.mxu0 0.0
  %4223 = vmatprep.subr.mxu0 0.0
  %4224 = vmatpush1.msra.mxu0 0.0
  %4225 = vmatprep.subr.mxu0 0.0
  %4226 = vmatpush1.msra.mxu0 0.0
  %4227 = vmatprep.subr.mxu0 0.0
  %4228 = vmatpush1.msra.mxu0 0.0
  %4229 = vmatprep.subr.mxu0 0.0
  %4230 = vmatpush1.msra.mxu0 0.0
  %4231 = vmatprep.subr.mxu0 0.0
  %4232 = vmatpush1.msra.mxu0 0.0
  %4233 = vmatprep.subr.mxu0 0.0
  %4234 = vmatpush1.msra.mxu0 0.0
  %4235 = vmatprep.subr.mxu0 0.0
  %4236 = vmatpush1.msra.mxu0 0.0
  %4237 = vmatprep.subr.mxu0 0.0
  %4238 = vmatpush1.msra.mxu0 0.0
  %4239 = vmatprep.subr.mxu0 0.0
  %4240 = vmatpush1.msra.mxu0 0.0
  %4241 = vmatprep.subr.mxu0 0.0
  %4242 = vmatpush1.msra.mxu0 0.0
  %4243 = vmatprep.subr.mxu0 0.0
  %4244 = vmatpush1.msra.mxu0 0.0
  %4245 = vmatprep.subr.mxu0 0.0
  %4246 = vmatpush1.msra.mxu0 0.0
  %4247 = vmatprep.mubr.f32.mxu0 0.0
  %4248 = vmatmul.mubr.f32.gmra.mrb[0].mxu0 %v4182
  %v4249 = vpop.f32.mrb[0].mxu0
  %v4250 = vadd.f32 0.0, %v4249
  %v4251 = vpop.f32.mrb[0].mxu0
  %4252 = vdwg.mxu0
  %v4253 = vmul.f32 %v4250, 0.5
  %v4254 = vadd.f32 %v3884, %v4253
  %v4256 = vsel %vm156, %v4254, 0
  %4258 = vmatprep.subr.mxu0 0.0
  %4259 = vmatpush1.msra.mxu0 %v137
  %4260 = vmatprep.subr.mxu0 0.0
  %4261 = vmatpush1.msra.mxu0 %v138
  %4262 = vmatprep.subr.mxu0 0.0
  %4263 = vmatpush1.msra.mxu0 0.0
  %4264 = vmatprep.subr.mxu0 0.0
  %4265 = vmatpush1.msra.mxu0 0.0
  %4266 = vmatprep.subr.mxu0 0.0
  %4267 = vmatpush1.msra.mxu0 0.0
  %4268 = vmatprep.subr.mxu0 0.0
  %4269 = vmatpush1.msra.mxu0 0.0
  %4270 = vmatprep.subr.mxu0 0.0
  %4271 = vmatpush1.msra.mxu0 0.0
  %4272 = vmatprep.subr.mxu0 0.0
  %4273 = vmatpush1.msra.mxu0 0.0
  %4274 = vmatprep.subr.mxu0 0.0
  %4275 = vmatpush1.msra.mxu0 0.0
  %4276 = vmatprep.subr.mxu0 0.0
  %4277 = vmatpush1.msra.mxu0 0.0
  %4278 = vmatprep.subr.mxu0 0.0
  %4279 = vmatpush1.msra.mxu0 0.0
  %4280 = vmatprep.subr.mxu0 0.0
  %4281 = vmatpush1.msra.mxu0 0.0
  %4282 = vmatprep.subr.mxu0 0.0
  %4283 = vmatpush1.msra.mxu0 0.0
  %4284 = vmatprep.subr.mxu0 0.0
  %4285 = vmatpush1.msra.mxu0 0.0
  %4286 = vmatprep.subr.mxu0 0.0
  %4287 = vmatpush1.msra.mxu0 0.0
  %4288 = vmatprep.subr.mxu0 0.0
  %4289 = vmatpush1.msra.mxu0 0.0
  %4290 = vmatprep.subr.mxu0 0.0
  %4291 = vmatpush1.msra.mxu0 0.0
  %4292 = vmatprep.subr.mxu0 0.0
  %4293 = vmatpush1.msra.mxu0 0.0
  %4294 = vmatprep.subr.mxu0 0.0
  %4295 = vmatpush1.msra.mxu0 0.0
  %4296 = vmatprep.subr.mxu0 0.0
  %4297 = vmatpush1.msra.mxu0 0.0
  %4298 = vmatprep.subr.mxu0 0.0
  %4299 = vmatpush1.msra.mxu0 0.0
  %4300 = vmatprep.subr.mxu0 0.0
  %4301 = vmatpush1.msra.mxu0 0.0
  %4302 = vmatprep.subr.mxu0 0.0
  %4303 = vmatpush1.msra.mxu0 0.0
  %4304 = vmatprep.subr.mxu0 0.0
  %4305 = vmatpush1.msra.mxu0 0.0
  %4306 = vmatprep.subr.mxu0 0.0
  %4307 = vmatpush1.msra.mxu0 0.0
  %4308 = vmatprep.subr.mxu0 0.0
  %4309 = vmatpush1.msra.mxu0 0.0
  %4310 = vmatprep.subr.mxu0 0.0
  %4311 = vmatpush1.msra.mxu0 0.0
  %4312 = vmatprep.subr.mxu0 0.0
  %4313 = vmatpush1.msra.mxu0 0.0
  %4314 = vmatprep.subr.mxu0 0.0
  %4315 = vmatpush1.msra.mxu0 0.0
  %4316 = vmatprep.subr.mxu0 0.0
  %4317 = vmatpush1.msra.mxu0 0.0
  %4318 = vmatprep.subr.mxu0 0.0
  %4319 = vmatpush1.msra.mxu0 0.0
  %4320 = vmatprep.subr.mxu0 0.0
  %4321 = vmatpush1.msra.mxu0 0.0
  %4322 = vmatprep.mubr.f32.mxu0 0.0
  %4323 = vmatmul.mubr.f32.gmra.mrb[0].mxu0 %v4256
  %v4324 = vpop.f32.mrb[0].mxu0
  %v4325 = vadd.f32 %v154, %v4324
  %v4326 = vpop.f32.mrb[0].mxu0
  %4327 = vdwg.mxu0
  %v4328 = vmax.f32 %v4325, 0.0
  %v4330 = vsel %vm237, %v4328, 0
  %4332 = vmatprep.subr.mxu0 0.0
  %4333 = vmatpush1.msra.mxu0 %v140
  %4334 = vmatprep.subr.mxu0 0.0
  %4335 = vmatpush1.msra.mxu0 %v243
  %4336 = vmatprep.subr.mxu0 0.0
  %4337 = vmatpush1.msra.mxu0 0.0
  %4338 = vmatprep.subr.mxu0 0.0
  %4339 = vmatpush1.msra.mxu0 0.0
  %4340 = vmatprep.subr.mxu0 0.0
  %4341 = vmatpush1.msra.mxu0 0.0
  %4342 = vmatprep.subr.mxu0 0.0
  %4343 = vmatpush1.msra.mxu0 0.0
  %4344 = vmatprep.subr.mxu0 0.0
  %4345 = vmatpush1.msra.mxu0 0.0
  %4346 = vmatprep.subr.mxu0 0.0
  %4347 = vmatpush1.msra.mxu0 0.0
  %4348 = vmatprep.subr.mxu0 0.0
  %4349 = vmatpush1.msra.mxu0 0.0
  %4350 = vmatprep.subr.mxu0 0.0
  %4351 = vmatpush1.msra.mxu0 0.0
  %4352 = vmatprep.subr.mxu0 0.0
  %4353 = vmatpush1.msra.mxu0 0.0
  %4354 = vmatprep.subr.mxu0 0.0
  %4355 = vmatpush1.msra.mxu0 0.0
  %4356 = vmatprep.subr.mxu0 0.0
  %4357 = vmatpush1.msra.mxu0 0.0
  %4358 = vmatprep.subr.mxu0 0.0
  %4359 = vmatpush1.msra.mxu0 0.0
  %4360 = vmatprep.subr.mxu0 0.0
  %4361 = vmatpush1.msra.mxu0 0.0
  %4362 = vmatprep.subr.mxu0 0.0
  %4363 = vmatpush1.msra.mxu0 0.0
  %4364 = vmatprep.subr.mxu0 0.0
  %4365 = vmatpush1.msra.mxu0 0.0
  %4366 = vmatprep.subr.mxu0 0.0
  %4367 = vmatpush1.msra.mxu0 0.0
  %4368 = vmatprep.subr.mxu0 0.0
  %4369 = vmatpush1.msra.mxu0 0.0
  %4370 = vmatprep.subr.mxu0 0.0
  %4371 = vmatpush1.msra.mxu0 0.0
  %4372 = vmatprep.subr.mxu0 0.0
  %4373 = vmatpush1.msra.mxu0 0.0
  %4374 = vmatprep.subr.mxu0 0.0
  %4375 = vmatpush1.msra.mxu0 0.0
  %4376 = vmatprep.subr.mxu0 0.0
  %4377 = vmatpush1.msra.mxu0 0.0
  %4378 = vmatprep.subr.mxu0 0.0
  %4379 = vmatpush1.msra.mxu0 0.0
  %4380 = vmatprep.subr.mxu0 0.0
  %4381 = vmatpush1.msra.mxu0 0.0
  %4382 = vmatprep.subr.mxu0 0.0
  %4383 = vmatpush1.msra.mxu0 0.0
  %4384 = vmatprep.subr.mxu0 0.0
  %4385 = vmatpush1.msra.mxu0 0.0
  %4386 = vmatprep.subr.mxu0 0.0
  %4387 = vmatpush1.msra.mxu0 0.0
  %4388 = vmatprep.subr.mxu0 0.0
  %4389 = vmatpush1.msra.mxu0 0.0
  %4390 = vmatprep.subr.mxu0 0.0
  %4391 = vmatpush1.msra.mxu0 0.0
  %4392 = vmatprep.subr.mxu0 0.0
  %4393 = vmatpush1.msra.mxu0 0.0
  %4394 = vmatprep.subr.mxu0 0.0
  %4395 = vmatpush1.msra.mxu0 0.0
  %4396 = vmatprep.mubr.f32.mxu0 0.0
  %4397 = vmatmul.mubr.f32.gmra.mrb[0].mxu0 %v4330
  %v4398 = vpop.f32.mrb[0].mxu0
  %v4399 = vadd.f32 %v235, %v4398
  %v4400 = vpop.f32.mrb[0].mxu0
  %4401 = vdwg.mxu0
  %v4402 = vmax.f32 %v4399, 0.0
  %v4404 = vsel %vm237, %v4402, 0
  %4406 = vmatprep.subr.mxu0 0.0
  %4407 = vmatpush1.msra.mxu0 %v143
  %4408 = vmatprep.subr.mxu0 0.0
  %4409 = vmatpush1.msra.mxu0 %v326
  %4410 = vmatprep.subr.mxu0 0.0
  %4411 = vmatpush1.msra.mxu0 0.0
  %4412 = vmatprep.subr.mxu0 0.0
  %4413 = vmatpush1.msra.mxu0 0.0
  %4414 = vmatprep.subr.mxu0 0.0
  %4415 = vmatpush1.msra.mxu0 0.0
  %4416 = vmatprep.subr.mxu0 0.0
  %4417 = vmatpush1.msra.mxu0 0.0
  %4418 = vmatprep.subr.mxu0 0.0
  %4419 = vmatpush1.msra.mxu0 0.0
  %4420 = vmatprep.subr.mxu0 0.0
  %4421 = vmatpush1.msra.mxu0 0.0
  %4422 = vmatprep.subr.mxu0 0.0
  %4423 = vmatpush1.msra.mxu0 0.0
  %4424 = vmatprep.subr.mxu0 0.0
  %4425 = vmatpush1.msra.mxu0 0.0
  %4426 = vmatprep.subr.mxu0 0.0
  %4427 = vmatpush1.msra.mxu0 0.0
  %4428 = vmatprep.subr.mxu0 0.0
  %4429 = vmatpush1.msra.mxu0 0.0
  %4430 = vmatprep.subr.mxu0 0.0
  %4431 = vmatpush1.msra.mxu0 0.0
  %4432 = vmatprep.subr.mxu0 0.0
  %4433 = vmatpush1.msra.mxu0 0.0
  %4434 = vmatprep.subr.mxu0 0.0
  %4435 = vmatpush1.msra.mxu0 0.0
  %4436 = vmatprep.subr.mxu0 0.0
  %4437 = vmatpush1.msra.mxu0 0.0
  %4438 = vmatprep.subr.mxu0 0.0
  %4439 = vmatpush1.msra.mxu0 0.0
  %4440 = vmatprep.subr.mxu0 0.0
  %4441 = vmatpush1.msra.mxu0 0.0
  %4442 = vmatprep.subr.mxu0 0.0
  %4443 = vmatpush1.msra.mxu0 0.0
  %4444 = vmatprep.subr.mxu0 0.0
  %4445 = vmatpush1.msra.mxu0 0.0
  %4446 = vmatprep.subr.mxu0 0.0
  %4447 = vmatpush1.msra.mxu0 0.0
  %4448 = vmatprep.subr.mxu0 0.0
  %4449 = vmatpush1.msra.mxu0 0.0
  %4450 = vmatprep.subr.mxu0 0.0
  %4451 = vmatpush1.msra.mxu0 0.0
  %4452 = vmatprep.subr.mxu0 0.0
  %4453 = vmatpush1.msra.mxu0 0.0
  %4454 = vmatprep.subr.mxu0 0.0
  %4455 = vmatpush1.msra.mxu0 0.0
  %4456 = vmatprep.subr.mxu0 0.0
  %4457 = vmatpush1.msra.mxu0 0.0
  %4458 = vmatprep.subr.mxu0 0.0
  %4459 = vmatpush1.msra.mxu0 0.0
  %4460 = vmatprep.subr.mxu0 0.0
  %4461 = vmatpush1.msra.mxu0 0.0
  %4462 = vmatprep.subr.mxu0 0.0
  %4463 = vmatpush1.msra.mxu0 0.0
  %4464 = vmatprep.subr.mxu0 0.0
  %4465 = vmatpush1.msra.mxu0 0.0
  %4466 = vmatprep.subr.mxu0 0.0
  %4467 = vmatpush1.msra.mxu0 0.0
  %4468 = vmatprep.subr.mxu0 0.0
  %4469 = vmatpush1.msra.mxu0 0.0
  %4470 = vmatprep.mubr.f32.mxu0 0.0
  %4471 = vmatmul.mubr.f32.gmra.mrb[0].mxu0 %v4404
  %v4472 = vpop.f32.mrb[0].mxu0
  %v4473 = vadd.f32 %v320, %v4472
  %v4474 = vpop.f32.mrb[0].mxu0
  %4475 = vdwg.mxu0
  %v4476 = vtanh.pop %v4473
  %v4478 = vsel %vm237, %v4476, 0
  %4480 = vmatprep.subr.mxu0 0.0
  %4481 = vmatpush1.msra.mxu0 %v146
  %4482 = vmatprep.subr.mxu0 0.0
  %4483 = vmatpush1.msra.mxu0 %v409
  %4484 = vmatprep.subr.mxu0 0.0
  %4485 = vmatpush1.msra.mxu0 0.0
  %4486 = vmatprep.subr.mxu0 0.0
  %4487 = vmatpush1.msra.mxu0 0.0
  %4488 = vmatprep.subr.mxu0 0.0
  %4489 = vmatpush1.msra.mxu0 0.0
  %4490 = vmatprep.subr.mxu0 0.0
  %4491 = vmatpush1.msra.mxu0 0.0
  %4492 = vmatprep.subr.mxu0 0.0
  %4493 = vmatpush1.msra.mxu0 0.0
  %4494 = vmatprep.subr.mxu0 0.0
  %4495 = vmatpush1.msra.mxu0 0.0
  %4496 = vmatprep.subr.mxu0 0.0
  %4497 = vmatpush1.msra.mxu0 0.0
  %4498 = vmatprep.subr.mxu0 0.0
  %4499 = vmatpush1.msra.mxu0 0.0
  %4500 = vmatprep.subr.mxu0 0.0
  %4501 = vmatpush1.msra.mxu0 0.0
  %4502 = vmatprep.subr.mxu0 0.0
  %4503 = vmatpush1.msra.mxu0 0.0
  %4504 = vmatprep.subr.mxu0 0.0
  %4505 = vmatpush1.msra.mxu0 0.0
  %4506 = vmatprep.subr.mxu0 0.0
  %4507 = vmatpush1.msra.mxu0 0.0
  %4508 = vmatprep.subr.mxu0 0.0
  %4509 = vmatpush1.msra.mxu0 0.0
  %4510 = vmatprep.subr.mxu0 0.0
  %4511 = vmatpush1.msra.mxu0 0.0
  %4512 = vmatprep.subr.mxu0 0.0
  %4513 = vmatpush1.msra.mxu0 0.0
  %4514 = vmatprep.subr.mxu0 0.0
  %4515 = vmatpush1.msra.mxu0 0.0
  %4516 = vmatprep.subr.mxu0 0.0
  %4517 = vmatpush1.msra.mxu0 0.0
  %4518 = vmatprep.subr.mxu0 0.0
  %4519 = vmatpush1.msra.mxu0 0.0
  %4520 = vmatprep.subr.mxu0 0.0
  %4521 = vmatpush1.msra.mxu0 0.0
  %4522 = vmatprep.subr.mxu0 0.0
  %4523 = vmatpush1.msra.mxu0 0.0
  %4524 = vmatprep.subr.mxu0 0.0
  %4525 = vmatpush1.msra.mxu0 0.0
  %4526 = vmatprep.subr.mxu0 0.0
  %4527 = vmatpush1.msra.mxu0 0.0
  %4528 = vmatprep.subr.mxu0 0.0
  %4529 = vmatpush1.msra.mxu0 0.0
  %4530 = vmatprep.subr.mxu0 0.0
  %4531 = vmatpush1.msra.mxu0 0.0
  %4532 = vmatprep.subr.mxu0 0.0
  %4533 = vmatpush1.msra.mxu0 0.0
  %4534 = vmatprep.subr.mxu0 0.0
  %4535 = vmatpush1.msra.mxu0 0.0
  %4536 = vmatprep.subr.mxu0 0.0
  %4537 = vmatpush1.msra.mxu0 0.0
  %4538 = vmatprep.subr.mxu0 0.0
  %4539 = vmatpush1.msra.mxu0 0.0
  %4540 = vmatprep.subr.mxu0 0.0
  %4541 = vmatpush1.msra.mxu0 0.0
  %4542 = vmatprep.subr.mxu0 0.0
  %4543 = vmatpush1.msra.mxu0 0.0
  %4544 = vmatprep.mubr.f32.mxu0 0.0
  %4545 = vmatmul.mubr.f32.gmra.mrb[0].mxu0 %v4478
  %v4546 = vpop.f32.mrb[0].mxu0
  %v4547 = vadd.f32 %v403, %v4546
  %v4548 = vpop.f32.mrb[0].mxu0
  %4549 = vdwg.mxu0
  %v4550 = vmul.f32 %v4547, %v3886
  %4551 = vmatprep.subr.mxu0 0.0
  %4552 = vmatpush1.msra.mxu0 %v482
  %4553 = vmatprep.subr.mxu0 0.0
  %4554 = vmatpush1.msra.mxu0 %v483
  %4555 = vmatprep.subr.mxu0 0.0
  %4556 = vmatpush1.msra.mxu0 %v484
  %4557 = vmatprep.subr.mxu0 0.0
  %4558 = vmatpush1.msra.mxu0 %v485
  %4559 = vmatprep.subr.mxu0 0.0
  %4560 = vmatpush1.msra.mxu0 %v486
  %4561 = vmatprep.subr.mxu0 0.0
  %4562 = vmatpush1.msra.mxu0 %v487
  %4563 = vmatprep.subr.mxu0 0.0
  %4564 = vmatpush1.msra.mxu0 %v488
  %4565 = vmatprep.subr.mxu0 0.0
  %4566 = vmatpush1.msra.mxu0 %v489
  %4567 = vmatprep.subr.mxu0 0.0
  %4568 = vmatpush1.msra.mxu0 %v490
  %4569 = vmatprep.subr.mxu0 0.0
  %4570 = vmatpush1.msra.mxu0 %v491
  %4571 = vmatprep.subr.mxu0 0.0
  %4572 = vmatpush1.msra.mxu0 %v492
  %4573 = vmatprep.subr.mxu0 0.0
  %4574 = vmatpush1.msra.mxu0 %v493
  %4575 = vmatprep.subr.mxu0 0.0
  %4576 = vmatpush1.msra.mxu0 %v494
  %4577 = vmatprep.subr.mxu0 0.0
  %4578 = vmatpush1.msra.mxu0 %v495
  %4579 = vmatprep.subr.mxu0 0.0
  %4580 = vmatpush1.msra.mxu0 %v496
  %4581 = vmatprep.subr.mxu0 0.0
  %4582 = vmatpush1.msra.mxu0 %v497
  %4583 = vmatprep.subr.mxu0 0.0
  %4584 = vmatpush1.msra.mxu0 0.0
  %4585 = vmatprep.subr.mxu0 0.0
  %4586 = vmatpush1.msra.mxu0 0.0
  %4587 = vmatprep.subr.mxu0 0.0
  %4588 = vmatpush1.msra.mxu0 0.0
  %4589 = vmatprep.subr.mxu0 0.0
  %4590 = vmatpush1.msra.mxu0 0.0
  %4591 = vmatprep.subr.mxu0 0.0
  %4592 = vmatpush1.msra.mxu0 0.0
  %4593 = vmatprep.subr.mxu0 0.0
  %4594 = vmatpush1.msra.mxu0 0.0
  %4595 = vmatprep.subr.mxu0 0.0
  %4596 = vmatpush1.msra.mxu0 0.0
  %4597 = vmatprep.subr.mxu0 0.0
  %4598 = vmatpush1.msra.mxu0 0.0
  %4599 = vmatprep.subr.mxu0 0.0
  %4600 = vmatpush1.msra.mxu0 0.0
  %4601 = vmatprep.subr.mxu0 0.0
  %4602 = vmatpush1.msra.mxu0 0.0
  %4603 = vmatprep.subr.mxu0 0.0
  %4604 = vmatpush1.msra.mxu0 0.0
  %4605 = vmatprep.subr.mxu0 0.0
  %4606 = vmatpush1.msra.mxu0 0.0
  %4607 = vmatprep.subr.mxu0 0.0
  %4608 = vmatpush1.msra.mxu0 0.0
  %4609 = vmatprep.subr.mxu0 0.0
  %4610 = vmatpush1.msra.mxu0 0.0
  %4611 = vmatprep.subr.mxu0 0.0
  %4612 = vmatpush1.msra.mxu0 0.0
  %4613 = vmatprep.subr.mxu0 0.0
  %4614 = vmatpush1.msra.mxu0 0.0
  %4615 = vmatprep.mubr.f32.mxu0 0.0
  %4616 = vmatmul.mubr.f32.gmra.mrb[0].mxu0 %v4550
  %v4617 = vpop.f32.mrb[0].mxu0
  %v4618 = vadd.f32 0.0, %v4617
  %v4619 = vpop.f32.mrb[0].mxu0
  %4620 = vdwg.mxu0
  %v4621 = vadd.f32 %v3884, %v4618
  %s4622 = scalar_lea.vmem %s1, 48
  %v4623 = vld [vmem:[%s4622] sm:$0xff]
  %v4625 = vsel %vm156, %v4621, 0
  %4627 = vmatprep.subr.mxu0 0.0
  %4628 = vmatpush1.msra.mxu0 %v137
  %4629 = vmatprep.subr.mxu0 0.0
  %4630 = vmatpush1.msra.mxu0 %v138
  %4631 = vmatprep.subr.mxu0 0.0
  %4632 = vmatpush1.msra.mxu0 0.0
  %4633 = vmatprep.subr.mxu0 0.0
  %4634 = vmatpush1.msra.mxu0 0.0
  %4635 = vmatprep.subr.mxu0 0.0
  %4636 = vmatpush1.msra.mxu0 0.0
  %4637 = vmatprep.subr.mxu0 0.0
  %4638 = vmatpush1.msra.mxu0 0.0
  %4639 = vmatprep.subr.mxu0 0.0
  %4640 = vmatpush1.msra.mxu0 0.0
  %4641 = vmatprep.subr.mxu0 0.0
  %4642 = vmatpush1.msra.mxu0 0.0
  %4643 = vmatprep.subr.mxu0 0.0
  %4644 = vmatpush1.msra.mxu0 0.0
  %4645 = vmatprep.subr.mxu0 0.0
  %4646 = vmatpush1.msra.mxu0 0.0
  %4647 = vmatprep.subr.mxu0 0.0
  %4648 = vmatpush1.msra.mxu0 0.0
  %4649 = vmatprep.subr.mxu0 0.0
  %4650 = vmatpush1.msra.mxu0 0.0
  %4651 = vmatprep.subr.mxu0 0.0
  %4652 = vmatpush1.msra.mxu0 0.0
  %4653 = vmatprep.subr.mxu0 0.0
  %4654 = vmatpush1.msra.mxu0 0.0
  %4655 = vmatprep.subr.mxu0 0.0
  %4656 = vmatpush1.msra.mxu0 0.0
  %4657 = vmatprep.subr.mxu0 0.0
  %4658 = vmatpush1.msra.mxu0 0.0
  %4659 = vmatprep.subr.mxu0 0.0
  %4660 = vmatpush1.msra.mxu0 0.0
  %4661 = vmatprep.subr.mxu0 0.0
  %4662 = vmatpush1.msra.mxu0 0.0
  %4663 = vmatprep.subr.mxu0 0.0
  %4664 = vmatpush1.msra.mxu0 0.0
  %4665 = vmatprep.subr.mxu0 0.0
  %4666 = vmatpush1.msra.mxu0 0.0
  %4667 = vmatprep.subr.mxu0 0.0
  %4668 = vmatpush1.msra.mxu0 0.0
  %4669 = vmatprep.subr.mxu0 0.0
  %4670 = vmatpush1.msra.mxu0 0.0
  %4671 = vmatprep.subr.mxu0 0.0
  %4672 = vmatpush1.msra.mxu0 0.0
  %4673 = vmatprep.subr.mxu0 0.0
  %4674 = vmatpush1.msra.mxu0 0.0
  %4675 = vmatprep.subr.mxu0 0.0
  %4676 = vmatpush1.msra.mxu0 0.0
  %4677 = vmatprep.subr.mxu0 0.0
  %4678 = vmatpush1.msra.mxu0 0.0
  %4679 = vmatprep.subr.mxu0 0.0
  %4680 = vmatpush1.msra.mxu0 0.0
  %4681 = vmatprep.subr.mxu0 0.0
  %4682 = vmatpush1.msra.mxu0 0.0
  %4683 = vmatprep.subr.mxu0 0.0
  %4684 = vmatpush1.msra.mxu0 0.0
  %4685 = vmatprep.subr.mxu0 0.0
  %4686 = vmatpush1.msra.mxu0 0.0
  %4687 = vmatprep.subr.mxu0 0.0
  %4688 = vmatpush1.msra.mxu0 0.0
  %4689 = vmatprep.subr.mxu0 0.0
  %4690 = vmatpush1.msra.mxu0 0.0
  %4691 = vmatprep.mubr.f32.mxu0 0.0
  %4692 = vmatmul.mubr.f32.gmra.mrb[0].mxu0 %v4625
  %v4693 = vpop.f32.mrb[0].mxu0
  %v4694 = vadd.f32 %v154, %v4693
  %v4695 = vpop.f32.mrb[0].mxu0
  %4696 = vdwg.mxu0
  %v4697 = vmax.f32 %v4694, 0.0
  %v4699 = vsel %vm237, %v4697, 0
  %4701 = vmatprep.subr.mxu0 0.0
  %4702 = vmatpush1.msra.mxu0 %v140
  %4703 = vmatprep.subr.mxu0 0.0
  %4704 = vmatpush1.msra.mxu0 %v243
  %4705 = vmatprep.subr.mxu0 0.0
  %4706 = vmatpush1.msra.mxu0 0.0
  %4707 = vmatprep.subr.mxu0 0.0
  %4708 = vmatpush1.msra.mxu0 0.0
  %4709 = vmatprep.subr.mxu0 0.0
  %4710 = vmatpush1.msra.mxu0 0.0
  %4711 = vmatprep.subr.mxu0 0.0
  %4712 = vmatpush1.msra.mxu0 0.0
  %4713 = vmatprep.subr.mxu0 0.0
  %4714 = vmatpush1.msra.mxu0 0.0
  %4715 = vmatprep.subr.mxu0 0.0
  %4716 = vmatpush1.msra.mxu0 0.0
  %4717 = vmatprep.subr.mxu0 0.0
  %4718 = vmatpush1.msra.mxu0 0.0
  %4719 = vmatprep.subr.mxu0 0.0
  %4720 = vmatpush1.msra.mxu0 0.0
  %4721 = vmatprep.subr.mxu0 0.0
  %4722 = vmatpush1.msra.mxu0 0.0
  %4723 = vmatprep.subr.mxu0 0.0
  %4724 = vmatpush1.msra.mxu0 0.0
  %4725 = vmatprep.subr.mxu0 0.0
  %4726 = vmatpush1.msra.mxu0 0.0
  %4727 = vmatprep.subr.mxu0 0.0
  %4728 = vmatpush1.msra.mxu0 0.0
  %4729 = vmatprep.subr.mxu0 0.0
  %4730 = vmatpush1.msra.mxu0 0.0
  %4731 = vmatprep.subr.mxu0 0.0
  %4732 = vmatpush1.msra.mxu0 0.0
  %4733 = vmatprep.subr.mxu0 0.0
  %4734 = vmatpush1.msra.mxu0 0.0
  %4735 = vmatprep.subr.mxu0 0.0
  %4736 = vmatpush1.msra.mxu0 0.0
  %4737 = vmatprep.subr.mxu0 0.0
  %4738 = vmatpush1.msra.mxu0 0.0
  %4739 = vmatprep.subr.mxu0 0.0
  %4740 = vmatpush1.msra.mxu0 0.0
  %4741 = vmatprep.subr.mxu0 0.0
  %4742 = vmatpush1.msra.mxu0 0.0
  %4743 = vmatprep.subr.mxu0 0.0
  %4744 = vmatpush1.msra.mxu0 0.0
  %4745 = vmatprep.subr.mxu0 0.0
  %4746 = vmatpush1.msra.mxu0 0.0
  %4747 = vmatprep.subr.mxu0 0.0
  %4748 = vmatpush1.msra.mxu0 0.0
  %4749 = vmatprep.subr.mxu0 0.0
  %4750 = vmatpush1.msra.mxu0 0.0
  %4751 = vmatprep.subr.mxu0 0.0
  %4752 = vmatpush1.msra.mxu0 0.0
  %4753 = vmatprep.subr.mxu0 0.0
  %4754 = vmatpush1.msra.mxu0 0.0
  %4755 = vmatprep.subr.mxu0 0.0
  %4756 = vmatpush1.msra.mxu0 0.0
  %4757 = vmatprep.subr.mxu0 0.0
  %4758 = vmatpush1.msra.mxu0 0.0
  %4759 = vmatprep.subr.mxu0 0.0
  %4760 = vmatpush1.msra.mxu0 0.0
  %4761 = vmatprep.subr.mxu0 0.0
  %4762 = vmatpush1.msra.mxu0 0.0
  %4763 = vmatprep.subr.mxu0 0.0
  %4764 = vmatpush1.msra.mxu0 0.0
  %4765 = vmatprep.mubr.f32.mxu0 0.0
  %4766 = vmatmul.mubr.f32.gmra.mrb[0].mxu0 %v4699
  %v4767 = vpop.f32.mrb[0].mxu0
  %v4768 = vadd.f32 %v235, %v4767
  %v4769 = vpop.f32.mrb[0].mxu0
  %4770 = vdwg.mxu0
  %v4771 = vmax.f32 %v4768, 0.0
  %v4773 = vsel %vm237, %v4771, 0
  %4775 = vmatprep.subr.mxu0 0.0
  %4776 = vmatpush1.msra.mxu0 %v143
  %4777 = vmatprep.subr.mxu0 0.0
  %4778 = vmatpush1.msra.mxu0 %v326
  %4779 = vmatprep.subr.mxu0 0.0
  %4780 = vmatpush1.msra.mxu0 0.0
  %4781 = vmatprep.subr.mxu0 0.0
  %4782 = vmatpush1.msra.mxu0 0.0
  %4783 = vmatprep.subr.mxu0 0.0
  %4784 = vmatpush1.msra.mxu0 0.0
  %4785 = vmatprep.subr.mxu0 0.0
  %4786 = vmatpush1.msra.mxu0 0.0
  %4787 = vmatprep.subr.mxu0 0.0
  %4788 = vmatpush1.msra.mxu0 0.0
  %4789 = vmatprep.subr.mxu0 0.0
  %4790 = vmatpush1.msra.mxu0 0.0
  %4791 = vmatprep.subr.mxu0 0.0
  %4792 = vmatpush1.msra.mxu0 0.0
  %4793 = vmatprep.subr.mxu0 0.0
  %4794 = vmatpush1.msra.mxu0 0.0
  %4795 = vmatprep.subr.mxu0 0.0
  %4796 = vmatpush1.msra.mxu0 0.0
  %4797 = vmatprep.subr.mxu0 0.0
  %4798 = vmatpush1.msra.mxu0 0.0
  %4799 = vmatprep.subr.mxu0 0.0
  %4800 = vmatpush1.msra.mxu0 0.0
  %4801 = vmatprep.subr.mxu0 0.0
  %4802 = vmatpush1.msra.mxu0 0.0
  %4803 = vmatprep.subr.mxu0 0.0
  %4804 = vmatpush1.msra.mxu0 0.0
  %4805 = vmatprep.subr.mxu0 0.0
  %4806 = vmatpush1.msra.mxu0 0.0
  %4807 = vmatprep.subr.mxu0 0.0
  %4808 = vmatpush1.msra.mxu0 0.0
  %4809 = vmatprep.subr.mxu0 0.0
  %4810 = vmatpush1.msra.mxu0 0.0
  %4811 = vmatprep.subr.mxu0 0.0
  %4812 = vmatpush1.msra.mxu0 0.0
  %4813 = vmatprep.subr.mxu0 0.0
  %4814 = vmatpush1.msra.mxu0 0.0
  %4815 = vmatprep.subr.mxu0 0.0
  %4816 = vmatpush1.msra.mxu0 0.0
  %4817 = vmatprep.subr.mxu0 0.0
  %4818 = vmatpush1.msra.mxu0 0.0
  %4819 = vmatprep.subr.mxu0 0.0
  %4820 = vmatpush1.msra.mxu0 0.0
  %4821 = vmatprep.subr.mxu0 0.0
  %4822 = vmatpush1.msra.mxu0 0.0
  %4823 = vmatprep.subr.mxu0 0.0
  %4824 = vmatpush1.msra.mxu0 0.0
  %4825 = vmatprep.subr.mxu0 0.0
  %4826 = vmatpush1.msra.mxu0 0.0
  %4827 = vmatprep.subr.mxu0 0.0
  %4828 = vmatpush1.msra.mxu0 0.0
  %4829 = vmatprep.subr.mxu0 0.0
  %4830 = vmatpush1.msra.mxu0 0.0
  %4831 = vmatprep.subr.mxu0 0.0
  %4832 = vmatpush1.msra.mxu0 0.0
  %4833 = vmatprep.subr.mxu0 0.0
  %4834 = vmatpush1.msra.mxu0 0.0
  %4835 = vmatprep.subr.mxu0 0.0
  %4836 = vmatpush1.msra.mxu0 0.0
  %4837 = vmatprep.subr.mxu0 0.0
  %4838 = vmatpush1.msra.mxu0 0.0
  %4839 = vmatprep.mubr.f32.mxu0 0.0
  %4840 = vmatmul.mubr.f32.gmra.mrb[0].mxu0 %v4773
  %v4841 = vpop.f32.mrb[0].mxu0
  %v4842 = vadd.f32 %v320, %v4841
  %v4843 = vpop.f32.mrb[0].mxu0
  %4844 = vdwg.mxu0
  %v4845 = vtanh.pop %v4842
  %v4847 = vsel %vm237, %v4845, 0
  %4849 = vmatprep.subr.mxu0 0.0
  %4850 = vmatpush1.msra.mxu0 %v146
  %4851 = vmatprep.subr.mxu0 0.0
  %4852 = vmatpush1.msra.mxu0 %v409
  %4853 = vmatprep.subr.mxu0 0.0
  %4854 = vmatpush1.msra.mxu0 0.0
  %4855 = vmatprep.subr.mxu0 0.0
  %4856 = vmatpush1.msra.mxu0 0.0
  %4857 = vmatprep.subr.mxu0 0.0
  %4858 = vmatpush1.msra.mxu0 0.0
  %4859 = vmatprep.subr.mxu0 0.0
  %4860 = vmatpush1.msra.mxu0 0.0
  %4861 = vmatprep.subr.mxu0 0.0
  %4862 = vmatpush1.msra.mxu0 0.0
  %4863 = vmatprep.subr.mxu0 0.0
  %4864 = vmatpush1.msra.mxu0 0.0
  %4865 = vmatprep.subr.mxu0 0.0
  %4866 = vmatpush1.msra.mxu0 0.0
  %4867 = vmatprep.subr.mxu0 0.0
  %4868 = vmatpush1.msra.mxu0 0.0
  %4869 = vmatprep.subr.mxu0 0.0
  %4870 = vmatpush1.msra.mxu0 0.0
  %4871 = vmatprep.subr.mxu0 0.0
  %4872 = vmatpush1.msra.mxu0 0.0
  %4873 = vmatprep.subr.mxu0 0.0
  %4874 = vmatpush1.msra.mxu0 0.0
  %4875 = vmatprep.subr.mxu0 0.0
  %4876 = vmatpush1.msra.mxu0 0.0
  %4877 = vmatprep.subr.mxu0 0.0
  %4878 = vmatpush1.msra.mxu0 0.0
  %4879 = vmatprep.subr.mxu0 0.0
  %4880 = vmatpush1.msra.mxu0 0.0
  %4881 = vmatprep.subr.mxu0 0.0
  %4882 = vmatpush1.msra.mxu0 0.0
  %4883 = vmatprep.subr.mxu0 0.0
  %4884 = vmatpush1.msra.mxu0 0.0
  %4885 = vmatprep.subr.mxu0 0.0
  %4886 = vmatpush1.msra.mxu0 0.0
  %4887 = vmatprep.subr.mxu0 0.0
  %4888 = vmatpush1.msra.mxu0 0.0
  %4889 = vmatprep.subr.mxu0 0.0
  %4890 = vmatpush1.msra.mxu0 0.0
  %4891 = vmatprep.subr.mxu0 0.0
  %4892 = vmatpush1.msra.mxu0 0.0
  %4893 = vmatprep.subr.mxu0 0.0
  %4894 = vmatpush1.msra.mxu0 0.0
  %4895 = vmatprep.subr.mxu0 0.0
  %4896 = vmatpush1.msra.mxu0 0.0
  %4897 = vmatprep.subr.mxu0 0.0
  %4898 = vmatpush1.msra.mxu0 0.0
  %4899 = vmatprep.subr.mxu0 0.0
  %4900 = vmatpush1.msra.mxu0 0.0
  %4901 = vmatprep.subr.mxu0 0.0
  %4902 = vmatpush1.msra.mxu0 0.0
  %4903 = vmatprep.subr.mxu0 0.0
  %4904 = vmatpush1.msra.mxu0 0.0
  %4905 = vmatprep.subr.mxu0 0.0
  %4906 = vmatpush1.msra.mxu0 0.0
  %4907 = vmatprep.subr.mxu0 0.0
  %4908 = vmatpush1.msra.mxu0 0.0
  %4909 = vmatprep.subr.mxu0 0.0
  %4910 = vmatpush1.msra.mxu0 0.0
  %4911 = vmatprep.subr.mxu0 0.0
  %4912 = vmatpush1.msra.mxu0 0.0
  %4913 = vmatprep.mubr.f32.mxu0 0.0
  %4914 = vmatmul.mubr.f32.gmra.mrb[0].mxu0 %v4847
  %v4915 = vpop.f32.mrb[0].mxu0
  %v4916 = vadd.f32 %v403, %v4915
  %v4917 = vpop.f32.mrb[0].mxu0
  %4918 = vdwg.mxu0
  %v4919 = vmul.f32 %v4916, %v4623
  %4920 = vmatprep.subr.mxu0 0.0
  %4921 = vmatpush1.msra.mxu0 %v482
  %4922 = vmatprep.subr.mxu0 0.0
  %4923 = vmatpush1.msra.mxu0 %v483
  %4924 = vmatprep.subr.mxu0 0.0
  %4925 = vmatpush1.msra.mxu0 %v484
  %4926 = vmatprep.subr.mxu0 0.0
  %4927 = vmatpush1.msra.mxu0 %v485
  %4928 = vmatprep.subr.mxu0 0.0
  %4929 = vmatpush1.msra.mxu0 %v486
  %4930 = vmatprep.subr.mxu0 0.0
  %4931 = vmatpush1.msra.mxu0 %v487
  %4932 = vmatprep.subr.mxu0 0.0
  %4933 = vmatpush1.msra.mxu0 %v488
  %4934 = vmatprep.subr.mxu0 0.0
  %4935 = vmatpush1.msra.mxu0 %v489
  %4936 = vmatprep.subr.mxu0 0.0
  %4937 = vmatpush1.msra.mxu0 %v490
  %4938 = vmatprep.subr.mxu0 0.0
  %4939 = vmatpush1.msra.mxu0 %v491
  %4940 = vmatprep.subr.mxu0 0.0
  %4941 = vmatpush1.msra.mxu0 %v492
  %4942 = vmatprep.subr.mxu0 0.0
  %4943 = vmatpush1.msra.mxu0 %v493
  %4944 = vmatprep.subr.mxu0 0.0
  %4945 = vmatpush1.msra.mxu0 %v494
  %4946 = vmatprep.subr.mxu0 0.0
  %4947 = vmatpush1.msra.mxu0 %v495
  %4948 = vmatprep.subr.mxu0 0.0
  %4949 = vmatpush1.msra.mxu0 %v496
  %4950 = vmatprep.subr.mxu0 0.0
  %4951 = vmatpush1.msra.mxu0 %v497
  %4952 = vmatprep.subr.mxu0 0.0
  %4953 = vmatpush1.msra.mxu0 0.0
  %4954 = vmatprep.subr.mxu0 0.0
  %4955 = vmatpush1.msra.mxu0 0.0
  %4956 = vmatprep.subr.mxu0 0.0
  %4957 = vmatpush1.msra.mxu0 0.0
  %4958 = vmatprep.subr.mxu0 0.0
  %4959 = vmatpush1.msra.mxu0 0.0
  %4960 = vmatprep.subr.mxu0 0.0
  %4961 = vmatpush1.msra.mxu0 0.0
  %4962 = vmatprep.subr.mxu0 0.0
  %4963 = vmatpush1.msra.mxu0 0.0
  %4964 = vmatprep.subr.mxu0 0.0
  %4965 = vmatpush1.msra.mxu0 0.0
  %4966 = vmatprep.subr.mxu0 0.0
  %4967 = vmatpush1.msra.mxu0 0.0
  %4968 = vmatprep.subr.mxu0 0.0
  %4969 = vmatpush1.msra.mxu0 0.0
  %4970 = vmatprep.subr.mxu0 0.0
  %4971 = vmatpush1.msra.mxu0 0.0
  %4972 = vmatprep.subr.mxu0 0.0
  %4973 = vmatpush1.msra.mxu0 0.0
  %4974 = vmatprep.subr.mxu0 0.0
  %4975 = vmatpush1.msra.mxu0 0.0
  %4976 = vmatprep.subr.mxu0 0.0
  %4977 = vmatpush1.msra.mxu0 0.0
  %4978 = vmatprep.subr.mxu0 0.0
  %4979 = vmatpush1.msra.mxu0 0.0
  %4980 = vmatprep.subr.mxu0 0.0
  %4981 = vmatpush1.msra.mxu0 0.0
  %4982 = vmatprep.subr.mxu0 0.0
  %4983 = vmatpush1.msra.mxu0 0.0
  %4984 = vmatprep.mubr.f32.mxu0 0.0
  %4985 = vmatmul.mubr.f32.gmra.mrb[0].mxu0 %v4919
  %v4986 = vpop.f32.mrb[0].mxu0
  %v4987 = vadd.f32 0.0, %v4986
  %v4988 = vpop.f32.mrb[0].mxu0
  %4989 = vdwg.mxu0
  %v4990 = vmul.f32 %v4987, 0.5
  %v4991 = vadd.f32 %v4621, %v4990
  %v4993 = vsel %vm156, %v4991, 0
  %4995 = vmatprep.subr.mxu0 0.0
  %4996 = vmatpush1.msra.mxu0 %v137
  %4997 = vmatprep.subr.mxu0 0.0
  %4998 = vmatpush1.msra.mxu0 %v138
  %4999 = vmatprep.subr.mxu0 0.0
  %5000 = vmatpush1.msra.mxu0 0.0
  %5001 = vmatprep.subr.mxu0 0.0
  %5002 = vmatpush1.msra.mxu0 0.0
  %5003 = vmatprep.subr.mxu0 0.0
  %5004 = vmatpush1.msra.mxu0 0.0
  %5005 = vmatprep.subr.mxu0 0.0
  %5006 = vmatpush1.msra.mxu0 0.0
  %5007 = vmatprep.subr.mxu0 0.0
  %5008 = vmatpush1.msra.mxu0 0.0
  %5009 = vmatprep.subr.mxu0 0.0
  %5010 = vmatpush1.msra.mxu0 0.0
  %5011 = vmatprep.subr.mxu0 0.0
  %5012 = vmatpush1.msra.mxu0 0.0
  %5013 = vmatprep.subr.mxu0 0.0
  %5014 = vmatpush1.msra.mxu0 0.0
  %5015 = vmatprep.subr.mxu0 0.0
  %5016 = vmatpush1.msra.mxu0 0.0
  %5017 = vmatprep.subr.mxu0 0.0
  %5018 = vmatpush1.msra.mxu0 0.0
  %5019 = vmatprep.subr.mxu0 0.0
  %5020 = vmatpush1.msra.mxu0 0.0
  %5021 = vmatprep.subr.mxu0 0.0
  %5022 = vmatpush1.msra.mxu0 0.0
  %5023 = vmatprep.subr.mxu0 0.0
  %5024 = vmatpush1.msra.mxu0 0.0
  %5025 = vmatprep.subr.mxu0 0.0
  %5026 = vmatpush1.msra.mxu0 0.0
  %5027 = vmatprep.subr.mxu0 0.0
  %5028 = vmatpush1.msra.mxu0 0.0
  %5029 = vmatprep.subr.mxu0 0.0
  %5030 = vmatpush1.msra.mxu0 0.0
  %5031 = vmatprep.subr.mxu0 0.0
  %5032 = vmatpush1.msra.mxu0 0.0
  %5033 = vmatprep.subr.mxu0 0.0
  %5034 = vmatpush1.msra.mxu0 0.0
  %5035 = vmatprep.subr.mxu0 0.0
  %5036 = vmatpush1.msra.mxu0 0.0
  %5037 = vmatprep.subr.mxu0 0.0
  %5038 = vmatpush1.msra.mxu0 0.0
  %5039 = vmatprep.subr.mxu0 0.0
  %5040 = vmatpush1.msra.mxu0 0.0
  %5041 = vmatprep.subr.mxu0 0.0
  %5042 = vmatpush1.msra.mxu0 0.0
  %5043 = vmatprep.subr.mxu0 0.0
  %5044 = vmatpush1.msra.mxu0 0.0
  %5045 = vmatprep.subr.mxu0 0.0
  %5046 = vmatpush1.msra.mxu0 0.0
  %5047 = vmatprep.subr.mxu0 0.0
  %5048 = vmatpush1.msra.mxu0 0.0
  %5049 = vmatprep.subr.mxu0 0.0
  %5050 = vmatpush1.msra.mxu0 0.0
  %5051 = vmatprep.subr.mxu0 0.0
  %5052 = vmatpush1.msra.mxu0 0.0
  %5053 = vmatprep.subr.mxu0 0.0
  %5054 = vmatpush1.msra.mxu0 0.0
  %5055 = vmatprep.subr.mxu0 0.0
  %5056 = vmatpush1.msra.mxu0 0.0
  %5057 = vmatprep.subr.mxu0 0.0
  %5058 = vmatpush1.msra.mxu0 0.0
  %5059 = vmatprep.mubr.f32.mxu0 0.0
  %5060 = vmatmul.mubr.f32.gmra.mrb[0].mxu0 %v4993
  %v5061 = vpop.f32.mrb[0].mxu0
  %v5062 = vadd.f32 %v154, %v5061
  %v5063 = vpop.f32.mrb[0].mxu0
  %5064 = vdwg.mxu0
  %v5065 = vmax.f32 %v5062, 0.0
  %v5067 = vsel %vm237, %v5065, 0
  %5069 = vmatprep.subr.mxu0 0.0
  %5070 = vmatpush1.msra.mxu0 %v140
  %5071 = vmatprep.subr.mxu0 0.0
  %5072 = vmatpush1.msra.mxu0 %v243
  %5073 = vmatprep.subr.mxu0 0.0
  %5074 = vmatpush1.msra.mxu0 0.0
  %5075 = vmatprep.subr.mxu0 0.0
  %5076 = vmatpush1.msra.mxu0 0.0
  %5077 = vmatprep.subr.mxu0 0.0
  %5078 = vmatpush1.msra.mxu0 0.0
  %5079 = vmatprep.subr.mxu0 0.0
  %5080 = vmatpush1.msra.mxu0 0.0
  %5081 = vmatprep.subr.mxu0 0.0
  %5082 = vmatpush1.msra.mxu0 0.0
  %5083 = vmatprep.subr.mxu0 0.0
  %5084 = vmatpush1.msra.mxu0 0.0
  %5085 = vmatprep.subr.mxu0 0.0
  %5086 = vmatpush1.msra.mxu0 0.0
  %5087 = vmatprep.subr.mxu0 0.0
  %5088 = vmatpush1.msra.mxu0 0.0
  %5089 = vmatprep.subr.mxu0 0.0
  %5090 = vmatpush1.msra.mxu0 0.0
  %5091 = vmatprep.subr.mxu0 0.0
  %5092 = vmatpush1.msra.mxu0 0.0
  %5093 = vmatprep.subr.mxu0 0.0
  %5094 = vmatpush1.msra.mxu0 0.0
  %5095 = vmatprep.subr.mxu0 0.0
  %5096 = vmatpush1.msra.mxu0 0.0
  %5097 = vmatprep.subr.mxu0 0.0
  %5098 = vmatpush1.msra.mxu0 0.0
  %5099 = vmatprep.subr.mxu0 0.0
  %5100 = vmatpush1.msra.mxu0 0.0
  %5101 = vmatprep.subr.mxu0 0.0
  %5102 = vmatpush1.msra.mxu0 0.0
  %5103 = vmatprep.subr.mxu0 0.0
  %5104 = vmatpush1.msra.mxu0 0.0
  %5105 = vmatprep.subr.mxu0 0.0
  %5106 = vmatpush1.msra.mxu0 0.0
  %5107 = vmatprep.subr.mxu0 0.0
  %5108 = vmatpush1.msra.mxu0 0.0
  %5109 = vmatprep.subr.mxu0 0.0
  %5110 = vmatpush1.msra.mxu0 0.0
  %5111 = vmatprep.subr.mxu0 0.0
  %5112 = vmatpush1.msra.mxu0 0.0
  %5113 = vmatprep.subr.mxu0 0.0
  %5114 = vmatpush1.msra.mxu0 0.0
  %5115 = vmatprep.subr.mxu0 0.0
  %5116 = vmatpush1.msra.mxu0 0.0
  %5117 = vmatprep.subr.mxu0 0.0
  %5118 = vmatpush1.msra.mxu0 0.0
  %5119 = vmatprep.subr.mxu0 0.0
  %5120 = vmatpush1.msra.mxu0 0.0
  %5121 = vmatprep.subr.mxu0 0.0
  %5122 = vmatpush1.msra.mxu0 0.0
  %5123 = vmatprep.subr.mxu0 0.0
  %5124 = vmatpush1.msra.mxu0 0.0
  %5125 = vmatprep.subr.mxu0 0.0
  %5126 = vmatpush1.msra.mxu0 0.0
  %5127 = vmatprep.subr.mxu0 0.0
  %5128 = vmatpush1.msra.mxu0 0.0
  %5129 = vmatprep.subr.mxu0 0.0
  %5130 = vmatpush1.msra.mxu0 0.0
  %5131 = vmatprep.subr.mxu0 0.0
  %5132 = vmatpush1.msra.mxu0 0.0
  %5133 = vmatprep.mubr.f32.mxu0 0.0
  %5134 = vmatmul.mubr.f32.gmra.mrb[0].mxu0 %v5067
  %v5135 = vpop.f32.mrb[0].mxu0
  %v5136 = vadd.f32 %v235, %v5135
  %v5137 = vpop.f32.mrb[0].mxu0
  %5138 = vdwg.mxu0
  %v5139 = vmax.f32 %v5136, 0.0
  %v5141 = vsel %vm237, %v5139, 0
  %5143 = vmatprep.subr.mxu0 0.0
  %5144 = vmatpush1.msra.mxu0 %v143
  %5145 = vmatprep.subr.mxu0 0.0
  %5146 = vmatpush1.msra.mxu0 %v326
  %5147 = vmatprep.subr.mxu0 0.0
  %5148 = vmatpush1.msra.mxu0 0.0
  %5149 = vmatprep.subr.mxu0 0.0
  %5150 = vmatpush1.msra.mxu0 0.0
  %5151 = vmatprep.subr.mxu0 0.0
  %5152 = vmatpush1.msra.mxu0 0.0
  %5153 = vmatprep.subr.mxu0 0.0
  %5154 = vmatpush1.msra.mxu0 0.0
  %5155 = vmatprep.subr.mxu0 0.0
  %5156 = vmatpush1.msra.mxu0 0.0
  %5157 = vmatprep.subr.mxu0 0.0
  %5158 = vmatpush1.msra.mxu0 0.0
  %5159 = vmatprep.subr.mxu0 0.0
  %5160 = vmatpush1.msra.mxu0 0.0
  %5161 = vmatprep.subr.mxu0 0.0
  %5162 = vmatpush1.msra.mxu0 0.0
  %5163 = vmatprep.subr.mxu0 0.0
  %5164 = vmatpush1.msra.mxu0 0.0
  %5165 = vmatprep.subr.mxu0 0.0
  %5166 = vmatpush1.msra.mxu0 0.0
  %5167 = vmatprep.subr.mxu0 0.0
  %5168 = vmatpush1.msra.mxu0 0.0
  %5169 = vmatprep.subr.mxu0 0.0
  %5170 = vmatpush1.msra.mxu0 0.0
  %5171 = vmatprep.subr.mxu0 0.0
  %5172 = vmatpush1.msra.mxu0 0.0
  %5173 = vmatprep.subr.mxu0 0.0
  %5174 = vmatpush1.msra.mxu0 0.0
  %5175 = vmatprep.subr.mxu0 0.0
  %5176 = vmatpush1.msra.mxu0 0.0
  %5177 = vmatprep.subr.mxu0 0.0
  %5178 = vmatpush1.msra.mxu0 0.0
  %5179 = vmatprep.subr.mxu0 0.0
  %5180 = vmatpush1.msra.mxu0 0.0
  %5181 = vmatprep.subr.mxu0 0.0
  %5182 = vmatpush1.msra.mxu0 0.0
  %5183 = vmatprep.subr.mxu0 0.0
  %5184 = vmatpush1.msra.mxu0 0.0
  %5185 = vmatprep.subr.mxu0 0.0
  %5186 = vmatpush1.msra.mxu0 0.0
  %5187 = vmatprep.subr.mxu0 0.0
  %5188 = vmatpush1.msra.mxu0 0.0
  %5189 = vmatprep.subr.mxu0 0.0
  %5190 = vmatpush1.msra.mxu0 0.0
  %5191 = vmatprep.subr.mxu0 0.0
  %5192 = vmatpush1.msra.mxu0 0.0
  %5193 = vmatprep.subr.mxu0 0.0
  %5194 = vmatpush1.msra.mxu0 0.0
  %5195 = vmatprep.subr.mxu0 0.0
  %5196 = vmatpush1.msra.mxu0 0.0
  %5197 = vmatprep.subr.mxu0 0.0
  %5198 = vmatpush1.msra.mxu0 0.0
  %5199 = vmatprep.subr.mxu0 0.0
  %5200 = vmatpush1.msra.mxu0 0.0
  %5201 = vmatprep.subr.mxu0 0.0
  %5202 = vmatpush1.msra.mxu0 0.0
  %5203 = vmatprep.subr.mxu0 0.0
  %5204 = vmatpush1.msra.mxu0 0.0
  %5205 = vmatprep.subr.mxu0 0.0
  %5206 = vmatpush1.msra.mxu0 0.0
  %5207 = vmatprep.mubr.f32.mxu0 0.0
  %5208 = vmatmul.mubr.f32.gmra.mrb[0].mxu0 %v5141
  %v5209 = vpop.f32.mrb[0].mxu0
  %v5210 = vadd.f32 %v320, %v5209
  %v5211 = vpop.f32.mrb[0].mxu0
  %5212 = vdwg.mxu0
  %v5213 = vtanh.pop %v5210
  %v5215 = vsel %vm237, %v5213, 0
  %5217 = vmatprep.subr.mxu0 0.0
  %5218 = vmatpush1.msra.mxu0 %v146
  %5219 = vmatprep.subr.mxu0 0.0
  %5220 = vmatpush1.msra.mxu0 %v409
  %5221 = vmatprep.subr.mxu0 0.0
  %5222 = vmatpush1.msra.mxu0 0.0
  %5223 = vmatprep.subr.mxu0 0.0
  %5224 = vmatpush1.msra.mxu0 0.0
  %5225 = vmatprep.subr.mxu0 0.0
  %5226 = vmatpush1.msra.mxu0 0.0
  %5227 = vmatprep.subr.mxu0 0.0
  %5228 = vmatpush1.msra.mxu0 0.0
  %5229 = vmatprep.subr.mxu0 0.0
  %5230 = vmatpush1.msra.mxu0 0.0
  %5231 = vmatprep.subr.mxu0 0.0
  %5232 = vmatpush1.msra.mxu0 0.0
  %5233 = vmatprep.subr.mxu0 0.0
  %5234 = vmatpush1.msra.mxu0 0.0
  %5235 = vmatprep.subr.mxu0 0.0
  %5236 = vmatpush1.msra.mxu0 0.0
  %5237 = vmatprep.subr.mxu0 0.0
  %5238 = vmatpush1.msra.mxu0 0.0
  %5239 = vmatprep.subr.mxu0 0.0
  %5240 = vmatpush1.msra.mxu0 0.0
  %5241 = vmatprep.subr.mxu0 0.0
  %5242 = vmatpush1.msra.mxu0 0.0
  %5243 = vmatprep.subr.mxu0 0.0
  %5244 = vmatpush1.msra.mxu0 0.0
  %5245 = vmatprep.subr.mxu0 0.0
  %5246 = vmatpush1.msra.mxu0 0.0
  %5247 = vmatprep.subr.mxu0 0.0
  %5248 = vmatpush1.msra.mxu0 0.0
  %5249 = vmatprep.subr.mxu0 0.0
  %5250 = vmatpush1.msra.mxu0 0.0
  %5251 = vmatprep.subr.mxu0 0.0
  %5252 = vmatpush1.msra.mxu0 0.0
  %5253 = vmatprep.subr.mxu0 0.0
  %5254 = vmatpush1.msra.mxu0 0.0
  %5255 = vmatprep.subr.mxu0 0.0
  %5256 = vmatpush1.msra.mxu0 0.0
  %5257 = vmatprep.subr.mxu0 0.0
  %5258 = vmatpush1.msra.mxu0 0.0
  %5259 = vmatprep.subr.mxu0 0.0
  %5260 = vmatpush1.msra.mxu0 0.0
  %5261 = vmatprep.subr.mxu0 0.0
  %5262 = vmatpush1.msra.mxu0 0.0
  %5263 = vmatprep.subr.mxu0 0.0
  %5264 = vmatpush1.msra.mxu0 0.0
  %5265 = vmatprep.subr.mxu0 0.0
  %5266 = vmatpush1.msra.mxu0 0.0
  %5267 = vmatprep.subr.mxu0 0.0
  %5268 = vmatpush1.msra.mxu0 0.0
  %5269 = vmatprep.subr.mxu0 0.0
  %5270 = vmatpush1.msra.mxu0 0.0
  %5271 = vmatprep.subr.mxu0 0.0
  %5272 = vmatpush1.msra.mxu0 0.0
  %5273 = vmatprep.subr.mxu0 0.0
  %5274 = vmatpush1.msra.mxu0 0.0
  %5275 = vmatprep.subr.mxu0 0.0
  %5276 = vmatpush1.msra.mxu0 0.0
  %5277 = vmatprep.subr.mxu0 0.0
  %5278 = vmatpush1.msra.mxu0 0.0
  %5279 = vmatprep.subr.mxu0 0.0
  %5280 = vmatpush1.msra.mxu0 0.0
  %5281 = vmatprep.mubr.f32.mxu0 0.0
  %5282 = vmatmul.mubr.f32.gmra.mrb[0].mxu0 %v5215
  %v5283 = vpop.f32.mrb[0].mxu0
  %v5284 = vadd.f32 %v403, %v5283
  %v5285 = vpop.f32.mrb[0].mxu0
  %5286 = vdwg.mxu0
  %v5287 = vmul.f32 %v5284, %v4623
  %5288 = vmatprep.subr.mxu0 0.0
  %5289 = vmatpush1.msra.mxu0 %v482
  %5290 = vmatprep.subr.mxu0 0.0
  %5291 = vmatpush1.msra.mxu0 %v483
  %5292 = vmatprep.subr.mxu0 0.0
  %5293 = vmatpush1.msra.mxu0 %v484
  %5294 = vmatprep.subr.mxu0 0.0
  %5295 = vmatpush1.msra.mxu0 %v485
  %5296 = vmatprep.subr.mxu0 0.0
  %5297 = vmatpush1.msra.mxu0 %v486
  %5298 = vmatprep.subr.mxu0 0.0
  %5299 = vmatpush1.msra.mxu0 %v487
  %5300 = vmatprep.subr.mxu0 0.0
  %5301 = vmatpush1.msra.mxu0 %v488
  %5302 = vmatprep.subr.mxu0 0.0
  %5303 = vmatpush1.msra.mxu0 %v489
  %5304 = vmatprep.subr.mxu0 0.0
  %5305 = vmatpush1.msra.mxu0 %v490
  %5306 = vmatprep.subr.mxu0 0.0
  %5307 = vmatpush1.msra.mxu0 %v491
  %5308 = vmatprep.subr.mxu0 0.0
  %5309 = vmatpush1.msra.mxu0 %v492
  %5310 = vmatprep.subr.mxu0 0.0
  %5311 = vmatpush1.msra.mxu0 %v493
  %5312 = vmatprep.subr.mxu0 0.0
  %5313 = vmatpush1.msra.mxu0 %v494
  %5314 = vmatprep.subr.mxu0 0.0
  %5315 = vmatpush1.msra.mxu0 %v495
  %5316 = vmatprep.subr.mxu0 0.0
  %5317 = vmatpush1.msra.mxu0 %v496
  %5318 = vmatprep.subr.mxu0 0.0
  %5319 = vmatpush1.msra.mxu0 %v497
  %5320 = vmatprep.subr.mxu0 0.0
  %5321 = vmatpush1.msra.mxu0 0.0
  %5322 = vmatprep.subr.mxu0 0.0
  %5323 = vmatpush1.msra.mxu0 0.0
  %5324 = vmatprep.subr.mxu0 0.0
  %5325 = vmatpush1.msra.mxu0 0.0
  %5326 = vmatprep.subr.mxu0 0.0
  %5327 = vmatpush1.msra.mxu0 0.0
  %5328 = vmatprep.subr.mxu0 0.0
  %5329 = vmatpush1.msra.mxu0 0.0
  %5330 = vmatprep.subr.mxu0 0.0
  %5331 = vmatpush1.msra.mxu0 0.0
  %5332 = vmatprep.subr.mxu0 0.0
  %5333 = vmatpush1.msra.mxu0 0.0
  %5334 = vmatprep.subr.mxu0 0.0
  %5335 = vmatpush1.msra.mxu0 0.0
  %5336 = vmatprep.subr.mxu0 0.0
  %5337 = vmatpush1.msra.mxu0 0.0
  %5338 = vmatprep.subr.mxu0 0.0
  %5339 = vmatpush1.msra.mxu0 0.0
  %5340 = vmatprep.subr.mxu0 0.0
  %5341 = vmatpush1.msra.mxu0 0.0
  %5342 = vmatprep.subr.mxu0 0.0
  %5343 = vmatpush1.msra.mxu0 0.0
  %5344 = vmatprep.subr.mxu0 0.0
  %5345 = vmatpush1.msra.mxu0 0.0
  %5346 = vmatprep.subr.mxu0 0.0
  %5347 = vmatpush1.msra.mxu0 0.0
  %5348 = vmatprep.subr.mxu0 0.0
  %5349 = vmatpush1.msra.mxu0 0.0
  %5350 = vmatprep.subr.mxu0 0.0
  %5351 = vmatpush1.msra.mxu0 0.0
  %5352 = vmatprep.mubr.f32.mxu0 0.0
  %5353 = vmatmul.mubr.f32.gmra.mrb[0].mxu0 %v5287
  %v5354 = vpop.f32.mrb[0].mxu0
  %v5355 = vadd.f32 0.0, %v5354
  %v5356 = vpop.f32.mrb[0].mxu0
  %5357 = vdwg.mxu0
  %v5358 = vadd.f32 %v4621, %v5355
  %s5359 = scalar_lea.vmem %s1, 56
  %v5360 = vld [vmem:[%s5359] sm:$0xff]
  %v5362 = vsel %vm156, %v5358, 0
  %5364 = vmatprep.subr.mxu0 0.0
  %5365 = vmatpush1.msra.mxu0 %v137
  %5366 = vmatprep.subr.mxu0 0.0
  %5367 = vmatpush1.msra.mxu0 %v138
  %5368 = vmatprep.subr.mxu0 0.0
  %5369 = vmatpush1.msra.mxu0 0.0
  %5370 = vmatprep.subr.mxu0 0.0
  %5371 = vmatpush1.msra.mxu0 0.0
  %5372 = vmatprep.subr.mxu0 0.0
  %5373 = vmatpush1.msra.mxu0 0.0
  %5374 = vmatprep.subr.mxu0 0.0
  %5375 = vmatpush1.msra.mxu0 0.0
  %5376 = vmatprep.subr.mxu0 0.0
  %5377 = vmatpush1.msra.mxu0 0.0
  %5378 = vmatprep.subr.mxu0 0.0
  %5379 = vmatpush1.msra.mxu0 0.0
  %5380 = vmatprep.subr.mxu0 0.0
  %5381 = vmatpush1.msra.mxu0 0.0
  %5382 = vmatprep.subr.mxu0 0.0
  %5383 = vmatpush1.msra.mxu0 0.0
  %5384 = vmatprep.subr.mxu0 0.0
  %5385 = vmatpush1.msra.mxu0 0.0
  %5386 = vmatprep.subr.mxu0 0.0
  %5387 = vmatpush1.msra.mxu0 0.0
  %5388 = vmatprep.subr.mxu0 0.0
  %5389 = vmatpush1.msra.mxu0 0.0
  %5390 = vmatprep.subr.mxu0 0.0
  %5391 = vmatpush1.msra.mxu0 0.0
  %5392 = vmatprep.subr.mxu0 0.0
  %5393 = vmatpush1.msra.mxu0 0.0
  %5394 = vmatprep.subr.mxu0 0.0
  %5395 = vmatpush1.msra.mxu0 0.0
  %5396 = vmatprep.subr.mxu0 0.0
  %5397 = vmatpush1.msra.mxu0 0.0
  %5398 = vmatprep.subr.mxu0 0.0
  %5399 = vmatpush1.msra.mxu0 0.0
  %5400 = vmatprep.subr.mxu0 0.0
  %5401 = vmatpush1.msra.mxu0 0.0
  %5402 = vmatprep.subr.mxu0 0.0
  %5403 = vmatpush1.msra.mxu0 0.0
  %5404 = vmatprep.subr.mxu0 0.0
  %5405 = vmatpush1.msra.mxu0 0.0
  %5406 = vmatprep.subr.mxu0 0.0
  %5407 = vmatpush1.msra.mxu0 0.0
  %5408 = vmatprep.subr.mxu0 0.0
  %5409 = vmatpush1.msra.mxu0 0.0
  %5410 = vmatprep.subr.mxu0 0.0
  %5411 = vmatpush1.msra.mxu0 0.0
  %5412 = vmatprep.subr.mxu0 0.0
  %5413 = vmatpush1.msra.mxu0 0.0
  %5414 = vmatprep.subr.mxu0 0.0
  %5415 = vmatpush1.msra.mxu0 0.0
  %5416 = vmatprep.subr.mxu0 0.0
  %5417 = vmatpush1.msra.mxu0 0.0
  %5418 = vmatprep.subr.mxu0 0.0
  %5419 = vmatpush1.msra.mxu0 0.0
  %5420 = vmatprep.subr.mxu0 0.0
  %5421 = vmatpush1.msra.mxu0 0.0
  %5422 = vmatprep.subr.mxu0 0.0
  %5423 = vmatpush1.msra.mxu0 0.0
  %5424 = vmatprep.subr.mxu0 0.0
  %5425 = vmatpush1.msra.mxu0 0.0
  %5426 = vmatprep.subr.mxu0 0.0
  %5427 = vmatpush1.msra.mxu0 0.0
  %5428 = vmatprep.mubr.f32.mxu0 0.0
  %5429 = vmatmul.mubr.f32.gmra.mrb[0].mxu0 %v5362
  %v5430 = vpop.f32.mrb[0].mxu0
  %v5431 = vadd.f32 %v154, %v5430
  %v5432 = vpop.f32.mrb[0].mxu0
  %5433 = vdwg.mxu0
  %v5434 = vmax.f32 %v5431, 0.0
  %v5436 = vsel %vm237, %v5434, 0
  %5438 = vmatprep.subr.mxu0 0.0
  %5439 = vmatpush1.msra.mxu0 %v140
  %5440 = vmatprep.subr.mxu0 0.0
  %5441 = vmatpush1.msra.mxu0 %v243
  %5442 = vmatprep.subr.mxu0 0.0
  %5443 = vmatpush1.msra.mxu0 0.0
  %5444 = vmatprep.subr.mxu0 0.0
  %5445 = vmatpush1.msra.mxu0 0.0
  %5446 = vmatprep.subr.mxu0 0.0
  %5447 = vmatpush1.msra.mxu0 0.0
  %5448 = vmatprep.subr.mxu0 0.0
  %5449 = vmatpush1.msra.mxu0 0.0
  %5450 = vmatprep.subr.mxu0 0.0
  %5451 = vmatpush1.msra.mxu0 0.0
  %5452 = vmatprep.subr.mxu0 0.0
  %5453 = vmatpush1.msra.mxu0 0.0
  %5454 = vmatprep.subr.mxu0 0.0
  %5455 = vmatpush1.msra.mxu0 0.0
  %5456 = vmatprep.subr.mxu0 0.0
  %5457 = vmatpush1.msra.mxu0 0.0
  %5458 = vmatprep.subr.mxu0 0.0
  %5459 = vmatpush1.msra.mxu0 0.0
  %5460 = vmatprep.subr.mxu0 0.0
  %5461 = vmatpush1.msra.mxu0 0.0
  %5462 = vmatprep.subr.mxu0 0.0
  %5463 = vmatpush1.msra.mxu0 0.0
  %5464 = vmatprep.subr.mxu0 0.0
  %5465 = vmatpush1.msra.mxu0 0.0
  %5466 = vmatprep.subr.mxu0 0.0
  %5467 = vmatpush1.msra.mxu0 0.0
  %5468 = vmatprep.subr.mxu0 0.0
  %5469 = vmatpush1.msra.mxu0 0.0
  %5470 = vmatprep.subr.mxu0 0.0
  %5471 = vmatpush1.msra.mxu0 0.0
  %5472 = vmatprep.subr.mxu0 0.0
  %5473 = vmatpush1.msra.mxu0 0.0
  %5474 = vmatprep.subr.mxu0 0.0
  %5475 = vmatpush1.msra.mxu0 0.0
  %5476 = vmatprep.subr.mxu0 0.0
  %5477 = vmatpush1.msra.mxu0 0.0
  %5478 = vmatprep.subr.mxu0 0.0
  %5479 = vmatpush1.msra.mxu0 0.0
  %5480 = vmatprep.subr.mxu0 0.0
  %5481 = vmatpush1.msra.mxu0 0.0
  %5482 = vmatprep.subr.mxu0 0.0
  %5483 = vmatpush1.msra.mxu0 0.0
  %5484 = vmatprep.subr.mxu0 0.0
  %5485 = vmatpush1.msra.mxu0 0.0
  %5486 = vmatprep.subr.mxu0 0.0
  %5487 = vmatpush1.msra.mxu0 0.0
  %5488 = vmatprep.subr.mxu0 0.0
  %5489 = vmatpush1.msra.mxu0 0.0
  %5490 = vmatprep.subr.mxu0 0.0
  %5491 = vmatpush1.msra.mxu0 0.0
  %5492 = vmatprep.subr.mxu0 0.0
  %5493 = vmatpush1.msra.mxu0 0.0
  %5494 = vmatprep.subr.mxu0 0.0
  %5495 = vmatpush1.msra.mxu0 0.0
  %5496 = vmatprep.subr.mxu0 0.0
  %5497 = vmatpush1.msra.mxu0 0.0
  %5498 = vmatprep.subr.mxu0 0.0
  %5499 = vmatpush1.msra.mxu0 0.0
  %5500 = vmatprep.subr.mxu0 0.0
  %5501 = vmatpush1.msra.mxu0 0.0
  %5502 = vmatprep.mubr.f32.mxu0 0.0
  %5503 = vmatmul.mubr.f32.gmra.mrb[0].mxu0 %v5436
  %v5504 = vpop.f32.mrb[0].mxu0
  %v5505 = vadd.f32 %v235, %v5504
  %v5506 = vpop.f32.mrb[0].mxu0
  %5507 = vdwg.mxu0
  %v5508 = vmax.f32 %v5505, 0.0
  %v5510 = vsel %vm237, %v5508, 0
  %5512 = vmatprep.subr.mxu0 0.0
  %5513 = vmatpush1.msra.mxu0 %v143
  %5514 = vmatprep.subr.mxu0 0.0
  %5515 = vmatpush1.msra.mxu0 %v326
  %5516 = vmatprep.subr.mxu0 0.0
  %5517 = vmatpush1.msra.mxu0 0.0
  %5518 = vmatprep.subr.mxu0 0.0
  %5519 = vmatpush1.msra.mxu0 0.0
  %5520 = vmatprep.subr.mxu0 0.0
  %5521 = vmatpush1.msra.mxu0 0.0
  %5522 = vmatprep.subr.mxu0 0.0
  %5523 = vmatpush1.msra.mxu0 0.0
  %5524 = vmatprep.subr.mxu0 0.0
  %5525 = vmatpush1.msra.mxu0 0.0
  %5526 = vmatprep.subr.mxu0 0.0
  %5527 = vmatpush1.msra.mxu0 0.0
  %5528 = vmatprep.subr.mxu0 0.0
  %5529 = vmatpush1.msra.mxu0 0.0
  %5530 = vmatprep.subr.mxu0 0.0
  %5531 = vmatpush1.msra.mxu0 0.0
  %5532 = vmatprep.subr.mxu0 0.0
  %5533 = vmatpush1.msra.mxu0 0.0
  %5534 = vmatprep.subr.mxu0 0.0
  %5535 = vmatpush1.msra.mxu0 0.0
  %5536 = vmatprep.subr.mxu0 0.0
  %5537 = vmatpush1.msra.mxu0 0.0
  %5538 = vmatprep.subr.mxu0 0.0
  %5539 = vmatpush1.msra.mxu0 0.0
  %5540 = vmatprep.subr.mxu0 0.0
  %5541 = vmatpush1.msra.mxu0 0.0
  %5542 = vmatprep.subr.mxu0 0.0
  %5543 = vmatpush1.msra.mxu0 0.0
  %5544 = vmatprep.subr.mxu0 0.0
  %5545 = vmatpush1.msra.mxu0 0.0
  %5546 = vmatprep.subr.mxu0 0.0
  %5547 = vmatpush1.msra.mxu0 0.0
  %5548 = vmatprep.subr.mxu0 0.0
  %5549 = vmatpush1.msra.mxu0 0.0
  %5550 = vmatprep.subr.mxu0 0.0
  %5551 = vmatpush1.msra.mxu0 0.0
  %5552 = vmatprep.subr.mxu0 0.0
  %5553 = vmatpush1.msra.mxu0 0.0
  %5554 = vmatprep.subr.mxu0 0.0
  %5555 = vmatpush1.msra.mxu0 0.0
  %5556 = vmatprep.subr.mxu0 0.0
  %5557 = vmatpush1.msra.mxu0 0.0
  %5558 = vmatprep.subr.mxu0 0.0
  %5559 = vmatpush1.msra.mxu0 0.0
  %5560 = vmatprep.subr.mxu0 0.0
  %5561 = vmatpush1.msra.mxu0 0.0
  %5562 = vmatprep.subr.mxu0 0.0
  %5563 = vmatpush1.msra.mxu0 0.0
  %5564 = vmatprep.subr.mxu0 0.0
  %5565 = vmatpush1.msra.mxu0 0.0
  %5566 = vmatprep.subr.mxu0 0.0
  %5567 = vmatpush1.msra.mxu0 0.0
  %5568 = vmatprep.subr.mxu0 0.0
  %5569 = vmatpush1.msra.mxu0 0.0
  %5570 = vmatprep.subr.mxu0 0.0
  %5571 = vmatpush1.msra.mxu0 0.0
  %5572 = vmatprep.subr.mxu0 0.0
  %5573 = vmatpush1.msra.mxu0 0.0
  %5574 = vmatprep.subr.mxu0 0.0
  %5575 = vmatpush1.msra.mxu0 0.0
  %5576 = vmatprep.mubr.f32.mxu0 0.0
  %5577 = vmatmul.mubr.f32.gmra.mrb[0].mxu0 %v5510
  %v5578 = vpop.f32.mrb[0].mxu0
  %v5579 = vadd.f32 %v320, %v5578
  %v5580 = vpop.f32.mrb[0].mxu0
  %5581 = vdwg.mxu0
  %v5582 = vtanh.pop %v5579
  %v5584 = vsel %vm237, %v5582, 0
  %5586 = vmatprep.subr.mxu0 0.0
  %5587 = vmatpush1.msra.mxu0 %v146
  %5588 = vmatprep.subr.mxu0 0.0
  %5589 = vmatpush1.msra.mxu0 %v409
  %5590 = vmatprep.subr.mxu0 0.0
  %5591 = vmatpush1.msra.mxu0 0.0
  %5592 = vmatprep.subr.mxu0 0.0
  %5593 = vmatpush1.msra.mxu0 0.0
  %5594 = vmatprep.subr.mxu0 0.0
  %5595 = vmatpush1.msra.mxu0 0.0
  %5596 = vmatprep.subr.mxu0 0.0
  %5597 = vmatpush1.msra.mxu0 0.0
  %5598 = vmatprep.subr.mxu0 0.0
  %5599 = vmatpush1.msra.mxu0 0.0
  %5600 = vmatprep.subr.mxu0 0.0
  %5601 = vmatpush1.msra.mxu0 0.0
  %5602 = vmatprep.subr.mxu0 0.0
  %5603 = vmatpush1.msra.mxu0 0.0
  %5604 = vmatprep.subr.mxu0 0.0
  %5605 = vmatpush1.msra.mxu0 0.0
  %5606 = vmatprep.subr.mxu0 0.0
  %5607 = vmatpush1.msra.mxu0 0.0
  %5608 = vmatprep.subr.mxu0 0.0
  %5609 = vmatpush1.msra.mxu0 0.0
  %5610 = vmatprep.subr.mxu0 0.0
  %5611 = vmatpush1.msra.mxu0 0.0
  %5612 = vmatprep.subr.mxu0 0.0
  %5613 = vmatpush1.msra.mxu0 0.0
  %5614 = vmatprep.subr.mxu0 0.0
  %5615 = vmatpush1.msra.mxu0 0.0
  %5616 = vmatprep.subr.mxu0 0.0
  %5617 = vmatpush1.msra.mxu0 0.0
  %5618 = vmatprep.subr.mxu0 0.0
  %5619 = vmatpush1.msra.mxu0 0.0
  %5620 = vmatprep.subr.mxu0 0.0
  %5621 = vmatpush1.msra.mxu0 0.0
  %5622 = vmatprep.subr.mxu0 0.0
  %5623 = vmatpush1.msra.mxu0 0.0
  %5624 = vmatprep.subr.mxu0 0.0
  %5625 = vmatpush1.msra.mxu0 0.0
  %5626 = vmatprep.subr.mxu0 0.0
  %5627 = vmatpush1.msra.mxu0 0.0
  %5628 = vmatprep.subr.mxu0 0.0
  %5629 = vmatpush1.msra.mxu0 0.0
  %5630 = vmatprep.subr.mxu0 0.0
  %5631 = vmatpush1.msra.mxu0 0.0
  %5632 = vmatprep.subr.mxu0 0.0
  %5633 = vmatpush1.msra.mxu0 0.0
  %5634 = vmatprep.subr.mxu0 0.0
  %5635 = vmatpush1.msra.mxu0 0.0
  %5636 = vmatprep.subr.mxu0 0.0
  %5637 = vmatpush1.msra.mxu0 0.0
  %5638 = vmatprep.subr.mxu0 0.0
  %5639 = vmatpush1.msra.mxu0 0.0
  %5640 = vmatprep.subr.mxu0 0.0
  %5641 = vmatpush1.msra.mxu0 0.0
  %5642 = vmatprep.subr.mxu0 0.0
  %5643 = vmatpush1.msra.mxu0 0.0
  %5644 = vmatprep.subr.mxu0 0.0
  %5645 = vmatpush1.msra.mxu0 0.0
  %5646 = vmatprep.subr.mxu0 0.0
  %5647 = vmatpush1.msra.mxu0 0.0
  %5648 = vmatprep.subr.mxu0 0.0
  %5649 = vmatpush1.msra.mxu0 0.0
  %5650 = vmatprep.mubr.f32.mxu0 0.0
  %5651 = vmatmul.mubr.f32.gmra.mrb[0].mxu0 %v5584
  %v5652 = vpop.f32.mrb[0].mxu0
  %v5653 = vadd.f32 %v403, %v5652
  %v5654 = vpop.f32.mrb[0].mxu0
  %5655 = vdwg.mxu0
  %v5656 = vmul.f32 %v5653, %v5360
  %5657 = vmatprep.subr.mxu0 0.0
  %5658 = vmatpush1.msra.mxu0 %v482
  %5659 = vmatprep.subr.mxu0 0.0
  %5660 = vmatpush1.msra.mxu0 %v483
  %5661 = vmatprep.subr.mxu0 0.0
  %5662 = vmatpush1.msra.mxu0 %v484
  %5663 = vmatprep.subr.mxu0 0.0
  %5664 = vmatpush1.msra.mxu0 %v485
  %5665 = vmatprep.subr.mxu0 0.0
  %5666 = vmatpush1.msra.mxu0 %v486
  %5667 = vmatprep.subr.mxu0 0.0
  %5668 = vmatpush1.msra.mxu0 %v487
  %5669 = vmatprep.subr.mxu0 0.0
  %5670 = vmatpush1.msra.mxu0 %v488
  %5671 = vmatprep.subr.mxu0 0.0
  %5672 = vmatpush1.msra.mxu0 %v489
  %5673 = vmatprep.subr.mxu0 0.0
  %5674 = vmatpush1.msra.mxu0 %v490
  %5675 = vmatprep.subr.mxu0 0.0
  %5676 = vmatpush1.msra.mxu0 %v491
  %5677 = vmatprep.subr.mxu0 0.0
  %5678 = vmatpush1.msra.mxu0 %v492
  %5679 = vmatprep.subr.mxu0 0.0
  %5680 = vmatpush1.msra.mxu0 %v493
  %5681 = vmatprep.subr.mxu0 0.0
  %5682 = vmatpush1.msra.mxu0 %v494
  %5683 = vmatprep.subr.mxu0 0.0
  %5684 = vmatpush1.msra.mxu0 %v495
  %5685 = vmatprep.subr.mxu0 0.0
  %5686 = vmatpush1.msra.mxu0 %v496
  %5687 = vmatprep.subr.mxu0 0.0
  %5688 = vmatpush1.msra.mxu0 %v497
  %5689 = vmatprep.subr.mxu0 0.0
  %5690 = vmatpush1.msra.mxu0 0.0
  %5691 = vmatprep.subr.mxu0 0.0
  %5692 = vmatpush1.msra.mxu0 0.0
  %5693 = vmatprep.subr.mxu0 0.0
  %5694 = vmatpush1.msra.mxu0 0.0
  %5695 = vmatprep.subr.mxu0 0.0
  %5696 = vmatpush1.msra.mxu0 0.0
  %5697 = vmatprep.subr.mxu0 0.0
  %5698 = vmatpush1.msra.mxu0 0.0
  %5699 = vmatprep.subr.mxu0 0.0
  %5700 = vmatpush1.msra.mxu0 0.0
  %5701 = vmatprep.subr.mxu0 0.0
  %5702 = vmatpush1.msra.mxu0 0.0
  %5703 = vmatprep.subr.mxu0 0.0
  %5704 = vmatpush1.msra.mxu0 0.0
  %5705 = vmatprep.subr.mxu0 0.0
  %5706 = vmatpush1.msra.mxu0 0.0
  %5707 = vmatprep.subr.mxu0 0.0
  %5708 = vmatpush1.msra.mxu0 0.0
  %5709 = vmatprep.subr.mxu0 0.0
  %5710 = vmatpush1.msra.mxu0 0.0
  %5711 = vmatprep.subr.mxu0 0.0
  %5712 = vmatpush1.msra.mxu0 0.0
  %5713 = vmatprep.subr.mxu0 0.0
  %5714 = vmatpush1.msra.mxu0 0.0
  %5715 = vmatprep.subr.mxu0 0.0
  %5716 = vmatpush1.msra.mxu0 0.0
  %5717 = vmatprep.subr.mxu0 0.0
  %5718 = vmatpush1.msra.mxu0 0.0
  %5719 = vmatprep.subr.mxu0 0.0
  %5720 = vmatpush1.msra.mxu0 0.0
  %5721 = vmatprep.mubr.f32.mxu0 0.0
  %5722 = vmatmul.mubr.f32.gmra.mrb[0].mxu0 %v5656
  %v5723 = vpop.f32.mrb[0].mxu0
  %v5724 = vadd.f32 0.0, %v5723
  %v5725 = vpop.f32.mrb[0].mxu0
  %5726 = vdwg.mxu0
  %v5727 = vmul.f32 %v5724, 0.5
  %v5728 = vadd.f32 %v5358, %v5727
  %v5730 = vsel %vm156, %v5728, 0
  %5732 = vmatprep.subr.mxu0 0.0
  %5733 = vmatpush1.msra.mxu0 %v137
  %5734 = vmatprep.subr.mxu0 0.0
  %5735 = vmatpush1.msra.mxu0 %v138
  %5736 = vmatprep.subr.mxu0 0.0
  %5737 = vmatpush1.msra.mxu0 0.0
  %5738 = vmatprep.subr.mxu0 0.0
  %5739 = vmatpush1.msra.mxu0 0.0
  %5740 = vmatprep.subr.mxu0 0.0
  %5741 = vmatpush1.msra.mxu0 0.0
  %5742 = vmatprep.subr.mxu0 0.0
  %5743 = vmatpush1.msra.mxu0 0.0
  %5744 = vmatprep.subr.mxu0 0.0
  %5745 = vmatpush1.msra.mxu0 0.0
  %5746 = vmatprep.subr.mxu0 0.0
  %5747 = vmatpush1.msra.mxu0 0.0
  %5748 = vmatprep.subr.mxu0 0.0
  %5749 = vmatpush1.msra.mxu0 0.0
  %5750 = vmatprep.subr.mxu0 0.0
  %5751 = vmatpush1.msra.mxu0 0.0
  %5752 = vmatprep.subr.mxu0 0.0
  %5753 = vmatpush1.msra.mxu0 0.0
  %5754 = vmatprep.subr.mxu0 0.0
  %5755 = vmatpush1.msra.mxu0 0.0
  %5756 = vmatprep.subr.mxu0 0.0
  %5757 = vmatpush1.msra.mxu0 0.0
  %5758 = vmatprep.subr.mxu0 0.0
  %5759 = vmatpush1.msra.mxu0 0.0
  %5760 = vmatprep.subr.mxu0 0.0
  %5761 = vmatpush1.msra.mxu0 0.0
  %5762 = vmatprep.subr.mxu0 0.0
  %5763 = vmatpush1.msra.mxu0 0.0
  %5764 = vmatprep.subr.mxu0 0.0
  %5765 = vmatpush1.msra.mxu0 0.0
  %5766 = vmatprep.subr.mxu0 0.0
  %5767 = vmatpush1.msra.mxu0 0.0
  %5768 = vmatprep.subr.mxu0 0.0
  %5769 = vmatpush1.msra.mxu0 0.0
  %5770 = vmatprep.subr.mxu0 0.0
  %5771 = vmatpush1.msra.mxu0 0.0
  %5772 = vmatprep.subr.mxu0 0.0
  %5773 = vmatpush1.msra.mxu0 0.0
  %5774 = vmatprep.subr.mxu0 0.0
  %5775 = vmatpush1.msra.mxu0 0.0
  %5776 = vmatprep.subr.mxu0 0.0
  %5777 = vmatpush1.msra.mxu0 0.0
  %5778 = vmatprep.subr.mxu0 0.0
  %5779 = vmatpush1.msra.mxu0 0.0
  %5780 = vmatprep.subr.mxu0 0.0
  %5781 = vmatpush1.msra.mxu0 0.0
  %5782 = vmatprep.subr.mxu0 0.0
  %5783 = vmatpush1.msra.mxu0 0.0
  %5784 = vmatprep.subr.mxu0 0.0
  %5785 = vmatpush1.msra.mxu0 0.0
  %5786 = vmatprep.subr.mxu0 0.0
  %5787 = vmatpush1.msra.mxu0 0.0
  %5788 = vmatprep.subr.mxu0 0.0
  %5789 = vmatpush1.msra.mxu0 0.0
  %5790 = vmatprep.subr.mxu0 0.0
  %5791 = vmatpush1.msra.mxu0 0.0
  %5792 = vmatprep.subr.mxu0 0.0
  %5793 = vmatpush1.msra.mxu0 0.0
  %5794 = vmatprep.subr.mxu0 0.0
  %5795 = vmatpush1.msra.mxu0 0.0
  %5796 = vmatprep.mubr.f32.mxu0 0.0
  %5797 = vmatmul.mubr.f32.gmra.mrb[0].mxu0 %v5730
  %v5798 = vpop.f32.mrb[0].mxu0
  %v5799 = vadd.f32 %v154, %v5798
  %v5800 = vpop.f32.mrb[0].mxu0
  %5801 = vdwg.mxu0
  %v5802 = vmax.f32 %v5799, 0.0
  %v5804 = vsel %vm237, %v5802, 0
  %5806 = vmatprep.subr.mxu0 0.0
  %5807 = vmatpush1.msra.mxu0 %v140
  %5808 = vmatprep.subr.mxu0 0.0
  %5809 = vmatpush1.msra.mxu0 %v243
  %5810 = vmatprep.subr.mxu0 0.0
  %5811 = vmatpush1.msra.mxu0 0.0
  %5812 = vmatprep.subr.mxu0 0.0
  %5813 = vmatpush1.msra.mxu0 0.0
  %5814 = vmatprep.subr.mxu0 0.0
  %5815 = vmatpush1.msra.mxu0 0.0
  %5816 = vmatprep.subr.mxu0 0.0
  %5817 = vmatpush1.msra.mxu0 0.0
  %5818 = vmatprep.subr.mxu0 0.0
  %5819 = vmatpush1.msra.mxu0 0.0
  %5820 = vmatprep.subr.mxu0 0.0
  %5821 = vmatpush1.msra.mxu0 0.0
  %5822 = vmatprep.subr.mxu0 0.0
  %5823 = vmatpush1.msra.mxu0 0.0
  %5824 = vmatprep.subr.mxu0 0.0
  %5825 = vmatpush1.msra.mxu0 0.0
  %5826 = vmatprep.subr.mxu0 0.0
  %5827 = vmatpush1.msra.mxu0 0.0
  %5828 = vmatprep.subr.mxu0 0.0
  %5829 = vmatpush1.msra.mxu0 0.0
  %5830 = vmatprep.subr.mxu0 0.0
  %5831 = vmatpush1.msra.mxu0 0.0
  %5832 = vmatprep.subr.mxu0 0.0
  %5833 = vmatpush1.msra.mxu0 0.0
  %5834 = vmatprep.subr.mxu0 0.0
  %5835 = vmatpush1.msra.mxu0 0.0
  %5836 = vmatprep.subr.mxu0 0.0
  %5837 = vmatpush1.msra.mxu0 0.0
  %5838 = vmatprep.subr.mxu0 0.0
  %5839 = vmatpush1.msra.mxu0 0.0
  %5840 = vmatprep.subr.mxu0 0.0
  %5841 = vmatpush1.msra.mxu0 0.0
  %5842 = vmatprep.subr.mxu0 0.0
  %5843 = vmatpush1.msra.mxu0 0.0
  %5844 = vmatprep.subr.mxu0 0.0
  %5845 = vmatpush1.msra.mxu0 0.0
  %5846 = vmatprep.subr.mxu0 0.0
  %5847 = vmatpush1.msra.mxu0 0.0
  %5848 = vmatprep.subr.mxu0 0.0
  %5849 = vmatpush1.msra.mxu0 0.0
  %5850 = vmatprep.subr.mxu0 0.0
  %5851 = vmatpush1.msra.mxu0 0.0
  %5852 = vmatprep.subr.mxu0 0.0
  %5853 = vmatpush1.msra.mxu0 0.0
  %5854 = vmatprep.subr.mxu0 0.0
  %5855 = vmatpush1.msra.mxu0 0.0
  %5856 = vmatprep.subr.mxu0 0.0
  %5857 = vmatpush1.msra.mxu0 0.0
  %5858 = vmatprep.subr.mxu0 0.0
  %5859 = vmatpush1.msra.mxu0 0.0
  %5860 = vmatprep.subr.mxu0 0.0
  %5861 = vmatpush1.msra.mxu0 0.0
  %5862 = vmatprep.subr.mxu0 0.0
  %5863 = vmatpush1.msra.mxu0 0.0
  %5864 = vmatprep.subr.mxu0 0.0
  %5865 = vmatpush1.msra.mxu0 0.0
  %5866 = vmatprep.subr.mxu0 0.0
  %5867 = vmatpush1.msra.mxu0 0.0
  %5868 = vmatprep.subr.mxu0 0.0
  %5869 = vmatpush1.msra.mxu0 0.0
  %5870 = vmatprep.mubr.f32.mxu0 0.0
  %5871 = vmatmul.mubr.f32.gmra.mrb[0].mxu0 %v5804
  %v5872 = vpop.f32.mrb[0].mxu0
  %v5873 = vadd.f32 %v235, %v5872
  %v5874 = vpop.f32.mrb[0].mxu0
  %5875 = vdwg.mxu0
  %v5876 = vmax.f32 %v5873, 0.0
  %v5878 = vsel %vm237, %v5876, 0
  %5880 = vmatprep.subr.mxu0 0.0
  %5881 = vmatpush1.msra.mxu0 %v143
  %5882 = vmatprep.subr.mxu0 0.0
  %5883 = vmatpush1.msra.mxu0 %v326
  %5884 = vmatprep.subr.mxu0 0.0
  %5885 = vmatpush1.msra.mxu0 0.0
  %5886 = vmatprep.subr.mxu0 0.0
  %5887 = vmatpush1.msra.mxu0 0.0
  %5888 = vmatprep.subr.mxu0 0.0
  %5889 = vmatpush1.msra.mxu0 0.0
  %5890 = vmatprep.subr.mxu0 0.0
  %5891 = vmatpush1.msra.mxu0 0.0
  %5892 = vmatprep.subr.mxu0 0.0
  %5893 = vmatpush1.msra.mxu0 0.0
  %5894 = vmatprep.subr.mxu0 0.0
  %5895 = vmatpush1.msra.mxu0 0.0
  %5896 = vmatprep.subr.mxu0 0.0
  %5897 = vmatpush1.msra.mxu0 0.0
  %5898 = vmatprep.subr.mxu0 0.0
  %5899 = vmatpush1.msra.mxu0 0.0
  %5900 = vmatprep.subr.mxu0 0.0
  %5901 = vmatpush1.msra.mxu0 0.0
  %5902 = vmatprep.subr.mxu0 0.0
  %5903 = vmatpush1.msra.mxu0 0.0
  %5904 = vmatprep.subr.mxu0 0.0
  %5905 = vmatpush1.msra.mxu0 0.0
  %5906 = vmatprep.subr.mxu0 0.0
  %5907 = vmatpush1.msra.mxu0 0.0
  %5908 = vmatprep.subr.mxu0 0.0
  %5909 = vmatpush1.msra.mxu0 0.0
  %5910 = vmatprep.subr.mxu0 0.0
  %5911 = vmatpush1.msra.mxu0 0.0
  %5912 = vmatprep.subr.mxu0 0.0
  %5913 = vmatpush1.msra.mxu0 0.0
  %5914 = vmatprep.subr.mxu0 0.0
  %5915 = vmatpush1.msra.mxu0 0.0
  %5916 = vmatprep.subr.mxu0 0.0
  %5917 = vmatpush1.msra.mxu0 0.0
  %5918 = vmatprep.subr.mxu0 0.0
  %5919 = vmatpush1.msra.mxu0 0.0
  %5920 = vmatprep.subr.mxu0 0.0
  %5921 = vmatpush1.msra.mxu0 0.0
  %5922 = vmatprep.subr.mxu0 0.0
  %5923 = vmatpush1.msra.mxu0 0.0
  %5924 = vmatprep.subr.mxu0 0.0
  %5925 = vmatpush1.msra.mxu0 0.0
  %5926 = vmatprep.subr.mxu0 0.0
  %5927 = vmatpush1.msra.mxu0 0.0
  %5928 = vmatprep.subr.mxu0 0.0
  %5929 = vmatpush1.msra.mxu0 0.0
  %5930 = vmatprep.subr.mxu0 0.0
  %5931 = vmatpush1.msra.mxu0 0.0
  %5932 = vmatprep.subr.mxu0 0.0
  %5933 = vmatpush1.msra.mxu0 0.0
  %5934 = vmatprep.subr.mxu0 0.0
  %5935 = vmatpush1.msra.mxu0 0.0
  %5936 = vmatprep.subr.mxu0 0.0
  %5937 = vmatpush1.msra.mxu0 0.0
  %5938 = vmatprep.subr.mxu0 0.0
  %5939 = vmatpush1.msra.mxu0 0.0
  %5940 = vmatprep.subr.mxu0 0.0
  %5941 = vmatpush1.msra.mxu0 0.0
  %5942 = vmatprep.subr.mxu0 0.0
  %5943 = vmatpush1.msra.mxu0 0.0
  %5944 = vmatprep.mubr.f32.mxu0 0.0
  %5945 = vmatmul.mubr.f32.gmra.mrb[0].mxu0 %v5878
  %v5946 = vpop.f32.mrb[0].mxu0
  %v5947 = vadd.f32 %v320, %v5946
  %v5948 = vpop.f32.mrb[0].mxu0
  %5949 = vdwg.mxu0
  %v5950 = vtanh.pop %v5947
  %v5952 = vsel %vm237, %v5950, 0
  %5954 = vmatprep.subr.mxu0 0.0
  %5955 = vmatpush1.msra.mxu0 %v146
  %5956 = vmatprep.subr.mxu0 0.0
  %5957 = vmatpush1.msra.mxu0 %v409
  %5958 = vmatprep.subr.mxu0 0.0
  %5959 = vmatpush1.msra.mxu0 0.0
  %5960 = vmatprep.subr.mxu0 0.0
  %5961 = vmatpush1.msra.mxu0 0.0
  %5962 = vmatprep.subr.mxu0 0.0
  %5963 = vmatpush1.msra.mxu0 0.0
  %5964 = vmatprep.subr.mxu0 0.0
  %5965 = vmatpush1.msra.mxu0 0.0
  %5966 = vmatprep.subr.mxu0 0.0
  %5967 = vmatpush1.msra.mxu0 0.0
  %5968 = vmatprep.subr.mxu0 0.0
  %5969 = vmatpush1.msra.mxu0 0.0
  %5970 = vmatprep.subr.mxu0 0.0
  %5971 = vmatpush1.msra.mxu0 0.0
  %5972 = vmatprep.subr.mxu0 0.0
  %5973 = vmatpush1.msra.mxu0 0.0
  %5974 = vmatprep.subr.mxu0 0.0
  %5975 = vmatpush1.msra.mxu0 0.0
  %5976 = vmatprep.subr.mxu0 0.0
  %5977 = vmatpush1.msra.mxu0 0.0
  %5978 = vmatprep.subr.mxu0 0.0
  %5979 = vmatpush1.msra.mxu0 0.0
  %5980 = vmatprep.subr.mxu0 0.0
  %5981 = vmatpush1.msra.mxu0 0.0
  %5982 = vmatprep.subr.mxu0 0.0
  %5983 = vmatpush1.msra.mxu0 0.0
  %5984 = vmatprep.subr.mxu0 0.0
  %5985 = vmatpush1.msra.mxu0 0.0
  %5986 = vmatprep.subr.mxu0 0.0
  %5987 = vmatpush1.msra.mxu0 0.0
  %5988 = vmatprep.subr.mxu0 0.0
  %5989 = vmatpush1.msra.mxu0 0.0
  %5990 = vmatprep.subr.mxu0 0.0
  %5991 = vmatpush1.msra.mxu0 0.0
  %5992 = vmatprep.subr.mxu0 0.0
  %5993 = vmatpush1.msra.mxu0 0.0
  %5994 = vmatprep.subr.mxu0 0.0
  %5995 = vmatpush1.msra.mxu0 0.0
  %5996 = vmatprep.subr.mxu0 0.0
  %5997 = vmatpush1.msra.mxu0 0.0
  %5998 = vmatprep.subr.mxu0 0.0
  %5999 = vmatpush1.msra.mxu0 0.0
  %6000 = vmatprep.subr.mxu0 0.0
  %6001 = vmatpush1.msra.mxu0 0.0
  %6002 = vmatprep.subr.mxu0 0.0
  %6003 = vmatpush1.msra.mxu0 0.0
  %6004 = vmatprep.subr.mxu0 0.0
  %6005 = vmatpush1.msra.mxu0 0.0
  %6006 = vmatprep.subr.mxu0 0.0
  %6007 = vmatpush1.msra.mxu0 0.0
  %6008 = vmatprep.subr.mxu0 0.0
  %6009 = vmatpush1.msra.mxu0 0.0
  %6010 = vmatprep.subr.mxu0 0.0
  %6011 = vmatpush1.msra.mxu0 0.0
  %6012 = vmatprep.subr.mxu0 0.0
  %6013 = vmatpush1.msra.mxu0 0.0
  %6014 = vmatprep.subr.mxu0 0.0
  %6015 = vmatpush1.msra.mxu0 0.0
  %6016 = vmatprep.subr.mxu0 0.0
  %6017 = vmatpush1.msra.mxu0 0.0
  %6018 = vmatprep.mubr.f32.mxu0 0.0
  %6019 = vmatmul.mubr.f32.gmra.mrb[0].mxu0 %v5952
  %v6020 = vpop.f32.mrb[0].mxu0
  %v6021 = vadd.f32 %v403, %v6020
  %v6022 = vpop.f32.mrb[0].mxu0
  %6023 = vdwg.mxu0
  %v6024 = vmul.f32 %v6021, %v5360
  %6025 = vmatprep.subr.mxu0 0.0
  %6026 = vmatpush1.msra.mxu0 %v482
  %6027 = vmatprep.subr.mxu0 0.0
  %6028 = vmatpush1.msra.mxu0 %v483
  %6029 = vmatprep.subr.mxu0 0.0
  %6030 = vmatpush1.msra.mxu0 %v484
  %6031 = vmatprep.subr.mxu0 0.0
  %6032 = vmatpush1.msra.mxu0 %v485
  %6033 = vmatprep.subr.mxu0 0.0
  %6034 = vmatpush1.msra.mxu0 %v486
  %6035 = vmatprep.subr.mxu0 0.0
  %6036 = vmatpush1.msra.mxu0 %v487
  %6037 = vmatprep.subr.mxu0 0.0
  %6038 = vmatpush1.msra.mxu0 %v488
  %6039 = vmatprep.subr.mxu0 0.0
  %6040 = vmatpush1.msra.mxu0 %v489
  %6041 = vmatprep.subr.mxu0 0.0
  %6042 = vmatpush1.msra.mxu0 %v490
  %6043 = vmatprep.subr.mxu0 0.0
  %6044 = vmatpush1.msra.mxu0 %v491
  %6045 = vmatprep.subr.mxu0 0.0
  %6046 = vmatpush1.msra.mxu0 %v492
  %6047 = vmatprep.subr.mxu0 0.0
  %6048 = vmatpush1.msra.mxu0 %v493
  %6049 = vmatprep.subr.mxu0 0.0
  %6050 = vmatpush1.msra.mxu0 %v494
  %6051 = vmatprep.subr.mxu0 0.0
  %6052 = vmatpush1.msra.mxu0 %v495
  %6053 = vmatprep.subr.mxu0 0.0
  %6054 = vmatpush1.msra.mxu0 %v496
  %6055 = vmatprep.subr.mxu0 0.0
  %6056 = vmatpush1.msra.mxu0 %v497
  %6057 = vmatprep.subr.mxu0 0.0
  %6058 = vmatpush1.msra.mxu0 0.0
  %6059 = vmatprep.subr.mxu0 0.0
  %6060 = vmatpush1.msra.mxu0 0.0
  %6061 = vmatprep.subr.mxu0 0.0
  %6062 = vmatpush1.msra.mxu0 0.0
  %6063 = vmatprep.subr.mxu0 0.0
  %6064 = vmatpush1.msra.mxu0 0.0
  %6065 = vmatprep.subr.mxu0 0.0
  %6066 = vmatpush1.msra.mxu0 0.0
  %6067 = vmatprep.subr.mxu0 0.0
  %6068 = vmatpush1.msra.mxu0 0.0
  %6069 = vmatprep.subr.mxu0 0.0
  %6070 = vmatpush1.msra.mxu0 0.0
  %6071 = vmatprep.subr.mxu0 0.0
  %6072 = vmatpush1.msra.mxu0 0.0
  %6073 = vmatprep.subr.mxu0 0.0
  %6074 = vmatpush1.msra.mxu0 0.0
  %6075 = vmatprep.subr.mxu0 0.0
  %6076 = vmatpush1.msra.mxu0 0.0
  %6077 = vmatprep.subr.mxu0 0.0
  %6078 = vmatpush1.msra.mxu0 0.0
  %6079 = vmatprep.subr.mxu0 0.0
  %6080 = vmatpush1.msra.mxu0 0.0
  %6081 = vmatprep.subr.mxu0 0.0
  %6082 = vmatpush1.msra.mxu0 0.0
  %6083 = vmatprep.subr.mxu0 0.0
  %6084 = vmatpush1.msra.mxu0 0.0
  %6085 = vmatprep.subr.mxu0 0.0
  %6086 = vmatpush1.msra.mxu0 0.0
  %6087 = vmatprep.subr.mxu0 0.0
  %6088 = vmatpush1.msra.mxu0 0.0
  %6089 = vmatprep.mubr.f32.mxu0 0.0
  %6090 = vmatmul.mubr.f32.gmra.mrb[0].mxu0 %v6024
  %v6091 = vpop.f32.mrb[0].mxu0
  %v6092 = vadd.f32 0.0, %v6091
  %v6093 = vpop.f32.mrb[0].mxu0
  %6094 = vdwg.mxu0
  %v6095 = vadd.f32 %v5358, %v6092
  %s6096 = scalar_lea.vmem %s1, 64
  %v6097 = vld [vmem:[%s6096] sm:$0xff]
  %v6099 = vsel %vm156, %v6095, 0
  %6101 = vmatprep.subr.mxu0 0.0
  %6102 = vmatpush1.msra.mxu0 %v137
  %6103 = vmatprep.subr.mxu0 0.0
  %6104 = vmatpush1.msra.mxu0 %v138
  %6105 = vmatprep.subr.mxu0 0.0
  %6106 = vmatpush1.msra.mxu0 0.0
  %6107 = vmatprep.subr.mxu0 0.0
  %6108 = vmatpush1.msra.mxu0 0.0
  %6109 = vmatprep.subr.mxu0 0.0
  %6110 = vmatpush1.msra.mxu0 0.0
  %6111 = vmatprep.subr.mxu0 0.0
  %6112 = vmatpush1.msra.mxu0 0.0
  %6113 = vmatprep.subr.mxu0 0.0
  %6114 = vmatpush1.msra.mxu0 0.0
  %6115 = vmatprep.subr.mxu0 0.0
  %6116 = vmatpush1.msra.mxu0 0.0
  %6117 = vmatprep.subr.mxu0 0.0
  %6118 = vmatpush1.msra.mxu0 0.0
  %6119 = vmatprep.subr.mxu0 0.0
  %6120 = vmatpush1.msra.mxu0 0.0
  %6121 = vmatprep.subr.mxu0 0.0
  %6122 = vmatpush1.msra.mxu0 0.0
  %6123 = vmatprep.subr.mxu0 0.0
  %6124 = vmatpush1.msra.mxu0 0.0
  %6125 = vmatprep.subr.mxu0 0.0
  %6126 = vmatpush1.msra.mxu0 0.0
  %6127 = vmatprep.subr.mxu0 0.0
  %6128 = vmatpush1.msra.mxu0 0.0
  %6129 = vmatprep.subr.mxu0 0.0
  %6130 = vmatpush1.msra.mxu0 0.0
  %6131 = vmatprep.subr.mxu0 0.0
  %6132 = vmatpush1.msra.mxu0 0.0
  %6133 = vmatprep.subr.mxu0 0.0
  %6134 = vmatpush1.msra.mxu0 0.0
  %6135 = vmatprep.subr.mxu0 0.0
  %6136 = vmatpush1.msra.mxu0 0.0
  %6137 = vmatprep.subr.mxu0 0.0
  %6138 = vmatpush1.msra.mxu0 0.0
  %6139 = vmatprep.subr.mxu0 0.0
  %6140 = vmatpush1.msra.mxu0 0.0
  %6141 = vmatprep.subr.mxu0 0.0
  %6142 = vmatpush1.msra.mxu0 0.0
  %6143 = vmatprep.subr.mxu0 0.0
  %6144 = vmatpush1.msra.mxu0 0.0
  %6145 = vmatprep.subr.mxu0 0.0
  %6146 = vmatpush1.msra.mxu0 0.0
  %6147 = vmatprep.subr.mxu0 0.0
  %6148 = vmatpush1.msra.mxu0 0.0
  %6149 = vmatprep.subr.mxu0 0.0
  %6150 = vmatpush1.msra.mxu0 0.0
  %6151 = vmatprep.subr.mxu0 0.0
  %6152 = vmatpush1.msra.mxu0 0.0
  %6153 = vmatprep.subr.mxu0 0.0
  %6154 = vmatpush1.msra.mxu0 0.0
  %6155 = vmatprep.subr.mxu0 0.0
  %6156 = vmatpush1.msra.mxu0 0.0
  %6157 = vmatprep.subr.mxu0 0.0
  %6158 = vmatpush1.msra.mxu0 0.0
  %6159 = vmatprep.subr.mxu0 0.0
  %6160 = vmatpush1.msra.mxu0 0.0
  %6161 = vmatprep.subr.mxu0 0.0
  %6162 = vmatpush1.msra.mxu0 0.0
  %6163 = vmatprep.subr.mxu0 0.0
  %6164 = vmatpush1.msra.mxu0 0.0
  %6165 = vmatprep.mubr.f32.mxu0 0.0
  %6166 = vmatmul.mubr.f32.gmra.mrb[0].mxu0 %v6099
  %v6167 = vpop.f32.mrb[0].mxu0
  %v6168 = vadd.f32 %v154, %v6167
  %v6169 = vpop.f32.mrb[0].mxu0
  %6170 = vdwg.mxu0
  %v6171 = vmax.f32 %v6168, 0.0
  %v6173 = vsel %vm237, %v6171, 0
  %6175 = vmatprep.subr.mxu0 0.0
  %6176 = vmatpush1.msra.mxu0 %v140
  %6177 = vmatprep.subr.mxu0 0.0
  %6178 = vmatpush1.msra.mxu0 %v243
  %6179 = vmatprep.subr.mxu0 0.0
  %6180 = vmatpush1.msra.mxu0 0.0
  %6181 = vmatprep.subr.mxu0 0.0
  %6182 = vmatpush1.msra.mxu0 0.0
  %6183 = vmatprep.subr.mxu0 0.0
  %6184 = vmatpush1.msra.mxu0 0.0
  %6185 = vmatprep.subr.mxu0 0.0
  %6186 = vmatpush1.msra.mxu0 0.0
  %6187 = vmatprep.subr.mxu0 0.0
  %6188 = vmatpush1.msra.mxu0 0.0
  %6189 = vmatprep.subr.mxu0 0.0
  %6190 = vmatpush1.msra.mxu0 0.0
  %6191 = vmatprep.subr.mxu0 0.0
  %6192 = vmatpush1.msra.mxu0 0.0
  %6193 = vmatprep.subr.mxu0 0.0
  %6194 = vmatpush1.msra.mxu0 0.0
  %6195 = vmatprep.subr.mxu0 0.0
  %6196 = vmatpush1.msra.mxu0 0.0
  %6197 = vmatprep.subr.mxu0 0.0
  %6198 = vmatpush1.msra.mxu0 0.0
  %6199 = vmatprep.subr.mxu0 0.0
  %6200 = vmatpush1.msra.mxu0 0.0
  %6201 = vmatprep.subr.mxu0 0.0
  %6202 = vmatpush1.msra.mxu0 0.0
  %6203 = vmatprep.subr.mxu0 0.0
  %6204 = vmatpush1.msra.mxu0 0.0
  %6205 = vmatprep.subr.mxu0 0.0
  %6206 = vmatpush1.msra.mxu0 0.0
  %6207 = vmatprep.subr.mxu0 0.0
  %6208 = vmatpush1.msra.mxu0 0.0
  %6209 = vmatprep.subr.mxu0 0.0
  %6210 = vmatpush1.msra.mxu0 0.0
  %6211 = vmatprep.subr.mxu0 0.0
  %6212 = vmatpush1.msra.mxu0 0.0
  %6213 = vmatprep.subr.mxu0 0.0
  %6214 = vmatpush1.msra.mxu0 0.0
  %6215 = vmatprep.subr.mxu0 0.0
  %6216 = vmatpush1.msra.mxu0 0.0
  %6217 = vmatprep.subr.mxu0 0.0
  %6218 = vmatpush1.msra.mxu0 0.0
  %6219 = vmatprep.subr.mxu0 0.0
  %6220 = vmatpush1.msra.mxu0 0.0
  %6221 = vmatprep.subr.mxu0 0.0
  %6222 = vmatpush1.msra.mxu0 0.0
  %6223 = vmatprep.subr.mxu0 0.0
  %6224 = vmatpush1.msra.mxu0 0.0
  %6225 = vmatprep.subr.mxu0 0.0
  %6226 = vmatpush1.msra.mxu0 0.0
  %6227 = vmatprep.subr.mxu0 0.0
  %6228 = vmatpush1.msra.mxu0 0.0
  %6229 = vmatprep.subr.mxu0 0.0
  %6230 = vmatpush1.msra.mxu0 0.0
  %6231 = vmatprep.subr.mxu0 0.0
  %6232 = vmatpush1.msra.mxu0 0.0
  %6233 = vmatprep.subr.mxu0 0.0
  %6234 = vmatpush1.msra.mxu0 0.0
  %6235 = vmatprep.subr.mxu0 0.0
  %6236 = vmatpush1.msra.mxu0 0.0
  %6237 = vmatprep.subr.mxu0 0.0
  %6238 = vmatpush1.msra.mxu0 0.0
  %6239 = vmatprep.mubr.f32.mxu0 0.0
  %6240 = vmatmul.mubr.f32.gmra.mrb[0].mxu0 %v6173
  %v6241 = vpop.f32.mrb[0].mxu0
  %v6242 = vadd.f32 %v235, %v6241
  %v6243 = vpop.f32.mrb[0].mxu0
  %6244 = vdwg.mxu0
  %v6245 = vmax.f32 %v6242, 0.0
  %v6247 = vsel %vm237, %v6245, 0
  %6249 = vmatprep.subr.mxu0 0.0
  %6250 = vmatpush1.msra.mxu0 %v143
  %6251 = vmatprep.subr.mxu0 0.0
  %6252 = vmatpush1.msra.mxu0 %v326
  %6253 = vmatprep.subr.mxu0 0.0
  %6254 = vmatpush1.msra.mxu0 0.0
  %6255 = vmatprep.subr.mxu0 0.0
  %6256 = vmatpush1.msra.mxu0 0.0
  %6257 = vmatprep.subr.mxu0 0.0
  %6258 = vmatpush1.msra.mxu0 0.0
  %6259 = vmatprep.subr.mxu0 0.0
  %6260 = vmatpush1.msra.mxu0 0.0
  %6261 = vmatprep.subr.mxu0 0.0
  %6262 = vmatpush1.msra.mxu0 0.0
  %6263 = vmatprep.subr.mxu0 0.0
  %6264 = vmatpush1.msra.mxu0 0.0
  %6265 = vmatprep.subr.mxu0 0.0
  %6266 = vmatpush1.msra.mxu0 0.0
  %6267 = vmatprep.subr.mxu0 0.0
  %6268 = vmatpush1.msra.mxu0 0.0
  %6269 = vmatprep.subr.mxu0 0.0
  %6270 = vmatpush1.msra.mxu0 0.0
  %6271 = vmatprep.subr.mxu0 0.0
  %6272 = vmatpush1.msra.mxu0 0.0
  %6273 = vmatprep.subr.mxu0 0.0
  %6274 = vmatpush1.msra.mxu0 0.0
  %6275 = vmatprep.subr.mxu0 0.0
  %6276 = vmatpush1.msra.mxu0 0.0
  %6277 = vmatprep.subr.mxu0 0.0
  %6278 = vmatpush1.msra.mxu0 0.0
  %6279 = vmatprep.subr.mxu0 0.0
  %6280 = vmatpush1.msra.mxu0 0.0
  %6281 = vmatprep.subr.mxu0 0.0
  %6282 = vmatpush1.msra.mxu0 0.0
  %6283 = vmatprep.subr.mxu0 0.0
  %6284 = vmatpush1.msra.mxu0 0.0
  %6285 = vmatprep.subr.mxu0 0.0
  %6286 = vmatpush1.msra.mxu0 0.0
  %6287 = vmatprep.subr.mxu0 0.0
  %6288 = vmatpush1.msra.mxu0 0.0
  %6289 = vmatprep.subr.mxu0 0.0
  %6290 = vmatpush1.msra.mxu0 0.0
  %6291 = vmatprep.subr.mxu0 0.0
  %6292 = vmatpush1.msra.mxu0 0.0
  %6293 = vmatprep.subr.mxu0 0.0
  %6294 = vmatpush1.msra.mxu0 0.0
  %6295 = vmatprep.subr.mxu0 0.0
  %6296 = vmatpush1.msra.mxu0 0.0
  %6297 = vmatprep.subr.mxu0 0.0
  %6298 = vmatpush1.msra.mxu0 0.0
  %6299 = vmatprep.subr.mxu0 0.0
  %6300 = vmatpush1.msra.mxu0 0.0
  %6301 = vmatprep.subr.mxu0 0.0
  %6302 = vmatpush1.msra.mxu0 0.0
  %6303 = vmatprep.subr.mxu0 0.0
  %6304 = vmatpush1.msra.mxu0 0.0
  %6305 = vmatprep.subr.mxu0 0.0
  %6306 = vmatpush1.msra.mxu0 0.0
  %6307 = vmatprep.subr.mxu0 0.0
  %6308 = vmatpush1.msra.mxu0 0.0
  %6309 = vmatprep.subr.mxu0 0.0
  %6310 = vmatpush1.msra.mxu0 0.0
  %6311 = vmatprep.subr.mxu0 0.0
  %6312 = vmatpush1.msra.mxu0 0.0
  %6313 = vmatprep.mubr.f32.mxu0 0.0
  %6314 = vmatmul.mubr.f32.gmra.mrb[0].mxu0 %v6247
  %v6315 = vpop.f32.mrb[0].mxu0
  %v6316 = vadd.f32 %v320, %v6315
  %v6317 = vpop.f32.mrb[0].mxu0
  %6318 = vdwg.mxu0
  %v6319 = vtanh.pop %v6316
  %v6321 = vsel %vm237, %v6319, 0
  %6323 = vmatprep.subr.mxu0 0.0
  %6324 = vmatpush1.msra.mxu0 %v146
  %6325 = vmatprep.subr.mxu0 0.0
  %6326 = vmatpush1.msra.mxu0 %v409
  %6327 = vmatprep.subr.mxu0 0.0
  %6328 = vmatpush1.msra.mxu0 0.0
  %6329 = vmatprep.subr.mxu0 0.0
  %6330 = vmatpush1.msra.mxu0 0.0
  %6331 = vmatprep.subr.mxu0 0.0
  %6332 = vmatpush1.msra.mxu0 0.0
  %6333 = vmatprep.subr.mxu0 0.0
  %6334 = vmatpush1.msra.mxu0 0.0
  %6335 = vmatprep.subr.mxu0 0.0
  %6336 = vmatpush1.msra.mxu0 0.0
  %6337 = vmatprep.subr.mxu0 0.0
  %6338 = vmatpush1.msra.mxu0 0.0
  %6339 = vmatprep.subr.mxu0 0.0
  %6340 = vmatpush1.msra.mxu0 0.0
  %6341 = vmatprep.subr.mxu0 0.0
  %6342 = vmatpush1.msra.mxu0 0.0
  %6343 = vmatprep.subr.mxu0 0.0
  %6344 = vmatpush1.msra.mxu0 0.0
  %6345 = vmatprep.subr.mxu0 0.0
  %6346 = vmatpush1.msra.mxu0 0.0
  %6347 = vmatprep.subr.mxu0 0.0
  %6348 = vmatpush1.msra.mxu0 0.0
  %6349 = vmatprep.subr.mxu0 0.0
  %6350 = vmatpush1.msra.mxu0 0.0
  %6351 = vmatprep.subr.mxu0 0.0
  %6352 = vmatpush1.msra.mxu0 0.0
  %6353 = vmatprep.subr.mxu0 0.0
  %6354 = vmatpush1.msra.mxu0 0.0
  %6355 = vmatprep.subr.mxu0 0.0
  %6356 = vmatpush1.msra.mxu0 0.0
  %6357 = vmatprep.subr.mxu0 0.0
  %6358 = vmatpush1.msra.mxu0 0.0
  %6359 = vmatprep.subr.mxu0 0.0
  %6360 = vmatpush1.msra.mxu0 0.0
  %6361 = vmatprep.subr.mxu0 0.0
  %6362 = vmatpush1.msra.mxu0 0.0
  %6363 = vmatprep.subr.mxu0 0.0
  %6364 = vmatpush1.msra.mxu0 0.0
  %6365 = vmatprep.subr.mxu0 0.0
  %6366 = vmatpush1.msra.mxu0 0.0
  %6367 = vmatprep.subr.mxu0 0.0
  %6368 = vmatpush1.msra.mxu0 0.0
  %6369 = vmatprep.subr.mxu0 0.0
  %6370 = vmatpush1.msra.mxu0 0.0
  %6371 = vmatprep.subr.mxu0 0.0
  %6372 = vmatpush1.msra.mxu0 0.0
  %6373 = vmatprep.subr.mxu0 0.0
  %6374 = vmatpush1.msra.mxu0 0.0
  %6375 = vmatprep.subr.mxu0 0.0
  %6376 = vmatpush1.msra.mxu0 0.0
  %6377 = vmatprep.subr.mxu0 0.0
  %6378 = vmatpush1.msra.mxu0 0.0
  %6379 = vmatprep.subr.mxu0 0.0
  %6380 = vmatpush1.msra.mxu0 0.0
  %6381 = vmatprep.subr.mxu0 0.0
  %6382 = vmatpush1.msra.mxu0 0.0
  %6383 = vmatprep.subr.mxu0 0.0
  %6384 = vmatpush1.msra.mxu0 0.0
  %6385 = vmatprep.subr.mxu0 0.0
  %6386 = vmatpush1.msra.mxu0 0.0
  %6387 = vmatprep.mubr.f32.mxu0 0.0
  %6388 = vmatmul.mubr.f32.gmra.mrb[0].mxu0 %v6321
  %v6389 = vpop.f32.mrb[0].mxu0
  %v6390 = vadd.f32 %v403, %v6389
  %v6391 = vpop.f32.mrb[0].mxu0
  %6392 = vdwg.mxu0
  %v6393 = vmul.f32 %v6390, %v6097
  %6394 = vmatprep.subr.mxu0 0.0
  %6395 = vmatpush1.msra.mxu0 %v482
  %6396 = vmatprep.subr.mxu0 0.0
  %6397 = vmatpush1.msra.mxu0 %v483
  %6398 = vmatprep.subr.mxu0 0.0
  %6399 = vmatpush1.msra.mxu0 %v484
  %6400 = vmatprep.subr.mxu0 0.0
  %6401 = vmatpush1.msra.mxu0 %v485
  %6402 = vmatprep.subr.mxu0 0.0
  %6403 = vmatpush1.msra.mxu0 %v486
  %6404 = vmatprep.subr.mxu0 0.0
  %6405 = vmatpush1.msra.mxu0 %v487
  %6406 = vmatprep.subr.mxu0 0.0
  %6407 = vmatpush1.msra.mxu0 %v488
  %6408 = vmatprep.subr.mxu0 0.0
  %6409 = vmatpush1.msra.mxu0 %v489
  %6410 = vmatprep.subr.mxu0 0.0
  %6411 = vmatpush1.msra.mxu0 %v490
  %6412 = vmatprep.subr.mxu0 0.0
  %6413 = vmatpush1.msra.mxu0 %v491
  %6414 = vmatprep.subr.mxu0 0.0
  %6415 = vmatpush1.msra.mxu0 %v492
  %6416 = vmatprep.subr.mxu0 0.0
  %6417 = vmatpush1.msra.mxu0 %v493
  %6418 = vmatprep.subr.mxu0 0.0
  %6419 = vmatpush1.msra.mxu0 %v494
  %6420 = vmatprep.subr.mxu0 0.0
  %6421 = vmatpush1.msra.mxu0 %v495
  %6422 = vmatprep.subr.mxu0 0.0
  %6423 = vmatpush1.msra.mxu0 %v496
  %6424 = vmatprep.subr.mxu0 0.0
  %6425 = vmatpush1.msra.mxu0 %v497
  %6426 = vmatprep.subr.mxu0 0.0
  %6427 = vmatpush1.msra.mxu0 0.0
  %6428 = vmatprep.subr.mxu0 0.0
  %6429 = vmatpush1.msra.mxu0 0.0
  %6430 = vmatprep.subr.mxu0 0.0
  %6431 = vmatpush1.msra.mxu0 0.0
  %6432 = vmatprep.subr.mxu0 0.0
  %6433 = vmatpush1.msra.mxu0 0.0
  %6434 = vmatprep.subr.mxu0 0.0
  %6435 = vmatpush1.msra.mxu0 0.0
  %6436 = vmatprep.subr.mxu0 0.0
  %6437 = vmatpush1.msra.mxu0 0.0
  %6438 = vmatprep.subr.mxu0 0.0
  %6439 = vmatpush1.msra.mxu0 0.0
  %6440 = vmatprep.subr.mxu0 0.0
  %6441 = vmatpush1.msra.mxu0 0.0
  %6442 = vmatprep.subr.mxu0 0.0
  %6443 = vmatpush1.msra.mxu0 0.0
  %6444 = vmatprep.subr.mxu0 0.0
  %6445 = vmatpush1.msra.mxu0 0.0
  %6446 = vmatprep.subr.mxu0 0.0
  %6447 = vmatpush1.msra.mxu0 0.0
  %6448 = vmatprep.subr.mxu0 0.0
  %6449 = vmatpush1.msra.mxu0 0.0
  %6450 = vmatprep.subr.mxu0 0.0
  %6451 = vmatpush1.msra.mxu0 0.0
  %6452 = vmatprep.subr.mxu0 0.0
  %6453 = vmatpush1.msra.mxu0 0.0
  %6454 = vmatprep.subr.mxu0 0.0
  %6455 = vmatpush1.msra.mxu0 0.0
  %6456 = vmatprep.subr.mxu0 0.0
  %6457 = vmatpush1.msra.mxu0 0.0
  %6458 = vmatprep.mubr.f32.mxu0 0.0
  %6459 = vmatmul.mubr.f32.gmra.mrb[0].mxu0 %v6393
  %v6460 = vpop.f32.mrb[0].mxu0
  %v6461 = vadd.f32 0.0, %v6460
  %v6462 = vpop.f32.mrb[0].mxu0
  %6463 = vdwg.mxu0
  %v6464 = vmul.f32 %v6461, 0.5
  %v6465 = vadd.f32 %v6095, %v6464
  %v6467 = vsel %vm156, %v6465, 0
  %6469 = vmatprep.subr.mxu0 0.0
  %6470 = vmatpush1.msra.mxu0 %v137
  %6471 = vmatprep.subr.mxu0 0.0
  %6472 = vmatpush1.msra.mxu0 %v138
  %6473 = vmatprep.subr.mxu0 0.0
  %6474 = vmatpush1.msra.mxu0 0.0
  %6475 = vmatprep.subr.mxu0 0.0
  %6476 = vmatpush1.msra.mxu0 0.0
  %6477 = vmatprep.subr.mxu0 0.0
  %6478 = vmatpush1.msra.mxu0 0.0
  %6479 = vmatprep.subr.mxu0 0.0
  %6480 = vmatpush1.msra.mxu0 0.0
  %6481 = vmatprep.subr.mxu0 0.0
  %6482 = vmatpush1.msra.mxu0 0.0
  %6483 = vmatprep.subr.mxu0 0.0
  %6484 = vmatpush1.msra.mxu0 0.0
  %6485 = vmatprep.subr.mxu0 0.0
  %6486 = vmatpush1.msra.mxu0 0.0
  %6487 = vmatprep.subr.mxu0 0.0
  %6488 = vmatpush1.msra.mxu0 0.0
  %6489 = vmatprep.subr.mxu0 0.0
  %6490 = vmatpush1.msra.mxu0 0.0
  %6491 = vmatprep.subr.mxu0 0.0
  %6492 = vmatpush1.msra.mxu0 0.0
  %6493 = vmatprep.subr.mxu0 0.0
  %6494 = vmatpush1.msra.mxu0 0.0
  %6495 = vmatprep.subr.mxu0 0.0
  %6496 = vmatpush1.msra.mxu0 0.0
  %6497 = vmatprep.subr.mxu0 0.0
  %6498 = vmatpush1.msra.mxu0 0.0
  %6499 = vmatprep.subr.mxu0 0.0
  %6500 = vmatpush1.msra.mxu0 0.0
  %6501 = vmatprep.subr.mxu0 0.0
  %6502 = vmatpush1.msra.mxu0 0.0
  %6503 = vmatprep.subr.mxu0 0.0
  %6504 = vmatpush1.msra.mxu0 0.0
  %6505 = vmatprep.subr.mxu0 0.0
  %6506 = vmatpush1.msra.mxu0 0.0
  %6507 = vmatprep.subr.mxu0 0.0
  %6508 = vmatpush1.msra.mxu0 0.0
  %6509 = vmatprep.subr.mxu0 0.0
  %6510 = vmatpush1.msra.mxu0 0.0
  %6511 = vmatprep.subr.mxu0 0.0
  %6512 = vmatpush1.msra.mxu0 0.0
  %6513 = vmatprep.subr.mxu0 0.0
  %6514 = vmatpush1.msra.mxu0 0.0
  %6515 = vmatprep.subr.mxu0 0.0
  %6516 = vmatpush1.msra.mxu0 0.0
  %6517 = vmatprep.subr.mxu0 0.0
  %6518 = vmatpush1.msra.mxu0 0.0
  %6519 = vmatprep.subr.mxu0 0.0
  %6520 = vmatpush1.msra.mxu0 0.0
  %6521 = vmatprep.subr.mxu0 0.0
  %6522 = vmatpush1.msra.mxu0 0.0
  %6523 = vmatprep.subr.mxu0 0.0
  %6524 = vmatpush1.msra.mxu0 0.0
  %6525 = vmatprep.subr.mxu0 0.0
  %6526 = vmatpush1.msra.mxu0 0.0
  %6527 = vmatprep.subr.mxu0 0.0
  %6528 = vmatpush1.msra.mxu0 0.0
  %6529 = vmatprep.subr.mxu0 0.0
  %6530 = vmatpush1.msra.mxu0 0.0
  %6531 = vmatprep.subr.mxu0 0.0
  %6532 = vmatpush1.msra.mxu0 0.0
  %6533 = vmatprep.mubr.f32.mxu0 0.0
  %6534 = vmatmul.mubr.f32.gmra.mrb[0].mxu0 %v6467
  %v6535 = vpop.f32.mrb[0].mxu0
  %v6536 = vadd.f32 %v154, %v6535
  %v6537 = vpop.f32.mrb[0].mxu0
  %6538 = vdwg.mxu0
  %v6539 = vmax.f32 %v6536, 0.0
  %v6541 = vsel %vm237, %v6539, 0
  %6543 = vmatprep.subr.mxu0 0.0
  %6544 = vmatpush1.msra.mxu0 %v140
  %6545 = vmatprep.subr.mxu0 0.0
  %6546 = vmatpush1.msra.mxu0 %v243
  %6547 = vmatprep.subr.mxu0 0.0
  %6548 = vmatpush1.msra.mxu0 0.0
  %6549 = vmatprep.subr.mxu0 0.0
  %6550 = vmatpush1.msra.mxu0 0.0
  %6551 = vmatprep.subr.mxu0 0.0
  %6552 = vmatpush1.msra.mxu0 0.0
  %6553 = vmatprep.subr.mxu0 0.0
  %6554 = vmatpush1.msra.mxu0 0.0
  %6555 = vmatprep.subr.mxu0 0.0
  %6556 = vmatpush1.msra.mxu0 0.0
  %6557 = vmatprep.subr.mxu0 0.0
  %6558 = vmatpush1.msra.mxu0 0.0
  %6559 = vmatprep.subr.mxu0 0.0
  %6560 = vmatpush1.msra.mxu0 0.0
  %6561 = vmatprep.subr.mxu0 0.0
  %6562 = vmatpush1.msra.mxu0 0.0
  %6563 = vmatprep.subr.mxu0 0.0
  %6564 = vmatpush1.msra.mxu0 0.0
  %6565 = vmatprep.subr.mxu0 0.0
  %6566 = vmatpush1.msra.mxu0 0.0
  %6567 = vmatprep.subr.mxu0 0.0
  %6568 = vmatpush1.msra.mxu0 0.0
  %6569 = vmatprep.subr.mxu0 0.0
  %6570 = vmatpush1.msra.mxu0 0.0
  %6571 = vmatprep.subr.mxu0 0.0
  %6572 = vmatpush1.msra.mxu0 0.0
  %6573 = vmatprep.subr.mxu0 0.0
  %6574 = vmatpush1.msra.mxu0 0.0
  %6575 = vmatprep.subr.mxu0 0.0
  %6576 = vmatpush1.msra.mxu0 0.0
  %6577 = vmatprep.subr.mxu0 0.0
  %6578 = vmatpush1.msra.mxu0 0.0
  %6579 = vmatprep.subr.mxu0 0.0
  %6580 = vmatpush1.msra.mxu0 0.0
  %6581 = vmatprep.subr.mxu0 0.0
  %6582 = vmatpush1.msra.mxu0 0.0
  %6583 = vmatprep.subr.mxu0 0.0
  %6584 = vmatpush1.msra.mxu0 0.0
  %6585 = vmatprep.subr.mxu0 0.0
  %6586 = vmatpush1.msra.mxu0 0.0
  %6587 = vmatprep.subr.mxu0 0.0
  %6588 = vmatpush1.msra.mxu0 0.0
  %6589 = vmatprep.subr.mxu0 0.0
  %6590 = vmatpush1.msra.mxu0 0.0
  %6591 = vmatprep.subr.mxu0 0.0
  %6592 = vmatpush1.msra.mxu0 0.0
  %6593 = vmatprep.subr.mxu0 0.0
  %6594 = vmatpush1.msra.mxu0 0.0
  %6595 = vmatprep.subr.mxu0 0.0
  %6596 = vmatpush1.msra.mxu0 0.0
  %6597 = vmatprep.subr.mxu0 0.0
  %6598 = vmatpush1.msra.mxu0 0.0
  %6599 = vmatprep.subr.mxu0 0.0
  %6600 = vmatpush1.msra.mxu0 0.0
  %6601 = vmatprep.subr.mxu0 0.0
  %6602 = vmatpush1.msra.mxu0 0.0
  %6603 = vmatprep.subr.mxu0 0.0
  %6604 = vmatpush1.msra.mxu0 0.0
  %6605 = vmatprep.subr.mxu0 0.0
  %6606 = vmatpush1.msra.mxu0 0.0
  %6607 = vmatprep.mubr.f32.mxu0 0.0
  %6608 = vmatmul.mubr.f32.gmra.mrb[0].mxu0 %v6541
  %v6609 = vpop.f32.mrb[0].mxu0
  %v6610 = vadd.f32 %v235, %v6609
  %v6611 = vpop.f32.mrb[0].mxu0
  %6612 = vdwg.mxu0
  %v6613 = vmax.f32 %v6610, 0.0
  %v6615 = vsel %vm237, %v6613, 0
  %6617 = vmatprep.subr.mxu0 0.0
  %6618 = vmatpush1.msra.mxu0 %v143
  %6619 = vmatprep.subr.mxu0 0.0
  %6620 = vmatpush1.msra.mxu0 %v326
  %6621 = vmatprep.subr.mxu0 0.0
  %6622 = vmatpush1.msra.mxu0 0.0
  %6623 = vmatprep.subr.mxu0 0.0
  %6624 = vmatpush1.msra.mxu0 0.0
  %6625 = vmatprep.subr.mxu0 0.0
  %6626 = vmatpush1.msra.mxu0 0.0
  %6627 = vmatprep.subr.mxu0 0.0
  %6628 = vmatpush1.msra.mxu0 0.0
  %6629 = vmatprep.subr.mxu0 0.0
  %6630 = vmatpush1.msra.mxu0 0.0
  %6631 = vmatprep.subr.mxu0 0.0
  %6632 = vmatpush1.msra.mxu0 0.0
  %6633 = vmatprep.subr.mxu0 0.0
  %6634 = vmatpush1.msra.mxu0 0.0
  %6635 = vmatprep.subr.mxu0 0.0
  %6636 = vmatpush1.msra.mxu0 0.0
  %6637 = vmatprep.subr.mxu0 0.0
  %6638 = vmatpush1.msra.mxu0 0.0
  %6639 = vmatprep.subr.mxu0 0.0
  %6640 = vmatpush1.msra.mxu0 0.0
  %6641 = vmatprep.subr.mxu0 0.0
  %6642 = vmatpush1.msra.mxu0 0.0
  %6643 = vmatprep.subr.mxu0 0.0
  %6644 = vmatpush1.msra.mxu0 0.0
  %6645 = vmatprep.subr.mxu0 0.0
  %6646 = vmatpush1.msra.mxu0 0.0
  %6647 = vmatprep.subr.mxu0 0.0
  %6648 = vmatpush1.msra.mxu0 0.0
  %6649 = vmatprep.subr.mxu0 0.0
  %6650 = vmatpush1.msra.mxu0 0.0
  %6651 = vmatprep.subr.mxu0 0.0
  %6652 = vmatpush1.msra.mxu0 0.0
  %6653 = vmatprep.subr.mxu0 0.0
  %6654 = vmatpush1.msra.mxu0 0.0
  %6655 = vmatprep.subr.mxu0 0.0
  %6656 = vmatpush1.msra.mxu0 0.0
  %6657 = vmatprep.subr.mxu0 0.0
  %6658 = vmatpush1.msra.mxu0 0.0
  %6659 = vmatprep.subr.mxu0 0.0
  %6660 = vmatpush1.msra.mxu0 0.0
  %6661 = vmatprep.subr.mxu0 0.0
  %6662 = vmatpush1.msra.mxu0 0.0
  %6663 = vmatprep.subr.mxu0 0.0
  %6664 = vmatpush1.msra.mxu0 0.0
  %6665 = vmatprep.subr.mxu0 0.0
  %6666 = vmatpush1.msra.mxu0 0.0
  %6667 = vmatprep.subr.mxu0 0.0
  %6668 = vmatpush1.msra.mxu0 0.0
  %6669 = vmatprep.subr.mxu0 0.0
  %6670 = vmatpush1.msra.mxu0 0.0
  %6671 = vmatprep.subr.mxu0 0.0
  %6672 = vmatpush1.msra.mxu0 0.0
  %6673 = vmatprep.subr.mxu0 0.0
  %6674 = vmatpush1.msra.mxu0 0.0
  %6675 = vmatprep.subr.mxu0 0.0
  %6676 = vmatpush1.msra.mxu0 0.0
  %6677 = vmatprep.subr.mxu0 0.0
  %6678 = vmatpush1.msra.mxu0 0.0
  %6679 = vmatprep.subr.mxu0 0.0
  %6680 = vmatpush1.msra.mxu0 0.0
  %6681 = vmatprep.mubr.f32.mxu0 0.0
  %6682 = vmatmul.mubr.f32.gmra.mrb[0].mxu0 %v6615
  %v6683 = vpop.f32.mrb[0].mxu0
  %v6684 = vadd.f32 %v320, %v6683
  %v6685 = vpop.f32.mrb[0].mxu0
  %6686 = vdwg.mxu0
  %v6687 = vtanh.pop %v6684
  %v6689 = vsel %vm237, %v6687, 0
  %6691 = vmatprep.subr.mxu0 0.0
  %6692 = vmatpush1.msra.mxu0 %v146
  %6693 = vmatprep.subr.mxu0 0.0
  %6694 = vmatpush1.msra.mxu0 %v409
  %6695 = vmatprep.subr.mxu0 0.0
  %6696 = vmatpush1.msra.mxu0 0.0
  %6697 = vmatprep.subr.mxu0 0.0
  %6698 = vmatpush1.msra.mxu0 0.0
  %6699 = vmatprep.subr.mxu0 0.0
  %6700 = vmatpush1.msra.mxu0 0.0
  %6701 = vmatprep.subr.mxu0 0.0
  %6702 = vmatpush1.msra.mxu0 0.0
  %6703 = vmatprep.subr.mxu0 0.0
  %6704 = vmatpush1.msra.mxu0 0.0
  %6705 = vmatprep.subr.mxu0 0.0
  %6706 = vmatpush1.msra.mxu0 0.0
  %6707 = vmatprep.subr.mxu0 0.0
  %6708 = vmatpush1.msra.mxu0 0.0
  %6709 = vmatprep.subr.mxu0 0.0
  %6710 = vmatpush1.msra.mxu0 0.0
  %6711 = vmatprep.subr.mxu0 0.0
  %6712 = vmatpush1.msra.mxu0 0.0
  %6713 = vmatprep.subr.mxu0 0.0
  %6714 = vmatpush1.msra.mxu0 0.0
  %6715 = vmatprep.subr.mxu0 0.0
  %6716 = vmatpush1.msra.mxu0 0.0
  %6717 = vmatprep.subr.mxu0 0.0
  %6718 = vmatpush1.msra.mxu0 0.0
  %6719 = vmatprep.subr.mxu0 0.0
  %6720 = vmatpush1.msra.mxu0 0.0
  %6721 = vmatprep.subr.mxu0 0.0
  %6722 = vmatpush1.msra.mxu0 0.0
  %6723 = vmatprep.subr.mxu0 0.0
  %6724 = vmatpush1.msra.mxu0 0.0
  %6725 = vmatprep.subr.mxu0 0.0
  %6726 = vmatpush1.msra.mxu0 0.0
  %6727 = vmatprep.subr.mxu0 0.0
  %6728 = vmatpush1.msra.mxu0 0.0
  %6729 = vmatprep.subr.mxu0 0.0
  %6730 = vmatpush1.msra.mxu0 0.0
  %6731 = vmatprep.subr.mxu0 0.0
  %6732 = vmatpush1.msra.mxu0 0.0
  %6733 = vmatprep.subr.mxu0 0.0
  %6734 = vmatpush1.msra.mxu0 0.0
  %6735 = vmatprep.subr.mxu0 0.0
  %6736 = vmatpush1.msra.mxu0 0.0
  %6737 = vmatprep.subr.mxu0 0.0
  %6738 = vmatpush1.msra.mxu0 0.0
  %6739 = vmatprep.subr.mxu0 0.0
  %6740 = vmatpush1.msra.mxu0 0.0
  %6741 = vmatprep.subr.mxu0 0.0
  %6742 = vmatpush1.msra.mxu0 0.0
  %6743 = vmatprep.subr.mxu0 0.0
  %6744 = vmatpush1.msra.mxu0 0.0
  %6745 = vmatprep.subr.mxu0 0.0
  %6746 = vmatpush1.msra.mxu0 0.0
  %6747 = vmatprep.subr.mxu0 0.0
  %6748 = vmatpush1.msra.mxu0 0.0
  %6749 = vmatprep.subr.mxu0 0.0
  %6750 = vmatpush1.msra.mxu0 0.0
  %6751 = vmatprep.subr.mxu0 0.0
  %6752 = vmatpush1.msra.mxu0 0.0
  %6753 = vmatprep.subr.mxu0 0.0
  %6754 = vmatpush1.msra.mxu0 0.0
  %6755 = vmatprep.mubr.f32.mxu0 0.0
  %6756 = vmatmul.mubr.f32.gmra.mrb[0].mxu0 %v6689
  %v6757 = vpop.f32.mrb[0].mxu0
  %v6758 = vadd.f32 %v403, %v6757
  %v6759 = vpop.f32.mrb[0].mxu0
  %6760 = vdwg.mxu0
  %v6761 = vmul.f32 %v6758, %v6097
  %6762 = vmatprep.subr.mxu0 0.0
  %6763 = vmatpush1.msra.mxu0 %v482
  %6764 = vmatprep.subr.mxu0 0.0
  %6765 = vmatpush1.msra.mxu0 %v483
  %6766 = vmatprep.subr.mxu0 0.0
  %6767 = vmatpush1.msra.mxu0 %v484
  %6768 = vmatprep.subr.mxu0 0.0
  %6769 = vmatpush1.msra.mxu0 %v485
  %6770 = vmatprep.subr.mxu0 0.0
  %6771 = vmatpush1.msra.mxu0 %v486
  %6772 = vmatprep.subr.mxu0 0.0
  %6773 = vmatpush1.msra.mxu0 %v487
  %6774 = vmatprep.subr.mxu0 0.0
  %6775 = vmatpush1.msra.mxu0 %v488
  %6776 = vmatprep.subr.mxu0 0.0
  %6777 = vmatpush1.msra.mxu0 %v489
  %6778 = vmatprep.subr.mxu0 0.0
  %6779 = vmatpush1.msra.mxu0 %v490
  %6780 = vmatprep.subr.mxu0 0.0
  %6781 = vmatpush1.msra.mxu0 %v491
  %6782 = vmatprep.subr.mxu0 0.0
  %6783 = vmatpush1.msra.mxu0 %v492
  %6784 = vmatprep.subr.mxu0 0.0
  %6785 = vmatpush1.msra.mxu0 %v493
  %6786 = vmatprep.subr.mxu0 0.0
  %6787 = vmatpush1.msra.mxu0 %v494
  %6788 = vmatprep.subr.mxu0 0.0
  %6789 = vmatpush1.msra.mxu0 %v495
  %6790 = vmatprep.subr.mxu0 0.0
  %6791 = vmatpush1.msra.mxu0 %v496
  %6792 = vmatprep.subr.mxu0 0.0
  %6793 = vmatpush1.msra.mxu0 %v497
  %6794 = vmatprep.subr.mxu0 0.0
  %6795 = vmatpush1.msra.mxu0 0.0
  %6796 = vmatprep.subr.mxu0 0.0
  %6797 = vmatpush1.msra.mxu0 0.0
  %6798 = vmatprep.subr.mxu0 0.0
  %6799 = vmatpush1.msra.mxu0 0.0
  %6800 = vmatprep.subr.mxu0 0.0
  %6801 = vmatpush1.msra.mxu0 0.0
  %6802 = vmatprep.subr.mxu0 0.0
  %6803 = vmatpush1.msra.mxu0 0.0
  %6804 = vmatprep.subr.mxu0 0.0
  %6805 = vmatpush1.msra.mxu0 0.0
  %6806 = vmatprep.subr.mxu0 0.0
  %6807 = vmatpush1.msra.mxu0 0.0
  %6808 = vmatprep.subr.mxu0 0.0
  %6809 = vmatpush1.msra.mxu0 0.0
  %6810 = vmatprep.subr.mxu0 0.0
  %6811 = vmatpush1.msra.mxu0 0.0
  %6812 = vmatprep.subr.mxu0 0.0
  %6813 = vmatpush1.msra.mxu0 0.0
  %6814 = vmatprep.subr.mxu0 0.0
  %6815 = vmatpush1.msra.mxu0 0.0
  %6816 = vmatprep.subr.mxu0 0.0
  %6817 = vmatpush1.msra.mxu0 0.0
  %6818 = vmatprep.subr.mxu0 0.0
  %6819 = vmatpush1.msra.mxu0 0.0
  %6820 = vmatprep.subr.mxu0 0.0
  %6821 = vmatpush1.msra.mxu0 0.0
  %6822 = vmatprep.subr.mxu0 0.0
  %6823 = vmatpush1.msra.mxu0 0.0
  %6824 = vmatprep.subr.mxu0 0.0
  %6825 = vmatpush1.msra.mxu0 0.0
  %6826 = vmatprep.mubr.f32.mxu0 0.0
  %6827 = vmatmul.mubr.f32.gmra.mrb[0].mxu0 %v6761
  %v6828 = vpop.f32.mrb[0].mxu0
  %v6829 = vadd.f32 0.0, %v6828
  %v6830 = vpop.f32.mrb[0].mxu0
  %6831 = vdwg.mxu0
  %v6832 = vadd.f32 %v6095, %v6829
  %v6833 = vld [vmem:[%s13] sm:$0xff]
  %v6834 = vld [vmem:[%s13 + $0x8] sm:$0xff]
  %v6835 = vld [vmem:[%s14] sm:$0x1]
  %v6837 = vlaneseq
  %v6838 = vshrl.u32 %v6837, 7
  %v6839 = vsub.s32 0, %v6838
  %v6840 = vrot.slane %v6835, %v6839
  %v6843 = vsel %vm156, %v6832, 0
  %6845 = vmatprep.subr.mxu0 0.0
  %6846 = vmatpush1.msra.mxu0 %v6833
  %6847 = vmatprep.subr.mxu0 0.0
  %6848 = vmatpush1.msra.mxu0 %v6834
  %6849 = vmatprep.subr.mxu0 0.0
  %6850 = vmatpush1.msra.mxu0 0.0
  %6851 = vmatprep.subr.mxu0 0.0
  %6852 = vmatpush1.msra.mxu0 0.0
  %6853 = vmatprep.subr.mxu0 0.0
  %6854 = vmatpush1.msra.mxu0 0.0
  %6855 = vmatprep.subr.mxu0 0.0
  %6856 = vmatpush1.msra.mxu0 0.0
  %6857 = vmatprep.subr.mxu0 0.0
  %6858 = vmatpush1.msra.mxu0 0.0
  %6859 = vmatprep.subr.mxu0 0.0
  %6860 = vmatpush1.msra.mxu0 0.0
  %6861 = vmatprep.subr.mxu0 0.0
  %6862 = vmatpush1.msra.mxu0 0.0
  %6863 = vmatprep.subr.mxu0 0.0
  %6864 = vmatpush1.msra.mxu0 0.0
  %6865 = vmatprep.subr.mxu0 0.0
  %6866 = vmatpush1.msra.mxu0 0.0
  %6867 = vmatprep.subr.mxu0 0.0
  %6868 = vmatpush1.msra.mxu0 0.0
  %6869 = vmatprep.subr.mxu0 0.0
  %6870 = vmatpush1.msra.mxu0 0.0
  %6871 = vmatprep.subr.mxu0 0.0
  %6872 = vmatpush1.msra.mxu0 0.0
  %6873 = vmatprep.subr.mxu0 0.0
  %6874 = vmatpush1.msra.mxu0 0.0
  %6875 = vmatprep.subr.mxu0 0.0
  %6876 = vmatpush1.msra.mxu0 0.0
  %6877 = vmatprep.subr.mxu0 0.0
  %6878 = vmatpush1.msra.mxu0 0.0
  %6879 = vmatprep.subr.mxu0 0.0
  %6880 = vmatpush1.msra.mxu0 0.0
  %6881 = vmatprep.subr.mxu0 0.0
  %6882 = vmatpush1.msra.mxu0 0.0
  %6883 = vmatprep.subr.mxu0 0.0
  %6884 = vmatpush1.msra.mxu0 0.0
  %6885 = vmatprep.subr.mxu0 0.0
  %6886 = vmatpush1.msra.mxu0 0.0
  %6887 = vmatprep.subr.mxu0 0.0
  %6888 = vmatpush1.msra.mxu0 0.0
  %6889 = vmatprep.subr.mxu0 0.0
  %6890 = vmatpush1.msra.mxu0 0.0
  %6891 = vmatprep.subr.mxu0 0.0
  %6892 = vmatpush1.msra.mxu0 0.0
  %6893 = vmatprep.subr.mxu0 0.0
  %6894 = vmatpush1.msra.mxu0 0.0
  %6895 = vmatprep.subr.mxu0 0.0
  %6896 = vmatpush1.msra.mxu0 0.0
  %6897 = vmatprep.subr.mxu0 0.0
  %6898 = vmatpush1.msra.mxu0 0.0
  %6899 = vmatprep.subr.mxu0 0.0
  %6900 = vmatpush1.msra.mxu0 0.0
  %6901 = vmatprep.subr.mxu0 0.0
  %6902 = vmatpush1.msra.mxu0 0.0
  %6903 = vmatprep.subr.mxu0 0.0
  %6904 = vmatpush1.msra.mxu0 0.0
  %6905 = vmatprep.subr.mxu0 0.0
  %6906 = vmatpush1.msra.mxu0 0.0
  %6907 = vmatprep.subr.mxu0 0.0
  %6908 = vmatpush1.msra.mxu0 0.0
  %6909 = vmatprep.mubr.f32.mxu0 0.0
  %6910 = vmatmul.mubr.f32.gmra.mrb[0].mxu0 %v6843
  %v6911 = vpop.f32.mrb[0].mxu0
  %v6912 = vadd.f32 %v6840, %v6911
  %v6913 = vpop.f32.mrb[0].mxu0
  %6914 = vdwg.mxu0
  %vm6915 = vcmask 23552
  %6916 = vst.msk [vmem:[%s15] sm:$0xff] %vm6915, %v6912
  // Predicated region
  $region62: #{tpu_custom_call.1} parent=0 // pred_check
    _
  $region63: #{tpu_custom_call.1} parent=0 // pred_check_branch
    %6918 = sbr.rel (0) target = $region65
  $region64: #{tpu_custom_call.1} parent=0 // pred_region
    _
  $region65: #{tpu_custom_call.1} parent=0 // pred_fallthru
    _
  // Predicated region
  $region66: #{tpu_custom_call.1} parent=0 // pred_check
    _
  $region67: #{tpu_custom_call.1} parent=0 // pred_check_branch
    %6920 = sbr.rel (0) target = $region69
  $region68: #{tpu_custom_call.1} parent=0 // pred_region
    _
  $region69: #{tpu_custom_call.1} parent=0 // pred_fallthru
    _

</llo_original>
